<compile_context>
chip_gen: v5e
topology: v5e:2x2
jax: 0.10.0
libtpu: 0.0.40
codegen_flags: <defaults>
</compile_context>

<pallas_src>
import math

import numpy as np
import jax
import jax.numpy as jnp
from jax.experimental import pallas as pl
from jax.experimental.pallas import tpu as pltpu


# ------------------------------ Pallas kernel ------------------------------

def _decoder_kernel(x1_ref, x2_ref, x3_ref,          # (1, C, S*S) activations
                    k1t_ref, k2t_ref,                # upsample matrices
                    m2_ref, m3_ref,                  # horizontal edge masks
                    wu1_ref, su1_ref, wu2_ref, su2_ref, wu3_ref, su3_ref,
                    wu4_ref, su4_ref, wu5_ref, su5_ref,
                    wc2_ref, sc2_ref, wc3_ref, sc3_ref, w4_ref, s4_ref,
                    o_ref,                           # (1, C, S3*S3)
                    pad_ref):                        # VMEM scratch
    f32 = jnp.float32

    def up(x, kt_ref):
        # Bilinear x2, align_corners=True:  (C, S*S) @ (S*S, 4*S*S).
        return jnp.dot(x, kt_ref[...], preferred_element_type=f32)

    def cbr(x, w_ref, sb_ref, m_ref):
        # BasicConv2d: 3x3 "SAME" conv -> folded BN (eval) -> ReLU.
        # x: (Cin, H*W) with H == W;  w: (Cout, 9*Cin);  sb: (Cout, 2).
        cin, hw = x.shape
        s = math.isqrt(hw)                    # square spatial side
        length = hw + 2 * s + 2               # two zero pad rows + 1 lane/side

        # Vertically padded, flattened copy of x (no horizontal pad columns:
        # horizontally out-of-range taps are killed by the edge masks below).
        pad_ref[0:cin, 0:s + 1] = jnp.zeros((cin, s + 1), f32)
        pad_ref[0:cin, s + 1:s + 1 + hw] = x
        pad_ref[0:cin, s + 1 + hw:length] = jnp.zeros((cin, s + 1), f32)

        left_ok = m_ref[0:1, :]               # 1.0 where output col > 0
        right_ok = m_ref[1:2, :]              # 1.0 where output col < S-1

        taps = []
        for ky in range(3):
            for kx in range(3):
                start = ky * s + kx
                t = pad_ref[0:cin, start:start + hw]
                if kx == 0:
                    t = t * left_ok
                elif kx == 2:
                    t = t * right_ok
                taps.append(t)
        patches = jnp.concatenate(taps, axis=0)                 # (9*Cin, H*W)
        acc = jnp.dot(w_ref[...], patches, preferred_element_type=f32)
        return jnp.maximum(acc * sb_ref[:, 0:1] + sb_ref[:, 1:2], 0.0)

    x1 = x1_ref[0]                       # (C, S1*S1)
    x2 = x2_ref[0]                       # (C, S2*S2)
    x3 = x3_ref[0]                       # (C, S3*S3)

    x1u = up(x1, k1t_ref)                # upsample(x1)    (C, S2*S2)
    x1uu = up(x1u, k2t_ref)              # upsample^2(x1)  (C, S3*S3)
    x2u = up(x2, k2t_ref)                # upsample(x2)    (C, S3*S3)

    x2_1 = cbr(x1u, wu1_ref, su1_ref, m2_ref) * x2
    x3_1 = (cbr(x1uu, wu2_ref, su2_ref, m3_ref) *
            cbr(x2u, wu3_ref, su3_ref, m3_ref) * x3)
    x2_2 = jnp.concatenate([x2_1, cbr(x1u, wu4_ref, su4_ref, m2_ref)], axis=0)
    x2_2 = cbr(x2_2, wc2_ref, sc2_ref, m2_ref)
    x3_2 = jnp.concatenate(
        [x3_1, cbr(up(x2_2, k2t_ref), wu5_ref, su5_ref, m3_ref)], axis=0)
    x3_2 = cbr(x3_2, wc3_ref, sc3_ref, m3_ref)
    o_ref[0] = cbr(x3_2, w4_ref, s4_ref, m3_ref)        # (C, S3*S3)


# ------------------------------- helpers -----------------------------------

def _interp_matrix(in_size, out_size):
    """PyTorch bilinear align_corners=True 1-D interpolation matrix."""
    if in_size == 1:
        return np.ones((out_size, 1), np.float32)
    src = np.arange(out_size, dtype=np.float64) * (in_size - 1) / (out_size - 1)
    lo = np.clip(np.floor(src).astype(np.int64), 0, in_size - 2)
    frac = src - lo
    a = np.zeros((out_size, in_size), np.float64)
    a[np.arange(out_size), lo] = 1.0 - frac
    a[np.arange(out_size), lo + 1] = frac
    return a.astype(np.float32)


def _upsample_matrix_t(size):
    """(S*S, 4*S*S) matrix M such that  y_flat = x_flat @ M  is bilinear x2."""
    a = _interp_matrix(size, 2 * size)
    return np.kron(a, a).T.astype(np.float32)


def _edge_masks(size):
    """(2, S*S) {0,1} masks: row0 -> column > 0, row1 -> column < S-1."""
    col = np.tile(np.arange(size), size)
    return np.stack([col != 0, col != size - 1]).astype(np.float32)


def _fold_conv(w_hwio, scale, bias):
    """HWIO conv weight + folded-BN affine -> kernel layout."""
    cout = w_hwio.shape[-1]
    w2 = jnp.transpose(w_hwio, (3, 0, 1, 2)).reshape(cout, -1)   # (Cout, 9*Cin)
    sb = jnp.stack([scale, bias], axis=1)                        # (Cout, 2)
    return w2, sb


_CONV_ORDER = ("conv_upsample1", "conv_upsample2", "conv_upsample3",
               "conv_upsample4", "conv_upsample5", "conv_concat2",
               "conv_concat3", "conv4")


# ------------------------------- wrapper ------------------------------------

@jax.jit
def decoder_forward(params, x1, x2, x3):
    """Decoder.forward; x1/x2/x3 are NCHW with spatial S, 2S, 4S."""
    n, c, s1, s1b = x1.shape
    assert s1 == s1b, "square inputs expected"
    s2, s3 = 2 * s1, 4 * s1
    assert x2.shape == (n, c, s2, s2) and x3.shape == (n, c, s3, s3)

    k1t = jnp.asarray(_upsample_matrix_t(s1))       # (s1*s1, s2*s2)
    k2t = jnp.asarray(_upsample_matrix_t(s2))       # (s2*s2, s3*s3)
    m2 = jnp.asarray(_edge_masks(s2))               # (2, s2*s2)
    m3 = jnp.asarray(_edge_masks(s3))               # (2, s3*s3)

    conv_args = []
    for name in _CONV_ORDER:
        w_hwio, scale, bias = params[name]
        conv_args.extend(_fold_conv(w_hwio, scale, bias))

    consts = [k1t, k2t, m2, m3] + conv_args

    def _const_spec(arr):
        nd = arr.ndim
        return pl.BlockSpec(arr.shape, lambda i, _nd=nd: (0,) * _nd)

    in_specs = ([pl.BlockSpec((1, c, s1 * s1), lambda i: (i, 0, 0)),
                 pl.BlockSpec((1, c, s2 * s2), lambda i: (i, 0, 0)),
                 pl.BlockSpec((1, c, s3 * s3), lambda i: (i, 0, 0))]
                + [_const_spec(a) for a in consts])

    out = pl.pallas_call(
        _decoder_kernel,
        out_shape=jax.ShapeDtypeStruct((n, c, s3 * s3), jnp.float32),
        grid=(n,),
        in_specs=in_specs,
        out_specs=pl.BlockSpec((1, c, s3 * s3), lambda i: (i, 0, 0)),
        scratch_shapes=[pltpu.VMEM((3 * c, s3 * s3 + 2 * s3 + 2), jnp.float32)],
        compiler_params=pltpu.CompilerParams(
            dimension_semantics=("parallel",),
            vmem_limit_bytes=48 * 1024 * 1024),
    )(x1.reshape(n, c, s1 * s1), x2.reshape(n, c, s2 * s2),
      x3.reshape(n, c, s3 * s3), *consts)

    return out.reshape(n, c, s3, s3)


# -------------------------- plain-JAX reference -----------------------------

def _conv_ref(x, w_hwio, scale, bias):
    y = jax.lax.conv_general_dilated(
        x, w_hwio, window_strides=(1, 1), padding="SAME",
        dimension_numbers=("NCHW", "HWIO", "NCHW"))
    y = y * scale[None, :, None, None] + bias[None, :, None, None]
    return jnp.maximum(y, 0.0)


def _up_ref(x, a):
    return jnp.einsum("uh,nchw,vw->ncuv", a, x, a)


def _decoder_ref(params, x1, x2, x3):
    a1 = jnp.asarray(_interp_matrix(x1.shape[2], 2 * x1.shape[2]))
    a2 = jnp.asarray(_interp_matrix(2 * x1.shape[2], 4 * x1.shape[2]))

    def cbr(name, x):
        w, s, b = params[name]
        return _conv_ref(x, w, s, b)

    up1 = lambda t: _up_ref(t, a1)
    up2 = lambda t: _up_ref(t, a2)

    x1_1 = x1
    x2_1 = cbr("conv_upsample1", up1(x1)) * x2
    x3_1 = (cbr("conv_upsample2", up2(up1(x1))) *
            cbr("conv_upsample3", up2(x2)) * x3)
    x2_2 = jnp.concatenate([x2_1, cbr("conv_upsample4", up1(x1_1))], axis=1)
    x2_2 = cbr("conv_concat2", x2_2)
    x3_2 = jnp.concatenate([x3_1, cbr("conv_upsample5", up2(x2_2))], axis=1)
    x3_2 = cbr("conv_concat3", x3_2)
    return cbr("conv4", x3_2)


# -------------------------- parameter construction --------------------------

def make_basic_conv_params(key, cin, cout, eps=1e-5):
    """Conv2d(3x3, bias) + BatchNorm2d (eval) folded to (HWIO w, scale, bias)."""
    kw, kb, kg, kbe, km, kv = jax.random.split(key, 6)
    w = jax.random.normal(kw, (3, 3, cin, cout), jnp.float32) / np.sqrt(9 * cin)
    b_conv = 0.1 * jax.random.normal(kb, (cout,), jnp.float32)
    gamma = 1.0 + 0.1 * jax.random.normal(kg, (cout,), jnp.float32)
    beta = 0.1 * jax.random.normal(kbe, (cout,), jnp.float32)
    r_mean = 0.1 * jax.random.normal(km, (cout,), jnp.float32)
    r_var = 1.0 + 0.1 * jnp.abs(jax.random.normal(kv, (cout,), jnp.float32))
    scale = gamma / jnp.sqrt(r_var + eps)
    bias = (b_conv - r_mean) * scale + beta
    return (w, scale, bias)


# TODO(synk): BatchNorm training-mode (batch statistics + running-stat update)
# is not implemented; eval-mode folded affine is used instead.

if __name__ == "__main__":
    C, N = 8, 2
    key = jax.random.PRNGKey(0)
    k_params, kx1, kx2, kx3 = jax.random.split(key, 4)

    layer_dims = [("conv_upsample1", C, C), ("conv_upsample2", C, C),
                  ("conv_upsample3", C, C), ("conv_upsample4", C, C),
                  ("conv_upsample5", 2 * C, 2 * C),
                  ("conv_concat2", 2 * C, 2 * C),
                  ("conv_concat3", 3 * C, 3 * C), ("conv4", 3 * C, C)]
    layer_keys = jax.random.split(k_params, len(layer_dims))
    params = {name: make_basic_conv_params(k, ci, co)
              for (name, ci, co), k in zip(layer_dims, layer_keys)}

    # PyTorch-convention NCHW inputs (x1 smallest; x2 = 2x, x3 = 4x spatial).
    x1 = jax.random.normal(kx1, (N, C, 8, 8), jnp.float32)
    x2 = jax.random.normal(kx2, (N, C, 16, 16), jnp.float32)
    x3 = jax.random.normal(kx3, (N, C, 32, 32), jnp.float32)

    out = jax.block_until_ready(decoder_forward(params, x1, x2, x3))
    assert out.shape == (N, C, 32, 32)

    ref = jax.block_until_ready(_decoder_ref(params, x1, x2, x3))
    np.testing.assert_allclose(np.asarray(out), np.asarray(ref),
                               rtol=1e-2, atol=1e-2)
    print("KERNEL_OK")
</pallas_src>

<mosaic_0001>
module attributes {stable_mosaic.version = 11 : i64} {
  func.func @_decoder_kernel(%arg0: i32, %arg1: memref<1x8x64xf32, #tpu.memory_space<vmem>>, %arg2: memref<1x8x256xf32, #tpu.memory_space<vmem>>, %arg3: memref<1x8x1024xf32, #tpu.memory_space<vmem>>, %arg4: memref<64x256xf32, #tpu.memory_space<vmem>>, %arg5: memref<256x1024xf32, #tpu.memory_space<vmem>>, %arg6: memref<2x256xf32, #tpu.memory_space<vmem>>, %arg7: memref<2x1024xf32, #tpu.memory_space<vmem>>, %arg8: memref<8x72xf32, #tpu.memory_space<vmem>>, %arg9: memref<8x2xf32, #tpu.memory_space<vmem>>, %arg10: memref<8x72xf32, #tpu.memory_space<vmem>>, %arg11: memref<8x2xf32, #tpu.memory_space<vmem>>, %arg12: memref<8x72xf32, #tpu.memory_space<vmem>>, %arg13: memref<8x2xf32, #tpu.memory_space<vmem>>, %arg14: memref<8x72xf32, #tpu.memory_space<vmem>>, %arg15: memref<8x2xf32, #tpu.memory_space<vmem>>, %arg16: memref<16x144xf32, #tpu.memory_space<vmem>>, %arg17: memref<16x2xf32, #tpu.memory_space<vmem>>, %arg18: memref<16x144xf32, #tpu.memory_space<vmem>>, %arg19: memref<16x2xf32, #tpu.memory_space<vmem>>, %arg20: memref<24x216xf32, #tpu.memory_space<vmem>>, %arg21: memref<24x2xf32, #tpu.memory_space<vmem>>, %arg22: memref<8x216xf32, #tpu.memory_space<vmem>>, %arg23: memref<8x2xf32, #tpu.memory_space<vmem>>, %arg24: memref<1x8x1024xf32, #tpu.memory_space<vmem>>, %arg25: memref<24x1090xf32, #tpu.memory_space<vmem>>) attributes {dimension_semantics = [#tpu.dimension_semantics<parallel>], iteration_bounds = array<i64: 2>, scalar_prefetch = 0 : i64, scratch_operands = 1 : i64, tpu.core_type = #tpu.core_type<tc>, window_params = [{transform_indices = @transform_0, window_bounds = array<i64: 1, 8, 64>}, {transform_indices = @transform_1, window_bounds = array<i64: 1, 8, 256>}, {transform_indices = @transform_2, window_bounds = array<i64: 1, 8, 1024>}, {pipeline_mode = #tpu.pipeline_mode<synchronous>, transform_indices = @transform_3, window_bounds = array<i64: 64, 256>}, {pipeline_mode = #tpu.pipeline_mode<synchronous>, transform_indices = @transform_4, window_bounds = array<i64: 256, 1024>}, {pipeline_mode = #tpu.pipeline_mode<synchronous>, transform_indices = @transform_5, window_bounds = array<i64: 2, 256>}, {pipeline_mode = #tpu.pipeline_mode<synchronous>, transform_indices = @transform_6, window_bounds = array<i64: 2, 1024>}, {pipeline_mode = #tpu.pipeline_mode<synchronous>, transform_indices = @transform_7, window_bounds = array<i64: 8, 72>}, {pipeline_mode = #tpu.pipeline_mode<synchronous>, transform_indices = @transform_8, window_bounds = array<i64: 8, 2>}, {pipeline_mode = #tpu.pipeline_mode<synchronous>, transform_indices = @transform_9, window_bounds = array<i64: 8, 72>}, {pipeline_mode = #tpu.pipeline_mode<synchronous>, transform_indices = @transform_10, window_bounds = array<i64: 8, 2>}, {pipeline_mode = #tpu.pipeline_mode<synchronous>, transform_indices = @transform_11, window_bounds = array<i64: 8, 72>}, {pipeline_mode = #tpu.pipeline_mode<synchronous>, transform_indices = @transform_12, window_bounds = array<i64: 8, 2>}, {pipeline_mode = #tpu.pipeline_mode<synchronous>, transform_indices = @transform_13, window_bounds = array<i64: 8, 72>}, {pipeline_mode = #tpu.pipeline_mode<synchronous>, transform_indices = @transform_14, window_bounds = array<i64: 8, 2>}, {pipeline_mode = #tpu.pipeline_mode<synchronous>, transform_indices = @transform_15, window_bounds = array<i64: 16, 144>}, {pipeline_mode = #tpu.pipeline_mode<synchronous>, transform_indices = @transform_16, window_bounds = array<i64: 16, 2>}, {pipeline_mode = #tpu.pipeline_mode<synchronous>, transform_indices = @transform_17, window_bounds = array<i64: 16, 144>}, {pipeline_mode = #tpu.pipeline_mode<synchronous>, transform_indices = @transform_18, window_bounds = array<i64: 16, 2>}, {pipeline_mode = #tpu.pipeline_mode<synchronous>, transform_indices = @transform_19, window_bounds = array<i64: 24, 216>}, {pipeline_mode = #tpu.pipeline_mode<synchronous>, transform_indices = @transform_20, window_bounds = array<i64: 24, 2>}, {pipeline_mode = #tpu.pipeline_mode<synchronous>, transform_indices = @transform_21, window_bounds = array<i64: 8, 216>}, {pipeline_mode = #tpu.pipeline_mode<synchronous>, transform_indices = @transform_22, window_bounds = array<i64: 8, 2>}, {transform_indices = @transform_23, window_bounds = array<i64: 1, 8, 1024>}]} {
    %c0 = arith.constant 0 : index
    %c0_0 = arith.constant 0 : index
    %c0_1 = arith.constant 0 : index
    %0 = vector.load %arg1[%c0, %c0_0, %c0_1] : memref<1x8x64xf32, #tpu.memory_space<vmem>>, vector<1x8x64xf32>
    %1 = vector.shape_cast %0 : vector<1x8x64xf32> to vector<8x64xf32>
    %c0_2 = arith.constant 0 : index
    %c0_3 = arith.constant 0 : index
    %c0_4 = arith.constant 0 : index
    %2 = vector.load %arg2[%c0_2, %c0_3, %c0_4] : memref<1x8x256xf32, #tpu.memory_space<vmem>>, vector<1x8x256xf32>
    %3 = vector.shape_cast %2 : vector<1x8x256xf32> to vector<8x256xf32>
    %c0_5 = arith.constant 0 : index
    %c0_6 = arith.constant 0 : index
    %c0_7 = arith.constant 0 : index
    %4 = vector.load %arg3[%c0_5, %c0_6, %c0_7] : memref<1x8x1024xf32, #tpu.memory_space<vmem>>, vector<1x8x1024xf32>
    %5 = vector.shape_cast %4 : vector<1x8x1024xf32> to vector<8x1024xf32>
    %c0_8 = arith.constant 0 : index
    %c0_9 = arith.constant 0 : index
    %6 = vector.load %arg4[%c0_8, %c0_9] : memref<64x256xf32, #tpu.memory_space<vmem>>, vector<64x256xf32>
    %cst = arith.constant dense<0.000000e+00> : vector<8x256xf32>
    %7 = tpu.matmul %1, %6, %cst {dimension_numbers = #tpu.dot_dimension_numbers<[1], [0], [0], [1], [0, 0, 1, 1], [], []>} : vector<8x64xf32>, vector<64x256xf32>, vector<8x256xf32> -> vector<8x256xf32>
    %c0_10 = arith.constant 0 : index
    %c0_11 = arith.constant 0 : index
    %8 = vector.load %arg5[%c0_10, %c0_11] : memref<256x1024xf32, #tpu.memory_space<vmem>>, vector<256x1024xf32>
    %cst_12 = arith.constant dense<0.000000e+00> : vector<8x1024xf32>
    %9 = tpu.matmul %7, %8, %cst_12 {dimension_numbers = #tpu.dot_dimension_numbers<[1], [0], [0], [1], [0, 0, 1, 1], [], []>} : vector<8x256xf32>, vector<256x1024xf32>, vector<8x1024xf32> -> vector<8x1024xf32>
    %c0_13 = arith.constant 0 : index
    %c0_14 = arith.constant 0 : index
    %10 = vector.load %arg5[%c0_13, %c0_14] : memref<256x1024xf32, #tpu.memory_space<vmem>>, vector<256x1024xf32>
    %cst_15 = arith.constant dense<0.000000e+00> : vector<8x1024xf32>
    %11 = tpu.matmul %3, %10, %cst_15 {dimension_numbers = #tpu.dot_dimension_numbers<[1], [0], [0], [1], [0, 0, 1, 1], [], []>} : vector<8x256xf32>, vector<256x1024xf32>, vector<8x1024xf32> -> vector<8x1024xf32>
    %cst_16 = arith.constant 0.000000e+00 : f32
    %12 = vector.broadcast %cst_16 : f32 to vector<8x17xf32>
    %c0_17 = arith.constant 0 : index
    %c0_18 = arith.constant 0 : index
    %13 = vector.load %arg25[%c0_17, %c0_18] : memref<24x1090xf32, #tpu.memory_space<vmem>>, vector<8x17xf32>
    tpu.vector_store %arg25[%c0_17, %c0_18], %12 {strides = array<i32>} : memref<24x1090xf32, #tpu.memory_space<vmem>>, vector<8x17xf32>,
    %c0_19 = arith.constant 0 : index
    %c17 = arith.constant 17 : index
    %14 = vector.load %arg25[%c0_19, %c17] : memref<24x1090xf32, #tpu.memory_space<vmem>>, vector<8x256xf32>
    tpu.vector_store %arg25[%c0_19, %c17], %7 {strides = array<i32>} : memref<24x1090xf32, #tpu.memory_space<vmem>>, vector<8x256xf32>,
    %cst_20 = arith.constant 0.000000e+00 : f32
    %15 = vector.broadcast %cst_20 : f32 to vector<8x17xf32>
    %c0_21 = arith.constant 0 : index
    %c273 = arith.constant 273 : index
    %16 = vector.load %arg25[%c0_21, %c273] : memref<24x1090xf32, #tpu.memory_space<vmem>>, vector<8x17xf32>
    tpu.vector_store %arg25[%c0_21, %c273], %15 {strides = array<i32>} : memref<24x1090xf32, #tpu.memory_space<vmem>>, vector<8x17xf32>,
    %c0_22 = arith.constant 0 : index
    %c0_23 = arith.constant 0 : index
    %17 = vector.load %arg6[%c0_22, %c0_23] : memref<2x256xf32, #tpu.memory_space<vmem>>, vector<1x256xf32>
    %c1 = arith.constant 1 : index
    %c0_24 = arith.constant 0 : index
    %18 = vector.load %arg6[%c1, %c0_24] : memref<2x256xf32, #tpu.memory_space<vmem>>, vector<1x256xf32>
    %c0_25 = arith.constant 0 : index
    %c0_26 = arith.constant 0 : index
    %19 = vector.load %arg25[%c0_25, %c0_26] : memref<24x1090xf32, #tpu.memory_space<vmem>>, vector<8x256xf32>
    %20 = vector.broadcast %17 : vector<1x256xf32> to vector<8x256xf32>
    %21 = arith.mulf %19, %20 : vector<8x256xf32>
    %c0_27 = arith.constant 0 : index
    %c1_28 = arith.constant 1 : index
    %22 = vector.load %arg25[%c0_27, %c1_28] : memref<24x1090xf32, #tpu.memory_space<vmem>>, vector<8x256xf32>
    %c0_29 = arith.constant 0 : index
    %c2 = arith.constant 2 : index
    %23 = vector.load %arg25[%c0_29, %c2] : memref<24x1090xf32, #tpu.memory_space<vmem>>, vector<8x256xf32>
    %24 = vector.broadcast %18 : vector<1x256xf32> to vector<8x256xf32>
    %25 = arith.mulf %23, %24 : vector<8x256xf32>
    %c0_30 = arith.constant 0 : index
    %c16 = arith.constant 16 : index
    %26 = vector.load %arg25[%c0_30, %c16] : memref<24x1090xf32, #tpu.memory_space<vmem>>, vector<8x256xf32>
    %27 = vector.broadcast %17 : vector<1x256xf32> to vector<8x256xf32>
    %28 = arith.mulf %26, %27 : vector<8x256xf32>
    %c0_31 = arith.constant 0 : index
    %c17_32 = arith.constant 17 : index
    %29 = vector.load %arg25[%c0_31, %c17_32] : memref<24x1090xf32, #tpu.memory_space<vmem>>, vector<8x256xf32>
    %c0_33 = arith.constant 0 : index
    %c18 = arith.constant 18 : index
    %30 = vector.load %arg25[%c0_33, %c18] : memref<24x1090xf32, #tpu.memory_space<vmem>>, vector<8x256xf32>
    %31 = vector.broadcast %18 : vector<1x256xf32> to vector<8x256xf32>
    %32 = arith.mulf %30, %31 : vector<8x256xf32>
    %c0_34 = arith.constant 0 : index
    %c32 = arith.constant 32 : index
    %33 = vector.load %arg25[%c0_34, %c32] : memref<24x1090xf32, #tpu.memory_space<vmem>>, vector<8x256xf32>
    %34 = vector.broadcast %17 : vector<1x256xf32> to vector<8x256xf32>
    %35 = arith.mulf %33, %34 : vector<8x256xf32>
    %c0_35 = arith.constant 0 : index
    %c33 = arith.constant 33 : index
    %36 = vector.load %arg25[%c0_35, %c33] : memref<24x1090xf32, #tpu.memory_space<vmem>>, vector<8x256xf32>
    %c0_36 = arith.constant 0 : index
    %c34 = arith.constant 34 : index
    %37 = vector.load %arg25[%c0_36, %c34] : memref<24x1090xf32, #tpu.memory_space<vmem>>, vector<8x256xf32>
    %38 = vector.broadcast %18 : vector<1x256xf32> to vector<8x256xf32>
    %39 = arith.mulf %37, %38 : vector<8x256xf32>
    %40 = tpu.concatenate %21, %22, %25, %28, %29, %32, %35, %36, %39 in 0 : vector<8x256xf32>, vector<8x256xf32>, vector<8x256xf32>, vector<8x256xf32>, vector<8x256xf32>, vector<8x256xf32>, vector<8x256xf32>, vector<8x256xf32>, vector<8x256xf32> -> vector<72x256xf32>
    %c0_37 = arith.constant 0 : index
    %c0_38 = arith.constant 0 : index
    %41 = vector.load %arg8[%c0_37, %c0_38] : memref<8x72xf32, #tpu.memory_space<vmem>>, vector<8x72xf32>
    %cst_39 = arith.constant dense<0.000000e+00> : vector<8x256xf32>
    %42 = tpu.matmul %41, %40, %cst_39 {dimension_numbers = #tpu.dot_dimension_numbers<[1], [0], [0], [1], [0, 0, 1, 1], [], []>} : vector<8x72xf32>, vector<72x256xf32>, vector<8x256xf32> -> vector<8x256xf32>
    %c0_40 = arith.constant 0 : index
    %c0_41 = arith.constant 0 : index
    %43 = vector.load %arg9[%c0_40, %c0_41] : memref<8x2xf32, #tpu.memory_space<vmem>>, vector<8x1xf32>
    %44 = vector.broadcast %43 : vector<8x1xf32> to vector<8x256xf32>
    %45 = arith.mulf %42, %44 : vector<8x256xf32>
    %c0_42 = arith.constant 0 : index
    %c1_43 = arith.constant 1 : index
    %46 = vector.load %arg9[%c0_42, %c1_43] : memref<8x2xf32, #tpu.memory_space<vmem>>, vector<8x1xf32>
    %47 = vector.broadcast %46 : vector<8x1xf32> to vector<8x256xf32>
    %48 = arith.addf %45, %47 : vector<8x256xf32>
    %cst_44 = arith.constant 0.000000e+00 : f32
    %49 = vector.broadcast %cst_44 : f32 to vector<8x256xf32>
    %50 = arith.maximumf %48, %49 : vector<8x256xf32>
    %51 = arith.mulf %50, %3 : vector<8x256xf32>
    %cst_45 = arith.constant 0.000000e+00 : f32
    %52 = vector.broadcast %cst_45 : f32 to vector<8x33xf32>
    %c0_46 = arith.constant 0 : index
    %c0_47 = arith.constant 0 : index
    %53 = vector.load %arg25[%c0_46, %c0_47] : memref<24x1090xf32, #tpu.memory_space<vmem>>, vector<8x33xf32>
    tpu.vector_store %arg25[%c0_46, %c0_47], %52 {strides = array<i32>} : memref<24x1090xf32, #tpu.memory_space<vmem>>, vector<8x33xf32>,
    %c0_48 = arith.constant 0 : index
    %c33_49 = arith.constant 33 : index
    %54 = vector.load %arg25[%c0_48, %c33_49] : memref<24x1090xf32, #tpu.memory_space<vmem>>, vector<8x1024xf32>
    tpu.vector_store %arg25[%c0_48, %c33_49], %9 {strides = array<i32>} : memref<24x1090xf32, #tpu.memory_space<vmem>>, vector<8x1024xf32>,
    %cst_50 = arith.constant 0.000000e+00 : f32
    %55 = vector.broadcast %cst_50 : f32 to vector<8x33xf32>
    %c0_51 = arith.constant 0 : index
    %c1057 = arith.constant 1057 : index
    %56 = vector.load %arg25[%c0_51, %c1057] : memref<24x1090xf32, #tpu.memory_space<vmem>>, vector<8x33xf32>
    tpu.vector_store %arg25[%c0_51, %c1057], %55 {strides = array<i32>} : memref<24x1090xf32, #tpu.memory_space<vmem>>, vector<8x33xf32>,
    %c0_52 = arith.constant 0 : index
    %c0_53 = arith.constant 0 : index
    %57 = vector.load %arg7[%c0_52, %c0_53] : memref<2x1024xf32, #tpu.memory_space<vmem>>, vector<1x1024xf32>
    %c1_54 = arith.constant 1 : index
    %c0_55 = arith.constant 0 : index
    %58 = vector.load %arg7[%c1_54, %c0_55] : memref<2x1024xf32, #tpu.memory_space<vmem>>, vector<1x1024xf32>
    %c0_56 = arith.constant 0 : index
    %c0_57 = arith.constant 0 : index
    %59 = vector.load %arg25[%c0_56, %c0_57] : memref<24x1090xf32, #tpu.memory_space<vmem>>, vector<8x1024xf32>
    %60 = vector.broadcast %57 : vector<1x1024xf32> to vector<8x1024xf32>
    %61 = arith.mulf %59, %60 : vector<8x1024xf32>
    %c0_58 = arith.constant 0 : index
    %c1_59 = arith.constant 1 : index
    %62 = vector.load %arg25[%c0_58, %c1_59] : memref<24x1090xf32, #tpu.memory_space<vmem>>, vector<8x1024xf32>
    %c0_60 = arith.constant 0 : index
    %c2_61 = arith.constant 2 : index
    %63 = vector.load %arg25[%c0_60, %c2_61] : memref<24x1090xf32, #tpu.memory_space<vmem>>, vector<8x1024xf32>
    %64 = vector.broadcast %58 : vector<1x1024xf32> to vector<8x1024xf32>
    %65 = arith.mulf %63, %64 : vector<8x1024xf32>
    %c0_62 = arith.constant 0 : index
    %c32_63 = arith.constant 32 : index
    %66 = vector.load %arg25[%c0_62, %c32_63] : memref<24x1090xf32, #tpu.memory_space<vmem>>, vector<8x1024xf32>
    %67 = vector.broadcast %57 : vector<1x1024xf32> to vector<8x1024xf32>
    %68 = arith.mulf %66, %67 : vector<8x1024xf32>
    %c0_64 = arith.constant 0 : index
    %c33_65 = arith.constant 33 : index
    %69 = vector.load %arg25[%c0_64, %c33_65] : memref<24x1090xf32, #tpu.memory_space<vmem>>, vector<8x1024xf32>
    %c0_66 = arith.constant 0 : index
    %c34_67 = arith.constant 34 : index
    %70 = vector.load %arg25[%c0_66, %c34_67] : memref<24x1090xf32, #tpu.memory_space<vmem>>, vector<8x1024xf32>
    %71 = vector.broadcast %58 : vector<1x1024xf32> to vector<8x1024xf32>
    %72 = arith.mulf %70, %71 : vector<8x1024xf32>
    %c0_68 = arith.constant 0 : index
    %c64 = arith.constant 64 : index
    %73 = vector.load %arg25[%c0_68, %c64] : memref<24x1090xf32, #tpu.memory_space<vmem>>, vector<8x1024xf32>
    %74 = vector.broadcast %57 : vector<1x1024xf32> to vector<8x1024xf32>
    %75 = arith.mulf %73, %74 : vector<8x1024xf32>
    %c0_69 = arith.constant 0 : index
    %c65 = arith.constant 65 : index
    %76 = vector.load %arg25[%c0_69, %c65] : memref<24x1090xf32, #tpu.memory_space<vmem>>, vector<8x1024xf32>
    %c0_70 = arith.constant 0 : index
    %c66 = arith.constant 66 : index
    %77 = vector.load %arg25[%c0_70, %c66] : memref<24x1090xf32, #tpu.memory_space<vmem>>, vector<8x1024xf32>
    %78 = vector.broadcast %58 : vector<1x1024xf32> to vector<8x1024xf32>
    %79 = arith.mulf %77, %78 : vector<8x1024xf32>
    %80 = tpu.concatenate %61, %62, %65, %68, %69, %72, %75, %76, %79 in 0 : vector<8x1024xf32>, vector<8x1024xf32>, vector<8x1024xf32>, vector<8x1024xf32>, vector<8x1024xf32>, vector<8x1024xf32>, vector<8x1024xf32>, vector<8x1024xf32>, vector<8x1024xf32> -> vector<72x1024xf32>
    %c0_71 = arith.constant 0 : index
    %c0_72 = arith.constant 0 : index
    %81 = vector.load %arg10[%c0_71, %c0_72] : memref<8x72xf32, #tpu.memory_space<vmem>>, vector<8x72xf32>
    %cst_73 = arith.constant dense<0.000000e+00> : vector<8x1024xf32>
    %82 = tpu.matmul %81, %80, %cst_73 {dimension_numbers = #tpu.dot_dimension_numbers<[1], [0], [0], [1], [0, 0, 1, 1], [], []>} : vector<8x72xf32>, vector<72x1024xf32>, vector<8x1024xf32> -> vector<8x1024xf32>
    %c0_74 = arith.constant 0 : index
    %c0_75 = arith.constant 0 : index
    %83 = vector.load %arg11[%c0_74, %c0_75] : memref<8x2xf32, #tpu.memory_space<vmem>>, vector<8x1xf32>
    %84 = vector.broadcast %83 : vector<8x1xf32> to vector<8x1024xf32>
    %85 = arith.mulf %82, %84 : vector<8x1024xf32>
    %c0_76 = arith.constant 0 : index
    %c1_77 = arith.constant 1 : index
    %86 = vector.load %arg11[%c0_76, %c1_77] : memref<8x2xf32, #tpu.memory_space<vmem>>, vector<8x1xf32>
    %87 = vector.broadcast %86 : vector<8x1xf32> to vector<8x1024xf32>
    %88 = arith.addf %85, %87 : vector<8x1024xf32>
    %cst_78 = arith.constant 0.000000e+00 : f32
    %89 = vector.broadcast %cst_78 : f32 to vector<8x1024xf32>
    %90 = arith.maximumf %88, %89 : vector<8x1024xf32>
    %cst_79 = arith.constant 0.000000e+00 : f32
    %91 = vector.broadcast %cst_79 : f32 to vector<8x33xf32>
    %c0_80 = arith.constant 0 : index
    %c0_81 = arith.constant 0 : index
    %92 = vector.load %arg25[%c0_80, %c0_81] : memref<24x1090xf32, #tpu.memory_space<vmem>>, vector<8x33xf32>
    tpu.vector_store %arg25[%c0_80, %c0_81], %91 {strides = array<i32>} : memref<24x1090xf32, #tpu.memory_space<vmem>>, vector<8x33xf32>,
    %c0_82 = arith.constant 0 : index
    %c33_83 = arith.constant 33 : index
    %93 = vector.load %arg25[%c0_82, %c33_83] : memref<24x1090xf32, #tpu.memory_space<vmem>>, vector<8x1024xf32>
    tpu.vector_store %arg25[%c0_82, %c33_83], %11 {strides = array<i32>} : memref<24x1090xf32, #tpu.memory_space<vmem>>, vector<8x1024xf32>,
    %cst_84 = arith.constant 0.000000e+00 : f32
    %94 = vector.broadcast %cst_84 : f32 to vector<8x33xf32>
    %c0_85 = arith.constant 0 : index
    %c1057_86 = arith.constant 1057 : index
    %95 = vector.load %arg25[%c0_85, %c1057_86] : memref<24x1090xf32, #tpu.memory_space<vmem>>, vector<8x33xf32>
    tpu.vector_store %arg25[%c0_85, %c1057_86], %94 {strides = array<i32>} : memref<24x1090xf32, #tpu.memory_space<vmem>>, vector<8x33xf32>,
    %c0_87 = arith.constant 0 : index
    %c0_88 = arith.constant 0 : index
    %96 = vector.load %arg7[%c0_87, %c0_88] : memref<2x1024xf32, #tpu.memory_space<vmem>>, vector<1x1024xf32>
    %c1_89 = arith.constant 1 : index
    %c0_90 = arith.constant 0 : index
    %97 = vector.load %arg7[%c1_89, %c0_90] : memref<2x1024xf32, #tpu.memory_space<vmem>>, vector<1x1024xf32>
    %c0_91 = arith.constant 0 : index
    %c0_92 = arith.constant 0 : index
    %98 = vector.load %arg25[%c0_91, %c0_92] : memref<24x1090xf32, #tpu.memory_space<vmem>>, vector<8x1024xf32>
    %99 = vector.broadcast %96 : vector<1x1024xf32> to vector<8x1024xf32>
    %100 = arith.mulf %98, %99 : vector<8x1024xf32>
    %c0_93 = arith.constant 0 : index
    %c1_94 = arith.constant 1 : index
    %101 = vector.load %arg25[%c0_93, %c1_94] : memref<24x1090xf32, #tpu.memory_space<vmem>>, vector<8x1024xf32>
    %c0_95 = arith.constant 0 : index
    %c2_96 = arith.constant 2 : index
    %102 = vector.load %arg25[%c0_95, %c2_96] : memref<24x1090xf32, #tpu.memory_space<vmem>>, vector<8x1024xf32>
    %103 = vector.broadcast %97 : vector<1x1024xf32> to vector<8x1024xf32>
    %104 = arith.mulf %102, %103 : vector<8x1024xf32>
    %c0_97 = arith.constant 0 : index
    %c32_98 = arith.constant 32 : index
    %105 = vector.load %arg25[%c0_97, %c32_98] : memref<24x1090xf32, #tpu.memory_space<vmem>>, vector<8x1024xf32>
    %106 = vector.broadcast %96 : vector<1x1024xf32> to vector<8x1024xf32>
    %107 = arith.mulf %105, %106 : vector<8x1024xf32>
    %c0_99 = arith.constant 0 : index
    %c33_100 = arith.constant 33 : index
    %108 = vector.load %arg25[%c0_99, %c33_100] : memref<24x1090xf32, #tpu.memory_space<vmem>>, vector<8x1024xf32>
    %c0_101 = arith.constant 0 : index
    %c34_102 = arith.constant 34 : index
    %109 = vector.load %arg25[%c0_101, %c34_102] : memref<24x1090xf32, #tpu.memory_space<vmem>>, vector<8x1024xf32>
    %110 = vector.broadcast %97 : vector<1x1024xf32> to vector<8x1024xf32>
    %111 = arith.mulf %109, %110 : vector<8x1024xf32>
    %c0_103 = arith.constant 0 : index
    %c64_104 = arith.constant 64 : index
    %112 = vector.load %arg25[%c0_103, %c64_104] : memref<24x1090xf32, #tpu.memory_space<vmem>>, vector<8x1024xf32>
    %113 = vector.broadcast %96 : vector<1x1024xf32> to vector<8x1024xf32>
    %114 = arith.mulf %112, %113 : vector<8x1024xf32>
    %c0_105 = arith.constant 0 : index
    %c65_106 = arith.constant 65 : index
    %115 = vector.load %arg25[%c0_105, %c65_106] : memref<24x1090xf32, #tpu.memory_space<vmem>>, vector<8x1024xf32>
    %c0_107 = arith.constant 0 : index
    %c66_108 = arith.constant 66 : index
    %116 = vector.load %arg25[%c0_107, %c66_108] : memref<24x1090xf32, #tpu.memory_space<vmem>>, vector<8x1024xf32>
    %117 = vector.broadcast %97 : vector<1x1024xf32> to vector<8x1024xf32>
    %118 = arith.mulf %116, %117 : vector<8x1024xf32>
    %119 = tpu.concatenate %100, %101, %104, %107, %108, %111, %114, %115, %118 in 0 : vector<8x1024xf32>, vector<8x1024xf32>, vector<8x1024xf32>, vector<8x1024xf32>, vector<8x1024xf32>, vector<8x1024xf32>, vector<8x1024xf32>, vector<8x1024xf32>, vector<8x1024xf32> -> vector<72x1024xf32>
    %c0_109 = arith.constant 0 : index
    %c0_110 = arith.constant 0 : index
    %120 = vector.load %arg12[%c0_109, %c0_110] : memref<8x72xf32, #tpu.memory_space<vmem>>, vector<8x72xf32>
    %cst_111 = arith.constant dense<0.000000e+00> : vector<8x1024xf32>
    %121 = tpu.matmul %120, %119, %cst_111 {dimension_numbers = #tpu.dot_dimension_numbers<[1], [0], [0], [1], [0, 0, 1, 1], [], []>} : vector<8x72xf32>, vector<72x1024xf32>, vector<8x1024xf32> -> vector<8x1024xf32>
    %c0_112 = arith.constant 0 : index
    %c0_113 = arith.constant 0 : index
    %122 = vector.load %arg13[%c0_112, %c0_113] : memref<8x2xf32, #tpu.memory_space<vmem>>, vector<8x1xf32>
    %123 = vector.broadcast %122 : vector<8x1xf32> to vector<8x1024xf32>
    %124 = arith.mulf %121, %123 : vector<8x1024xf32>
    %c0_114 = arith.constant 0 : index
    %c1_115 = arith.constant 1 : index
    %125 = vector.load %arg13[%c0_114, %c1_115] : memref<8x2xf32, #tpu.memory_space<vmem>>, vector<8x1xf32>
    %126 = vector.broadcast %125 : vector<8x1xf32> to vector<8x1024xf32>
    %127 = arith.addf %124, %126 : vector<8x1024xf32>
    %cst_116 = arith.constant 0.000000e+00 : f32
    %128 = vector.broadcast %cst_116 : f32 to vector<8x1024xf32>
    %129 = arith.maximumf %127, %128 : vector<8x1024xf32>
    %130 = arith.mulf %90, %129 : vector<8x1024xf32>
    %131 = arith.mulf %130, %5 : vector<8x1024xf32>
    %cst_117 = arith.constant 0.000000e+00 : f32
    %132 = vector.broadcast %cst_117 : f32 to vector<8x17xf32>
    %c0_118 = arith.constant 0 : index
    %c0_119 = arith.constant 0 : index
    %133 = vector.load %arg25[%c0_118, %c0_119] : memref<24x1090xf32, #tpu.memory_space<vmem>>, vector<8x17xf32>
    tpu.vector_store %arg25[%c0_118, %c0_119], %132 {strides = array<i32>} : memref<24x1090xf32, #tpu.memory_space<vmem>>, vector<8x17xf32>,
    %c0_120 = arith.constant 0 : index
    %c17_121 = arith.constant 17 : index
    %134 = vector.load %arg25[%c0_120, %c17_121] : memref<24x1090xf32, #tpu.memory_space<vmem>>, vector<8x256xf32>
    tpu.vector_store %arg25[%c0_120, %c17_121], %7 {strides = array<i32>} : memref<24x1090xf32, #tpu.memory_space<vmem>>, vector<8x256xf32>,
    %cst_122 = arith.constant 0.000000e+00 : f32
    %135 = vector.broadcast %cst_122 : f32 to vector<8x17xf32>
    %c0_123 = arith.constant 0 : index
    %c273_124 = arith.constant 273 : index
    %136 = vector.load %arg25[%c0_123, %c273_124] : memref<24x1090xf32, #tpu.memory_space<vmem>>, vector<8x17xf32>
    tpu.vector_store %arg25[%c0_123, %c273_124], %135 {strides = array<i32>} : memref<24x1090xf32, #tpu.memory_space<vmem>>, vector<8x17xf32>,
    %c0_125 = arith.constant 0 : index
    %c0_126 = arith.constant 0 : index
    %137 = vector.load %arg6[%c0_125, %c0_126] : memref<2x256xf32, #tpu.memory_space<vmem>>, vector<1x256xf32>
    %c1_127 = arith.constant 1 : index
    %c0_128 = arith.constant 0 : index
    %138 = vector.load %arg6[%c1_127, %c0_128] : memref<2x256xf32, #tpu.memory_space<vmem>>, vector<1x256xf32>
    %c0_129 = arith.constant 0 : index
    %c0_130 = arith.constant 0 : index
    %139 = vector.load %arg25[%c0_129, %c0_130] : memref<24x1090xf32, #tpu.memory_space<vmem>>, vector<8x256xf32>
    %140 = vector.broadcast %137 : vector<1x256xf32> to vector<8x256xf32>
    %141 = arith.mulf %139, %140 : vector<8x256xf32>
    %c0_131 = arith.constant 0 : index
    %c1_132 = arith.constant 1 : index
    %142 = vector.load %arg25[%c0_131, %c1_132] : memref<24x1090xf32, #tpu.memory_space<vmem>>, vector<8x256xf32>
    %c0_133 = arith.constant 0 : index
    %c2_134 = arith.constant 2 : index
    %143 = vector.load %arg25[%c0_133, %c2_134] : memref<24x1090xf32, #tpu.memory_space<vmem>>, vector<8x256xf32>
    %144 = vector.broadcast %138 : vector<1x256xf32> to vector<8x256xf32>
    %145 = arith.mulf %143, %144 : vector<8x256xf32>
    %c0_135 = arith.constant 0 : index
    %c16_136 = arith.constant 16 : index
    %146 = vector.load %arg25[%c0_135, %c16_136] : memref<24x1090xf32, #tpu.memory_space<vmem>>, vector<8x256xf32>
    %147 = vector.broadcast %137 : vector<1x256xf32> to vector<8x256xf32>
    %148 = arith.mulf %146, %147 : vector<8x256xf32>
    %c0_137 = arith.constant 0 : index
    %c17_138 = arith.constant 17 : index
    %149 = vector.load %arg25[%c0_137, %c17_138] : memref<24x1090xf32, #tpu.memory_space<vmem>>, vector<8x256xf32>
    %c0_139 = arith.constant 0 : index
    %c18_140 = arith.constant 18 : index
    %150 = vector.load %arg25[%c0_139, %c18_140] : memref<24x1090xf32, #tpu.memory_space<vmem>>, vector<8x256xf32>
    %151 = vector.broadcast %138 : vector<1x256xf32> to vector<8x256xf32>
    %152 = arith.mulf %150, %151 : vector<8x256xf32>
    %c0_141 = arith.constant 0 : index
    %c32_142 = arith.constant 32 : index
    %153 = vector.load %arg25[%c0_141, %c32_142] : memref<24x1090xf32, #tpu.memory_space<vmem>>, vector<8x256xf32>
    %154 = vector.broadcast %137 : vector<1x256xf32> to vector<8x256xf32>
    %155 = arith.mulf %153, %154 : vector<8x256xf32>
    %c0_143 = arith.constant 0 : index
    %c33_144 = arith.constant 33 : index
    %156 = vector.load %arg25[%c0_143, %c33_144] : memref<24x1090xf32, #tpu.memory_space<vmem>>, vector<8x256xf32>
    %c0_145 = arith.constant 0 : index
    %c34_146 = arith.constant 34 : index
    %157 = vector.load %arg25[%c0_145, %c34_146] : memref<24x1090xf32, #tpu.memory_space<vmem>>, vector<8x256xf32>
    %158 = vector.broadcast %138 : vector<1x256xf32> to vector<8x256xf32>
    %159 = arith.mulf %157, %158 : vector<8x256xf32>
    %160 = tpu.concatenate %141, %142, %145, %148, %149, %152, %155, %156, %159 in 0 : vector<8x256xf32>, vector<8x256xf32>, vector<8x256xf32>, vector<8x256xf32>, vector<8x256xf32>, vector<8x256xf32>, vector<8x256xf32>, vector<8x256xf32>, vector<8x256xf32> -> vector<72x256xf32>
    %c0_147 = arith.constant 0 : index
    %c0_148 = arith.constant 0 : index
    %161 = vector.load %arg14[%c0_147, %c0_148] : memref<8x72xf32, #tpu.memory_space<vmem>>, vector<8x72xf32>
    %cst_149 = arith.constant dense<0.000000e+00> : vector<8x256xf32>
    %162 = tpu.matmul %161, %160, %cst_149 {dimension_numbers = #tpu.dot_dimension_numbers<[1], [0], [0], [1], [0, 0, 1, 1], [], []>} : vector<8x72xf32>, vector<72x256xf32>, vector<8x256xf32> -> vector<8x256xf32>
    %c0_150 = arith.constant 0 : index
    %c0_151 = arith.constant 0 : index
    %163 = vector.load %arg15[%c0_150, %c0_151] : memref<8x2xf32, #tpu.memory_space<vmem>>, vector<8x1xf32>
    %164 = vector.broadcast %163 : vector<8x1xf32> to vector<8x256xf32>
    %165 = arith.mulf %162, %164 : vector<8x256xf32>
    %c0_152 = arith.constant 0 : index
    %c1_153 = arith.constant 1 : index
    %166 = vector.load %arg15[%c0_152, %c1_153] : memref<8x2xf32, #tpu.memory_space<vmem>>, vector<8x1xf32>
    %167 = vector.broadcast %166 : vector<8x1xf32> to vector<8x256xf32>
    %168 = arith.addf %165, %167 : vector<8x256xf32>
    %cst_154 = arith.constant 0.000000e+00 : f32
    %169 = vector.broadcast %cst_154 : f32 to vector<8x256xf32>
    %170 = arith.maximumf %168, %169 : vector<8x256xf32>
    %171 = tpu.concatenate %51, %170 in 0 : vector<8x256xf32>, vector<8x256xf32> -> vector<16x256xf32>
    %cst_155 = arith.constant 0.000000e+00 : f32
    %172 = vector.broadcast %cst_155 : f32 to vector<16x17xf32>
    %c0_156 = arith.constant 0 : index
    %c0_157 = arith.constant 0 : index
    %173 = vector.load %arg25[%c0_156, %c0_157] : memref<24x1090xf32, #tpu.memory_space<vmem>>, vector<16x17xf32>
    tpu.vector_store %arg25[%c0_156, %c0_157], %172 {strides = array<i32>} : memref<24x1090xf32, #tpu.memory_space<vmem>>, vector<16x17xf32>,
    %c0_158 = arith.constant 0 : index
    %c17_159 = arith.constant 17 : index
    %174 = vector.load %arg25[%c0_158, %c17_159] : memref<24x1090xf32, #tpu.memory_space<vmem>>, vector<16x256xf32>
    tpu.vector_store %arg25[%c0_158, %c17_159], %171 {strides = array<i32>} : memref<24x1090xf32, #tpu.memory_space<vmem>>, vector<16x256xf32>,
    %cst_160 = arith.constant 0.000000e+00 : f32
    %175 = vector.broadcast %cst_160 : f32 to vector<16x17xf32>
    %c0_161 = arith.constant 0 : index
    %c273_162 = arith.constant 273 : index
    %176 = vector.load %arg25[%c0_161, %c273_162] : memref<24x1090xf32, #tpu.memory_space<vmem>>, vector<16x17xf32>
    tpu.vector_store %arg25[%c0_161, %c273_162], %175 {strides = array<i32>} : memref<24x1090xf32, #tpu.memory_space<vmem>>, vector<16x17xf32>,
    %c0_163 = arith.constant 0 : index
    %c0_164 = arith.constant 0 : index
    %177 = vector.load %arg6[%c0_163, %c0_164] : memref<2x256xf32, #tpu.memory_space<vmem>>, vector<1x256xf32>
    %c1_165 = arith.constant 1 : index
    %c0_166 = arith.constant 0 : index
    %178 = vector.load %arg6[%c1_165, %c0_166] : memref<2x256xf32, #tpu.memory_space<vmem>>, vector<1x256xf32>
    %c0_167 = arith.constant 0 : index
    %c0_168 = arith.constant 0 : index
    %179 = vector.load %arg25[%c0_167, %c0_168] : memref<24x1090xf32, #tpu.memory_space<vmem>>, vector<16x256xf32>
    %180 = vector.broadcast %177 : vector<1x256xf32> to vector<16x256xf32>
    %181 = arith.mulf %179, %180 : vector<16x256xf32>
    %c0_169 = arith.constant 0 : index
    %c1_170 = arith.constant 1 : index
    %182 = vector.load %arg25[%c0_169, %c1_170] : memref<24x1090xf32, #tpu.memory_space<vmem>>, vector<16x256xf32>
    %c0_171 = arith.constant 0 : index
    %c2_172 = arith.constant 2 : index
    %183 = vector.load %arg25[%c0_171, %c2_172] : memref<24x1090xf32, #tpu.memory_space<vmem>>, vector<16x256xf32>
    %184 = vector.broadcast %178 : vector<1x256xf32> to vector<16x256xf32>
    %185 = arith.mulf %183, %184 : vector<16x256xf32>
    %c0_173 = arith.constant 0 : index
    %c16_174 = arith.constant 16 : index
    %186 = vector.load %arg25[%c0_173, %c16_174] : memref<24x1090xf32, #tpu.memory_space<vmem>>, vector<16x256xf32>
    %187 = vector.broadcast %177 : vector<1x256xf32> to vector<16x256xf32>
    %188 = arith.mulf %186, %187 : vector<16x256xf32>
    %c0_175 = arith.constant 0 : index
    %c17_176 = arith.constant 17 : index
    %189 = vector.load %arg25[%c0_175, %c17_176] : memref<24x1090xf32, #tpu.memory_space<vmem>>, vector<16x256xf32>
    %c0_177 = arith.constant 0 : index
    %c18_178 = arith.constant 18 : index
    %190 = vector.load %arg25[%c0_177, %c18_178] : memref<24x1090xf32, #tpu.memory_space<vmem>>, vector<16x256xf32>
    %191 = vector.broadcast %178 : vector<1x256xf32> to vector<16x256xf32>
    %192 = arith.mulf %190, %191 : vector<16x256xf32>
    %c0_179 = arith.constant 0 : index
    %c32_180 = arith.constant 32 : index
    %193 = vector.load %arg25[%c0_179, %c32_180] : memref<24x1090xf32, #tpu.memory_space<vmem>>, vector<16x256xf32>
    %194 = vector.broadcast %177 : vector<1x256xf32> to vector<16x256xf32>
    %195 = arith.mulf %193, %194 : vector<16x256xf32>
    %c0_181 = arith.constant 0 : index
    %c33_182 = arith.constant 33 : index
    %196 = vector.load %arg25[%c0_181, %c33_182] : memref<24x1090xf32, #tpu.memory_space<vmem>>, vector<16x256xf32>
    %c0_183 = arith.constant 0 : index
    %c34_184 = arith.constant 34 : index
    %197 = vector.load %arg25[%c0_183, %c34_184] : memref<24x1090xf32, #tpu.memory_space<vmem>>, vector<16x256xf32>
    %198 = vector.broadcast %178 : vector<1x256xf32> to vector<16x256xf32>
    %199 = arith.mulf %197, %198 : vector<16x256xf32>
    %200 = tpu.concatenate %181, %182, %185, %188, %189, %192, %195, %196, %199 in 0 : vector<16x256xf32>, vector<16x256xf32>, vector<16x256xf32>, vector<16x256xf32>, vector<16x256xf32>, vector<16x256xf32>, vector<16x256xf32>, vector<16x256xf32>, vector<16x256xf32> -> vector<144x256xf32>
    %c0_185 = arith.constant 0 : index
    %c0_186 = arith.constant 0 : index
    %201 = vector.load %arg18[%c0_185, %c0_186] : memref<16x144xf32, #tpu.memory_space<vmem>>, vector<16x144xf32>
    %cst_187 = arith.constant dense<0.000000e+00> : vector<16x256xf32>
    %202 = tpu.matmul %201, %200, %cst_187 {dimension_numbers = #tpu.dot_dimension_numbers<[1], [0], [0], [1], [0, 0, 1, 1], [], []>} : vector<16x144xf32>, vector<144x256xf32>, vector<16x256xf32> -> vector<16x256xf32>
    %c0_188 = arith.constant 0 : index
    %c0_189 = arith.constant 0 : index
    %203 = vector.load %arg19[%c0_188, %c0_189] : memref<16x2xf32, #tpu.memory_space<vmem>>, vector<16x1xf32>
    %204 = vector.broadcast %203 : vector<16x1xf32> to vector<16x256xf32>
    %205 = arith.mulf %202, %204 : vector<16x256xf32>
    %c0_190 = arith.constant 0 : index
    %c1_191 = arith.constant 1 : index
    %206 = vector.load %arg19[%c0_190, %c1_191] : memref<16x2xf32, #tpu.memory_space<vmem>>, vector<16x1xf32>
    %207 = vector.broadcast %206 : vector<16x1xf32> to vector<16x256xf32>
    %208 = arith.addf %205, %207 : vector<16x256xf32>
    %cst_192 = arith.constant 0.000000e+00 : f32
    %209 = vector.broadcast %cst_192 : f32 to vector<16x256xf32>
    %210 = arith.maximumf %208, %209 : vector<16x256xf32>
    %c0_193 = arith.constant 0 : index
    %c0_194 = arith.constant 0 : index
    %211 = vector.load %arg5[%c0_193, %c0_194] : memref<256x1024xf32, #tpu.memory_space<vmem>>, vector<256x1024xf32>
    %cst_195 = arith.constant dense<0.000000e+00> : vector<16x1024xf32>
    %212 = tpu.matmul %210, %211, %cst_195 {dimension_numbers = #tpu.dot_dimension_numbers<[1], [0], [0], [1], [0, 0, 1, 1], [], []>} : vector<16x256xf32>, vector<256x1024xf32>, vector<16x1024xf32> -> vector<16x1024xf32>
    %cst_196 = arith.constant 0.000000e+00 : f32
    %213 = vector.broadcast %cst_196 : f32 to vector<16x33xf32>
    %c0_197 = arith.constant 0 : index
    %c0_198 = arith.constant 0 : index
    %214 = vector.load %arg25[%c0_197, %c0_198] : memref<24x1090xf32, #tpu.memory_space<vmem>>, vector<16x33xf32>
    tpu.vector_store %arg25[%c0_197, %c0_198], %213 {strides = array<i32>} : memref<24x1090xf32, #tpu.memory_space<vmem>>, vector<16x33xf32>,
    %c0_199 = arith.constant 0 : index
    %c33_200 = arith.constant 33 : index
    %215 = vector.load %arg25[%c0_199, %c33_200] : memref<24x1090xf32, #tpu.memory_space<vmem>>, vector<16x1024xf32>
    tpu.vector_store %arg25[%c0_199, %c33_200], %212 {strides = array<i32>} : memref<24x1090xf32, #tpu.memory_space<vmem>>, vector<16x1024xf32>,
    %cst_201 = arith.constant 0.000000e+00 : f32
    %216 = vector.broadcast %cst_201 : f32 to vector<16x33xf32>
    %c0_202 = arith.constant 0 : index
    %c1057_203 = arith.constant 1057 : index
    %217 = vector.load %arg25[%c0_202, %c1057_203] : memref<24x1090xf32, #tpu.memory_space<vmem>>, vector<16x33xf32>
    tpu.vector_store %arg25[%c0_202, %c1057_203], %216 {strides = array<i32>} : memref<24x1090xf32, #tpu.memory_space<vmem>>, vector<16x33xf32>,
    %c0_204 = arith.constant 0 : index
    %c0_205 = arith.constant 0 : index
    %218 = vector.load %arg7[%c0_204, %c0_205] : memref<2x1024xf32, #tpu.memory_space<vmem>>, vector<1x1024xf32>
    %c1_206 = arith.constant 1 : index
    %c0_207 = arith.constant 0 : index
    %219 = vector.load %arg7[%c1_206, %c0_207] : memref<2x1024xf32, #tpu.memory_space<vmem>>, vector<1x1024xf32>
    %c0_208 = arith.constant 0 : index
    %c0_209 = arith.constant 0 : index
    %220 = vector.load %arg25[%c0_208, %c0_209] : memref<24x1090xf32, #tpu.memory_space<vmem>>, vector<16x1024xf32>
    %221 = vector.broadcast %218 : vector<1x1024xf32> to vector<16x1024xf32>
    %222 = arith.mulf %220, %221 : vector<16x1024xf32>
    %c0_210 = arith.constant 0 : index
    %c1_211 = arith.constant 1 : index
    %223 = vector.load %arg25[%c0_210, %c1_211] : memref<24x1090xf32, #tpu.memory_space<vmem>>, vector<16x1024xf32>
    %c0_212 = arith.constant 0 : index
    %c2_213 = arith.constant 2 : index
    %224 = vector.load %arg25[%c0_212, %c2_213] : memref<24x1090xf32, #tpu.memory_space<vmem>>, vector<16x1024xf32>
    %225 = vector.broadcast %219 : vector<1x1024xf32> to vector<16x1024xf32>
    %226 = arith.mulf %224, %225 : vector<16x1024xf32>
    %c0_214 = arith.constant 0 : index
    %c32_215 = arith.constant 32 : index
    %227 = vector.load %arg25[%c0_214, %c32_215] : memref<24x1090xf32, #tpu.memory_space<vmem>>, vector<16x1024xf32>
    %228 = vector.broadcast %218 : vector<1x1024xf32> to vector<16x1024xf32>
    %229 = arith.mulf %227, %228 : vector<16x1024xf32>
    %c0_216 = arith.constant 0 : index
    %c33_217 = arith.constant 33 : index
    %230 = vector.load %arg25[%c0_216, %c33_217] : memref<24x1090xf32, #tpu.memory_space<vmem>>, vector<16x1024xf32>
    %c0_218 = arith.constant 0 : index
    %c34_219 = arith.constant 34 : index
    %231 = vector.load %arg25[%c0_218, %c34_219] : memref<24x1090xf32, #tpu.memory_space<vmem>>, vector<16x1024xf32>
    %232 = vector.broadcast %219 : vector<1x1024xf32> to vector<16x1024xf32>
    %233 = arith.mulf %231, %232 : vector<16x1024xf32>
    %c0_220 = arith.constant 0 : index
    %c64_221 = arith.constant 64 : index
    %234 = vector.load %arg25[%c0_220, %c64_221] : memref<24x1090xf32, #tpu.memory_space<vmem>>, vector<16x1024xf32>
    %235 = vector.broadcast %218 : vector<1x1024xf32> to vector<16x1024xf32>
    %236 = arith.mulf %234, %235 : vector<16x1024xf32>
    %c0_222 = arith.constant 0 : index
    %c65_223 = arith.constant 65 : index
    %237 = vector.load %arg25[%c0_222, %c65_223] : memref<24x1090xf32, #tpu.memory_space<vmem>>, vector<16x1024xf32>
    %c0_224 = arith.constant 0 : index
    %c66_225 = arith.constant 66 : index
    %238 = vector.load %arg25[%c0_224, %c66_225] : memref<24x1090xf32, #tpu.memory_space<vmem>>, vector<16x1024xf32>
    %239 = vector.broadcast %219 : vector<1x1024xf32> to vector<16x1024xf32>
    %240 = arith.mulf %238, %239 : vector<16x1024xf32>
    %241 = tpu.concatenate %222, %223, %226, %229, %230, %233, %236, %237, %240 in 0 : vector<16x1024xf32>, vector<16x1024xf32>, vector<16x1024xf32>, vector<16x1024xf32>, vector<16x1024xf32>, vector<16x1024xf32>, vector<16x1024xf32>, vector<16x1024xf32>, vector<16x1024xf32> -> vector<144x1024xf32>
    %c0_226 = arith.constant 0 : index
    %c0_227 = arith.constant 0 : index
    %242 = vector.load %arg16[%c0_226, %c0_227] : memref<16x144xf32, #tpu.memory_space<vmem>>, vector<16x144xf32>
    %cst_228 = arith.constant dense<0.000000e+00> : vector<16x1024xf32>
    %243 = tpu.matmul %242, %241, %cst_228 {dimension_numbers = #tpu.dot_dimension_numbers<[1], [0], [0], [1], [0, 0, 1, 1], [], []>} : vector<16x144xf32>, vector<144x1024xf32>, vector<16x1024xf32> -> vector<16x1024xf32>
    %c0_229 = arith.constant 0 : index
    %c0_230 = arith.constant 0 : index
    %244 = vector.load %arg17[%c0_229, %c0_230] : memref<16x2xf32, #tpu.memory_space<vmem>>, vector<16x1xf32>
    %245 = vector.broadcast %244 : vector<16x1xf32> to vector<16x1024xf32>
    %246 = arith.mulf %243, %245 : vector<16x1024xf32>
    %c0_231 = arith.constant 0 : index
    %c1_232 = arith.constant 1 : index
    %247 = vector.load %arg17[%c0_231, %c1_232] : memref<16x2xf32, #tpu.memory_space<vmem>>, vector<16x1xf32>
    %248 = vector.broadcast %247 : vector<16x1xf32> to vector<16x1024xf32>
    %249 = arith.addf %246, %248 : vector<16x1024xf32>
    %cst_233 = arith.constant 0.000000e+00 : f32
    %250 = vector.broadcast %cst_233 : f32 to vector<16x1024xf32>
    %251 = arith.maximumf %249, %250 : vector<16x1024xf32>
    %252 = tpu.concatenate %131, %251 in 0 : vector<8x1024xf32>, vector<16x1024xf32> -> vector<24x1024xf32>
    %cst_234 = arith.constant 0.000000e+00 : f32
    %253 = vector.broadcast %cst_234 : f32 to vector<24x33xf32>
    %c0_235 = arith.constant 0 : index
    %c0_236 = arith.constant 0 : index
    %254 = vector.load %arg25[%c0_235, %c0_236] : memref<24x1090xf32, #tpu.memory_space<vmem>>, vector<24x33xf32>
    tpu.vector_store %arg25[%c0_235, %c0_236], %253 {strides = array<i32>} : memref<24x1090xf32, #tpu.memory_space<vmem>>, vector<24x33xf32>,
    %c0_237 = arith.constant 0 : index
    %c33_238 = arith.constant 33 : index
    %255 = vector.load %arg25[%c0_237, %c33_238] : memref<24x1090xf32, #tpu.memory_space<vmem>>, vector<24x1024xf32>
    tpu.vector_store %arg25[%c0_237, %c33_238], %252 {strides = array<i32>} : memref<24x1090xf32, #tpu.memory_space<vmem>>, vector<24x1024xf32>,
    %cst_239 = arith.constant 0.000000e+00 : f32
    %256 = vector.broadcast %cst_239 : f32 to vector<24x33xf32>
    %c0_240 = arith.constant 0 : index
    %c1057_241 = arith.constant 1057 : index
    %257 = vector.load %arg25[%c0_240, %c1057_241] : memref<24x1090xf32, #tpu.memory_space<vmem>>, vector<24x33xf32>
    tpu.vector_store %arg25[%c0_240, %c1057_241], %256 {strides = array<i32>} : memref<24x1090xf32, #tpu.memory_space<vmem>>, vector<24x33xf32>,
    %c0_242 = arith.constant 0 : index
    %c0_243 = arith.constant 0 : index
    %258 = vector.load %arg7[%c0_242, %c0_243] : memref<2x1024xf32, #tpu.memory_space<vmem>>, vector<1x1024xf32>
    %c1_244 = arith.constant 1 : index
    %c0_245 = arith.constant 0 : index
    %259 = vector.load %arg7[%c1_244, %c0_245] : memref<2x1024xf32, #tpu.memory_space<vmem>>, vector<1x1024xf32>
    %c0_246 = arith.constant 0 : index
    %c0_247 = arith.constant 0 : index
    %260 = vector.load %arg25[%c0_246, %c0_247] : memref<24x1090xf32, #tpu.memory_space<vmem>>, vector<24x1024xf32>
    %261 = vector.broadcast %258 : vector<1x1024xf32> to vector<24x1024xf32>
    %262 = arith.mulf %260, %261 : vector<24x1024xf32>
    %c0_248 = arith.constant 0 : index
    %c1_249 = arith.constant 1 : index
    %263 = vector.load %arg25[%c0_248, %c1_249] : memref<24x1090xf32, #tpu.memory_space<vmem>>, vector<24x1024xf32>
    %c0_250 = arith.constant 0 : index
    %c2_251 = arith.constant 2 : index
    %264 = vector.load %arg25[%c0_250, %c2_251] : memref<24x1090xf32, #tpu.memory_space<vmem>>, vector<24x1024xf32>
    %265 = vector.broadcast %259 : vector<1x1024xf32> to vector<24x1024xf32>
    %266 = arith.mulf %264, %265 : vector<24x1024xf32>
    %c0_252 = arith.constant 0 : index
    %c32_253 = arith.constant 32 : index
    %267 = vector.load %arg25[%c0_252, %c32_253] : memref<24x1090xf32, #tpu.memory_space<vmem>>, vector<24x1024xf32>
    %268 = vector.broadcast %258 : vector<1x1024xf32> to vector<24x1024xf32>
    %269 = arith.mulf %267, %268 : vector<24x1024xf32>
    %c0_254 = arith.constant 0 : index
    %c33_255 = arith.constant 33 : index
    %270 = vector.load %arg25[%c0_254, %c33_255] : memref<24x1090xf32, #tpu.memory_space<vmem>>, vector<24x1024xf32>
    %c0_256 = arith.constant 0 : index
    %c34_257 = arith.constant 34 : index
    %271 = vector.load %arg25[%c0_256, %c34_257] : memref<24x1090xf32, #tpu.memory_space<vmem>>, vector<24x1024xf32>
    %272 = vector.broadcast %259 : vector<1x1024xf32> to vector<24x1024xf32>
    %273 = arith.mulf %271, %272 : vector<24x1024xf32>
    %c0_258 = arith.constant 0 : index
    %c64_259 = arith.constant 64 : index
    %274 = vector.load %arg25[%c0_258, %c64_259] : memref<24x1090xf32, #tpu.memory_space<vmem>>, vector<24x1024xf32>
    %275 = vector.broadcast %258 : vector<1x1024xf32> to vector<24x1024xf32>
    %276 = arith.mulf %274, %275 : vector<24x1024xf32>
    %c0_260 = arith.constant 0 : index
    %c65_261 = arith.constant 65 : index
    %277 = vector.load %arg25[%c0_260, %c65_261] : memref<24x1090xf32, #tpu.memory_space<vmem>>, vector<24x1024xf32>
    %c0_262 = arith.constant 0 : index
    %c66_263 = arith.constant 66 : index
    %278 = vector.load %arg25[%c0_262, %c66_263] : memref<24x1090xf32, #tpu.memory_space<vmem>>, vector<24x1024xf32>
    %279 = vector.broadcast %259 : vector<1x1024xf32> to vector<24x1024xf32>
    %280 = arith.mulf %278, %279 : vector<24x1024xf32>
    %281 = tpu.concatenate %262, %263, %266, %269, %270, %273, %276, %277, %280 in 0 : vector<24x1024xf32>, vector<24x1024xf32>, vector<24x1024xf32>, vector<24x1024xf32>, vector<24x1024xf32>, vector<24x1024xf32>, vector<24x1024xf32>, vector<24x1024xf32>, vector<24x1024xf32> -> vector<216x1024xf32>
    %c0_264 = arith.constant 0 : index
    %c0_265 = arith.constant 0 : index
    %282 = vector.load %arg20[%c0_264, %c0_265] : memref<24x216xf32, #tpu.memory_space<vmem>>, vector<24x216xf32>
    %cst_266 = arith.constant dense<0.000000e+00> : vector<24x1024xf32>
    %283 = tpu.matmul %282, %281, %cst_266 {dimension_numbers = #tpu.dot_dimension_numbers<[1], [0], [0], [1], [0, 0, 1, 1], [], []>} : vector<24x216xf32>, vector<216x1024xf32>, vector<24x1024xf32> -> vector<24x1024xf32>
    %c0_267 = arith.constant 0 : index
    %c0_268 = arith.constant 0 : index
    %284 = vector.load %arg21[%c0_267, %c0_268] : memref<24x2xf32, #tpu.memory_space<vmem>>, vector<24x1xf32>
    %285 = vector.broadcast %284 : vector<24x1xf32> to vector<24x1024xf32>
    %286 = arith.mulf %283, %285 : vector<24x1024xf32>
    %c0_269 = arith.constant 0 : index
    %c1_270 = arith.constant 1 : index
    %287 = vector.load %arg21[%c0_269, %c1_270] : memref<24x2xf32, #tpu.memory_space<vmem>>, vector<24x1xf32>
    %288 = vector.broadcast %287 : vector<24x1xf32> to vector<24x1024xf32>
    %289 = arith.addf %286, %288 : vector<24x1024xf32>
    %cst_271 = arith.constant 0.000000e+00 : f32
    %290 = vector.broadcast %cst_271 : f32 to vector<24x1024xf32>
    %291 = arith.maximumf %289, %290 : vector<24x1024xf32>
    %cst_272 = arith.constant 0.000000e+00 : f32
    %292 = vector.broadcast %cst_272 : f32 to vector<24x33xf32>
    %c0_273 = arith.constant 0 : index
    %c0_274 = arith.constant 0 : index
    %293 = vector.load %arg25[%c0_273, %c0_274] : memref<24x1090xf32, #tpu.memory_space<vmem>>, vector<24x33xf32>
    tpu.vector_store %arg25[%c0_273, %c0_274], %292 {strides = array<i32>} : memref<24x1090xf32, #tpu.memory_space<vmem>>, vector<24x33xf32>,
    %c0_275 = arith.constant 0 : index
    %c33_276 = arith.constant 33 : index
    %294 = vector.load %arg25[%c0_275, %c33_276] : memref<24x1090xf32, #tpu.memory_space<vmem>>, vector<24x1024xf32>
    tpu.vector_store %arg25[%c0_275, %c33_276], %291 {strides = array<i32>} : memref<24x1090xf32, #tpu.memory_space<vmem>>, vector<24x1024xf32>,
    %cst_277 = arith.constant 0.000000e+00 : f32
    %295 = vector.broadcast %cst_277 : f32 to vector<24x33xf32>
    %c0_278 = arith.constant 0 : index
    %c1057_279 = arith.constant 1057 : index
    %296 = vector.load %arg25[%c0_278, %c1057_279] : memref<24x1090xf32, #tpu.memory_space<vmem>>, vector<24x33xf32>
    tpu.vector_store %arg25[%c0_278, %c1057_279], %295 {strides = array<i32>} : memref<24x1090xf32, #tpu.memory_space<vmem>>, vector<24x33xf32>,
    %c0_280 = arith.constant 0 : index
    %c0_281 = arith.constant 0 : index
    %297 = vector.load %arg7[%c0_280, %c0_281] : memref<2x1024xf32, #tpu.memory_space<vmem>>, vector<1x1024xf32>
    %c1_282 = arith.constant 1 : index
    %c0_283 = arith.constant 0 : index
    %298 = vector.load %arg7[%c1_282, %c0_283] : memref<2x1024xf32, #tpu.memory_space<vmem>>, vector<1x1024xf32>
    %c0_284 = arith.constant 0 : index
    %c0_285 = arith.constant 0 : index
    %299 = vector.load %arg25[%c0_284, %c0_285] : memref<24x1090xf32, #tpu.memory_space<vmem>>, vector<24x1024xf32>
    %300 = vector.broadcast %297 : vector<1x1024xf32> to vector<24x1024xf32>
    %301 = arith.mulf %299, %300 : vector<24x1024xf32>
    %c0_286 = arith.constant 0 : index
    %c1_287 = arith.constant 1 : index
    %302 = vector.load %arg25[%c0_286, %c1_287] : memref<24x1090xf32, #tpu.memory_space<vmem>>, vector<24x1024xf32>
    %c0_288 = arith.constant 0 : index
    %c2_289 = arith.constant 2 : index
    %303 = vector.load %arg25[%c0_288, %c2_289] : memref<24x1090xf32, #tpu.memory_space<vmem>>, vector<24x1024xf32>
    %304 = vector.broadcast %298 : vector<1x1024xf32> to vector<24x1024xf32>
    %305 = arith.mulf %303, %304 : vector<24x1024xf32>
    %c0_290 = arith.constant 0 : index
    %c32_291 = arith.constant 32 : index
    %306 = vector.load %arg25[%c0_290, %c32_291] : memref<24x1090xf32, #tpu.memory_space<vmem>>, vector<24x1024xf32>
    %307 = vector.broadcast %297 : vector<1x1024xf32> to vector<24x1024xf32>
    %308 = arith.mulf %306, %307 : vector<24x1024xf32>
    %c0_292 = arith.constant 0 : index
    %c33_293 = arith.constant 33 : index
    %309 = vector.load %arg25[%c0_292, %c33_293] : memref<24x1090xf32, #tpu.memory_space<vmem>>, vector<24x1024xf32>
    %c0_294 = arith.constant 0 : index
    %c34_295 = arith.constant 34 : index
    %310 = vector.load %arg25[%c0_294, %c34_295] : memref<24x1090xf32, #tpu.memory_space<vmem>>, vector<24x1024xf32>
    %311 = vector.broadcast %298 : vector<1x1024xf32> to vector<24x1024xf32>
    %312 = arith.mulf %310, %311 : vector<24x1024xf32>
    %c0_296 = arith.constant 0 : index
    %c64_297 = arith.constant 64 : index
    %313 = vector.load %arg25[%c0_296, %c64_297] : memref<24x1090xf32, #tpu.memory_space<vmem>>, vector<24x1024xf32>
    %314 = vector.broadcast %297 : vector<1x1024xf32> to vector<24x1024xf32>
    %315 = arith.mulf %313, %314 : vector<24x1024xf32>
    %c0_298 = arith.constant 0 : index
    %c65_299 = arith.constant 65 : index
    %316 = vector.load %arg25[%c0_298, %c65_299] : memref<24x1090xf32, #tpu.memory_space<vmem>>, vector<24x1024xf32>
    %c0_300 = arith.constant 0 : index
    %c66_301 = arith.constant 66 : index
    %317 = vector.load %arg25[%c0_300, %c66_301] : memref<24x1090xf32, #tpu.memory_space<vmem>>, vector<24x1024xf32>
    %318 = vector.broadcast %298 : vector<1x1024xf32> to vector<24x1024xf32>
    %319 = arith.mulf %317, %318 : vector<24x1024xf32>
    %320 = tpu.concatenate %301, %302, %305, %308, %309, %312, %315, %316, %319 in 0 : vector<24x1024xf32>, vector<24x1024xf32>, vector<24x1024xf32>, vector<24x1024xf32>, vector<24x1024xf32>, vector<24x1024xf32>, vector<24x1024xf32>, vector<24x1024xf32>, vector<24x1024xf32> -> vector<216x1024xf32>
    %c0_302 = arith.constant 0 : index
    %c0_303 = arith.constant 0 : index
    %321 = vector.load %arg22[%c0_302, %c0_303] : memref<8x216xf32, #tpu.memory_space<vmem>>, vector<8x216xf32>
    %cst_304 = arith.constant dense<0.000000e+00> : vector<8x1024xf32>
    %322 = tpu.matmul %321, %320, %cst_304 {dimension_numbers = #tpu.dot_dimension_numbers<[1], [0], [0], [1], [0, 0, 1, 1], [], []>} : vector<8x216xf32>, vector<216x1024xf32>, vector<8x1024xf32> -> vector<8x1024xf32>
    %c0_305 = arith.constant 0 : index
    %c0_306 = arith.constant 0 : index
    %323 = vector.load %arg23[%c0_305, %c0_306] : memref<8x2xf32, #tpu.memory_space<vmem>>, vector<8x1xf32>
    %324 = vector.broadcast %323 : vector<8x1xf32> to vector<8x1024xf32>
    %325 = arith.mulf %322, %324 : vector<8x1024xf32>
    %c0_307 = arith.constant 0 : index
    %c1_308 = arith.constant 1 : index
    %326 = vector.load %arg23[%c0_307, %c1_308] : memref<8x2xf32, #tpu.memory_space<vmem>>, vector<8x1xf32>
    %327 = vector.broadcast %326 : vector<8x1xf32> to vector<8x1024xf32>
    %328 = arith.addf %325, %327 : vector<8x1024xf32>
    %cst_309 = arith.constant 0.000000e+00 : f32
    %329 = vector.broadcast %cst_309 : f32 to vector<8x1024xf32>
    %330 = arith.maximumf %328, %329 : vector<8x1024xf32>
    %c0_310 = arith.constant 0 : index
    %c0_311 = arith.constant 0 : index
    %c0_312 = arith.constant 0 : index
    %331 = vector.load %arg24[%c0_310, %c0_311, %c0_312] : memref<1x8x1024xf32, #tpu.memory_space<vmem>>, vector<1x8x1024xf32>
    %332 = vector.shape_cast %331 : vector<1x8x1024xf32> to vector<8x1024xf32>
    %333 = vector.shape_cast %330 : vector<8x1024xf32> to vector<1x8x1024xf32>
    tpu.vector_store %arg24[%c0_310, %c0_311, %c0_312], %333 {strides = array<i32>} : memref<1x8x1024xf32, #tpu.memory_space<vmem>>, vector<1x8x1024xf32>,
    return
  }
  func.func @transform_0(%arg0: i32) -> (i32, i32, i32) {
    %c0_i32 = arith.constant 0 : i32
    %c0_i32_0 = arith.constant 0 : i32
    %c0_i32_1 = arith.constant 0 : i32
    return %arg0, %c0_i32, %c0_i32_0 : i32, i32, i32
  }
  func.func @transform_1(%arg0: i32) -> (i32, i32, i32) {
    %c0_i32 = arith.constant 0 : i32
    %c0_i32_0 = arith.constant 0 : i32
    %c0_i32_1 = arith.constant 0 : i32
    return %arg0, %c0_i32, %c0_i32_0 : i32, i32, i32
  }
  func.func @transform_2(%arg0: i32) -> (i32, i32, i32) {
    %c0_i32 = arith.constant 0 : i32
    %c0_i32_0 = arith.constant 0 : i32
    %c0_i32_1 = arith.constant 0 : i32
    return %arg0, %c0_i32, %c0_i32_0 : i32, i32, i32
  }
  func.func @transform_3(%arg0: i32) -> (i32, i32) {
    %c0_i32 = arith.constant 0 : i32
    %c0_i32_0 = arith.constant 0 : i32
    %c0_i32_1 = arith.constant 0 : i32
    return %c0_i32, %c0_i32_0 : i32, i32
  }
  func.func @transform_4(%arg0: i32) -> (i32, i32) {
    %c0_i32 = arith.constant 0 : i32
    %c0_i32_0 = arith.constant 0 : i32
    %c0_i32_1 = arith.constant 0 : i32
    return %c0_i32, %c0_i32_0 : i32, i32
  }
  func.func @transform_5(%arg0: i32) -> (i32, i32) {
    %c0_i32 = arith.constant 0 : i32
    %c0_i32_0 = arith.constant 0 : i32
    %c0_i32_1 = arith.constant 0 : i32
    return %c0_i32, %c0_i32_0 : i32, i32
  }
  func.func @transform_6(%arg0: i32) -> (i32, i32) {
    %c0_i32 = arith.constant 0 : i32
    %c0_i32_0 = arith.constant 0 : i32
    %c0_i32_1 = arith.constant 0 : i32
    return %c0_i32, %c0_i32_0 : i32, i32
  }
  func.func @transform_7(%arg0: i32) -> (i32, i32) {
    %c0_i32 = arith.constant 0 : i32
    %c0_i32_0 = arith.constant 0 : i32
    %c0_i32_1 = arith.constant 0 : i32
    return %c0_i32, %c0_i32_0 : i32, i32
  }
  func.func @transform_8(%arg0: i32) -> (i32, i32) {
    %c0_i32 = arith.constant 0 : i32
    %c0_i32_0 = arith.constant 0 : i32
    %c0_i32_1 = arith.constant 0 : i32
    return %c0_i32, %c0_i32_0 : i32, i32
  }
  func.func @transform_9(%arg0: i32) -> (i32, i32) {
    %c0_i32 = arith.constant 0 : i32
    %c0_i32_0 = arith.constant 0 : i32
    %c0_i32_1 = arith.constant 0 : i32
    return %c0_i32, %c0_i32_0 : i32, i32
  }
  func.func @transform_10(%arg0: i32) -> (i32, i32) {
    %c0_i32 = arith.constant 0 : i32
    %c0_i32_0 = arith.constant 0 : i32
    %c0_i32_1 = arith.constant 0 : i32
    return %c0_i32, %c0_i32_0 : i32, i32
  }
  func.func @transform_11(%arg0: i32) -> (i32, i32) {
    %c0_i32 = arith.constant 0 : i32
    %c0_i32_0 = arith.constant 0 : i32
    %c0_i32_1 = arith.constant 0 : i32
    return %c0_i32, %c0_i32_0 : i32, i32
  }
  func.func @transform_12(%arg0: i32) -> (i32, i32) {
    %c0_i32 = arith.constant 0 : i32
    %c0_i32_0 = arith.constant 0 : i32
    %c0_i32_1 = arith.constant 0 : i32
    return %c0_i32, %c0_i32_0 : i32, i32
  }
  func.func @transform_13(%arg0: i32) -> (i32, i32) {
    %c0_i32 = arith.constant 0 : i32
    %c0_i32_0 = arith.constant 0 : i32
    %c0_i32_1 = arith.constant 0 : i32
    return %c0_i32, %c0_i32_0 : i32, i32
  }
  func.func @transform_14(%arg0: i32) -> (i32, i32) {
    %c0_i32 = arith.constant 0 : i32
    %c0_i32_0 = arith.constant 0 : i32
    %c0_i32_1 = arith.constant 0 : i32
    return %c0_i32, %c0_i32_0 : i32, i32
  }
  func.func @transform_15(%arg0: i32) -> (i32, i32) {
    %c0_i32 = arith.constant 0 : i32
    %c0_i32_0 = arith.constant 0 : i32
    %c0_i32_1 = arith.constant 0 : i32
    return %c0_i32, %c0_i32_0 : i32, i32
  }
  func.func @transform_16(%arg0: i32) -> (i32, i32) {
    %c0_i32 = arith.constant 0 : i32
    %c0_i32_0 = arith.constant 0 : i32
    %c0_i32_1 = arith.constant 0 : i32
    return %c0_i32, %c0_i32_0 : i32, i32
  }
  func.func @transform_17(%arg0: i32) -> (i32, i32) {
    %c0_i32 = arith.constant 0 : i32
    %c0_i32_0 = arith.constant 0 : i32
    %c0_i32_1 = arith.constant 0 : i32
    return %c0_i32, %c0_i32_0 : i32, i32
  }
  func.func @transform_18(%arg0: i32) -> (i32, i32) {
    %c0_i32 = arith.constant 0 : i32
    %c0_i32_0 = arith.constant 0 : i32
    %c0_i32_1 = arith.constant 0 : i32
    return %c0_i32, %c0_i32_0 : i32, i32
  }
  func.func @transform_19(%arg0: i32) -> (i32, i32) {
    %c0_i32 = arith.constant 0 : i32
    %c0_i32_0 = arith.constant 0 : i32
    %c0_i32_1 = arith.constant 0 : i32
    return %c0_i32, %c0_i32_0 : i32, i32
  }
  func.func @transform_20(%arg0: i32) -> (i32, i32) {
    %c0_i32 = arith.constant 0 : i32
    %c0_i32_0 = arith.constant 0 : i32
    %c0_i32_1 = arith.constant 0 : i32
    return %c0_i32, %c0_i32_0 : i32, i32
  }
  func.func @transform_21(%arg0: i32) -> (i32, i32) {
    %c0_i32 = arith.constant 0 : i32
    %c0_i32_0 = arith.constant 0 : i32
    %c0_i32_1 = arith.constant 0 : i32
    return %c0_i32, %c0_i32_0 : i32, i32
  }
  func.func @transform_22(%arg0: i32) -> (i32, i32) {
    %c0_i32 = arith.constant 0 : i32
    %c0_i32_0 = arith.constant 0 : i32
    %c0_i32_1 = arith.constant 0 : i32
    return %c0_i32, %c0_i32_0 : i32, i32
  }
  func.func @transform_23(%arg0: i32) -> (i32, i32, i32) {
    %c0_i32 = arith.constant 0 : i32
    %c0_i32_0 = arith.constant 0 : i32
    %c0_i32_1 = arith.constant 0 : i32
    return %arg0, %c0_i32, %c0_i32_0 : i32, i32, i32
  }
}

</mosaic_0001>

<llo_original>
// kernel: decoder_forward.1
$region0: #{decoder_forward.1}
  #allocation0 [shape = 'u32[]', space=smem, size = 0x4, offset = 0x4, fixed_abs, tag = 'smem constant byte address 0x4 - core index']
  #allocation1 [shape = 'u32[72,128]{1,0:T(1,128)}', space=vmem, size = 0x9000, scoped, tag = 'internal scratch']
  #allocation2 [shape = 'f32[24,1090]{1,0:T(8,128)}', space=vmem, size = 0x1b000, scoped, tag = 'scratch operand']
  %s0 = inlined_call_operand.vmem [shape: f32[2,8,64], index: 0, kind: input, shape index: {}]
  %s1 = inlined_call_operand.vmem [shape: f32[2,8,256], index: 1, kind: input, shape index: {}]
  %s2 = inlined_call_operand.vmem [shape: f32[2,8,1024], index: 2, kind: input, shape index: {}]
  %s3 = inlined_call_operand.vmem [shape: f32[64,256], index: 3, kind: input, shape index: {}]
  %s4 = inlined_call_operand.hbm [shape: f32[256,1024], index: 4, kind: input, shape index: {}]
  %s5 = inlined_call_operand.vmem [shape: f32[2,256], index: 5, kind: input, shape index: {}]
  %s6 = inlined_call_operand.vmem [shape: f32[2,1024], index: 6, kind: input, shape index: {}]
  %s7 = inlined_call_operand.vmem [shape: f32[8,72], index: 7, kind: input, shape index: {}]
  %s8 = inlined_call_operand.vmem [shape: f32[8,2], index: 8, kind: input, shape index: {}]
  %s9 = inlined_call_operand.vmem [shape: f32[8,72], index: 9, kind: input, shape index: {}]
  %s10 = inlined_call_operand.vmem [shape: f32[8,2], index: 10, kind: input, shape index: {}]
  %s11 = inlined_call_operand.vmem [shape: f32[8,72], index: 11, kind: input, shape index: {}]
  %s12 = inlined_call_operand.vmem [shape: f32[8,2], index: 12, kind: input, shape index: {}]
  %s13 = inlined_call_operand.vmem [shape: f32[8,72], index: 13, kind: input, shape index: {}]
  %s14 = inlined_call_operand.vmem [shape: f32[8,2], index: 14, kind: input, shape index: {}]
  %s15 = inlined_call_operand.vmem [shape: f32[16,144], index: 15, kind: input, shape index: {}]
  %s16 = inlined_call_operand.vmem [shape: f32[16,2], index: 16, kind: input, shape index: {}]
  %s17 = inlined_call_operand.vmem [shape: f32[16,144], index: 17, kind: input, shape index: {}]
  %s18 = inlined_call_operand.vmem [shape: f32[16,2], index: 18, kind: input, shape index: {}]
  %s19 = inlined_call_operand.vmem [shape: f32[24,216], index: 19, kind: input, shape index: {}]
  %s20 = inlined_call_operand.vmem [shape: f32[24,2], index: 20, kind: input, shape index: {}]
  %s21 = inlined_call_operand.vmem [shape: f32[8,216], index: 21, kind: input, shape index: {}]
  %s22 = inlined_call_operand.vmem [shape: f32[8,2], index: 22, kind: input, shape index: {}]
  %s23 = inlined_call_operand.vmem [shape: f32[2,8,1024], index: 23, kind: output, shape index: {}]
  %s24 = sld [smem:[#allocation0]]
  $region129: #{decoder_forward.1} parent=0
    _
  %s26 = ssub.s32 1, %s24
  %s27 = scalar_select 0, %s26, %s24
  $region1: #{decoder_forward.1} parent=0
    #allocation3 [shape = 'u8[1048576]{0}', space=vmem, size = 0x100000, scoped, tag = 'input window, operand 4, single buffered']
    #allocation4 [shape = 's32[2]{0}', space=sflag, size = 0x8, scoped, tag = 'scoped memory for decoder_forward.1']
    %28 = vsyncpa [#allocation4], 0
    loop: start=0, step=1, limit=4
    $region2: #{decoder_forward.1} parent=1 // loop_pre_header
      _
    $region3: #{decoder_forward.1} parent=1 // loop_header
      %s30 = sphi 0, %s34
      %p31 = scmp.ge.s32.totalorder %s30, 4
      %s40 = sphi 0, %s42
      %s43 = sphi 0, %s40
      %s44 = sphi 0, %s43
      %s60 = sphi 0, %s44
      %s66 = sphi 0, %s68
      %s69 = sphi 0, %s66
      %s70 = sphi 0, %s69
      %s86 = sphi 0, %s70
      %s92 = sphi 0, %s94
      %s95 = sphi 0, %s92
      %s96 = sphi 0, %s95
      %s112 = sphi 0, %s96
      %s116 = sphi 0, %s116
      %s118 = sphi 0, %s116
      %s119 = sphi 0, %s118
      %s133 = sphi 0, %s119
      %s137 = sphi 0, %s137
      %s139 = sphi 0, %s137
      %s140 = sphi 0, %s139
      %s154 = sphi 0, %s140
      %s158 = sphi 0, %s158
      %s160 = sphi 0, %s158
      %s161 = sphi 0, %s160
      %s175 = sphi 0, %s161
      %s179 = sphi 0, %s179
      %s181 = sphi 0, %s179
      %s182 = sphi 0, %s181
      %s196 = sphi 0, %s182
      %s200 = sphi 0, %s200
      %s202 = sphi 0, %s200
      %s203 = sphi 0, %s202
      %s217 = sphi 0, %s203
      %s221 = sphi 0, %s221
      %s223 = sphi 0, %s221
      %s224 = sphi 0, %s223
      %s238 = sphi 0, %s224
      %s242 = sphi 0, %s242
      %s244 = sphi 0, %s242
      %s245 = sphi 0, %s244
      %s259 = sphi 0, %s245
      %s263 = sphi 0, %s263
      %s265 = sphi 0, %s263
      %s266 = sphi 0, %s265
      %s280 = sphi 0, %s266
      %s284 = sphi 0, %s284
      %s286 = sphi 0, %s284
      %s287 = sphi 0, %s286
      %s301 = sphi 0, %s287
      %s305 = sphi 0, %s305
      %s307 = sphi 0, %s305
      %s308 = sphi 0, %s307
      %s322 = sphi 0, %s308
      %s326 = sphi 0, %s326
      %s328 = sphi 0, %s326
      %s329 = sphi 0, %s328
      %s343 = sphi 0, %s329
      %s347 = sphi 0, %s347
      %s349 = sphi 0, %s347
      %s350 = sphi 0, %s349
      %s364 = sphi 0, %s350
      %s368 = sphi 0, %s368
      %s370 = sphi 0, %s368
      %s371 = sphi 0, %s370
      %s385 = sphi 0, %s371
      %s389 = sphi 0, %s389
      %s391 = sphi 0, %s389
      %s392 = sphi 0, %s391
      %s406 = sphi 0, %s392
      %s410 = sphi 0, %s410
      %s412 = sphi 0, %s410
      %s413 = sphi 0, %s412
      %s427 = sphi 0, %s413
      %s431 = sphi 0, %s431
      %s433 = sphi 0, %s431
      %s434 = sphi 0, %s433
      %s448 = sphi 0, %s434
      %s452 = sphi 0, %s452
      %s454 = sphi 0, %s452
      %s455 = sphi 0, %s454
      %s469 = sphi 0, %s455
      %s473 = sphi 0, %s473
      %s475 = sphi 0, %s473
      %s476 = sphi 0, %s475
      %s490 = sphi 0, %s476
      %s494 = sphi 0, %s494
      %s496 = sphi 0, %s494
      %s497 = sphi 0, %s496
      %s511 = sphi 0, %s497
      %s515 = sphi 0, %s515
      %s517 = sphi 0, %s515
      %s518 = sphi 0, %s517
      %s532 = sphi 0, %s518
      %s538 = sphi 0, %s540
      %s541 = sphi 0, %s538
      %s542 = sphi 0, %s541
      %s558 = sphi 0, %s542
    $region4: #{decoder_forward.1} parent=1 // loop_header_branch
      %33 = sbr.rel (%p31) target = $region8
    $region5: #{decoder_forward.1} parent=1 // loop_body
      %s35 = ssub.s32 %s30, 1
      %s36 = ssub.s32 %s30, 2
      %s37 = sadd.s32 %s30, 1
      %s38 = ssub.s32 %s30, %s37
      %p39 = scmp.eq.s32.totalorder %s38, 0
      %s41 = sadd.s32 %s40, 1
      %s42 = scalar_select %p39, %s40, %s41
      %p45 = pneg %p39
      %p46 = scmp.eq.s32.totalorder %s30, 1
      %p47 = por %p45, %p46
      %p48 = scmp.ne.s32.totalorder %s40, %s43
      %p49 = scmp.eq.s32.totalorder %s30, 0
      %p50 = por %p48, %p49
      %p51 = scmp.ne.s32.totalorder %s40, %s43
      %p52 = scmp.eq.s32.totalorder %s35, 1
      %p53 = por %p51, %p52
      %p54 = scmp.ne.s32.totalorder %s43, %s44
      %p55 = scmp.eq.s32.totalorder %s35, 0
      %p56 = por %p54, %p55
      %p57 = scmp.ne.s32.totalorder %s43, %s44
      %p58 = scmp.eq.s32.totalorder %s36, 1
      %p59 = por %p57, %p58
      %p61 = scmp.ne.s32.totalorder %s44, %s60
      %p62 = scmp.eq.s32.totalorder %s36, 0
      %p63 = por %p61, %p62
      %s64 = ssub.s32 %s30, %s37
      %p65 = scmp.eq.s32.totalorder %s64, 0
      %s67 = sadd.s32 %s66, 1
      %s68 = scalar_select %p65, %s66, %s67
      %p71 = pneg %p65
      %p72 = scmp.eq.s32.totalorder %s30, 1
      %p73 = por %p71, %p72
      %p74 = scmp.ne.s32.totalorder %s66, %s69
      %p75 = scmp.eq.s32.totalorder %s30, 0
      %p76 = por %p74, %p75
      %p77 = scmp.ne.s32.totalorder %s66, %s69
      %p78 = scmp.eq.s32.totalorder %s35, 1
      %p79 = por %p77, %p78
      %p80 = scmp.ne.s32.totalorder %s69, %s70
      %p81 = scmp.eq.s32.totalorder %s35, 0
      %p82 = por %p80, %p81
      %p83 = scmp.ne.s32.totalorder %s69, %s70
      %p84 = scmp.eq.s32.totalorder %s36, 1
      %p85 = por %p83, %p84
      %p87 = scmp.ne.s32.totalorder %s70, %s86
      %p88 = scmp.eq.s32.totalorder %s36, 0
      %p89 = por %p87, %p88
      %s90 = ssub.s32 %s30, %s37
      %p91 = scmp.eq.s32.totalorder %s90, 0
      %s93 = sadd.s32 %s92, 1
      %s94 = scalar_select %p91, %s92, %s93
      %p97 = pneg %p91
      %p98 = scmp.eq.s32.totalorder %s30, 1
      %p99 = por %p97, %p98
      %p100 = scmp.ne.s32.totalorder %s92, %s95
      %p101 = scmp.eq.s32.totalorder %s30, 0
      %p102 = por %p100, %p101
      %p103 = scmp.ne.s32.totalorder %s92, %s95
      %p104 = scmp.eq.s32.totalorder %s35, 1
      %p105 = por %p103, %p104
      %p106 = scmp.ne.s32.totalorder %s95, %s96
      %p107 = scmp.eq.s32.totalorder %s35, 0
      %p108 = por %p106, %p107
      %p109 = scmp.ne.s32.totalorder %s95, %s96
      %p110 = scmp.eq.s32.totalorder %s36, 1
      %p111 = por %p109, %p110
      %p113 = scmp.ne.s32.totalorder %s96, %s112
      %p114 = scmp.eq.s32.totalorder %s36, 0
      %p115 = por %p113, %p114
      %s117 = sadd.s32 %s116, 1
      %p120 = scmp.eq.s32.totalorder %s30, 1
      %p121 = scmp.ne.s32.totalorder %s116, %s118
      %p122 = scmp.eq.s32.totalorder %s30, 0
      %p123 = por %p121, %p122
      %p124 = scmp.ne.s32.totalorder %s116, %s118
      %p125 = scmp.eq.s32.totalorder %s35, 1
      %p126 = por %p124, %p125
      %p127 = scmp.ne.s32.totalorder %s118, %s119
      %p128 = scmp.eq.s32.totalorder %s35, 0
      %p129 = por %p127, %p128
      %p130 = scmp.ne.s32.totalorder %s118, %s119
      %p131 = scmp.eq.s32.totalorder %s36, 1
      %p132 = por %p130, %p131
      %p134 = scmp.ne.s32.totalorder %s119, %s133
      %p135 = scmp.eq.s32.totalorder %s36, 0
      %p136 = por %p134, %p135
      %s138 = sadd.s32 %s137, 1
      %p141 = scmp.eq.s32.totalorder %s30, 1
      %p142 = scmp.ne.s32.totalorder %s137, %s139
      %p143 = scmp.eq.s32.totalorder %s30, 0
      %p144 = por %p142, %p143
      %p145 = scmp.ne.s32.totalorder %s137, %s139
      %p146 = scmp.eq.s32.totalorder %s35, 1
      %p147 = por %p145, %p146
      %p148 = scmp.ne.s32.totalorder %s139, %s140
      %p149 = scmp.eq.s32.totalorder %s35, 0
      %p150 = por %p148, %p149
      %p151 = scmp.ne.s32.totalorder %s139, %s140
      %p152 = scmp.eq.s32.totalorder %s36, 1
      %p153 = por %p151, %p152
      %p155 = scmp.ne.s32.totalorder %s140, %s154
      %p156 = scmp.eq.s32.totalorder %s36, 0
      %p157 = por %p155, %p156
      %s159 = sadd.s32 %s158, 1
      %p162 = scmp.eq.s32.totalorder %s30, 1
      %p163 = scmp.ne.s32.totalorder %s158, %s160
      %p164 = scmp.eq.s32.totalorder %s30, 0
      %p165 = por %p163, %p164
      %p166 = scmp.ne.s32.totalorder %s158, %s160
      %p167 = scmp.eq.s32.totalorder %s35, 1
      %p168 = por %p166, %p167
      %p169 = scmp.ne.s32.totalorder %s160, %s161
      %p170 = scmp.eq.s32.totalorder %s35, 0
      %p171 = por %p169, %p170
      %p172 = scmp.ne.s32.totalorder %s160, %s161
      %p173 = scmp.eq.s32.totalorder %s36, 1
      %p174 = por %p172, %p173
      %p176 = scmp.ne.s32.totalorder %s161, %s175
      %p177 = scmp.eq.s32.totalorder %s36, 0
      %p178 = por %p176, %p177
      %s180 = sadd.s32 %s179, 1
      %p183 = scmp.eq.s32.totalorder %s30, 1
      %p184 = scmp.ne.s32.totalorder %s179, %s181
      %p185 = scmp.eq.s32.totalorder %s30, 0
      %p186 = por %p184, %p185
      %p187 = scmp.ne.s32.totalorder %s179, %s181
      %p188 = scmp.eq.s32.totalorder %s35, 1
      %p189 = por %p187, %p188
      %p190 = scmp.ne.s32.totalorder %s181, %s182
      %p191 = scmp.eq.s32.totalorder %s35, 0
      %p192 = por %p190, %p191
      %p193 = scmp.ne.s32.totalorder %s181, %s182
      %p194 = scmp.eq.s32.totalorder %s36, 1
      %p195 = por %p193, %p194
      %p197 = scmp.ne.s32.totalorder %s182, %s196
      %p198 = scmp.eq.s32.totalorder %s36, 0
      %p199 = por %p197, %p198
      %s201 = sadd.s32 %s200, 1
      %p204 = scmp.eq.s32.totalorder %s30, 1
      %p205 = scmp.ne.s32.totalorder %s200, %s202
      %p206 = scmp.eq.s32.totalorder %s30, 0
      %p207 = por %p205, %p206
      %p208 = scmp.ne.s32.totalorder %s200, %s202
      %p209 = scmp.eq.s32.totalorder %s35, 1
      %p210 = por %p208, %p209
      %p211 = scmp.ne.s32.totalorder %s202, %s203
      %p212 = scmp.eq.s32.totalorder %s35, 0
      %p213 = por %p211, %p212
      %p214 = scmp.ne.s32.totalorder %s202, %s203
      %p215 = scmp.eq.s32.totalorder %s36, 1
      %p216 = por %p214, %p215
      %p218 = scmp.ne.s32.totalorder %s203, %s217
      %p219 = scmp.eq.s32.totalorder %s36, 0
      %p220 = por %p218, %p219
      %s222 = sadd.s32 %s221, 1
      %p225 = scmp.eq.s32.totalorder %s30, 1
      %p226 = scmp.ne.s32.totalorder %s221, %s223
      %p227 = scmp.eq.s32.totalorder %s30, 0
      %p228 = por %p226, %p227
      %p229 = scmp.ne.s32.totalorder %s221, %s223
      %p230 = scmp.eq.s32.totalorder %s35, 1
      %p231 = por %p229, %p230
      %p232 = scmp.ne.s32.totalorder %s223, %s224
      %p233 = scmp.eq.s32.totalorder %s35, 0
      %p234 = por %p232, %p233
      %p235 = scmp.ne.s32.totalorder %s223, %s224
      %p236 = scmp.eq.s32.totalorder %s36, 1
      %p237 = por %p235, %p236
      %p239 = scmp.ne.s32.totalorder %s224, %s238
      %p240 = scmp.eq.s32.totalorder %s36, 0
      %p241 = por %p239, %p240
      %s243 = sadd.s32 %s242, 1
      %p246 = scmp.eq.s32.totalorder %s30, 1
      %p247 = scmp.ne.s32.totalorder %s242, %s244
      %p248 = scmp.eq.s32.totalorder %s30, 0
      %p249 = por %p247, %p248
      %p250 = scmp.ne.s32.totalorder %s242, %s244
      %p251 = scmp.eq.s32.totalorder %s35, 1
      %p252 = por %p250, %p251
      %p253 = scmp.ne.s32.totalorder %s244, %s245
      %p254 = scmp.eq.s32.totalorder %s35, 0
      %p255 = por %p253, %p254
      %p256 = scmp.ne.s32.totalorder %s244, %s245
      %p257 = scmp.eq.s32.totalorder %s36, 1
      %p258 = por %p256, %p257
      %p260 = scmp.ne.s32.totalorder %s245, %s259
      %p261 = scmp.eq.s32.totalorder %s36, 0
      %p262 = por %p260, %p261
      %s264 = sadd.s32 %s263, 1
      %p267 = scmp.eq.s32.totalorder %s30, 1
      %p268 = scmp.ne.s32.totalorder %s263, %s265
      %p269 = scmp.eq.s32.totalorder %s30, 0
      %p270 = por %p268, %p269
      %p271 = scmp.ne.s32.totalorder %s263, %s265
      %p272 = scmp.eq.s32.totalorder %s35, 1
      %p273 = por %p271, %p272
      %p274 = scmp.ne.s32.totalorder %s265, %s266
      %p275 = scmp.eq.s32.totalorder %s35, 0
      %p276 = por %p274, %p275
      %p277 = scmp.ne.s32.totalorder %s265, %s266
      %p278 = scmp.eq.s32.totalorder %s36, 1
      %p279 = por %p277, %p278
      %p281 = scmp.ne.s32.totalorder %s266, %s280
      %p282 = scmp.eq.s32.totalorder %s36, 0
      %p283 = por %p281, %p282
      %s285 = sadd.s32 %s284, 1
      %p288 = scmp.eq.s32.totalorder %s30, 1
      %p289 = scmp.ne.s32.totalorder %s284, %s286
      %p290 = scmp.eq.s32.totalorder %s30, 0
      %p291 = por %p289, %p290
      %p292 = scmp.ne.s32.totalorder %s284, %s286
      %p293 = scmp.eq.s32.totalorder %s35, 1
      %p294 = por %p292, %p293
      %p295 = scmp.ne.s32.totalorder %s286, %s287
      %p296 = scmp.eq.s32.totalorder %s35, 0
      %p297 = por %p295, %p296
      %p298 = scmp.ne.s32.totalorder %s286, %s287
      %p299 = scmp.eq.s32.totalorder %s36, 1
      %p300 = por %p298, %p299
      %p302 = scmp.ne.s32.totalorder %s287, %s301
      %p303 = scmp.eq.s32.totalorder %s36, 0
      %p304 = por %p302, %p303
      %s306 = sadd.s32 %s305, 1
      %p309 = scmp.eq.s32.totalorder %s30, 1
      %p310 = scmp.ne.s32.totalorder %s305, %s307
      %p311 = scmp.eq.s32.totalorder %s30, 0
      %p312 = por %p310, %p311
      %p313 = scmp.ne.s32.totalorder %s305, %s307
      %p314 = scmp.eq.s32.totalorder %s35, 1
      %p315 = por %p313, %p314
      %p316 = scmp.ne.s32.totalorder %s307, %s308
      %p317 = scmp.eq.s32.totalorder %s35, 0
      %p318 = por %p316, %p317
      %p319 = scmp.ne.s32.totalorder %s307, %s308
      %p320 = scmp.eq.s32.totalorder %s36, 1
      %p321 = por %p319, %p320
      %p323 = scmp.ne.s32.totalorder %s308, %s322
      %p324 = scmp.eq.s32.totalorder %s36, 0
      %p325 = por %p323, %p324
      %s327 = sadd.s32 %s326, 1
      %p330 = scmp.eq.s32.totalorder %s30, 1
      %p331 = scmp.ne.s32.totalorder %s326, %s328
      %p332 = scmp.eq.s32.totalorder %s30, 0
      %p333 = por %p331, %p332
      %p334 = scmp.ne.s32.totalorder %s326, %s328
      %p335 = scmp.eq.s32.totalorder %s35, 1
      %p336 = por %p334, %p335
      %p337 = scmp.ne.s32.totalorder %s328, %s329
      %p338 = scmp.eq.s32.totalorder %s35, 0
      %p339 = por %p337, %p338
      %p340 = scmp.ne.s32.totalorder %s328, %s329
      %p341 = scmp.eq.s32.totalorder %s36, 1
      %p342 = por %p340, %p341
      %p344 = scmp.ne.s32.totalorder %s329, %s343
      %p345 = scmp.eq.s32.totalorder %s36, 0
      %p346 = por %p344, %p345
      %s348 = sadd.s32 %s347, 1
      %p351 = scmp.eq.s32.totalorder %s30, 1
      %p352 = scmp.ne.s32.totalorder %s347, %s349
      %p353 = scmp.eq.s32.totalorder %s30, 0
      %p354 = por %p352, %p353
      %p355 = scmp.ne.s32.totalorder %s347, %s349
      %p356 = scmp.eq.s32.totalorder %s35, 1
      %p357 = por %p355, %p356
      %p358 = scmp.ne.s32.totalorder %s349, %s350
      %p359 = scmp.eq.s32.totalorder %s35, 0
      %p360 = por %p358, %p359
      %p361 = scmp.ne.s32.totalorder %s349, %s350
      %p362 = scmp.eq.s32.totalorder %s36, 1
      %p363 = por %p361, %p362
      %p365 = scmp.ne.s32.totalorder %s350, %s364
      %p366 = scmp.eq.s32.totalorder %s36, 0
      %p367 = por %p365, %p366
      %s369 = sadd.s32 %s368, 1
      %p372 = scmp.eq.s32.totalorder %s30, 1
      %p373 = scmp.ne.s32.totalorder %s368, %s370
      %p374 = scmp.eq.s32.totalorder %s30, 0
      %p375 = por %p373, %p374
      %p376 = scmp.ne.s32.totalorder %s368, %s370
      %p377 = scmp.eq.s32.totalorder %s35, 1
      %p378 = por %p376, %p377
      %p379 = scmp.ne.s32.totalorder %s370, %s371
      %p380 = scmp.eq.s32.totalorder %s35, 0
      %p381 = por %p379, %p380
      %p382 = scmp.ne.s32.totalorder %s370, %s371
      %p383 = scmp.eq.s32.totalorder %s36, 1
      %p384 = por %p382, %p383
      %p386 = scmp.ne.s32.totalorder %s371, %s385
      %p387 = scmp.eq.s32.totalorder %s36, 0
      %p388 = por %p386, %p387
      %s390 = sadd.s32 %s389, 1
      %p393 = scmp.eq.s32.totalorder %s30, 1
      %p394 = scmp.ne.s32.totalorder %s389, %s391
      %p395 = scmp.eq.s32.totalorder %s30, 0
      %p396 = por %p394, %p395
      %p397 = scmp.ne.s32.totalorder %s389, %s391
      %p398 = scmp.eq.s32.totalorder %s35, 1
      %p399 = por %p397, %p398
      %p400 = scmp.ne.s32.totalorder %s391, %s392
      %p401 = scmp.eq.s32.totalorder %s35, 0
      %p402 = por %p400, %p401
      %p403 = scmp.ne.s32.totalorder %s391, %s392
      %p404 = scmp.eq.s32.totalorder %s36, 1
      %p405 = por %p403, %p404
      %p407 = scmp.ne.s32.totalorder %s392, %s406
      %p408 = scmp.eq.s32.totalorder %s36, 0
      %p409 = por %p407, %p408
      %s411 = sadd.s32 %s410, 1
      %p414 = scmp.eq.s32.totalorder %s30, 1
      %p415 = scmp.ne.s32.totalorder %s410, %s412
      %p416 = scmp.eq.s32.totalorder %s30, 0
      %p417 = por %p415, %p416
      %p418 = scmp.ne.s32.totalorder %s410, %s412
      %p419 = scmp.eq.s32.totalorder %s35, 1
      %p420 = por %p418, %p419
      %p421 = scmp.ne.s32.totalorder %s412, %s413
      %p422 = scmp.eq.s32.totalorder %s35, 0
      %p423 = por %p421, %p422
      %p424 = scmp.ne.s32.totalorder %s412, %s413
      %p425 = scmp.eq.s32.totalorder %s36, 1
      %p426 = por %p424, %p425
      %p428 = scmp.ne.s32.totalorder %s413, %s427
      %p429 = scmp.eq.s32.totalorder %s36, 0
      %p430 = por %p428, %p429
      %s432 = sadd.s32 %s431, 1
      %p435 = scmp.eq.s32.totalorder %s30, 1
      %p436 = scmp.ne.s32.totalorder %s431, %s433
      %p437 = scmp.eq.s32.totalorder %s30, 0
      %p438 = por %p436, %p437
      %p439 = scmp.ne.s32.totalorder %s431, %s433
      %p440 = scmp.eq.s32.totalorder %s35, 1
      %p441 = por %p439, %p440
      %p442 = scmp.ne.s32.totalorder %s433, %s434
      %p443 = scmp.eq.s32.totalorder %s35, 0
      %p444 = por %p442, %p443
      %p445 = scmp.ne.s32.totalorder %s433, %s434
      %p446 = scmp.eq.s32.totalorder %s36, 1
      %p447 = por %p445, %p446
      %p449 = scmp.ne.s32.totalorder %s434, %s448
      %p450 = scmp.eq.s32.totalorder %s36, 0
      %p451 = por %p449, %p450
      %s453 = sadd.s32 %s452, 1
      %p456 = scmp.eq.s32.totalorder %s30, 1
      %p457 = scmp.ne.s32.totalorder %s452, %s454
      %p458 = scmp.eq.s32.totalorder %s30, 0
      %p459 = por %p457, %p458
      %p460 = scmp.ne.s32.totalorder %s452, %s454
      %p461 = scmp.eq.s32.totalorder %s35, 1
      %p462 = por %p460, %p461
      %p463 = scmp.ne.s32.totalorder %s454, %s455
      %p464 = scmp.eq.s32.totalorder %s35, 0
      %p465 = por %p463, %p464
      %p466 = scmp.ne.s32.totalorder %s454, %s455
      %p467 = scmp.eq.s32.totalorder %s36, 1
      %p468 = por %p466, %p467
      %p470 = scmp.ne.s32.totalorder %s455, %s469
      %p471 = scmp.eq.s32.totalorder %s36, 0
      %p472 = por %p470, %p471
      %s474 = sadd.s32 %s473, 1
      %p477 = scmp.eq.s32.totalorder %s30, 1
      %p478 = scmp.ne.s32.totalorder %s473, %s475
      %p479 = scmp.eq.s32.totalorder %s30, 0
      %p480 = por %p478, %p479
      %p481 = scmp.ne.s32.totalorder %s473, %s475
      %p482 = scmp.eq.s32.totalorder %s35, 1
      %p483 = por %p481, %p482
      %p484 = scmp.ne.s32.totalorder %s475, %s476
      %p485 = scmp.eq.s32.totalorder %s35, 0
      %p486 = por %p484, %p485
      %p487 = scmp.ne.s32.totalorder %s475, %s476
      %p488 = scmp.eq.s32.totalorder %s36, 1
      %p489 = por %p487, %p488
      %p491 = scmp.ne.s32.totalorder %s476, %s490
      %p492 = scmp.eq.s32.totalorder %s36, 0
      %p493 = por %p491, %p492
      %s495 = sadd.s32 %s494, 1
      %p498 = scmp.eq.s32.totalorder %s30, 1
      %p499 = scmp.ne.s32.totalorder %s494, %s496
      %p500 = scmp.eq.s32.totalorder %s30, 0
      %p501 = por %p499, %p500
      %p502 = scmp.ne.s32.totalorder %s494, %s496
      %p503 = scmp.eq.s32.totalorder %s35, 1
      %p504 = por %p502, %p503
      %p505 = scmp.ne.s32.totalorder %s496, %s497
      %p506 = scmp.eq.s32.totalorder %s35, 0
      %p507 = por %p505, %p506
      %p508 = scmp.ne.s32.totalorder %s496, %s497
      %p509 = scmp.eq.s32.totalorder %s36, 1
      %p510 = por %p508, %p509
      %p512 = scmp.ne.s32.totalorder %s497, %s511
      %p513 = scmp.eq.s32.totalorder %s36, 0
      %p514 = por %p512, %p513
      %s516 = sadd.s32 %s515, 1
      %p519 = scmp.eq.s32.totalorder %s30, 1
      %p520 = scmp.ne.s32.totalorder %s515, %s517
      %p521 = scmp.eq.s32.totalorder %s30, 0
      %p522 = por %p520, %p521
      %p523 = scmp.ne.s32.totalorder %s515, %s517
      %p524 = scmp.eq.s32.totalorder %s35, 1
      %p525 = por %p523, %p524
      %p526 = scmp.ne.s32.totalorder %s517, %s518
      %p527 = scmp.eq.s32.totalorder %s35, 0
      %p528 = por %p526, %p527
      %p529 = scmp.ne.s32.totalorder %s517, %s518
      %p530 = scmp.eq.s32.totalorder %s36, 1
      %p531 = por %p529, %p530
      %p533 = scmp.ne.s32.totalorder %s518, %s532
      %p534 = scmp.eq.s32.totalorder %s36, 0
      %p535 = por %p533, %p534
      %s536 = ssub.s32 %s30, %s37
      %p537 = scmp.eq.s32.totalorder %s536, 0
      %s539 = sadd.s32 %s538, 1
      %s540 = scalar_select %p537, %s538, %s539
      %p543 = pneg %p537
      %p544 = scmp.eq.s32.totalorder %s30, 1
      %p545 = por %p543, %p544
      %p546 = scmp.ne.s32.totalorder %s538, %s541
      %p547 = scmp.eq.s32.totalorder %s30, 0
      %p548 = por %p546, %p547
      %p549 = scmp.ne.s32.totalorder %s538, %s541
      %p550 = scmp.eq.s32.totalorder %s35, 1
      %p551 = por %p549, %p550
      %p552 = scmp.ne.s32.totalorder %s541, %s542
      %p553 = scmp.eq.s32.totalorder %s35, 0
      %p554 = por %p552, %p553
      %p555 = scmp.ne.s32.totalorder %s541, %s542
      %p556 = scmp.eq.s32.totalorder %s36, 1
      %p557 = por %p555, %p556
      %p559 = scmp.ne.s32.totalorder %s542, %s558
      %p560 = scmp.eq.s32.totalorder %s36, 0
      %p561 = por %p559, %p560
      %p562 = scmp.le.s32.totalorder 1, %s30
      %p563 = scmp.lt.s32.totalorder %s30, 3
      %p564 = pnand %p562, %p563
      %p565 = pneg %p564
      // Predicated region
      $region9: #{decoder_forward.1} parent=5 // pred_check
        _
      $region10: #{decoder_forward.1} parent=5 // pred_check_branch
        %567 = sbr.rel (%p564) target = $region12
      $region11: #{decoder_forward.1} parent=5 // pred_region
        %s568 = ssub.s32 %s30, 1
        // Predicated region
        $region13: #{decoder_forward.1} parent=11 // pred_check
          %p569 = pneg %p129
        $region14: #{decoder_forward.1} parent=11 // pred_check_branch
          %571 = sbr.rel (%p569) target = $region16
        $region15: #{decoder_forward.1} parent=11 // pred_region
          _
        $region16: #{decoder_forward.1} parent=11 // pred_fallthru
          _
        // Predicated region
        $region17: #{decoder_forward.1} parent=11 // pred_check
          %p572 = pneg %p150
        $region18: #{decoder_forward.1} parent=11 // pred_check_branch
          %574 = sbr.rel (%p572) target = $region20
        $region19: #{decoder_forward.1} parent=11 // pred_region
          %576 = vsyncadd [#allocation4], 0
          %s577 = sshll.u32 %s4, 4
          %s578 = int_to_ptr.hbm [resolvable:$true] %s577
          %s579 = sshll.u32 [#allocation3], 4
          %s580 = int_to_ptr.vmem [resolvable:$true] %s579
          %585 = dma.hbm_to_vmem [thread:$0]  %s578, 32768, %s580, [#allocation4], 1024, 1024, 64
        $region20: #{decoder_forward.1} parent=11 // pred_fallthru
          _
        // Predicated region
        $region21: #{decoder_forward.1} parent=11 // pred_check
          %p586 = pneg %p171
        $region22: #{decoder_forward.1} parent=11 // pred_check_branch
          %588 = sbr.rel (%p586) target = $region24
        $region23: #{decoder_forward.1} parent=11 // pred_region
          _
        $region24: #{decoder_forward.1} parent=11 // pred_fallthru
          _
        // Predicated region
        $region25: #{decoder_forward.1} parent=11 // pred_check
          %p589 = pneg %p192
        $region26: #{decoder_forward.1} parent=11 // pred_check_branch
          %591 = sbr.rel (%p589) target = $region28
        $region27: #{decoder_forward.1} parent=11 // pred_region
          _
        $region28: #{decoder_forward.1} parent=11 // pred_fallthru
          _
        // Predicated region
        $region29: #{decoder_forward.1} parent=11 // pred_check
          %p592 = pneg %p213
        $region30: #{decoder_forward.1} parent=11 // pred_check_branch
          %594 = sbr.rel (%p592) target = $region32
        $region31: #{decoder_forward.1} parent=11 // pred_region
          _
        $region32: #{decoder_forward.1} parent=11 // pred_fallthru
          _
        // Predicated region
        $region33: #{decoder_forward.1} parent=11 // pred_check
          %p595 = pneg %p234
        $region34: #{decoder_forward.1} parent=11 // pred_check_branch
          %597 = sbr.rel (%p595) target = $region36
        $region35: #{decoder_forward.1} parent=11 // pred_region
          _
        $region36: #{decoder_forward.1} parent=11 // pred_fallthru
          _
        // Predicated region
        $region37: #{decoder_forward.1} parent=11 // pred_check
          %p598 = pneg %p255
        $region38: #{decoder_forward.1} parent=11 // pred_check_branch
          %600 = sbr.rel (%p598) target = $region40
        $region39: #{decoder_forward.1} parent=11 // pred_region
          _
        $region40: #{decoder_forward.1} parent=11 // pred_fallthru
          _
        // Predicated region
        $region41: #{decoder_forward.1} parent=11 // pred_check
          %p601 = pneg %p276
        $region42: #{decoder_forward.1} parent=11 // pred_check_branch
          %603 = sbr.rel (%p601) target = $region44
        $region43: #{decoder_forward.1} parent=11 // pred_region
          _
        $region44: #{decoder_forward.1} parent=11 // pred_fallthru
          _
        // Predicated region
        $region45: #{decoder_forward.1} parent=11 // pred_check
          %p604 = pneg %p297
        $region46: #{decoder_forward.1} parent=11 // pred_check_branch
          %606 = sbr.rel (%p604) target = $region48
        $region47: #{decoder_forward.1} parent=11 // pred_region
          _
        $region48: #{decoder_forward.1} parent=11 // pred_fallthru
          _
        // Predicated region
        $region49: #{decoder_forward.1} parent=11 // pred_check
          %p607 = pneg %p318
        $region50: #{decoder_forward.1} parent=11 // pred_check_branch
          %609 = sbr.rel (%p607) target = $region52
        $region51: #{decoder_forward.1} parent=11 // pred_region
          _
        $region52: #{decoder_forward.1} parent=11 // pred_fallthru
          _
        // Predicated region
        $region53: #{decoder_forward.1} parent=11 // pred_check
          %p610 = pneg %p339
        $region54: #{decoder_forward.1} parent=11 // pred_check_branch
          %612 = sbr.rel (%p610) target = $region56
        $region55: #{decoder_forward.1} parent=11 // pred_region
          _
        $region56: #{decoder_forward.1} parent=11 // pred_fallthru
          _
        // Predicated region
        $region57: #{decoder_forward.1} parent=11 // pred_check
          %p613 = pneg %p360
        $region58: #{decoder_forward.1} parent=11 // pred_check_branch
          %615 = sbr.rel (%p613) target = $region60
        $region59: #{decoder_forward.1} parent=11 // pred_region
          _
        $region60: #{decoder_forward.1} parent=11 // pred_fallthru
          _
        // Predicated region
        $region61: #{decoder_forward.1} parent=11 // pred_check
          %p616 = pneg %p381
        $region62: #{decoder_forward.1} parent=11 // pred_check_branch
          %618 = sbr.rel (%p616) target = $region64
        $region63: #{decoder_forward.1} parent=11 // pred_region
          _
        $region64: #{decoder_forward.1} parent=11 // pred_fallthru
          _
        // Predicated region
        $region65: #{decoder_forward.1} parent=11 // pred_check
          %p619 = pneg %p402
        $region66: #{decoder_forward.1} parent=11 // pred_check_branch
          %621 = sbr.rel (%p619) target = $region68
        $region67: #{decoder_forward.1} parent=11 // pred_region
          _
        $region68: #{decoder_forward.1} parent=11 // pred_fallthru
          _
        // Predicated region
        $region69: #{decoder_forward.1} parent=11 // pred_check
          %p622 = pneg %p423
        $region70: #{decoder_forward.1} parent=11 // pred_check_branch
          %624 = sbr.rel (%p622) target = $region72
        $region71: #{decoder_forward.1} parent=11 // pred_region
          _
        $region72: #{decoder_forward.1} parent=11 // pred_fallthru
          _
        // Predicated region
        $region73: #{decoder_forward.1} parent=11 // pred_check
          %p625 = pneg %p444
        $region74: #{decoder_forward.1} parent=11 // pred_check_branch
          %627 = sbr.rel (%p625) target = $region76
        $region75: #{decoder_forward.1} parent=11 // pred_region
          _
        $region76: #{decoder_forward.1} parent=11 // pred_fallthru
          _
        // Predicated region
        $region77: #{decoder_forward.1} parent=11 // pred_check
          %p628 = pneg %p465
        $region78: #{decoder_forward.1} parent=11 // pred_check_branch
          %630 = sbr.rel (%p628) target = $region80
        $region79: #{decoder_forward.1} parent=11 // pred_region
          _
        $region80: #{decoder_forward.1} parent=11 // pred_fallthru
          _
        // Predicated region
        $region81: #{decoder_forward.1} parent=11 // pred_check
          %p631 = pneg %p486
        $region82: #{decoder_forward.1} parent=11 // pred_check_branch
          %633 = sbr.rel (%p631) target = $region84
        $region83: #{decoder_forward.1} parent=11 // pred_region
          _
        $region84: #{decoder_forward.1} parent=11 // pred_fallthru
          _
        // Predicated region
        $region85: #{decoder_forward.1} parent=11 // pred_check
          %p634 = pneg %p507
        $region86: #{decoder_forward.1} parent=11 // pred_check_branch
          %636 = sbr.rel (%p634) target = $region88
        $region87: #{decoder_forward.1} parent=11 // pred_region
          _
        $region88: #{decoder_forward.1} parent=11 // pred_fallthru
          _
        // Predicated region
        $region89: #{decoder_forward.1} parent=11 // pred_check
          %p637 = pneg %p528
        $region90: #{decoder_forward.1} parent=11 // pred_check_branch
          %639 = sbr.rel (%p637) target = $region92
        $region91: #{decoder_forward.1} parent=11 // pred_region
          _
        $region92: #{decoder_forward.1} parent=11 // pred_fallthru
          _
      $region12: #{decoder_forward.1} parent=5 // pred_fallthru
        _
      %p640 = scmp.lt.s32.totalorder %s30, 2
      // Predicated region
      $region93: #{decoder_forward.1} parent=5 // pred_check
        %p641 = pneg %p640
      $region94: #{decoder_forward.1} parent=5 // pred_check_branch
        %643 = sbr.rel (%p641) target = $region96
      $region95: #{decoder_forward.1} parent=5 // pred_region
        // Predicated region
        $region97: #{decoder_forward.1} parent=95 // pred_check
          %p644 = pneg %p50
        $region98: #{decoder_forward.1} parent=95 // pred_check_branch
          %646 = sbr.rel (%p644) target = $region100
        $region99: #{decoder_forward.1} parent=95 // pred_region
          %p647 = scmp.lt.s32.totalorder %s30, 1
          %s648 = scalar_select %p647, %s30, 1
          %s649 = smul.addr %s648, 8
          %s650 = scalar_lea.vmem %s0, %s649
        $region100: #{decoder_forward.1} parent=95 // pred_fallthru
          _
        // Predicated region
        $region101: #{decoder_forward.1} parent=95 // pred_check
          %p651 = pneg %p76
        $region102: #{decoder_forward.1} parent=95 // pred_check_branch
          %653 = sbr.rel (%p651) target = $region104
        $region103: #{decoder_forward.1} parent=95 // pred_region
          %p654 = scmp.lt.s32.totalorder %s30, 1
          %s655 = scalar_select %p654, %s30, 1
          %s656 = smul.addr %s655, 2
          %s657 = smul.addr %s656, 8
          %s658 = scalar_lea.vmem %s1, %s657
        $region104: #{decoder_forward.1} parent=95 // pred_fallthru
          _
        // Predicated region
        $region105: #{decoder_forward.1} parent=95 // pred_check
          %p659 = pneg %p102
        $region106: #{decoder_forward.1} parent=95 // pred_check_branch
          %661 = sbr.rel (%p659) target = $region108
        $region107: #{decoder_forward.1} parent=95 // pred_region
          %p662 = scmp.lt.s32.totalorder %s30, 1
          %s663 = scalar_select %p662, %s30, 1
          %s664 = smul.addr %s663, 8
          %s665 = smul.addr %s664, 8
          %s666 = scalar_lea.vmem %s2, %s665
        $region108: #{decoder_forward.1} parent=95 // pred_fallthru
          _
      $region96: #{decoder_forward.1} parent=5 // pred_fallthru
        _
      %p667 = scmp.le.s32.totalorder 1, %s30
      %p668 = scmp.lt.s32.totalorder %s30, 3
      %p669 = pnand %p667, %p668
      %p670 = pneg %p669
      // Predicated region
      $region109: #{decoder_forward.1} parent=5 // pred_check
        _
      $region110: #{decoder_forward.1} parent=5 // pred_check_branch
        %672 = sbr.rel (%p669) target = $region112
      $region111: #{decoder_forward.1} parent=5 // pred_region
        %s673 = ssub.s32 %s30, 1
        // Predicated region
        $region113: #{decoder_forward.1} parent=111 // pred_check
          %p674 = pneg %p150
        $region114: #{decoder_forward.1} parent=111 // pred_check_branch
          %676 = sbr.rel (%p674) target = $region116
        $region115: #{decoder_forward.1} parent=111 // pred_region
          %678 = dma.done [#allocation4], 32768
        $region116: #{decoder_forward.1} parent=111 // pred_fallthru
          _
        %p679 = scmp.lt.s32.totalorder %s35, 1
        %s680 = scalar_select %p679, %s35, 1
        %s681 = smul.addr %s680, 8
        %s682 = scalar_lea.vmem %s0, %s681
        %p683 = pneg %p56
        %p684 = pneg %p53
        %p685 = scmp.lt.s32.totalorder %s35, 1
        %s686 = scalar_select %p685, %s35, 1
        %s687 = smul.addr %s686, 2
        %s688 = smul.addr %s687, 8
        %s689 = scalar_lea.vmem %s1, %s688
        %p690 = pneg %p82
        %p691 = pneg %p79
        %p692 = scmp.lt.s32.totalorder %s35, 1
        %s693 = scalar_select %p692, %s35, 1
        %s694 = smul.addr %s693, 8
        %s695 = smul.addr %s694, 8
        %s696 = scalar_lea.vmem %s2, %s695
        %p697 = pneg %p108
        %p698 = pneg %p105
        %p699 = pneg %p129
        %p700 = pneg %p126
        %p701 = pneg %p150
        %p702 = pneg %p147
        %p703 = pneg %p171
        %p704 = pneg %p168
        %p705 = pneg %p192
        %p706 = pneg %p189
        %p707 = pneg %p213
        %p708 = pneg %p210
        %p709 = pneg %p234
        %p710 = pneg %p231
        %p711 = pneg %p255
        %p712 = pneg %p252
        %p713 = pneg %p276
        %p714 = pneg %p273
        %p715 = pneg %p297
        %p716 = pneg %p294
        %p717 = pneg %p318
        %p718 = pneg %p315
        %p719 = pneg %p339
        %p720 = pneg %p336
        %p721 = pneg %p360
        %p722 = pneg %p357
        %p723 = pneg %p381
        %p724 = pneg %p378
        %p725 = pneg %p402
        %p726 = pneg %p399
        %p727 = pneg %p423
        %p728 = pneg %p420
        %p729 = pneg %p444
        %p730 = pneg %p441
        %p731 = pneg %p465
        %p732 = pneg %p462
        %p733 = pneg %p486
        %p734 = pneg %p483
        %p735 = pneg %p507
        %p736 = pneg %p504
        %p737 = pneg %p528
        %p738 = pneg %p525
        %p739 = pneg %p554
        %p740 = pneg %p551
        %p741 = scmp.lt.s32.totalorder %s35, 1
        %s742 = scalar_select %p741, %s35, 1
        %s743 = smul.addr %s742, 8
        %s744 = smul.addr %s743, 8
        %s745 = scalar_lea.vmem %s23, %s744
        %p746 = scmp.lt.s32.totalorder %s35, 1
        %s747 = scalar_select %p746, %s35, 1
        %s748 = smul.addr %s747, 8
        %s749 = scalar_lea.vmem %s0, %s748
        %p750 = scmp.lt.s32.totalorder %s35, 1
        %s751 = scalar_select %p750, %s35, 1
        %s752 = smul.addr %s751, 2
        %s753 = smul.addr %s752, 8
        %s754 = scalar_lea.vmem %s1, %s753
        %p755 = scmp.lt.s32.totalorder %s35, 1
        %s756 = scalar_select %p755, %s35, 1
        %s757 = smul.addr %s756, 8
        %s758 = smul.addr %s757, 8
        %s759 = scalar_lea.vmem %s2, %s758
        %p760 = scmp.lt.s32.totalorder %s35, 1
        %s761 = scalar_select %p760, %s35, 1
        %s762 = smul.addr %s761, 8
        %s763 = smul.addr %s762, 8
        %s764 = scalar_lea.vmem %s23, %s763
        %v765 = vld [vmem:[%s749] sm:$0xff]
        %v766 = vld [vmem:[%s754] sm:$0xff]
        %v767 = vld [vmem:[%s754 + $0x8] sm:$0xff]
        %v768 = vld [vmem:[%s759] sm:$0xff]
        %v769 = vld [vmem:[%s759 + $0x8] sm:$0xff]
        %v770 = vld [vmem:[%s759 + $0x10] sm:$0xff]
        %v771 = vld [vmem:[%s759 + $0x18] sm:$0xff]
        %v772 = vld [vmem:[%s759 + $0x20] sm:$0xff]
        %v773 = vld [vmem:[%s759 + $0x28] sm:$0xff]
        %v774 = vld [vmem:[%s759 + $0x30] sm:$0xff]
        %v775 = vld [vmem:[%s759 + $0x38] sm:$0xff]
        %v776 = vld [vmem:[%s3] sm:$0xff]
        %v777 = vld [vmem:[%s3 + $0x8] sm:$0xff]
        %v778 = vld [vmem:[%s3 + $0x10] sm:$0xff]
        %v779 = vld [vmem:[%s3 + $0x18] sm:$0xff]
        %v780 = vld [vmem:[%s3 + $0x20] sm:$0xff]
        %v781 = vld [vmem:[%s3 + $0x28] sm:$0xff]
        %v782 = vld [vmem:[%s3 + $0x30] sm:$0xff]
        %v783 = vld [vmem:[%s3 + $0x38] sm:$0xff]
        %v784 = vld [vmem:[%s3 + $0x40] sm:$0xff]
        %v785 = vld [vmem:[%s3 + $0x48] sm:$0xff]
        %v786 = vld [vmem:[%s3 + $0x50] sm:$0xff]
        %v787 = vld [vmem:[%s3 + $0x58] sm:$0xff]
        %v788 = vld [vmem:[%s3 + $0x60] sm:$0xff]
        %v789 = vld [vmem:[%s3 + $0x68] sm:$0xff]
        %v790 = vld [vmem:[%s3 + $0x70] sm:$0xff]
        %v791 = vld [vmem:[%s3 + $0x78] sm:$0xff]
        %vm792 = vcmask 523264
        %v794 = vsel %vm792, %v765, 0
        %796 = vmatpush.msra.mxu0 0.0
        %797 = vmatpush.msra.mxu0 0.0
        %798 = vmatpush.msra.mxu0 0.0
        %799 = vmatpush.msra.mxu0 0.0
        %800 = vmatpush.msra.mxu0 0.0
        %801 = vmatpush.msra.mxu0 0.0
        %802 = vmatpush.msra.mxu0 0.0
        %803 = vmatpush.msra.mxu0 0.0
        %804 = vmatpush.msra.mxu0 %v790
        %805 = vmatpush.msra.mxu0 %v788
        %806 = vmatpush.msra.mxu0 %v786
        %807 = vmatpush.msra.mxu0 %v784
        %808 = vmatpush.msra.mxu0 %v782
        %809 = vmatpush.msra.mxu0 %v780
        %810 = vmatpush.msra.mxu0 %v778
        %811 = vmatpush.msra.mxu0 %v776
        %812 = vmatmul.f32.gmra.mxu0 %v794
        %v813 = vpop.f32.mrf.mxu0
        %v814 = vadd.f32 0.0, %v813
        %815 = vdwg.mxu0
        %816 = vmatpush.msra.mxu0 0.0
        %817 = vmatpush.msra.mxu0 0.0
        %818 = vmatpush.msra.mxu0 0.0
        %819 = vmatpush.msra.mxu0 0.0
        %820 = vmatpush.msra.mxu0 0.0
        %821 = vmatpush.msra.mxu0 0.0
        %822 = vmatpush.msra.mxu0 0.0
        %823 = vmatpush.msra.mxu0 0.0
        %824 = vmatpush.msra.mxu0 %v791
        %825 = vmatpush.msra.mxu0 %v789
        %826 = vmatpush.msra.mxu0 %v787
        %827 = vmatpush.msra.mxu0 %v785
        %828 = vmatpush.msra.mxu0 %v783
        %829 = vmatpush.msra.mxu0 %v781
        %830 = vmatpush.msra.mxu0 %v779
        %831 = vmatpush.msra.mxu0 %v777
        %832 = vmatmul.f32.gmra.mxu0 %v794
        %v833 = vpop.f32.mrf.mxu0
        %v834 = vadd.f32 0.0, %v833
        %835 = vdwg.mxu0
        %v836 = vld [vmem:[#allocation3] sm:$0xff]
        %v837 = vld [vmem:[#allocation3 + $0x8] sm:$0xff]
        %v838 = vld [vmem:[#allocation3 + $0x10] sm:$0xff]
        %v839 = vld [vmem:[#allocation3 + $0x18] sm:$0xff]
        %v840 = vld [vmem:[#allocation3 + $0x20] sm:$0xff]
        %v841 = vld [vmem:[#allocation3 + $0x28] sm:$0xff]
        %v842 = vld [vmem:[#allocation3 + $0x30] sm:$0xff]
        %v843 = vld [vmem:[#allocation3 + $0x38] sm:$0xff]
        %v844 = vld [vmem:[#allocation3 + $0x40] sm:$0xff]
        %v845 = vld [vmem:[#allocation3 + $0x48] sm:$0xff]
        %v846 = vld [vmem:[#allocation3 + $0x50] sm:$0xff]
        %v847 = vld [vmem:[#allocation3 + $0x58] sm:$0xff]
        %v848 = vld [vmem:[#allocation3 + $0x60] sm:$0xff]
        %v849 = vld [vmem:[#allocation3 + $0x68] sm:$0xff]
        %v850 = vld [vmem:[#allocation3 + $0x70] sm:$0xff]
        %v851 = vld [vmem:[#allocation3 + $0x78] sm:$0xff]
        %v852 = vld [vmem:[#allocation3 + $0x80] sm:$0xff]
        %v853 = vld [vmem:[#allocation3 + $0x88] sm:$0xff]
        %v854 = vld [vmem:[#allocation3 + $0x90] sm:$0xff]
        %v855 = vld [vmem:[#allocation3 + $0x98] sm:$0xff]
        %v856 = vld [vmem:[#allocation3 + $0xa0] sm:$0xff]
        %v857 = vld [vmem:[#allocation3 + $0xa8] sm:$0xff]
        %v858 = vld [vmem:[#allocation3 + $0xb0] sm:$0xff]
        %v859 = vld [vmem:[#allocation3 + $0xb8] sm:$0xff]
        %v860 = vld [vmem:[#allocation3 + $0xc0] sm:$0xff]
        %v861 = vld [vmem:[#allocation3 + $0xc8] sm:$0xff]
        %v862 = vld [vmem:[#allocation3 + $0xd0] sm:$0xff]
        %v863 = vld [vmem:[#allocation3 + $0xd8] sm:$0xff]
        %v864 = vld [vmem:[#allocation3 + $0xe0] sm:$0xff]
        %v865 = vld [vmem:[#allocation3 + $0xe8] sm:$0xff]
        %v866 = vld [vmem:[#allocation3 + $0xf0] sm:$0xff]
        %v867 = vld [vmem:[#allocation3 + $0xf8] sm:$0xff]
        %v868 = vld [vmem:[#allocation3 + $0x100] sm:$0xff]
        %v869 = vld [vmem:[#allocation3 + $0x108] sm:$0xff]
        %v870 = vld [vmem:[#allocation3 + $0x110] sm:$0xff]
        %v871 = vld [vmem:[#allocation3 + $0x118] sm:$0xff]
        %v872 = vld [vmem:[#allocation3 + $0x120] sm:$0xff]
        %v873 = vld [vmem:[#allocation3 + $0x128] sm:$0xff]
        %v874 = vld [vmem:[#allocation3 + $0x130] sm:$0xff]
        %v875 = vld [vmem:[#allocation3 + $0x138] sm:$0xff]
        %v876 = vld [vmem:[#allocation3 + $0x140] sm:$0xff]
        %v877 = vld [vmem:[#allocation3 + $0x148] sm:$0xff]
        %v878 = vld [vmem:[#allocation3 + $0x150] sm:$0xff]
        %v879 = vld [vmem:[#allocation3 + $0x158] sm:$0xff]
        %v880 = vld [vmem:[#allocation3 + $0x160] sm:$0xff]
        %v881 = vld [vmem:[#allocation3 + $0x168] sm:$0xff]
        %v882 = vld [vmem:[#allocation3 + $0x170] sm:$0xff]
        %v883 = vld [vmem:[#allocation3 + $0x178] sm:$0xff]
        %v884 = vld [vmem:[#allocation3 + $0x180] sm:$0xff]
        %v885 = vld [vmem:[#allocation3 + $0x188] sm:$0xff]
        %v886 = vld [vmem:[#allocation3 + $0x190] sm:$0xff]
        %v887 = vld [vmem:[#allocation3 + $0x198] sm:$0xff]
        %v888 = vld [vmem:[#allocation3 + $0x1a0] sm:$0xff]
        %v889 = vld [vmem:[#allocation3 + $0x1a8] sm:$0xff]
        %v890 = vld [vmem:[#allocation3 + $0x1b0] sm:$0xff]
        %v891 = vld [vmem:[#allocation3 + $0x1b8] sm:$0xff]
        %v892 = vld [vmem:[#allocation3 + $0x1c0] sm:$0xff]
        %v893 = vld [vmem:[#allocation3 + $0x1c8] sm:$0xff]
        %v894 = vld [vmem:[#allocation3 + $0x1d0] sm:$0xff]
        %v895 = vld [vmem:[#allocation3 + $0x1d8] sm:$0xff]
        %v896 = vld [vmem:[#allocation3 + $0x1e0] sm:$0xff]
        %v897 = vld [vmem:[#allocation3 + $0x1e8] sm:$0xff]
        %v898 = vld [vmem:[#allocation3 + $0x1f0] sm:$0xff]
        %v899 = vld [vmem:[#allocation3 + $0x1f8] sm:$0xff]
        %v900 = vld [vmem:[#allocation3 + $0x200] sm:$0xff]
        %v901 = vld [vmem:[#allocation3 + $0x208] sm:$0xff]
        %v902 = vld [vmem:[#allocation3 + $0x210] sm:$0xff]
        %v903 = vld [vmem:[#allocation3 + $0x218] sm:$0xff]
        %v904 = vld [vmem:[#allocation3 + $0x220] sm:$0xff]
        %v905 = vld [vmem:[#allocation3 + $0x228] sm:$0xff]
        %v906 = vld [vmem:[#allocation3 + $0x230] sm:$0xff]
        %v907 = vld [vmem:[#allocation3 + $0x238] sm:$0xff]
        %v908 = vld [vmem:[#allocation3 + $0x240] sm:$0xff]
        %v909 = vld [vmem:[#allocation3 + $0x248] sm:$0xff]
        %v910 = vld [vmem:[#allocation3 + $0x250] sm:$0xff]
        %v911 = vld [vmem:[#allocation3 + $0x258] sm:$0xff]
        %v912 = vld [vmem:[#allocation3 + $0x260] sm:$0xff]
        %v913 = vld [vmem:[#allocation3 + $0x268] sm:$0xff]
        %v914 = vld [vmem:[#allocation3 + $0x270] sm:$0xff]
        %v915 = vld [vmem:[#allocation3 + $0x278] sm:$0xff]
        %v916 = vld [vmem:[#allocation3 + $0x280] sm:$0xff]
        %v917 = vld [vmem:[#allocation3 + $0x288] sm:$0xff]
        %v918 = vld [vmem:[#allocation3 + $0x290] sm:$0xff]
        %v919 = vld [vmem:[#allocation3 + $0x298] sm:$0xff]
        %v920 = vld [vmem:[#allocation3 + $0x2a0] sm:$0xff]
        %v921 = vld [vmem:[#allocation3 + $0x2a8] sm:$0xff]
        %v922 = vld [vmem:[#allocation3 + $0x2b0] sm:$0xff]
        %v923 = vld [vmem:[#allocation3 + $0x2b8] sm:$0xff]
        %v924 = vld [vmem:[#allocation3 + $0x2c0] sm:$0xff]
        %v925 = vld [vmem:[#allocation3 + $0x2c8] sm:$0xff]
        %v926 = vld [vmem:[#allocation3 + $0x2d0] sm:$0xff]
        %v927 = vld [vmem:[#allocation3 + $0x2d8] sm:$0xff]
        %v928 = vld [vmem:[#allocation3 + $0x2e0] sm:$0xff]
        %v929 = vld [vmem:[#allocation3 + $0x2e8] sm:$0xff]
        %v930 = vld [vmem:[#allocation3 + $0x2f0] sm:$0xff]
        %v931 = vld [vmem:[#allocation3 + $0x2f8] sm:$0xff]
        %v932 = vld [vmem:[#allocation3 + $0x300] sm:$0xff]
        %v933 = vld [vmem:[#allocation3 + $0x308] sm:$0xff]
        %v934 = vld [vmem:[#allocation3 + $0x310] sm:$0xff]
        %v935 = vld [vmem:[#allocation3 + $0x318] sm:$0xff]
        %v936 = vld [vmem:[#allocation3 + $0x320] sm:$0xff]
        %v937 = vld [vmem:[#allocation3 + $0x328] sm:$0xff]
        %v938 = vld [vmem:[#allocation3 + $0x330] sm:$0xff]
        %v939 = vld [vmem:[#allocation3 + $0x338] sm:$0xff]
        %v940 = vld [vmem:[#allocation3 + $0x340] sm:$0xff]
        %v941 = vld [vmem:[#allocation3 + $0x348] sm:$0xff]
        %v942 = vld [vmem:[#allocation3 + $0x350] sm:$0xff]
        %v943 = vld [vmem:[#allocation3 + $0x358] sm:$0xff]
        %v944 = vld [vmem:[#allocation3 + $0x360] sm:$0xff]
        %v945 = vld [vmem:[#allocation3 + $0x368] sm:$0xff]
        %v946 = vld [vmem:[#allocation3 + $0x370] sm:$0xff]
        %v947 = vld [vmem:[#allocation3 + $0x378] sm:$0xff]
        %v948 = vld [vmem:[#allocation3 + $0x380] sm:$0xff]
        %v949 = vld [vmem:[#allocation3 + $0x388] sm:$0xff]
        %v950 = vld [vmem:[#allocation3 + $0x390] sm:$0xff]
        %v951 = vld [vmem:[#allocation3 + $0x398] sm:$0xff]
        %v952 = vld [vmem:[#allocation3 + $0x3a0] sm:$0xff]
        %v953 = vld [vmem:[#allocation3 + $0x3a8] sm:$0xff]
        %v954 = vld [vmem:[#allocation3 + $0x3b0] sm:$0xff]
        %v955 = vld [vmem:[#allocation3 + $0x3b8] sm:$0xff]
        %v956 = vld [vmem:[#allocation3 + $0x3c0] sm:$0xff]
        %v957 = vld [vmem:[#allocation3 + $0x3c8] sm:$0xff]
        %v958 = vld [vmem:[#allocation3 + $0x3d0] sm:$0xff]
        %v959 = vld [vmem:[#allocation3 + $0x3d8] sm:$0xff]
        %v960 = vld [vmem:[#allocation3 + $0x3e0] sm:$0xff]
        %v961 = vld [vmem:[#allocation3 + $0x3e8] sm:$0xff]
        %v962 = vld [vmem:[#allocation3 + $0x3f0] sm:$0xff]
        %v963 = vld [vmem:[#allocation3 + $0x3f8] sm:$0xff]
        %v964 = vld [vmem:[#allocation3 + $0x400] sm:$0xff]
        %v965 = vld [vmem:[#allocation3 + $0x408] sm:$0xff]
        %v966 = vld [vmem:[#allocation3 + $0x410] sm:$0xff]
        %v967 = vld [vmem:[#allocation3 + $0x418] sm:$0xff]
        %v968 = vld [vmem:[#allocation3 + $0x420] sm:$0xff]
        %v969 = vld [vmem:[#allocation3 + $0x428] sm:$0xff]
        %v970 = vld [vmem:[#allocation3 + $0x430] sm:$0xff]
        %v971 = vld [vmem:[#allocation3 + $0x438] sm:$0xff]
        %v972 = vld [vmem:[#allocation3 + $0x440] sm:$0xff]
        %v973 = vld [vmem:[#allocation3 + $0x448] sm:$0xff]
        %v974 = vld [vmem:[#allocation3 + $0x450] sm:$0xff]
        %v975 = vld [vmem:[#allocation3 + $0x458] sm:$0xff]
        %v976 = vld [vmem:[#allocation3 + $0x460] sm:$0xff]
        %v977 = vld [vmem:[#allocation3 + $0x468] sm:$0xff]
        %v978 = vld [vmem:[#allocation3 + $0x470] sm:$0xff]
        %v979 = vld [vmem:[#allocation3 + $0x478] sm:$0xff]
        %v980 = vld [vmem:[#allocation3 + $0x480] sm:$0xff]
        %v981 = vld [vmem:[#allocation3 + $0x488] sm:$0xff]
        %v982 = vld [vmem:[#allocation3 + $0x490] sm:$0xff]
        %v983 = vld [vmem:[#allocation3 + $0x498] sm:$0xff]
        %v984 = vld [vmem:[#allocation3 + $0x4a0] sm:$0xff]
        %v985 = vld [vmem:[#allocation3 + $0x4a8] sm:$0xff]
        %v986 = vld [vmem:[#allocation3 + $0x4b0] sm:$0xff]
        %v987 = vld [vmem:[#allocation3 + $0x4b8] sm:$0xff]
        %v988 = vld [vmem:[#allocation3 + $0x4c0] sm:$0xff]
        %v989 = vld [vmem:[#allocation3 + $0x4c8] sm:$0xff]
        %v990 = vld [vmem:[#allocation3 + $0x4d0] sm:$0xff]
        %v991 = vld [vmem:[#allocation3 + $0x4d8] sm:$0xff]
        %v992 = vld [vmem:[#allocation3 + $0x4e0] sm:$0xff]
        %v993 = vld [vmem:[#allocation3 + $0x4e8] sm:$0xff]
        %v994 = vld [vmem:[#allocation3 + $0x4f0] sm:$0xff]
        %v995 = vld [vmem:[#allocation3 + $0x4f8] sm:$0xff]
        %v996 = vld [vmem:[#allocation3 + $0x500] sm:$0xff]
        %v997 = vld [vmem:[#allocation3 + $0x508] sm:$0xff]
        %v998 = vld [vmem:[#allocation3 + $0x510] sm:$0xff]
        %v999 = vld [vmem:[#allocation3 + $0x518] sm:$0xff]
        %v1000 = vld [vmem:[#allocation3 + $0x520] sm:$0xff]
        %v1001 = vld [vmem:[#allocation3 + $0x528] sm:$0xff]
        %v1002 = vld [vmem:[#allocation3 + $0x530] sm:$0xff]
        %v1003 = vld [vmem:[#allocation3 + $0x538] sm:$0xff]
        %v1004 = vld [vmem:[#allocation3 + $0x540] sm:$0xff]
        %v1005 = vld [vmem:[#allocation3 + $0x548] sm:$0xff]
        %v1006 = vld [vmem:[#allocation3 + $0x550] sm:$0xff]
        %v1007 = vld [vmem:[#allocation3 + $0x558] sm:$0xff]
        %v1008 = vld [vmem:[#allocation3 + $0x560] sm:$0xff]
        %v1009 = vld [vmem:[#allocation3 + $0x568] sm:$0xff]
        %v1010 = vld [vmem:[#allocation3 + $0x570] sm:$0xff]
        %v1011 = vld [vmem:[#allocation3 + $0x578] sm:$0xff]
        %v1012 = vld [vmem:[#allocation3 + $0x580] sm:$0xff]
        %v1013 = vld [vmem:[#allocation3 + $0x588] sm:$0xff]
        %v1014 = vld [vmem:[#allocation3 + $0x590] sm:$0xff]
        %v1015 = vld [vmem:[#allocation3 + $0x598] sm:$0xff]
        %v1016 = vld [vmem:[#allocation3 + $0x5a0] sm:$0xff]
        %v1017 = vld [vmem:[#allocation3 + $0x5a8] sm:$0xff]
        %v1018 = vld [vmem:[#allocation3 + $0x5b0] sm:$0xff]
        %v1019 = vld [vmem:[#allocation3 + $0x5b8] sm:$0xff]
        %v1020 = vld [vmem:[#allocation3 + $0x5c0] sm:$0xff]
        %v1021 = vld [vmem:[#allocation3 + $0x5c8] sm:$0xff]
        %v1022 = vld [vmem:[#allocation3 + $0x5d0] sm:$0xff]
        %v1023 = vld [vmem:[#allocation3 + $0x5d8] sm:$0xff]
        %v1024 = vld [vmem:[#allocation3 + $0x5e0] sm:$0xff]
        %v1025 = vld [vmem:[#allocation3 + $0x5e8] sm:$0xff]
        %v1026 = vld [vmem:[#allocation3 + $0x5f0] sm:$0xff]
        %v1027 = vld [vmem:[#allocation3 + $0x5f8] sm:$0xff]
        %v1028 = vld [vmem:[#allocation3 + $0x600] sm:$0xff]
        %v1029 = vld [vmem:[#allocation3 + $0x608] sm:$0xff]
        %v1030 = vld [vmem:[#allocation3 + $0x610] sm:$0xff]
        %v1031 = vld [vmem:[#allocation3 + $0x618] sm:$0xff]
        %v1032 = vld [vmem:[#allocation3 + $0x620] sm:$0xff]
        %v1033 = vld [vmem:[#allocation3 + $0x628] sm:$0xff]
        %v1034 = vld [vmem:[#allocation3 + $0x630] sm:$0xff]
        %v1035 = vld [vmem:[#allocation3 + $0x638] sm:$0xff]
        %v1036 = vld [vmem:[#allocation3 + $0x640] sm:$0xff]
        %v1037 = vld [vmem:[#allocation3 + $0x648] sm:$0xff]
        %v1038 = vld [vmem:[#allocation3 + $0x650] sm:$0xff]
        %v1039 = vld [vmem:[#allocation3 + $0x658] sm:$0xff]
        %v1040 = vld [vmem:[#allocation3 + $0x660] sm:$0xff]
        %v1041 = vld [vmem:[#allocation3 + $0x668] sm:$0xff]
        %v1042 = vld [vmem:[#allocation3 + $0x670] sm:$0xff]
        %v1043 = vld [vmem:[#allocation3 + $0x678] sm:$0xff]
        %v1044 = vld [vmem:[#allocation3 + $0x680] sm:$0xff]
        %v1045 = vld [vmem:[#allocation3 + $0x688] sm:$0xff]
        %v1046 = vld [vmem:[#allocation3 + $0x690] sm:$0xff]
        %v1047 = vld [vmem:[#allocation3 + $0x698] sm:$0xff]
        %v1048 = vld [vmem:[#allocation3 + $0x6a0] sm:$0xff]
        %v1049 = vld [vmem:[#allocation3 + $0x6a8] sm:$0xff]
        %v1050 = vld [vmem:[#allocation3 + $0x6b0] sm:$0xff]
        %v1051 = vld [vmem:[#allocation3 + $0x6b8] sm:$0xff]
        %v1052 = vld [vmem:[#allocation3 + $0x6c0] sm:$0xff]
        %v1053 = vld [vmem:[#allocation3 + $0x6c8] sm:$0xff]
        %v1054 = vld [vmem:[#allocation3 + $0x6d0] sm:$0xff]
        %v1055 = vld [vmem:[#allocation3 + $0x6d8] sm:$0xff]
        %v1056 = vld [vmem:[#allocation3 + $0x6e0] sm:$0xff]
        %v1057 = vld [vmem:[#allocation3 + $0x6e8] sm:$0xff]
        %v1058 = vld [vmem:[#allocation3 + $0x6f0] sm:$0xff]
        %v1059 = vld [vmem:[#allocation3 + $0x6f8] sm:$0xff]
        %v1060 = vld [vmem:[#allocation3 + $0x700] sm:$0xff]
        %v1061 = vld [vmem:[#allocation3 + $0x708] sm:$0xff]
        %v1062 = vld [vmem:[#allocation3 + $0x710] sm:$0xff]
        %v1063 = vld [vmem:[#allocation3 + $0x718] sm:$0xff]
        %v1064 = vld [vmem:[#allocation3 + $0x720] sm:$0xff]
        %v1065 = vld [vmem:[#allocation3 + $0x728] sm:$0xff]
        %v1066 = vld [vmem:[#allocation3 + $0x730] sm:$0xff]
        %v1067 = vld [vmem:[#allocation3 + $0x738] sm:$0xff]
        %v1068 = vld [vmem:[#allocation3 + $0x740] sm:$0xff]
        %v1069 = vld [vmem:[#allocation3 + $0x748] sm:$0xff]
        %v1070 = vld [vmem:[#allocation3 + $0x750] sm:$0xff]
        %v1071 = vld [vmem:[#allocation3 + $0x758] sm:$0xff]
        %v1072 = vld [vmem:[#allocation3 + $0x760] sm:$0xff]
        %v1073 = vld [vmem:[#allocation3 + $0x768] sm:$0xff]
        %v1074 = vld [vmem:[#allocation3 + $0x770] sm:$0xff]
        %v1075 = vld [vmem:[#allocation3 + $0x778] sm:$0xff]
        %v1076 = vld [vmem:[#allocation3 + $0x780] sm:$0xff]
        %v1077 = vld [vmem:[#allocation3 + $0x788] sm:$0xff]
        %v1078 = vld [vmem:[#allocation3 + $0x790] sm:$0xff]
        %v1079 = vld [vmem:[#allocation3 + $0x798] sm:$0xff]
        %v1080 = vld [vmem:[#allocation3 + $0x7a0] sm:$0xff]
        %v1081 = vld [vmem:[#allocation3 + $0x7a8] sm:$0xff]
        %v1082 = vld [vmem:[#allocation3 + $0x7b0] sm:$0xff]
        %v1083 = vld [vmem:[#allocation3 + $0x7b8] sm:$0xff]
        %v1084 = vld [vmem:[#allocation3 + $0x7c0] sm:$0xff]
        %v1085 = vld [vmem:[#allocation3 + $0x7c8] sm:$0xff]
        %v1086 = vld [vmem:[#allocation3 + $0x7d0] sm:$0xff]
        %v1087 = vld [vmem:[#allocation3 + $0x7d8] sm:$0xff]
        %v1088 = vld [vmem:[#allocation3 + $0x7e0] sm:$0xff]
        %v1089 = vld [vmem:[#allocation3 + $0x7e8] sm:$0xff]
        %v1090 = vld [vmem:[#allocation3 + $0x7f0] sm:$0xff]
        %v1091 = vld [vmem:[#allocation3 + $0x7f8] sm:$0xff]
        %1092 = vmatpush.msra.mxu0 %v956
        %1093 = vmatpush.msra.mxu0 %v948
        %1094 = vmatpush.msra.mxu0 %v940
        %1095 = vmatpush.msra.mxu0 %v932
        %1096 = vmatpush.msra.mxu0 %v924
        %1097 = vmatpush.msra.mxu0 %v916
        %1098 = vmatpush.msra.mxu0 %v908
        %1099 = vmatpush.msra.mxu0 %v900
        %1100 = vmatpush.msra.mxu0 %v892
        %1101 = vmatpush.msra.mxu0 %v884
        %1102 = vmatpush.msra.mxu0 %v876
        %1103 = vmatpush.msra.mxu0 %v868
        %1104 = vmatpush.msra.mxu0 %v860
        %1105 = vmatpush.msra.mxu0 %v852
        %1106 = vmatpush.msra.mxu0 %v844
        %1107 = vmatpush.msra.mxu0 %v836
        %1108 = vmatmul.f32.gmra.mxu0 %v814
        %v1109 = vpop.f32.mrf.mxu0
        %v1110 = vadd.f32 0.0, %v1109
        %1111 = vdwg.mxu0
        %1112 = vmatpush.msra.mxu0 %v1084
        %1113 = vmatpush.msra.mxu0 %v1076
        %1114 = vmatpush.msra.mxu0 %v1068
        %1115 = vmatpush.msra.mxu0 %v1060
        %1116 = vmatpush.msra.mxu0 %v1052
        %1117 = vmatpush.msra.mxu0 %v1044
        %1118 = vmatpush.msra.mxu0 %v1036
        %1119 = vmatpush.msra.mxu0 %v1028
        %1120 = vmatpush.msra.mxu0 %v1020
        %1121 = vmatpush.msra.mxu0 %v1012
        %1122 = vmatpush.msra.mxu0 %v1004
        %1123 = vmatpush.msra.mxu0 %v996
        %1124 = vmatpush.msra.mxu0 %v988
        %1125 = vmatpush.msra.mxu0 %v980
        %1126 = vmatpush.msra.mxu0 %v972
        %1127 = vmatpush.msra.mxu0 %v964
        %1128 = vmatmul.f32.gmra.mxu0 %v834
        %v1129 = vpop.f32.mrf.mxu0
        %v1130 = vadd.f32 %v1110, %v1129
        %1131 = vdwg.mxu0
        %1132 = vmatpush.msra.mxu0 %v957
        %1133 = vmatpush.msra.mxu0 %v949
        %1134 = vmatpush.msra.mxu0 %v941
        %1135 = vmatpush.msra.mxu0 %v933
        %1136 = vmatpush.msra.mxu0 %v925
        %1137 = vmatpush.msra.mxu0 %v917
        %1138 = vmatpush.msra.mxu0 %v909
        %1139 = vmatpush.msra.mxu0 %v901
        %1140 = vmatpush.msra.mxu0 %v893
        %1141 = vmatpush.msra.mxu0 %v885
        %1142 = vmatpush.msra.mxu0 %v877
        %1143 = vmatpush.msra.mxu0 %v869
        %1144 = vmatpush.msra.mxu0 %v861
        %1145 = vmatpush.msra.mxu0 %v853
        %1146 = vmatpush.msra.mxu0 %v845
        %1147 = vmatpush.msra.mxu0 %v837
        %1148 = vmatmul.f32.gmra.mxu0 %v814
        %v1149 = vpop.f32.mrf.mxu0
        %v1150 = vadd.f32 0.0, %v1149
        %1151 = vdwg.mxu0
        %1152 = vmatpush.msra.mxu0 %v1085
        %1153 = vmatpush.msra.mxu0 %v1077
        %1154 = vmatpush.msra.mxu0 %v1069
        %1155 = vmatpush.msra.mxu0 %v1061
        %1156 = vmatpush.msra.mxu0 %v1053
        %1157 = vmatpush.msra.mxu0 %v1045
        %1158 = vmatpush.msra.mxu0 %v1037
        %1159 = vmatpush.msra.mxu0 %v1029
        %1160 = vmatpush.msra.mxu0 %v1021
        %1161 = vmatpush.msra.mxu0 %v1013
        %1162 = vmatpush.msra.mxu0 %v1005
        %1163 = vmatpush.msra.mxu0 %v997
        %1164 = vmatpush.msra.mxu0 %v989
        %1165 = vmatpush.msra.mxu0 %v981
        %1166 = vmatpush.msra.mxu0 %v973
        %1167 = vmatpush.msra.mxu0 %v965
        %1168 = vmatmul.f32.gmra.mxu0 %v834
        %v1169 = vpop.f32.mrf.mxu0
        %v1170 = vadd.f32 %v1150, %v1169
        %1171 = vdwg.mxu0
        %1172 = vmatpush.msra.mxu0 %v958
        %1173 = vmatpush.msra.mxu0 %v950
        %1174 = vmatpush.msra.mxu0 %v942
        %1175 = vmatpush.msra.mxu0 %v934
        %1176 = vmatpush.msra.mxu0 %v926
        %1177 = vmatpush.msra.mxu0 %v918
        %1178 = vmatpush.msra.mxu0 %v910
        %1179 = vmatpush.msra.mxu0 %v902
        %1180 = vmatpush.msra.mxu0 %v894
        %1181 = vmatpush.msra.mxu0 %v886
        %1182 = vmatpush.msra.mxu0 %v878
        %1183 = vmatpush.msra.mxu0 %v870
        %1184 = vmatpush.msra.mxu0 %v862
        %1185 = vmatpush.msra.mxu0 %v854
        %1186 = vmatpush.msra.mxu0 %v846
        %1187 = vmatpush.msra.mxu0 %v838
        %1188 = vmatmul.f32.gmra.mxu0 %v814
        %v1189 = vpop.f32.mrf.mxu0
        %v1190 = vadd.f32 0.0, %v1189
        %1191 = vdwg.mxu0
        %1192 = vmatpush.msra.mxu0 %v1086
        %1193 = vmatpush.msra.mxu0 %v1078
        %1194 = vmatpush.msra.mxu0 %v1070
        %1195 = vmatpush.msra.mxu0 %v1062
        %1196 = vmatpush.msra.mxu0 %v1054
        %1197 = vmatpush.msra.mxu0 %v1046
        %1198 = vmatpush.msra.mxu0 %v1038
        %1199 = vmatpush.msra.mxu0 %v1030
        %1200 = vmatpush.msra.mxu0 %v1022
        %1201 = vmatpush.msra.mxu0 %v1014
        %1202 = vmatpush.msra.mxu0 %v1006
        %1203 = vmatpush.msra.mxu0 %v998
        %1204 = vmatpush.msra.mxu0 %v990
        %1205 = vmatpush.msra.mxu0 %v982
        %1206 = vmatpush.msra.mxu0 %v974
        %1207 = vmatpush.msra.mxu0 %v966
        %1208 = vmatmul.f32.gmra.mxu0 %v834
        %v1209 = vpop.f32.mrf.mxu0
        %v1210 = vadd.f32 %v1190, %v1209
        %1211 = vdwg.mxu0
        %1212 = vmatpush.msra.mxu0 %v959
        %1213 = vmatpush.msra.mxu0 %v951
        %1214 = vmatpush.msra.mxu0 %v943
        %1215 = vmatpush.msra.mxu0 %v935
        %1216 = vmatpush.msra.mxu0 %v927
        %1217 = vmatpush.msra.mxu0 %v919
        %1218 = vmatpush.msra.mxu0 %v911
        %1219 = vmatpush.msra.mxu0 %v903
        %1220 = vmatpush.msra.mxu0 %v895
        %1221 = vmatpush.msra.mxu0 %v887
        %1222 = vmatpush.msra.mxu0 %v879
        %1223 = vmatpush.msra.mxu0 %v871
        %1224 = vmatpush.msra.mxu0 %v863
        %1225 = vmatpush.msra.mxu0 %v855
        %1226 = vmatpush.msra.mxu0 %v847
        %1227 = vmatpush.msra.mxu0 %v839
        %1228 = vmatmul.f32.gmra.mxu0 %v814
        %v1229 = vpop.f32.mrf.mxu0
        %v1230 = vadd.f32 0.0, %v1229
        %1231 = vdwg.mxu0
        %1232 = vmatpush.msra.mxu0 %v1087
        %1233 = vmatpush.msra.mxu0 %v1079
        %1234 = vmatpush.msra.mxu0 %v1071
        %1235 = vmatpush.msra.mxu0 %v1063
        %1236 = vmatpush.msra.mxu0 %v1055
        %1237 = vmatpush.msra.mxu0 %v1047
        %1238 = vmatpush.msra.mxu0 %v1039
        %1239 = vmatpush.msra.mxu0 %v1031
        %1240 = vmatpush.msra.mxu0 %v1023
        %1241 = vmatpush.msra.mxu0 %v1015
        %1242 = vmatpush.msra.mxu0 %v1007
        %1243 = vmatpush.msra.mxu0 %v999
        %1244 = vmatpush.msra.mxu0 %v991
        %1245 = vmatpush.msra.mxu0 %v983
        %1246 = vmatpush.msra.mxu0 %v975
        %1247 = vmatpush.msra.mxu0 %v967
        %1248 = vmatmul.f32.gmra.mxu0 %v834
        %v1249 = vpop.f32.mrf.mxu0
        %v1250 = vadd.f32 %v1230, %v1249
        %1251 = vdwg.mxu0
        %1252 = vmatpush.msra.mxu0 %v960
        %1253 = vmatpush.msra.mxu0 %v952
        %1254 = vmatpush.msra.mxu0 %v944
        %1255 = vmatpush.msra.mxu0 %v936
        %1256 = vmatpush.msra.mxu0 %v928
        %1257 = vmatpush.msra.mxu0 %v920
        %1258 = vmatpush.msra.mxu0 %v912
        %1259 = vmatpush.msra.mxu0 %v904
        %1260 = vmatpush.msra.mxu0 %v896
        %1261 = vmatpush.msra.mxu0 %v888
        %1262 = vmatpush.msra.mxu0 %v880
        %1263 = vmatpush.msra.mxu0 %v872
        %1264 = vmatpush.msra.mxu0 %v864
        %1265 = vmatpush.msra.mxu0 %v856
        %1266 = vmatpush.msra.mxu0 %v848
        %1267 = vmatpush.msra.mxu0 %v840
        %1268 = vmatmul.f32.gmra.mxu0 %v814
        %v1269 = vpop.f32.mrf.mxu0
        %v1270 = vadd.f32 0.0, %v1269
        %1271 = vdwg.mxu0
        %1272 = vmatpush.msra.mxu0 %v1088
        %1273 = vmatpush.msra.mxu0 %v1080
        %1274 = vmatpush.msra.mxu0 %v1072
        %1275 = vmatpush.msra.mxu0 %v1064
        %1276 = vmatpush.msra.mxu0 %v1056
        %1277 = vmatpush.msra.mxu0 %v1048
        %1278 = vmatpush.msra.mxu0 %v1040
        %1279 = vmatpush.msra.mxu0 %v1032
        %1280 = vmatpush.msra.mxu0 %v1024
        %1281 = vmatpush.msra.mxu0 %v1016
        %1282 = vmatpush.msra.mxu0 %v1008
        %1283 = vmatpush.msra.mxu0 %v1000
        %1284 = vmatpush.msra.mxu0 %v992
        %1285 = vmatpush.msra.mxu0 %v984
        %1286 = vmatpush.msra.mxu0 %v976
        %1287 = vmatpush.msra.mxu0 %v968
        %1288 = vmatmul.f32.gmra.mxu0 %v834
        %v1289 = vpop.f32.mrf.mxu0
        %v1290 = vadd.f32 %v1270, %v1289
        %1291 = vdwg.mxu0
        %1292 = vmatpush.msra.mxu0 %v961
        %1293 = vmatpush.msra.mxu0 %v953
        %1294 = vmatpush.msra.mxu0 %v945
        %1295 = vmatpush.msra.mxu0 %v937
        %1296 = vmatpush.msra.mxu0 %v929
        %1297 = vmatpush.msra.mxu0 %v921
        %1298 = vmatpush.msra.mxu0 %v913
        %1299 = vmatpush.msra.mxu0 %v905
        %1300 = vmatpush.msra.mxu0 %v897
        %1301 = vmatpush.msra.mxu0 %v889
        %1302 = vmatpush.msra.mxu0 %v881
        %1303 = vmatpush.msra.mxu0 %v873
        %1304 = vmatpush.msra.mxu0 %v865
        %1305 = vmatpush.msra.mxu0 %v857
        %1306 = vmatpush.msra.mxu0 %v849
        %1307 = vmatpush.msra.mxu0 %v841
        %1308 = vmatmul.f32.gmra.mxu0 %v814
        %v1309 = vpop.f32.mrf.mxu0
        %v1310 = vadd.f32 0.0, %v1309
        %1311 = vdwg.mxu0
        %1312 = vmatpush.msra.mxu0 %v1089
        %1313 = vmatpush.msra.mxu0 %v1081
        %1314 = vmatpush.msra.mxu0 %v1073
        %1315 = vmatpush.msra.mxu0 %v1065
        %1316 = vmatpush.msra.mxu0 %v1057
        %1317 = vmatpush.msra.mxu0 %v1049
        %1318 = vmatpush.msra.mxu0 %v1041
        %1319 = vmatpush.msra.mxu0 %v1033
        %1320 = vmatpush.msra.mxu0 %v1025
        %1321 = vmatpush.msra.mxu0 %v1017
        %1322 = vmatpush.msra.mxu0 %v1009
        %1323 = vmatpush.msra.mxu0 %v1001
        %1324 = vmatpush.msra.mxu0 %v993
        %1325 = vmatpush.msra.mxu0 %v985
        %1326 = vmatpush.msra.mxu0 %v977
        %1327 = vmatpush.msra.mxu0 %v969
        %1328 = vmatmul.f32.gmra.mxu0 %v834
        %v1329 = vpop.f32.mrf.mxu0
        %v1330 = vadd.f32 %v1310, %v1329
        %1331 = vdwg.mxu0
        %1332 = vmatpush.msra.mxu0 %v962
        %1333 = vmatpush.msra.mxu0 %v954
        %1334 = vmatpush.msra.mxu0 %v946
        %1335 = vmatpush.msra.mxu0 %v938
        %1336 = vmatpush.msra.mxu0 %v930
        %1337 = vmatpush.msra.mxu0 %v922
        %1338 = vmatpush.msra.mxu0 %v914
        %1339 = vmatpush.msra.mxu0 %v906
        %1340 = vmatpush.msra.mxu0 %v898
        %1341 = vmatpush.msra.mxu0 %v890
        %1342 = vmatpush.msra.mxu0 %v882
        %1343 = vmatpush.msra.mxu0 %v874
        %1344 = vmatpush.msra.mxu0 %v866
        %1345 = vmatpush.msra.mxu0 %v858
        %1346 = vmatpush.msra.mxu0 %v850
        %1347 = vmatpush.msra.mxu0 %v842
        %1348 = vmatmul.f32.gmra.mxu0 %v814
        %v1349 = vpop.f32.mrf.mxu0
        %v1350 = vadd.f32 0.0, %v1349
        %1351 = vdwg.mxu0
        %1352 = vmatpush.msra.mxu0 %v1090
        %1353 = vmatpush.msra.mxu0 %v1082
        %1354 = vmatpush.msra.mxu0 %v1074
        %1355 = vmatpush.msra.mxu0 %v1066
        %1356 = vmatpush.msra.mxu0 %v1058
        %1357 = vmatpush.msra.mxu0 %v1050
        %1358 = vmatpush.msra.mxu0 %v1042
        %1359 = vmatpush.msra.mxu0 %v1034
        %1360 = vmatpush.msra.mxu0 %v1026
        %1361 = vmatpush.msra.mxu0 %v1018
        %1362 = vmatpush.msra.mxu0 %v1010
        %1363 = vmatpush.msra.mxu0 %v1002
        %1364 = vmatpush.msra.mxu0 %v994
        %1365 = vmatpush.msra.mxu0 %v986
        %1366 = vmatpush.msra.mxu0 %v978
        %1367 = vmatpush.msra.mxu0 %v970
        %1368 = vmatmul.f32.gmra.mxu0 %v834
        %v1369 = vpop.f32.mrf.mxu0
        %v1370 = vadd.f32 %v1350, %v1369
        %1371 = vdwg.mxu0
        %1372 = vmatpush.msra.mxu0 %v963
        %1373 = vmatpush.msra.mxu0 %v955
        %1374 = vmatpush.msra.mxu0 %v947
        %1375 = vmatpush.msra.mxu0 %v939
        %1376 = vmatpush.msra.mxu0 %v931
        %1377 = vmatpush.msra.mxu0 %v923
        %1378 = vmatpush.msra.mxu0 %v915
        %1379 = vmatpush.msra.mxu0 %v907
        %1380 = vmatpush.msra.mxu0 %v899
        %1381 = vmatpush.msra.mxu0 %v891
        %1382 = vmatpush.msra.mxu0 %v883
        %1383 = vmatpush.msra.mxu0 %v875
        %1384 = vmatpush.msra.mxu0 %v867
        %1385 = vmatpush.msra.mxu0 %v859
        %1386 = vmatpush.msra.mxu0 %v851
        %1387 = vmatpush.msra.mxu0 %v843
        %1388 = vmatmul.f32.gmra.mxu0 %v814
        %v1389 = vpop.f32.mrf.mxu0
        %v1390 = vadd.f32 0.0, %v1389
        %1391 = vdwg.mxu0
        %1392 = vmatpush.msra.mxu0 %v1091
        %1393 = vmatpush.msra.mxu0 %v1083
        %1394 = vmatpush.msra.mxu0 %v1075
        %1395 = vmatpush.msra.mxu0 %v1067
        %1396 = vmatpush.msra.mxu0 %v1059
        %1397 = vmatpush.msra.mxu0 %v1051
        %1398 = vmatpush.msra.mxu0 %v1043
        %1399 = vmatpush.msra.mxu0 %v1035
        %1400 = vmatpush.msra.mxu0 %v1027
        %1401 = vmatpush.msra.mxu0 %v1019
        %1402 = vmatpush.msra.mxu0 %v1011
        %1403 = vmatpush.msra.mxu0 %v1003
        %1404 = vmatpush.msra.mxu0 %v995
        %1405 = vmatpush.msra.mxu0 %v987
        %1406 = vmatpush.msra.mxu0 %v979
        %1407 = vmatpush.msra.mxu0 %v971
        %1408 = vmatmul.f32.gmra.mxu0 %v834
        %v1409 = vpop.f32.mrf.mxu0
        %v1410 = vadd.f32 %v1390, %v1409
        %1411 = vdwg.mxu0
        %1412 = vmatpush.msra.mxu0 %v956
        %1413 = vmatpush.msra.mxu0 %v948
        %1414 = vmatpush.msra.mxu0 %v940
        %1415 = vmatpush.msra.mxu0 %v932
        %1416 = vmatpush.msra.mxu0 %v924
        %1417 = vmatpush.msra.mxu0 %v916
        %1418 = vmatpush.msra.mxu0 %v908
        %1419 = vmatpush.msra.mxu0 %v900
        %1420 = vmatpush.msra.mxu0 %v892
        %1421 = vmatpush.msra.mxu0 %v884
        %1422 = vmatpush.msra.mxu0 %v876
        %1423 = vmatpush.msra.mxu0 %v868
        %1424 = vmatpush.msra.mxu0 %v860
        %1425 = vmatpush.msra.mxu0 %v852
        %1426 = vmatpush.msra.mxu0 %v844
        %1427 = vmatpush.msra.mxu0 %v836
        %1428 = vmatmul.f32.gmra.mxu0 %v766
        %v1429 = vpop.f32.mrf.mxu0
        %v1430 = vadd.f32 0.0, %v1429
        %1431 = vdwg.mxu0
        %1432 = vmatpush.msra.mxu0 %v1084
        %1433 = vmatpush.msra.mxu0 %v1076
        %1434 = vmatpush.msra.mxu0 %v1068
        %1435 = vmatpush.msra.mxu0 %v1060
        %1436 = vmatpush.msra.mxu0 %v1052
        %1437 = vmatpush.msra.mxu0 %v1044
        %1438 = vmatpush.msra.mxu0 %v1036
        %1439 = vmatpush.msra.mxu0 %v1028
        %1440 = vmatpush.msra.mxu0 %v1020
        %1441 = vmatpush.msra.mxu0 %v1012
        %1442 = vmatpush.msra.mxu0 %v1004
        %1443 = vmatpush.msra.mxu0 %v996
        %1444 = vmatpush.msra.mxu0 %v988
        %1445 = vmatpush.msra.mxu0 %v980
        %1446 = vmatpush.msra.mxu0 %v972
        %1447 = vmatpush.msra.mxu0 %v964
        %1448 = vmatmul.f32.gmra.mxu0 %v767
        %v1449 = vpop.f32.mrf.mxu0
        %v1450 = vadd.f32 %v1430, %v1449
        %1451 = vdwg.mxu0
        %1452 = vmatpush.msra.mxu0 %v957
        %1453 = vmatpush.msra.mxu0 %v949
        %1454 = vmatpush.msra.mxu0 %v941
        %1455 = vmatpush.msra.mxu0 %v933
        %1456 = vmatpush.msra.mxu0 %v925
        %1457 = vmatpush.msra.mxu0 %v917
        %1458 = vmatpush.msra.mxu0 %v909
        %1459 = vmatpush.msra.mxu0 %v901
        %1460 = vmatpush.msra.mxu0 %v893
        %1461 = vmatpush.msra.mxu0 %v885
        %1462 = vmatpush.msra.mxu0 %v877
        %1463 = vmatpush.msra.mxu0 %v869
        %1464 = vmatpush.msra.mxu0 %v861
        %1465 = vmatpush.msra.mxu0 %v853
        %1466 = vmatpush.msra.mxu0 %v845
        %1467 = vmatpush.msra.mxu0 %v837
        %1468 = vmatmul.f32.gmra.mxu0 %v766
        %v1469 = vpop.f32.mrf.mxu0
        %v1470 = vadd.f32 0.0, %v1469
        %1471 = vdwg.mxu0
        %1472 = vmatpush.msra.mxu0 %v1085
        %1473 = vmatpush.msra.mxu0 %v1077
        %1474 = vmatpush.msra.mxu0 %v1069
        %1475 = vmatpush.msra.mxu0 %v1061
        %1476 = vmatpush.msra.mxu0 %v1053
        %1477 = vmatpush.msra.mxu0 %v1045
        %1478 = vmatpush.msra.mxu0 %v1037
        %1479 = vmatpush.msra.mxu0 %v1029
        %1480 = vmatpush.msra.mxu0 %v1021
        %1481 = vmatpush.msra.mxu0 %v1013
        %1482 = vmatpush.msra.mxu0 %v1005
        %1483 = vmatpush.msra.mxu0 %v997
        %1484 = vmatpush.msra.mxu0 %v989
        %1485 = vmatpush.msra.mxu0 %v981
        %1486 = vmatpush.msra.mxu0 %v973
        %1487 = vmatpush.msra.mxu0 %v965
        %1488 = vmatmul.f32.gmra.mxu0 %v767
        %v1489 = vpop.f32.mrf.mxu0
        %v1490 = vadd.f32 %v1470, %v1489
        %1491 = vdwg.mxu0
        %1492 = vmatpush.msra.mxu0 %v958
        %1493 = vmatpush.msra.mxu0 %v950
        %1494 = vmatpush.msra.mxu0 %v942
        %1495 = vmatpush.msra.mxu0 %v934
        %1496 = vmatpush.msra.mxu0 %v926
        %1497 = vmatpush.msra.mxu0 %v918
        %1498 = vmatpush.msra.mxu0 %v910
        %1499 = vmatpush.msra.mxu0 %v902
        %1500 = vmatpush.msra.mxu0 %v894
        %1501 = vmatpush.msra.mxu0 %v886
        %1502 = vmatpush.msra.mxu0 %v878
        %1503 = vmatpush.msra.mxu0 %v870
        %1504 = vmatpush.msra.mxu0 %v862
        %1505 = vmatpush.msra.mxu0 %v854
        %1506 = vmatpush.msra.mxu0 %v846
        %1507 = vmatpush.msra.mxu0 %v838
        %1508 = vmatmul.f32.gmra.mxu0 %v766
        %v1509 = vpop.f32.mrf.mxu0
        %v1510 = vadd.f32 0.0, %v1509
        %1511 = vdwg.mxu0
        %1512 = vmatpush.msra.mxu0 %v1086
        %1513 = vmatpush.msra.mxu0 %v1078
        %1514 = vmatpush.msra.mxu0 %v1070
        %1515 = vmatpush.msra.mxu0 %v1062
        %1516 = vmatpush.msra.mxu0 %v1054
        %1517 = vmatpush.msra.mxu0 %v1046
        %1518 = vmatpush.msra.mxu0 %v1038
        %1519 = vmatpush.msra.mxu0 %v1030
        %1520 = vmatpush.msra.mxu0 %v1022
        %1521 = vmatpush.msra.mxu0 %v1014
        %1522 = vmatpush.msra.mxu0 %v1006
        %1523 = vmatpush.msra.mxu0 %v998
        %1524 = vmatpush.msra.mxu0 %v990
        %1525 = vmatpush.msra.mxu0 %v982
        %1526 = vmatpush.msra.mxu0 %v974
        %1527 = vmatpush.msra.mxu0 %v966
        %1528 = vmatmul.f32.gmra.mxu0 %v767
        %v1529 = vpop.f32.mrf.mxu0
        %v1530 = vadd.f32 %v1510, %v1529
        %1531 = vdwg.mxu0
        %1532 = vmatpush.msra.mxu0 %v959
        %1533 = vmatpush.msra.mxu0 %v951
        %1534 = vmatpush.msra.mxu0 %v943
        %1535 = vmatpush.msra.mxu0 %v935
        %1536 = vmatpush.msra.mxu0 %v927
        %1537 = vmatpush.msra.mxu0 %v919
        %1538 = vmatpush.msra.mxu0 %v911
        %1539 = vmatpush.msra.mxu0 %v903
        %1540 = vmatpush.msra.mxu0 %v895
        %1541 = vmatpush.msra.mxu0 %v887
        %1542 = vmatpush.msra.mxu0 %v879
        %1543 = vmatpush.msra.mxu0 %v871
        %1544 = vmatpush.msra.mxu0 %v863
        %1545 = vmatpush.msra.mxu0 %v855
        %1546 = vmatpush.msra.mxu0 %v847
        %1547 = vmatpush.msra.mxu0 %v839
        %1548 = vmatmul.f32.gmra.mxu0 %v766
        %v1549 = vpop.f32.mrf.mxu0
        %v1550 = vadd.f32 0.0, %v1549
        %1551 = vdwg.mxu0
        %1552 = vmatpush.msra.mxu0 %v1087
        %1553 = vmatpush.msra.mxu0 %v1079
        %1554 = vmatpush.msra.mxu0 %v1071
        %1555 = vmatpush.msra.mxu0 %v1063
        %1556 = vmatpush.msra.mxu0 %v1055
        %1557 = vmatpush.msra.mxu0 %v1047
        %1558 = vmatpush.msra.mxu0 %v1039
        %1559 = vmatpush.msra.mxu0 %v1031
        %1560 = vmatpush.msra.mxu0 %v1023
        %1561 = vmatpush.msra.mxu0 %v1015
        %1562 = vmatpush.msra.mxu0 %v1007
        %1563 = vmatpush.msra.mxu0 %v999
        %1564 = vmatpush.msra.mxu0 %v991
        %1565 = vmatpush.msra.mxu0 %v983
        %1566 = vmatpush.msra.mxu0 %v975
        %1567 = vmatpush.msra.mxu0 %v967
        %1568 = vmatmul.f32.gmra.mxu0 %v767
        %v1569 = vpop.f32.mrf.mxu0
        %v1570 = vadd.f32 %v1550, %v1569
        %1571 = vdwg.mxu0
        %1572 = vmatpush.msra.mxu0 %v960
        %1573 = vmatpush.msra.mxu0 %v952
        %1574 = vmatpush.msra.mxu0 %v944
        %1575 = vmatpush.msra.mxu0 %v936
        %1576 = vmatpush.msra.mxu0 %v928
        %1577 = vmatpush.msra.mxu0 %v920
        %1578 = vmatpush.msra.mxu0 %v912
        %1579 = vmatpush.msra.mxu0 %v904
        %1580 = vmatpush.msra.mxu0 %v896
        %1581 = vmatpush.msra.mxu0 %v888
        %1582 = vmatpush.msra.mxu0 %v880
        %1583 = vmatpush.msra.mxu0 %v872
        %1584 = vmatpush.msra.mxu0 %v864
        %1585 = vmatpush.msra.mxu0 %v856
        %1586 = vmatpush.msra.mxu0 %v848
        %1587 = vmatpush.msra.mxu0 %v840
        %1588 = vmatmul.f32.gmra.mxu0 %v766
        %v1589 = vpop.f32.mrf.mxu0
        %v1590 = vadd.f32 0.0, %v1589
        %1591 = vdwg.mxu0
        %1592 = vmatpush.msra.mxu0 %v1088
        %1593 = vmatpush.msra.mxu0 %v1080
        %1594 = vmatpush.msra.mxu0 %v1072
        %1595 = vmatpush.msra.mxu0 %v1064
        %1596 = vmatpush.msra.mxu0 %v1056
        %1597 = vmatpush.msra.mxu0 %v1048
        %1598 = vmatpush.msra.mxu0 %v1040
        %1599 = vmatpush.msra.mxu0 %v1032
        %1600 = vmatpush.msra.mxu0 %v1024
        %1601 = vmatpush.msra.mxu0 %v1016
        %1602 = vmatpush.msra.mxu0 %v1008
        %1603 = vmatpush.msra.mxu0 %v1000
        %1604 = vmatpush.msra.mxu0 %v992
        %1605 = vmatpush.msra.mxu0 %v984
        %1606 = vmatpush.msra.mxu0 %v976
        %1607 = vmatpush.msra.mxu0 %v968
        %1608 = vmatmul.f32.gmra.mxu0 %v767
        %v1609 = vpop.f32.mrf.mxu0
        %v1610 = vadd.f32 %v1590, %v1609
        %1611 = vdwg.mxu0
        %1612 = vmatpush.msra.mxu0 %v961
        %1613 = vmatpush.msra.mxu0 %v953
        %1614 = vmatpush.msra.mxu0 %v945
        %1615 = vmatpush.msra.mxu0 %v937
        %1616 = vmatpush.msra.mxu0 %v929
        %1617 = vmatpush.msra.mxu0 %v921
        %1618 = vmatpush.msra.mxu0 %v913
        %1619 = vmatpush.msra.mxu0 %v905
        %1620 = vmatpush.msra.mxu0 %v897
        %1621 = vmatpush.msra.mxu0 %v889
        %1622 = vmatpush.msra.mxu0 %v881
        %1623 = vmatpush.msra.mxu0 %v873
        %1624 = vmatpush.msra.mxu0 %v865
        %1625 = vmatpush.msra.mxu0 %v857
        %1626 = vmatpush.msra.mxu0 %v849
        %1627 = vmatpush.msra.mxu0 %v841
        %1628 = vmatmul.f32.gmra.mxu0 %v766
        %v1629 = vpop.f32.mrf.mxu0
        %v1630 = vadd.f32 0.0, %v1629
        %1631 = vdwg.mxu0
        %1632 = vmatpush.msra.mxu0 %v1089
        %1633 = vmatpush.msra.mxu0 %v1081
        %1634 = vmatpush.msra.mxu0 %v1073
        %1635 = vmatpush.msra.mxu0 %v1065
        %1636 = vmatpush.msra.mxu0 %v1057
        %1637 = vmatpush.msra.mxu0 %v1049
        %1638 = vmatpush.msra.mxu0 %v1041
        %1639 = vmatpush.msra.mxu0 %v1033
        %1640 = vmatpush.msra.mxu0 %v1025
        %1641 = vmatpush.msra.mxu0 %v1017
        %1642 = vmatpush.msra.mxu0 %v1009
        %1643 = vmatpush.msra.mxu0 %v1001
        %1644 = vmatpush.msra.mxu0 %v993
        %1645 = vmatpush.msra.mxu0 %v985
        %1646 = vmatpush.msra.mxu0 %v977
        %1647 = vmatpush.msra.mxu0 %v969
        %1648 = vmatmul.f32.gmra.mxu0 %v767
        %v1649 = vpop.f32.mrf.mxu0
        %v1650 = vadd.f32 %v1630, %v1649
        %1651 = vdwg.mxu0
        %1652 = vmatpush.msra.mxu0 %v962
        %1653 = vmatpush.msra.mxu0 %v954
        %1654 = vmatpush.msra.mxu0 %v946
        %1655 = vmatpush.msra.mxu0 %v938
        %1656 = vmatpush.msra.mxu0 %v930
        %1657 = vmatpush.msra.mxu0 %v922
        %1658 = vmatpush.msra.mxu0 %v914
        %1659 = vmatpush.msra.mxu0 %v906
        %1660 = vmatpush.msra.mxu0 %v898
        %1661 = vmatpush.msra.mxu0 %v890
        %1662 = vmatpush.msra.mxu0 %v882
        %1663 = vmatpush.msra.mxu0 %v874
        %1664 = vmatpush.msra.mxu0 %v866
        %1665 = vmatpush.msra.mxu0 %v858
        %1666 = vmatpush.msra.mxu0 %v850
        %1667 = vmatpush.msra.mxu0 %v842
        %1668 = vmatmul.f32.gmra.mxu0 %v766
        %v1669 = vpop.f32.mrf.mxu0
        %v1670 = vadd.f32 0.0, %v1669
        %1671 = vdwg.mxu0
        %1672 = vmatpush.msra.mxu0 %v1090
        %1673 = vmatpush.msra.mxu0 %v1082
        %1674 = vmatpush.msra.mxu0 %v1074
        %1675 = vmatpush.msra.mxu0 %v1066
        %1676 = vmatpush.msra.mxu0 %v1058
        %1677 = vmatpush.msra.mxu0 %v1050
        %1678 = vmatpush.msra.mxu0 %v1042
        %1679 = vmatpush.msra.mxu0 %v1034
        %1680 = vmatpush.msra.mxu0 %v1026
        %1681 = vmatpush.msra.mxu0 %v1018
        %1682 = vmatpush.msra.mxu0 %v1010
        %1683 = vmatpush.msra.mxu0 %v1002
        %1684 = vmatpush.msra.mxu0 %v994
        %1685 = vmatpush.msra.mxu0 %v986
        %1686 = vmatpush.msra.mxu0 %v978
        %1687 = vmatpush.msra.mxu0 %v970
        %1688 = vmatmul.f32.gmra.mxu0 %v767
        %v1689 = vpop.f32.mrf.mxu0
        %v1690 = vadd.f32 %v1670, %v1689
        %1691 = vdwg.mxu0
        %1692 = vmatpush.msra.mxu0 %v963
        %1693 = vmatpush.msra.mxu0 %v955
        %1694 = vmatpush.msra.mxu0 %v947
        %1695 = vmatpush.msra.mxu0 %v939
        %1696 = vmatpush.msra.mxu0 %v931
        %1697 = vmatpush.msra.mxu0 %v923
        %1698 = vmatpush.msra.mxu0 %v915
        %1699 = vmatpush.msra.mxu0 %v907
        %1700 = vmatpush.msra.mxu0 %v899
        %1701 = vmatpush.msra.mxu0 %v891
        %1702 = vmatpush.msra.mxu0 %v883
        %1703 = vmatpush.msra.mxu0 %v875
        %1704 = vmatpush.msra.mxu0 %v867
        %1705 = vmatpush.msra.mxu0 %v859
        %1706 = vmatpush.msra.mxu0 %v851
        %1707 = vmatpush.msra.mxu0 %v843
        %1708 = vmatmul.f32.gmra.mxu0 %v766
        %v1709 = vpop.f32.mrf.mxu0
        %v1710 = vadd.f32 0.0, %v1709
        %1711 = vdwg.mxu0
        %1712 = vmatpush.msra.mxu0 %v1091
        %1713 = vmatpush.msra.mxu0 %v1083
        %1714 = vmatpush.msra.mxu0 %v1075
        %1715 = vmatpush.msra.mxu0 %v1067
        %1716 = vmatpush.msra.mxu0 %v1059
        %1717 = vmatpush.msra.mxu0 %v1051
        %1718 = vmatpush.msra.mxu0 %v1043
        %1719 = vmatpush.msra.mxu0 %v1035
        %1720 = vmatpush.msra.mxu0 %v1027
        %1721 = vmatpush.msra.mxu0 %v1019
        %1722 = vmatpush.msra.mxu0 %v1011
        %1723 = vmatpush.msra.mxu0 %v1003
        %1724 = vmatpush.msra.mxu0 %v995
        %1725 = vmatpush.msra.mxu0 %v987
        %1726 = vmatpush.msra.mxu0 %v979
        %1727 = vmatpush.msra.mxu0 %v971
        %1728 = vmatmul.f32.gmra.mxu0 %v767
        %v1729 = vpop.f32.mrf.mxu0
        %v1730 = vadd.f32 %v1710, %v1729
        %1731 = vdwg.mxu0
        %vm1732 = vcmask 138240
        %1733 = vst.msk [vmem:[#allocation2] sm:$0xff] %vm1732, 0.0
        %1736 = vrot.lane.b32.xlu0 %v814, 17
        %v1737 = vpop.permute.xlu0 %1736
        %1738 = vrot.lane.b32.xlu0 %v834, 17
        %v1739 = vpop.permute.xlu0 %1738
        %v1740 = vsel %vm1732, %v1737, %v1739
        %vm1744 = vcmask 1047688
        %1745 = vst.msk [vmem:[#allocation2] sm:$0xff] %vm1744, %v1737
        %1746 = vst [vmem:[#allocation2 + $0x8] sm:$0xff] %v1740
        %1747 = vst.msk [vmem:[#allocation2 + $0x10] sm:$0xff] %vm1732, %v1739
        %vm1748 = vcmask 277640
        %1749 = vst.msk [vmem:[#allocation2 + $0x10] sm:$0xff] %vm1748, 0.0
        %v1750 = vld [vmem:[%s5] ss:$2 sm:$0x3]
        %s1751 = scalar_lea.vmem %s5, 1
        %v1752 = vld [vmem:[%s1751] ss:$2 sm:$0x3]
        %v1753 = vld [vmem:[#allocation2] sm:$0xff]
        %v1754 = vld [vmem:[#allocation2 + $0x8] sm:$0xff]
        %v1756 = vperm.slane %v1750, 0
        %v1757 = vperm.slane %v1750, 1
        %v1760 = vmul.f32 %v1753, %v1756
        %v1761 = vmul.f32 %v1754, %v1757
        %v1762 = vld [vmem:[#allocation2 + $0x10] sm:$0xff]
        %v1764 = vperm.slane %v1752, 0
        %v1765 = vperm.slane %v1752, 1
        %1766 = vrot.lane.b32.xlu0 %v1764, 2
        %v1767 = vpop.permute.xlu0 %1766
        %1768 = vrot.lane.b32.xlu0 %v1765, 2
        %v1769 = vpop.permute.xlu0 %1768
        %vm1770 = vcmask 15360
        %v1771 = vsel %vm1770, %v1767, %v1769
        %v1775 = vmul.f32 %v1753, %v1767
        %v1776 = vmul.f32 %v1754, %v1771
        %v1777 = vmul.f32 %v1762, %v1769
        %1778 = vrot.lane.b32.xlu0 %v1756, 16
        %v1779 = vpop.permute.xlu0 %1778
        %1780 = vrot.lane.b32.xlu0 %v1757, 16
        %v1781 = vpop.permute.xlu0 %1780
        %vm1782 = vcmask 130048
        %v1783 = vsel %vm1782, %v1779, %v1781
        %v1787 = vmul.f32 %v1753, %v1779
        %v1788 = vmul.f32 %v1754, %v1783
        %v1789 = vmul.f32 %v1762, %v1781
        %1790 = vrot.lane.b32.xlu0 %v1764, 18
        %v1791 = vpop.permute.xlu0 %1790
        %1792 = vrot.lane.b32.xlu0 %v1765, 18
        %v1793 = vpop.permute.xlu0 %1792
        %vm1794 = vcmask 146432
        %v1795 = vsel %vm1794, %v1791, %v1793
        %v1799 = vmul.f32 %v1753, %v1791
        %v1800 = vmul.f32 %v1754, %v1795
        %v1801 = vmul.f32 %v1762, %v1793
        %1802 = vrot.lane.b32.xlu0 %v1756, 32
        %v1803 = vpop.permute.xlu0 %1802
        %1804 = vrot.lane.b32.xlu0 %v1757, 32
        %v1805 = vpop.permute.xlu0 %1804
        %vm1806 = vcmask 261120
        %v1807 = vsel %vm1806, %v1803, %v1805
        %v1811 = vmul.f32 %v1753, %v1803
        %v1812 = vmul.f32 %v1754, %v1807
        %v1813 = vmul.f32 %v1762, %v1805
        %1814 = vrot.lane.b32.xlu0 %v1764, 34
        %v1815 = vpop.permute.xlu0 %1814
        %1816 = vrot.lane.b32.xlu0 %v1765, 34
        %v1817 = vpop.permute.xlu0 %1816
        %vm1818 = vcmask 277504
        %v1819 = vsel %vm1818, %v1815, %v1817
        %v1823 = vmul.f32 %v1753, %v1815
        %v1824 = vmul.f32 %v1754, %v1819
        %v1825 = vmul.f32 %v1762, %v1817
        %1829 = vrot.lane.b32.xlu0 %v1753, 127
        %v1830 = vpop.permute.xlu0 %1829
        %1831 = vrot.lane.b32.xlu0 %v1754, 127
        %v1832 = vpop.permute.xlu0 %1831
        %1833 = vrot.lane.b32.xlu0 %v1762, 127
        %v1834 = vpop.permute.xlu0 %1833
        %vm1835 = vcmask 1039360
        %v1836 = vsel %vm1835, %v1830, %v1832
        %v1837 = vsel %vm1835, %v1832, %v1834
        %1843 = vrot.lane.b32.xlu0 %v1775, 126
        %v1844 = vpop.permute.xlu0 %1843
        %1845 = vrot.lane.b32.xlu0 %v1776, 126
        %v1846 = vpop.permute.xlu0 %1845
        %1847 = vrot.lane.b32.xlu0 %v1777, 126
        %v1848 = vpop.permute.xlu0 %1847
        %vm1849 = vcmask 1031168
        %v1850 = vsel %vm1849, %v1844, %v1846
        %v1851 = vsel %vm1849, %v1846, %v1848
        %1857 = vrot.lane.b32.xlu0 %v1787, 112
        %v1858 = vpop.permute.xlu0 %1857
        %1859 = vrot.lane.b32.xlu0 %v1788, 112
        %v1860 = vpop.permute.xlu0 %1859
        %1861 = vrot.lane.b32.xlu0 %v1789, 112
        %v1862 = vpop.permute.xlu0 %1861
        %vm1863 = vcmask 916480
        %v1864 = vsel %vm1863, %v1858, %v1860
        %v1865 = vsel %vm1863, %v1860, %v1862
        %1868 = vrot.lane.b32.xlu0 %v1753, 111
        %v1869 = vpop.permute.xlu0 %1868
        %1870 = vrot.lane.b32.xlu0 %v1754, 111
        %v1871 = vpop.permute.xlu0 %1870
        %1872 = vrot.lane.b32.xlu0 %v1762, 111
        %v1873 = vpop.permute.xlu0 %1872
        %vm1874 = vcmask 908288
        %v1875 = vsel %vm1874, %v1869, %v1871
        %v1876 = vsel %vm1874, %v1871, %v1873
        %1882 = vrot.lane.b32.xlu0 %v1799, 110
        %v1883 = vpop.permute.xlu0 %1882
        %1884 = vrot.lane.b32.xlu0 %v1800, 110
        %v1885 = vpop.permute.xlu0 %1884
        %1886 = vrot.lane.b32.xlu0 %v1801, 110
        %v1887 = vpop.permute.xlu0 %1886
        %vm1888 = vcmask 900096
        %v1889 = vsel %vm1888, %v1883, %v1885
        %v1890 = vsel %vm1888, %v1885, %v1887
        %1896 = vrot.lane.b32.xlu0 %v1811, 96
        %v1897 = vpop.permute.xlu0 %1896
        %1898 = vrot.lane.b32.xlu0 %v1812, 96
        %v1899 = vpop.permute.xlu0 %1898
        %1900 = vrot.lane.b32.xlu0 %v1813, 96
        %v1901 = vpop.permute.xlu0 %1900
        %vm1902 = vcmask 785408
        %v1903 = vsel %vm1902, %v1897, %v1899
        %v1904 = vsel %vm1902, %v1899, %v1901
        %1907 = vrot.lane.b32.xlu0 %v1753, 95
        %v1908 = vpop.permute.xlu0 %1907
        %1909 = vrot.lane.b32.xlu0 %v1754, 95
        %v1910 = vpop.permute.xlu0 %1909
        %1911 = vrot.lane.b32.xlu0 %v1762, 95
        %v1912 = vpop.permute.xlu0 %1911
        %vm1913 = vcmask 777216
        %v1914 = vsel %vm1913, %v1908, %v1910
        %v1915 = vsel %vm1913, %v1910, %v1912
        %1921 = vrot.lane.b32.xlu0 %v1823, 94
        %v1922 = vpop.permute.xlu0 %1921
        %1923 = vrot.lane.b32.xlu0 %v1824, 94
        %v1924 = vpop.permute.xlu0 %1923
        %1925 = vrot.lane.b32.xlu0 %v1825, 94
        %v1926 = vpop.permute.xlu0 %1925
        %vm1927 = vcmask 769024
        %v1928 = vsel %vm1927, %v1922, %v1924
        %v1929 = vsel %vm1927, %v1924, %v1926
        %v1932 = vld [vmem:[%s7] sm:$0xff]
        %vm1933 = vcmask 588800
        %v1935 = vsel %vm1933, %v1932, 0
        %1937 = vmatpush.msra.mxu0 0.0
        %1938 = vmatpush.msra.mxu0 0.0
        %1939 = vmatpush.msra.mxu0 0.0
        %1940 = vmatpush.msra.mxu0 0.0
        %1941 = vmatpush.msra.mxu0 0.0
        %1942 = vmatpush.msra.mxu0 0.0
        %1943 = vmatpush.msra.mxu0 0.0
        %1944 = vmatpush.msra.mxu0 %v1928
        %1945 = vmatpush.msra.mxu0 %v1914
        %1946 = vmatpush.msra.mxu0 %v1903
        %1947 = vmatpush.msra.mxu0 %v1889
        %1948 = vmatpush.msra.mxu0 %v1875
        %1949 = vmatpush.msra.mxu0 %v1864
        %1950 = vmatpush.msra.mxu0 %v1850
        %1951 = vmatpush.msra.mxu0 %v1836
        %1952 = vmatpush.msra.mxu0 %v1760
        %1953 = vmatmul.f32.gmra.mxu0 %v1935
        %v1954 = vpop.f32.mrf.mxu0
        %v1955 = vadd.f32 0.0, %v1954
        %1956 = vdwg.mxu0
        %1957 = vmatpush.msra.mxu0 0.0
        %1958 = vmatpush.msra.mxu0 0.0
        %1959 = vmatpush.msra.mxu0 0.0
        %1960 = vmatpush.msra.mxu0 0.0
        %1961 = vmatpush.msra.mxu0 0.0
        %1962 = vmatpush.msra.mxu0 0.0
        %1963 = vmatpush.msra.mxu0 0.0
        %1964 = vmatpush.msra.mxu0 %v1929
        %1965 = vmatpush.msra.mxu0 %v1915
        %1966 = vmatpush.msra.mxu0 %v1904
        %1967 = vmatpush.msra.mxu0 %v1890
        %1968 = vmatpush.msra.mxu0 %v1876
        %1969 = vmatpush.msra.mxu0 %v1865
        %1970 = vmatpush.msra.mxu0 %v1851
        %1971 = vmatpush.msra.mxu0 %v1837
        %1972 = vmatpush.msra.mxu0 %v1761
        %1973 = vmatmul.f32.gmra.mxu0 %v1935
        %v1974 = vpop.f32.mrf.mxu0
        %v1975 = vadd.f32 0.0, %v1974
        %1976 = vdwg.mxu0
        %v1977 = vld [vmem:[%s8] sm:$0xff]
        %1979 = vset.pattern.permute.xlu0 0
        %1980 = vperm.xlu0 %1979, %v1977
        %v1981 = vpop.permute.xlu0 %1980
        %v1983 = vmul.f32 %v1955, %v1981
        %v1984 = vmul.f32 %v1975, %v1981
        %1985 = vset.pattern.permute.xlu0 1
        %1986 = vperm.xlu0 %1985, %v1977
        %v1987 = vpop.permute.xlu0 %1986
        %v1989 = vadd.f32 %v1983, %v1987
        %v1990 = vadd.f32 %v1984, %v1987
        %v1991 = vmax.f32 %v1989, 0.0
        %v1992 = vmax.f32 %v1990, 0.0
        %v1993 = vmul.f32 %v1991, %v766
        %v1994 = vmul.f32 %v1992, %v767
        %vm1995 = vcmask 269312
        %1996 = vst.msk [vmem:[#allocation2] sm:$0xff] %vm1995, 0.0
        %2005 = vrot.lane.b32.xlu0 %v1130, 33
        %v2006 = vpop.permute.xlu0 %2005
        %2007 = vrot.lane.b32.xlu0 %v1170, 33
        %v2008 = vpop.permute.xlu0 %2007
        %2009 = vrot.lane.b32.xlu0 %v1210, 33
        %v2010 = vpop.permute.xlu0 %2009
        %2011 = vrot.lane.b32.xlu0 %v1250, 33
        %v2012 = vpop.permute.xlu0 %2011
        %2013 = vrot.lane.b32.xlu0 %v1290, 33
        %v2014 = vpop.permute.xlu0 %2013
        %2015 = vrot.lane.b32.xlu0 %v1330, 33
        %v2016 = vpop.permute.xlu0 %2015
        %2017 = vrot.lane.b32.xlu0 %v1370, 33
        %v2018 = vpop.permute.xlu0 %2017
        %2019 = vrot.lane.b32.xlu0 %v1410, 33
        %v2020 = vpop.permute.xlu0 %2019
        %v2021 = vsel %vm1995, %v2006, %v2008
        %v2022 = vsel %vm1995, %v2008, %v2010
        %v2023 = vsel %vm1995, %v2010, %v2012
        %v2024 = vsel %vm1995, %v2012, %v2014
        %v2025 = vsel %vm1995, %v2014, %v2016
        %v2026 = vsel %vm1995, %v2016, %v2018
        %v2027 = vsel %vm1995, %v2018, %v2020
        %vm2037 = vcmask 1047816
        %2038 = vst.msk [vmem:[#allocation2] sm:$0xff] %vm2037, %v2006
        %2039 = vst [vmem:[#allocation2 + $0x8] sm:$0xff] %v2021
        %2040 = vst [vmem:[#allocation2 + $0x10] sm:$0xff] %v2022
        %2041 = vst [vmem:[#allocation2 + $0x18] sm:$0xff] %v2023
        %2042 = vst [vmem:[#allocation2 + $0x20] sm:$0xff] %v2024
        %2043 = vst [vmem:[#allocation2 + $0x28] sm:$0xff] %v2025
        %2044 = vst [vmem:[#allocation2 + $0x30] sm:$0xff] %v2026
        %2045 = vst [vmem:[#allocation2 + $0x38] sm:$0xff] %v2027
        %2046 = vst.msk [vmem:[#allocation2 + $0x40] sm:$0xff] %vm1995, %v2020
        %vm2047 = vcmask 539912
        %2048 = vst.msk [vmem:[#allocation2 + $0x40] sm:$0xff] %vm2047, 0.0
        %v2049 = vld [vmem:[%s6] ss:$2 sm:$0xff]
        %s2050 = scalar_lea.vmem %s6, 1
        %v2051 = vld [vmem:[%s2050] ss:$2 sm:$0xff]
        %v2052 = vld [vmem:[#allocation2] sm:$0xff]
        %v2053 = vld [vmem:[#allocation2 + $0x8] sm:$0xff]
        %v2054 = vld [vmem:[#allocation2 + $0x10] sm:$0xff]
        %v2055 = vld [vmem:[#allocation2 + $0x18] sm:$0xff]
        %v2056 = vld [vmem:[#allocation2 + $0x20] sm:$0xff]
        %v2057 = vld [vmem:[#allocation2 + $0x28] sm:$0xff]
        %v2058 = vld [vmem:[#allocation2 + $0x30] sm:$0xff]
        %v2059 = vld [vmem:[#allocation2 + $0x38] sm:$0xff]
        %v2061 = vperm.slane %v2049, 0
        %v2062 = vperm.slane %v2049, 1
        %v2063 = vperm.slane %v2049, 2
        %v2064 = vperm.slane %v2049, 3
        %v2065 = vperm.slane %v2049, 4
        %v2066 = vperm.slane %v2049, 5
        %v2067 = vperm.slane %v2049, 6
        %v2068 = vperm.slane %v2049, 7
        %v2077 = vmul.f32 %v2052, %v2061
        %v2078 = vmul.f32 %v2053, %v2062
        %v2079 = vmul.f32 %v2054, %v2063
        %v2080 = vmul.f32 %v2055, %v2064
        %v2081 = vmul.f32 %v2056, %v2065
        %v2082 = vmul.f32 %v2057, %v2066
        %v2083 = vmul.f32 %v2058, %v2067
        %v2084 = vmul.f32 %v2059, %v2068
        %v2085 = vld [vmem:[#allocation2 + $0x40] sm:$0xff]
        %v2087 = vperm.slane %v2051, 0
        %v2088 = vperm.slane %v2051, 1
        %v2089 = vperm.slane %v2051, 2
        %v2090 = vperm.slane %v2051, 3
        %v2091 = vperm.slane %v2051, 4
        %v2092 = vperm.slane %v2051, 5
        %v2093 = vperm.slane %v2051, 6
        %v2094 = vperm.slane %v2051, 7
        %2095 = vrot.lane.b32.xlu0 %v2087, 2
        %v2096 = vpop.permute.xlu0 %2095
        %2097 = vrot.lane.b32.xlu0 %v2088, 2
        %v2098 = vpop.permute.xlu0 %2097
        %2099 = vrot.lane.b32.xlu0 %v2089, 2
        %v2100 = vpop.permute.xlu0 %2099
        %2101 = vrot.lane.b32.xlu0 %v2090, 2
        %v2102 = vpop.permute.xlu0 %2101
        %2103 = vrot.lane.b32.xlu0 %v2091, 2
        %v2104 = vpop.permute.xlu0 %2103
        %2105 = vrot.lane.b32.xlu0 %v2092, 2
        %v2106 = vpop.permute.xlu0 %2105
        %2107 = vrot.lane.b32.xlu0 %v2093, 2
        %v2108 = vpop.permute.xlu0 %2107
        %2109 = vrot.lane.b32.xlu0 %v2094, 2
        %v2110 = vpop.permute.xlu0 %2109
        %v2111 = vsel %vm1770, %v2096, %v2098
        %v2112 = vsel %vm1770, %v2098, %v2100
        %v2113 = vsel %vm1770, %v2100, %v2102
        %v2114 = vsel %vm1770, %v2102, %v2104
        %v2115 = vsel %vm1770, %v2104, %v2106
        %v2116 = vsel %vm1770, %v2106, %v2108
        %v2117 = vsel %vm1770, %v2108, %v2110
        %v2127 = vmul.f32 %v2052, %v2096
        %v2128 = vmul.f32 %v2053, %v2111
        %v2129 = vmul.f32 %v2054, %v2112
        %v2130 = vmul.f32 %v2055, %v2113
        %v2131 = vmul.f32 %v2056, %v2114
        %v2132 = vmul.f32 %v2057, %v2115
        %v2133 = vmul.f32 %v2058, %v2116
        %v2134 = vmul.f32 %v2059, %v2117
        %v2135 = vmul.f32 %v2085, %v2110
        %2136 = vrot.lane.b32.xlu0 %v2061, 32
        %v2137 = vpop.permute.xlu0 %2136
        %2138 = vrot.lane.b32.xlu0 %v2062, 32
        %v2139 = vpop.permute.xlu0 %2138
        %2140 = vrot.lane.b32.xlu0 %v2063, 32
        %v2141 = vpop.permute.xlu0 %2140
        %2142 = vrot.lane.b32.xlu0 %v2064, 32
        %v2143 = vpop.permute.xlu0 %2142
        %2144 = vrot.lane.b32.xlu0 %v2065, 32
        %v2145 = vpop.permute.xlu0 %2144
        %2146 = vrot.lane.b32.xlu0 %v2066, 32
        %v2147 = vpop.permute.xlu0 %2146
        %2148 = vrot.lane.b32.xlu0 %v2067, 32
        %v2149 = vpop.permute.xlu0 %2148
        %2150 = vrot.lane.b32.xlu0 %v2068, 32
        %v2151 = vpop.permute.xlu0 %2150
        %v2152 = vsel %vm1806, %v2137, %v2139
        %v2153 = vsel %vm1806, %v2139, %v2141
        %v2154 = vsel %vm1806, %v2141, %v2143
        %v2155 = vsel %vm1806, %v2143, %v2145
        %v2156 = vsel %vm1806, %v2145, %v2147
        %v2157 = vsel %vm1806, %v2147, %v2149
        %v2158 = vsel %vm1806, %v2149, %v2151
        %v2168 = vmul.f32 %v2052, %v2137
        %v2169 = vmul.f32 %v2053, %v2152
        %v2170 = vmul.f32 %v2054, %v2153
        %v2171 = vmul.f32 %v2055, %v2154
        %v2172 = vmul.f32 %v2056, %v2155
        %v2173 = vmul.f32 %v2057, %v2156
        %v2174 = vmul.f32 %v2058, %v2157
        %v2175 = vmul.f32 %v2059, %v2158
        %v2176 = vmul.f32 %v2085, %v2151
        %2177 = vrot.lane.b32.xlu0 %v2087, 34
        %v2178 = vpop.permute.xlu0 %2177
        %2179 = vrot.lane.b32.xlu0 %v2088, 34
        %v2180 = vpop.permute.xlu0 %2179
        %2181 = vrot.lane.b32.xlu0 %v2089, 34
        %v2182 = vpop.permute.xlu0 %2181
        %2183 = vrot.lane.b32.xlu0 %v2090, 34
        %v2184 = vpop.permute.xlu0 %2183
        %2185 = vrot.lane.b32.xlu0 %v2091, 34
        %v2186 = vpop.permute.xlu0 %2185
        %2187 = vrot.lane.b32.xlu0 %v2092, 34
        %v2188 = vpop.permute.xlu0 %2187
        %2189 = vrot.lane.b32.xlu0 %v2093, 34
        %v2190 = vpop.permute.xlu0 %2189
        %2191 = vrot.lane.b32.xlu0 %v2094, 34
        %v2192 = vpop.permute.xlu0 %2191
        %v2193 = vsel %vm1818, %v2178, %v2180
        %v2194 = vsel %vm1818, %v2180, %v2182
        %v2195 = vsel %vm1818, %v2182, %v2184
        %v2196 = vsel %vm1818, %v2184, %v2186
        %v2197 = vsel %vm1818, %v2186, %v2188
        %v2198 = vsel %vm1818, %v2188, %v2190
        %v2199 = vsel %vm1818, %v2190, %v2192
        %v2209 = vmul.f32 %v2052, %v2178
        %v2210 = vmul.f32 %v2053, %v2193
        %v2211 = vmul.f32 %v2054, %v2194
        %v2212 = vmul.f32 %v2055, %v2195
        %v2213 = vmul.f32 %v2056, %v2196
        %v2214 = vmul.f32 %v2057, %v2197
        %v2215 = vmul.f32 %v2058, %v2198
        %v2216 = vmul.f32 %v2059, %v2199
        %v2217 = vmul.f32 %v2085, %v2192
        %2218 = vrot.lane.b32.xlu0 %v2061, 64
        %v2219 = vpop.permute.xlu0 %2218
        %2220 = vrot.lane.b32.xlu0 %v2062, 64
        %v2221 = vpop.permute.xlu0 %2220
        %2222 = vrot.lane.b32.xlu0 %v2063, 64
        %v2223 = vpop.permute.xlu0 %2222
        %2224 = vrot.lane.b32.xlu0 %v2064, 64
        %v2225 = vpop.permute.xlu0 %2224
        %2226 = vrot.lane.b32.xlu0 %v2065, 64
        %v2227 = vpop.permute.xlu0 %2226
        %2228 = vrot.lane.b32.xlu0 %v2066, 64
        %v2229 = vpop.permute.xlu0 %2228
        %2230 = vrot.lane.b32.xlu0 %v2067, 64
        %v2231 = vpop.permute.xlu0 %2230
        %2232 = vrot.lane.b32.xlu0 %v2068, 64
        %v2233 = vpop.permute.xlu0 %2232
        %v2234 = vsel %vm792, %v2219, %v2221
        %v2235 = vsel %vm792, %v2221, %v2223
        %v2236 = vsel %vm792, %v2223, %v2225
        %v2237 = vsel %vm792, %v2225, %v2227
        %v2238 = vsel %vm792, %v2227, %v2229
        %v2239 = vsel %vm792, %v2229, %v2231
        %v2240 = vsel %vm792, %v2231, %v2233
        %v2250 = vmul.f32 %v2052, %v2219
        %v2251 = vmul.f32 %v2053, %v2234
        %v2252 = vmul.f32 %v2054, %v2235
        %v2253 = vmul.f32 %v2055, %v2236
        %v2254 = vmul.f32 %v2056, %v2237
        %v2255 = vmul.f32 %v2057, %v2238
        %v2256 = vmul.f32 %v2058, %v2239
        %v2257 = vmul.f32 %v2059, %v2240
        %v2258 = vmul.f32 %v2085, %v2233
        %2259 = vrot.lane.b32.xlu0 %v2087, 66
        %v2260 = vpop.permute.xlu0 %2259
        %2261 = vrot.lane.b32.xlu0 %v2088, 66
        %v2262 = vpop.permute.xlu0 %2261
        %2263 = vrot.lane.b32.xlu0 %v2089, 66
        %v2264 = vpop.permute.xlu0 %2263
        %2265 = vrot.lane.b32.xlu0 %v2090, 66
        %v2266 = vpop.permute.xlu0 %2265
        %2267 = vrot.lane.b32.xlu0 %v2091, 66
        %v2268 = vpop.permute.xlu0 %2267
        %2269 = vrot.lane.b32.xlu0 %v2092, 66
        %v2270 = vpop.permute.xlu0 %2269
        %2271 = vrot.lane.b32.xlu0 %v2093, 66
        %v2272 = vpop.permute.xlu0 %2271
        %2273 = vrot.lane.b32.xlu0 %v2094, 66
        %v2274 = vpop.permute.xlu0 %2273
        %vm2275 = vcmask 539648
        %v2276 = vsel %vm2275, %v2260, %v2262
        %v2277 = vsel %vm2275, %v2262, %v2264
        %v2278 = vsel %vm2275, %v2264, %v2266
        %v2279 = vsel %vm2275, %v2266, %v2268
        %v2280 = vsel %vm2275, %v2268, %v2270
        %v2281 = vsel %vm2275, %v2270, %v2272
        %v2282 = vsel %vm2275, %v2272, %v2274
        %v2292 = vmul.f32 %v2052, %v2260
        %v2293 = vmul.f32 %v2053, %v2276
        %v2294 = vmul.f32 %v2054, %v2277
        %v2295 = vmul.f32 %v2055, %v2278
        %v2296 = vmul.f32 %v2056, %v2279
        %v2297 = vmul.f32 %v2057, %v2280
        %v2298 = vmul.f32 %v2058, %v2281
        %v2299 = vmul.f32 %v2059, %v2282
        %v2300 = vmul.f32 %v2085, %v2274
        %2310 = vrot.lane.b32.xlu0 %v2052, 127
        %v2311 = vpop.permute.xlu0 %2310
        %2312 = vrot.lane.b32.xlu0 %v2053, 127
        %v2313 = vpop.permute.xlu0 %2312
        %2314 = vrot.lane.b32.xlu0 %v2054, 127
        %v2315 = vpop.permute.xlu0 %2314
        %2316 = vrot.lane.b32.xlu0 %v2055, 127
        %v2317 = vpop.permute.xlu0 %2316
        %2318 = vrot.lane.b32.xlu0 %v2056, 127
        %v2319 = vpop.permute.xlu0 %2318
        %2320 = vrot.lane.b32.xlu0 %v2057, 127
        %v2321 = vpop.permute.xlu0 %2320
        %2322 = vrot.lane.b32.xlu0 %v2058, 127
        %v2323 = vpop.permute.xlu0 %2322
        %2324 = vrot.lane.b32.xlu0 %v2059, 127
        %v2325 = vpop.permute.xlu0 %2324
        %2326 = vrot.lane.b32.xlu0 %v2085, 127
        %v2327 = vpop.permute.xlu0 %2326
        %v2328 = vsel %vm1835, %v2311, %v2313
        %v2329 = vsel %vm1835, %v2313, %v2315
        %v2330 = vsel %vm1835, %v2315, %v2317
        %v2331 = vsel %vm1835, %v2317, %v2319
        %v2332 = vsel %vm1835, %v2319, %v2321
        %v2333 = vsel %vm1835, %v2321, %v2323
        %v2334 = vsel %vm1835, %v2323, %v2325
        %v2335 = vsel %vm1835, %v2325, %v2327
        %2353 = vrot.lane.b32.xlu0 %v2127, 126
        %v2354 = vpop.permute.xlu0 %2353
        %2355 = vrot.lane.b32.xlu0 %v2128, 126
        %v2356 = vpop.permute.xlu0 %2355
        %2357 = vrot.lane.b32.xlu0 %v2129, 126
        %v2358 = vpop.permute.xlu0 %2357
        %2359 = vrot.lane.b32.xlu0 %v2130, 126
        %v2360 = vpop.permute.xlu0 %2359
        %2361 = vrot.lane.b32.xlu0 %v2131, 126
        %v2362 = vpop.permute.xlu0 %2361
        %2363 = vrot.lane.b32.xlu0 %v2132, 126
        %v2364 = vpop.permute.xlu0 %2363
        %2365 = vrot.lane.b32.xlu0 %v2133, 126
        %v2366 = vpop.permute.xlu0 %2365
        %2367 = vrot.lane.b32.xlu0 %v2134, 126
        %v2368 = vpop.permute.xlu0 %2367
        %2369 = vrot.lane.b32.xlu0 %v2135, 126
        %v2370 = vpop.permute.xlu0 %2369
        %v2371 = vsel %vm1849, %v2354, %v2356
        %v2372 = vsel %vm1849, %v2356, %v2358
        %v2373 = vsel %vm1849, %v2358, %v2360
        %v2374 = vsel %vm1849, %v2360, %v2362
        %v2375 = vsel %vm1849, %v2362, %v2364
        %v2376 = vsel %vm1849, %v2364, %v2366
        %v2377 = vsel %vm1849, %v2366, %v2368
        %v2378 = vsel %vm1849, %v2368, %v2370
        %2396 = vrot.lane.b32.xlu0 %v2168, 96
        %v2397 = vpop.permute.xlu0 %2396
        %2398 = vrot.lane.b32.xlu0 %v2169, 96
        %v2399 = vpop.permute.xlu0 %2398
        %2400 = vrot.lane.b32.xlu0 %v2170, 96
        %v2401 = vpop.permute.xlu0 %2400
        %2402 = vrot.lane.b32.xlu0 %v2171, 96
        %v2403 = vpop.permute.xlu0 %2402
        %2404 = vrot.lane.b32.xlu0 %v2172, 96
        %v2405 = vpop.permute.xlu0 %2404
        %2406 = vrot.lane.b32.xlu0 %v2173, 96
        %v2407 = vpop.permute.xlu0 %2406
        %2408 = vrot.lane.b32.xlu0 %v2174, 96
        %v2409 = vpop.permute.xlu0 %2408
        %2410 = vrot.lane.b32.xlu0 %v2175, 96
        %v2411 = vpop.permute.xlu0 %2410
        %2412 = vrot.lane.b32.xlu0 %v2176, 96
        %v2413 = vpop.permute.xlu0 %2412
        %v2414 = vsel %vm1902, %v2397, %v2399
        %v2415 = vsel %vm1902, %v2399, %v2401
        %v2416 = vsel %vm1902, %v2401, %v2403
        %v2417 = vsel %vm1902, %v2403, %v2405
        %v2418 = vsel %vm1902, %v2405, %v2407
        %v2419 = vsel %vm1902, %v2407, %v2409
        %v2420 = vsel %vm1902, %v2409, %v2411
        %v2421 = vsel %vm1902, %v2411, %v2413
        %2430 = vrot.lane.b32.xlu0 %v2052, 95
        %v2431 = vpop.permute.xlu0 %2430
        %2432 = vrot.lane.b32.xlu0 %v2053, 95
        %v2433 = vpop.permute.xlu0 %2432
        %2434 = vrot.lane.b32.xlu0 %v2054, 95
        %v2435 = vpop.permute.xlu0 %2434
        %2436 = vrot.lane.b32.xlu0 %v2055, 95
        %v2437 = vpop.permute.xlu0 %2436
        %2438 = vrot.lane.b32.xlu0 %v2056, 95
        %v2439 = vpop.permute.xlu0 %2438
        %2440 = vrot.lane.b32.xlu0 %v2057, 95
        %v2441 = vpop.permute.xlu0 %2440
        %2442 = vrot.lane.b32.xlu0 %v2058, 95
        %v2443 = vpop.permute.xlu0 %2442
        %2444 = vrot.lane.b32.xlu0 %v2059, 95
        %v2445 = vpop.permute.xlu0 %2444
        %2446 = vrot.lane.b32.xlu0 %v2085, 95
        %v2447 = vpop.permute.xlu0 %2446
        %v2448 = vsel %vm1913, %v2431, %v2433
        %v2449 = vsel %vm1913, %v2433, %v2435
        %v2450 = vsel %vm1913, %v2435, %v2437
        %v2451 = vsel %vm1913, %v2437, %v2439
        %v2452 = vsel %vm1913, %v2439, %v2441
        %v2453 = vsel %vm1913, %v2441, %v2443
        %v2454 = vsel %vm1913, %v2443, %v2445
        %v2455 = vsel %vm1913, %v2445, %v2447
        %2473 = vrot.lane.b32.xlu0 %v2209, 94
        %v2474 = vpop.permute.xlu0 %2473
        %2475 = vrot.lane.b32.xlu0 %v2210, 94
        %v2476 = vpop.permute.xlu0 %2475
        %2477 = vrot.lane.b32.xlu0 %v2211, 94
        %v2478 = vpop.permute.xlu0 %2477
        %2479 = vrot.lane.b32.xlu0 %v2212, 94
        %v2480 = vpop.permute.xlu0 %2479
        %2481 = vrot.lane.b32.xlu0 %v2213, 94
        %v2482 = vpop.permute.xlu0 %2481
        %2483 = vrot.lane.b32.xlu0 %v2214, 94
        %v2484 = vpop.permute.xlu0 %2483
        %2485 = vrot.lane.b32.xlu0 %v2215, 94
        %v2486 = vpop.permute.xlu0 %2485
        %2487 = vrot.lane.b32.xlu0 %v2216, 94
        %v2488 = vpop.permute.xlu0 %2487
        %2489 = vrot.lane.b32.xlu0 %v2217, 94
        %v2490 = vpop.permute.xlu0 %2489
        %v2491 = vsel %vm1927, %v2474, %v2476
        %v2492 = vsel %vm1927, %v2476, %v2478
        %v2493 = vsel %vm1927, %v2478, %v2480
        %v2494 = vsel %vm1927, %v2480, %v2482
        %v2495 = vsel %vm1927, %v2482, %v2484
        %v2496 = vsel %vm1927, %v2484, %v2486
        %v2497 = vsel %vm1927, %v2486, %v2488
        %v2498 = vsel %vm1927, %v2488, %v2490
        %2516 = vrot.lane.b32.xlu0 %v2250, 64
        %v2517 = vpop.permute.xlu0 %2516
        %2518 = vrot.lane.b32.xlu0 %v2251, 64
        %v2519 = vpop.permute.xlu0 %2518
        %2520 = vrot.lane.b32.xlu0 %v2252, 64
        %v2521 = vpop.permute.xlu0 %2520
        %2522 = vrot.lane.b32.xlu0 %v2253, 64
        %v2523 = vpop.permute.xlu0 %2522
        %2524 = vrot.lane.b32.xlu0 %v2254, 64
        %v2525 = vpop.permute.xlu0 %2524
        %2526 = vrot.lane.b32.xlu0 %v2255, 64
        %v2527 = vpop.permute.xlu0 %2526
        %2528 = vrot.lane.b32.xlu0 %v2256, 64
        %v2529 = vpop.permute.xlu0 %2528
        %2530 = vrot.lane.b32.xlu0 %v2257, 64
        %v2531 = vpop.permute.xlu0 %2530
        %2532 = vrot.lane.b32.xlu0 %v2258, 64
        %v2533 = vpop.permute.xlu0 %2532
        %v2534 = vsel %vm792, %v2517, %v2519
        %v2535 = vsel %vm792, %v2519, %v2521
        %v2536 = vsel %vm792, %v2521, %v2523
        %v2537 = vsel %vm792, %v2523, %v2525
        %v2538 = vsel %vm792, %v2525, %v2527
        %v2539 = vsel %vm792, %v2527, %v2529
        %v2540 = vsel %vm792, %v2529, %v2531
        %v2541 = vsel %vm792, %v2531, %v2533
        %2550 = vrot.lane.b32.xlu0 %v2052, 63
        %v2551 = vpop.permute.xlu0 %2550
        %2552 = vrot.lane.b32.xlu0 %v2053, 63
        %v2553 = vpop.permute.xlu0 %2552
        %2554 = vrot.lane.b32.xlu0 %v2054, 63
        %v2555 = vpop.permute.xlu0 %2554
        %2556 = vrot.lane.b32.xlu0 %v2055, 63
        %v2557 = vpop.permute.xlu0 %2556
        %2558 = vrot.lane.b32.xlu0 %v2056, 63
        %v2559 = vpop.permute.xlu0 %2558
        %2560 = vrot.lane.b32.xlu0 %v2057, 63
        %v2561 = vpop.permute.xlu0 %2560
        %2562 = vrot.lane.b32.xlu0 %v2058, 63
        %v2563 = vpop.permute.xlu0 %2562
        %2564 = vrot.lane.b32.xlu0 %v2059, 63
        %v2565 = vpop.permute.xlu0 %2564
        %2566 = vrot.lane.b32.xlu0 %v2085, 63
        %v2567 = vpop.permute.xlu0 %2566
        %vm2568 = vcmask 515072
        %v2569 = vsel %vm2568, %v2551, %v2553
        %v2570 = vsel %vm2568, %v2553, %v2555
        %v2571 = vsel %vm2568, %v2555, %v2557
        %v2572 = vsel %vm2568, %v2557, %v2559
        %v2573 = vsel %vm2568, %v2559, %v2561
        %v2574 = vsel %vm2568, %v2561, %v2563
        %v2575 = vsel %vm2568, %v2563, %v2565
        %v2576 = vsel %vm2568, %v2565, %v2567
        %2594 = vrot.lane.b32.xlu0 %v2292, 62
        %v2595 = vpop.permute.xlu0 %2594
        %2596 = vrot.lane.b32.xlu0 %v2293, 62
        %v2597 = vpop.permute.xlu0 %2596
        %2598 = vrot.lane.b32.xlu0 %v2294, 62
        %v2599 = vpop.permute.xlu0 %2598
        %2600 = vrot.lane.b32.xlu0 %v2295, 62
        %v2601 = vpop.permute.xlu0 %2600
        %2602 = vrot.lane.b32.xlu0 %v2296, 62
        %v2603 = vpop.permute.xlu0 %2602
        %2604 = vrot.lane.b32.xlu0 %v2297, 62
        %v2605 = vpop.permute.xlu0 %2604
        %2606 = vrot.lane.b32.xlu0 %v2298, 62
        %v2607 = vpop.permute.xlu0 %2606
        %2608 = vrot.lane.b32.xlu0 %v2299, 62
        %v2609 = vpop.permute.xlu0 %2608
        %2610 = vrot.lane.b32.xlu0 %v2300, 62
        %v2611 = vpop.permute.xlu0 %2610
        %vm2612 = vcmask 506880
        %v2613 = vsel %vm2612, %v2595, %v2597
        %v2614 = vsel %vm2612, %v2597, %v2599
        %v2615 = vsel %vm2612, %v2599, %v2601
        %v2616 = vsel %vm2612, %v2601, %v2603
        %v2617 = vsel %vm2612, %v2603, %v2605
        %v2618 = vsel %vm2612, %v2605, %v2607
        %v2619 = vsel %vm2612, %v2607, %v2609
        %v2620 = vsel %vm2612, %v2609, %v2611
        %v2629 = vld [vmem:[%s9] sm:$0xff]
        %v2631 = vsel %vm1933, %v2629, 0
        %2633 = vmatpush.msra.mxu0 0.0
        %2634 = vmatpush.msra.mxu0 0.0
        %2635 = vmatpush.msra.mxu0 0.0
        %2636 = vmatpush.msra.mxu0 0.0
        %2637 = vmatpush.msra.mxu0 0.0
        %2638 = vmatpush.msra.mxu0 0.0
        %2639 = vmatpush.msra.mxu0 0.0
        %2640 = vmatpush.msra.mxu0 %v2613
        %2641 = vmatpush.msra.mxu0 %v2569
        %2642 = vmatpush.msra.mxu0 %v2534
        %2643 = vmatpush.msra.mxu0 %v2491
        %2644 = vmatpush.msra.mxu0 %v2448
        %2645 = vmatpush.msra.mxu0 %v2414
        %2646 = vmatpush.msra.mxu0 %v2371
        %2647 = vmatpush.msra.mxu0 %v2328
        %2648 = vmatpush.msra.mxu0 %v2077
        %2649 = vmatmul.f32.gmra.mxu0 %v2631
        %v2650 = vpop.f32.mrf.mxu0
        %v2651 = vadd.f32 0.0, %v2650
        %2652 = vdwg.mxu0
        %2653 = vmatpush.msra.mxu0 0.0
        %2654 = vmatpush.msra.mxu0 0.0
        %2655 = vmatpush.msra.mxu0 0.0
        %2656 = vmatpush.msra.mxu0 0.0
        %2657 = vmatpush.msra.mxu0 0.0
        %2658 = vmatpush.msra.mxu0 0.0
        %2659 = vmatpush.msra.mxu0 0.0
        %2660 = vmatpush.msra.mxu0 %v2614
        %2661 = vmatpush.msra.mxu0 %v2570
        %2662 = vmatpush.msra.mxu0 %v2535
        %2663 = vmatpush.msra.mxu0 %v2492
        %2664 = vmatpush.msra.mxu0 %v2449
        %2665 = vmatpush.msra.mxu0 %v2415
        %2666 = vmatpush.msra.mxu0 %v2372
        %2667 = vmatpush.msra.mxu0 %v2329
        %2668 = vmatpush.msra.mxu0 %v2078
        %2669 = vmatmul.f32.gmra.mxu0 %v2631
        %v2670 = vpop.f32.mrf.mxu0
        %v2671 = vadd.f32 0.0, %v2670
        %2672 = vdwg.mxu0
        %2673 = vmatpush.msra.mxu0 0.0
        %2674 = vmatpush.msra.mxu0 0.0
        %2675 = vmatpush.msra.mxu0 0.0
        %2676 = vmatpush.msra.mxu0 0.0
        %2677 = vmatpush.msra.mxu0 0.0
        %2678 = vmatpush.msra.mxu0 0.0
        %2679 = vmatpush.msra.mxu0 0.0
        %2680 = vmatpush.msra.mxu0 %v2615
        %2681 = vmatpush.msra.mxu0 %v2571
        %2682 = vmatpush.msra.mxu0 %v2536
        %2683 = vmatpush.msra.mxu0 %v2493
        %2684 = vmatpush.msra.mxu0 %v2450
        %2685 = vmatpush.msra.mxu0 %v2416
        %2686 = vmatpush.msra.mxu0 %v2373
        %2687 = vmatpush.msra.mxu0 %v2330
        %2688 = vmatpush.msra.mxu0 %v2079
        %2689 = vmatmul.f32.gmra.mxu0 %v2631
        %v2690 = vpop.f32.mrf.mxu0
        %v2691 = vadd.f32 0.0, %v2690
        %2692 = vdwg.mxu0
        %2693 = vmatpush.msra.mxu0 0.0
        %2694 = vmatpush.msra.mxu0 0.0
        %2695 = vmatpush.msra.mxu0 0.0
        %2696 = vmatpush.msra.mxu0 0.0
        %2697 = vmatpush.msra.mxu0 0.0
        %2698 = vmatpush.msra.mxu0 0.0
        %2699 = vmatpush.msra.mxu0 0.0
        %2700 = vmatpush.msra.mxu0 %v2616
        %2701 = vmatpush.msra.mxu0 %v2572
        %2702 = vmatpush.msra.mxu0 %v2537
        %2703 = vmatpush.msra.mxu0 %v2494
        %2704 = vmatpush.msra.mxu0 %v2451
        %2705 = vmatpush.msra.mxu0 %v2417
        %2706 = vmatpush.msra.mxu0 %v2374
        %2707 = vmatpush.msra.mxu0 %v2331
        %2708 = vmatpush.msra.mxu0 %v2080
        %2709 = vmatmul.f32.gmra.mxu0 %v2631
        %v2710 = vpop.f32.mrf.mxu0
        %v2711 = vadd.f32 0.0, %v2710
        %2712 = vdwg.mxu0
        %2713 = vmatpush.msra.mxu0 0.0
        %2714 = vmatpush.msra.mxu0 0.0
        %2715 = vmatpush.msra.mxu0 0.0
        %2716 = vmatpush.msra.mxu0 0.0
        %2717 = vmatpush.msra.mxu0 0.0
        %2718 = vmatpush.msra.mxu0 0.0
        %2719 = vmatpush.msra.mxu0 0.0
        %2720 = vmatpush.msra.mxu0 %v2617
        %2721 = vmatpush.msra.mxu0 %v2573
        %2722 = vmatpush.msra.mxu0 %v2538
        %2723 = vmatpush.msra.mxu0 %v2495
        %2724 = vmatpush.msra.mxu0 %v2452
        %2725 = vmatpush.msra.mxu0 %v2418
        %2726 = vmatpush.msra.mxu0 %v2375
        %2727 = vmatpush.msra.mxu0 %v2332
        %2728 = vmatpush.msra.mxu0 %v2081
        %2729 = vmatmul.f32.gmra.mxu0 %v2631
        %v2730 = vpop.f32.mrf.mxu0
        %v2731 = vadd.f32 0.0, %v2730
        %2732 = vdwg.mxu0
        %2733 = vmatpush.msra.mxu0 0.0
        %2734 = vmatpush.msra.mxu0 0.0
        %2735 = vmatpush.msra.mxu0 0.0
        %2736 = vmatpush.msra.mxu0 0.0
        %2737 = vmatpush.msra.mxu0 0.0
        %2738 = vmatpush.msra.mxu0 0.0
        %2739 = vmatpush.msra.mxu0 0.0
        %2740 = vmatpush.msra.mxu0 %v2618
        %2741 = vmatpush.msra.mxu0 %v2574
        %2742 = vmatpush.msra.mxu0 %v2539
        %2743 = vmatpush.msra.mxu0 %v2496
        %2744 = vmatpush.msra.mxu0 %v2453
        %2745 = vmatpush.msra.mxu0 %v2419
        %2746 = vmatpush.msra.mxu0 %v2376
        %2747 = vmatpush.msra.mxu0 %v2333
        %2748 = vmatpush.msra.mxu0 %v2082
        %2749 = vmatmul.f32.gmra.mxu0 %v2631
        %v2750 = vpop.f32.mrf.mxu0
        %v2751 = vadd.f32 0.0, %v2750
        %2752 = vdwg.mxu0
        %2753 = vmatpush.msra.mxu0 0.0
        %2754 = vmatpush.msra.mxu0 0.0
        %2755 = vmatpush.msra.mxu0 0.0
        %2756 = vmatpush.msra.mxu0 0.0
        %2757 = vmatpush.msra.mxu0 0.0
        %2758 = vmatpush.msra.mxu0 0.0
        %2759 = vmatpush.msra.mxu0 0.0
        %2760 = vmatpush.msra.mxu0 %v2619
        %2761 = vmatpush.msra.mxu0 %v2575
        %2762 = vmatpush.msra.mxu0 %v2540
        %2763 = vmatpush.msra.mxu0 %v2497
        %2764 = vmatpush.msra.mxu0 %v2454
        %2765 = vmatpush.msra.mxu0 %v2420
        %2766 = vmatpush.msra.mxu0 %v2377
        %2767 = vmatpush.msra.mxu0 %v2334
        %2768 = vmatpush.msra.mxu0 %v2083
        %2769 = vmatmul.f32.gmra.mxu0 %v2631
        %v2770 = vpop.f32.mrf.mxu0
        %v2771 = vadd.f32 0.0, %v2770
        %2772 = vdwg.mxu0
        %2773 = vmatpush.msra.mxu0 0.0
        %2774 = vmatpush.msra.mxu0 0.0
        %2775 = vmatpush.msra.mxu0 0.0
        %2776 = vmatpush.msra.mxu0 0.0
        %2777 = vmatpush.msra.mxu0 0.0
        %2778 = vmatpush.msra.mxu0 0.0
        %2779 = vmatpush.msra.mxu0 0.0
        %2780 = vmatpush.msra.mxu0 %v2620
        %2781 = vmatpush.msra.mxu0 %v2576
        %2782 = vmatpush.msra.mxu0 %v2541
        %2783 = vmatpush.msra.mxu0 %v2498
        %2784 = vmatpush.msra.mxu0 %v2455
        %2785 = vmatpush.msra.mxu0 %v2421
        %2786 = vmatpush.msra.mxu0 %v2378
        %2787 = vmatpush.msra.mxu0 %v2335
        %2788 = vmatpush.msra.mxu0 %v2084
        %2789 = vmatmul.f32.gmra.mxu0 %v2631
        %v2790 = vpop.f32.mrf.mxu0
        %v2791 = vadd.f32 0.0, %v2790
        %2792 = vdwg.mxu0
        %v2793 = vld [vmem:[%s10] sm:$0xff]
        %2795 = vset.pattern.permute.xlu0 0
        %2796 = vperm.xlu0 %2795, %v2793
        %v2797 = vpop.permute.xlu0 %2796
        %v2799 = vmul.f32 %v2651, %v2797
        %v2800 = vmul.f32 %v2671, %v2797
        %v2801 = vmul.f32 %v2691, %v2797
        %v2802 = vmul.f32 %v2711, %v2797
        %v2803 = vmul.f32 %v2731, %v2797
        %v2804 = vmul.f32 %v2751, %v2797
        %v2805 = vmul.f32 %v2771, %v2797
        %v2806 = vmul.f32 %v2791, %v2797
        %2807 = vset.pattern.permute.xlu0 1
        %2808 = vperm.xlu0 %2807, %v2793
        %v2809 = vpop.permute.xlu0 %2808
        %v2811 = vadd.f32 %v2799, %v2809
        %v2812 = vadd.f32 %v2800, %v2809
        %v2813 = vadd.f32 %v2801, %v2809
        %v2814 = vadd.f32 %v2802, %v2809
        %v2815 = vadd.f32 %v2803, %v2809
        %v2816 = vadd.f32 %v2804, %v2809
        %v2817 = vadd.f32 %v2805, %v2809
        %v2818 = vadd.f32 %v2806, %v2809
        %v2819 = vmax.f32 %v2811, 0.0
        %v2820 = vmax.f32 %v2812, 0.0
        %v2821 = vmax.f32 %v2813, 0.0
        %v2822 = vmax.f32 %v2814, 0.0
        %v2823 = vmax.f32 %v2815, 0.0
        %v2824 = vmax.f32 %v2816, 0.0
        %v2825 = vmax.f32 %v2817, 0.0
        %v2826 = vmax.f32 %v2818, 0.0
        %2827 = vst.msk [vmem:[#allocation2] sm:$0xff] %vm1995, 0.0
        %2836 = vrot.lane.b32.xlu0 %v1450, 33
        %v2837 = vpop.permute.xlu0 %2836
        %2838 = vrot.lane.b32.xlu0 %v1490, 33
        %v2839 = vpop.permute.xlu0 %2838
        %2840 = vrot.lane.b32.xlu0 %v1530, 33
        %v2841 = vpop.permute.xlu0 %2840
        %2842 = vrot.lane.b32.xlu0 %v1570, 33
        %v2843 = vpop.permute.xlu0 %2842
        %2844 = vrot.lane.b32.xlu0 %v1610, 33
        %v2845 = vpop.permute.xlu0 %2844
        %2846 = vrot.lane.b32.xlu0 %v1650, 33
        %v2847 = vpop.permute.xlu0 %2846
        %2848 = vrot.lane.b32.xlu0 %v1690, 33
        %v2849 = vpop.permute.xlu0 %2848
        %2850 = vrot.lane.b32.xlu0 %v1730, 33
        %v2851 = vpop.permute.xlu0 %2850
        %v2852 = vsel %vm1995, %v2837, %v2839
        %v2853 = vsel %vm1995, %v2839, %v2841
        %v2854 = vsel %vm1995, %v2841, %v2843
        %v2855 = vsel %vm1995, %v2843, %v2845
        %v2856 = vsel %vm1995, %v2845, %v2847
        %v2857 = vsel %vm1995, %v2847, %v2849
        %v2858 = vsel %vm1995, %v2849, %v2851
        %2868 = vst.msk [vmem:[#allocation2] sm:$0xff] %vm2037, %v2837
        %2869 = vst [vmem:[#allocation2 + $0x8] sm:$0xff] %v2852
        %2870 = vst [vmem:[#allocation2 + $0x10] sm:$0xff] %v2853
        %2871 = vst [vmem:[#allocation2 + $0x18] sm:$0xff] %v2854
        %2872 = vst [vmem:[#allocation2 + $0x20] sm:$0xff] %v2855
        %2873 = vst [vmem:[#allocation2 + $0x28] sm:$0xff] %v2856
        %2874 = vst [vmem:[#allocation2 + $0x30] sm:$0xff] %v2857
        %2875 = vst [vmem:[#allocation2 + $0x38] sm:$0xff] %v2858
        %2876 = vst.msk [vmem:[#allocation2 + $0x40] sm:$0xff] %vm1995, %v2851
        %2877 = vst.msk [vmem:[#allocation2 + $0x40] sm:$0xff] %vm2047, 0.0
        %v2878 = vld [vmem:[%s6] ss:$2 sm:$0xff]
        %v2879 = vld [vmem:[%s2050] ss:$2 sm:$0xff]
        %v2880 = vld [vmem:[#allocation2] sm:$0xff]
        %v2881 = vld [vmem:[#allocation2 + $0x8] sm:$0xff]
        %v2882 = vld [vmem:[#allocation2 + $0x10] sm:$0xff]
        %v2883 = vld [vmem:[#allocation2 + $0x18] sm:$0xff]
        %v2884 = vld [vmem:[#allocation2 + $0x20] sm:$0xff]
        %v2885 = vld [vmem:[#allocation2 + $0x28] sm:$0xff]
        %v2886 = vld [vmem:[#allocation2 + $0x30] sm:$0xff]
        %v2887 = vld [vmem:[#allocation2 + $0x38] sm:$0xff]
        %v2889 = vperm.slane %v2878, 0
        %v2890 = vperm.slane %v2878, 1
        %v2891 = vperm.slane %v2878, 2
        %v2892 = vperm.slane %v2878, 3
        %v2893 = vperm.slane %v2878, 4
        %v2894 = vperm.slane %v2878, 5
        %v2895 = vperm.slane %v2878, 6
        %v2896 = vperm.slane %v2878, 7
        %v2905 = vmul.f32 %v2880, %v2889
        %v2906 = vmul.f32 %v2881, %v2890
        %v2907 = vmul.f32 %v2882, %v2891
        %v2908 = vmul.f32 %v2883, %v2892
        %v2909 = vmul.f32 %v2884, %v2893
        %v2910 = vmul.f32 %v2885, %v2894
        %v2911 = vmul.f32 %v2886, %v2895
        %v2912 = vmul.f32 %v2887, %v2896
        %v2913 = vld [vmem:[#allocation2 + $0x40] sm:$0xff]
        %v2915 = vperm.slane %v2879, 0
        %v2916 = vperm.slane %v2879, 1
        %v2917 = vperm.slane %v2879, 2
        %v2918 = vperm.slane %v2879, 3
        %v2919 = vperm.slane %v2879, 4
        %v2920 = vperm.slane %v2879, 5
        %v2921 = vperm.slane %v2879, 6
        %v2922 = vperm.slane %v2879, 7
        %2923 = vrot.lane.b32.xlu0 %v2915, 2
        %v2924 = vpop.permute.xlu0 %2923
        %2925 = vrot.lane.b32.xlu0 %v2916, 2
        %v2926 = vpop.permute.xlu0 %2925
        %2927 = vrot.lane.b32.xlu0 %v2917, 2
        %v2928 = vpop.permute.xlu0 %2927
        %2929 = vrot.lane.b32.xlu0 %v2918, 2
        %v2930 = vpop.permute.xlu0 %2929
        %2931 = vrot.lane.b32.xlu0 %v2919, 2
        %v2932 = vpop.permute.xlu0 %2931
        %2933 = vrot.lane.b32.xlu0 %v2920, 2
        %v2934 = vpop.permute.xlu0 %2933
        %2935 = vrot.lane.b32.xlu0 %v2921, 2
        %v2936 = vpop.permute.xlu0 %2935
        %2937 = vrot.lane.b32.xlu0 %v2922, 2
        %v2938 = vpop.permute.xlu0 %2937
        %v2939 = vsel %vm1770, %v2924, %v2926
        %v2940 = vsel %vm1770, %v2926, %v2928
        %v2941 = vsel %vm1770, %v2928, %v2930
        %v2942 = vsel %vm1770, %v2930, %v2932
        %v2943 = vsel %vm1770, %v2932, %v2934
        %v2944 = vsel %vm1770, %v2934, %v2936
        %v2945 = vsel %vm1770, %v2936, %v2938
        %v2955 = vmul.f32 %v2880, %v2924
        %v2956 = vmul.f32 %v2881, %v2939
        %v2957 = vmul.f32 %v2882, %v2940
        %v2958 = vmul.f32 %v2883, %v2941
        %v2959 = vmul.f32 %v2884, %v2942
        %v2960 = vmul.f32 %v2885, %v2943
        %v2961 = vmul.f32 %v2886, %v2944
        %v2962 = vmul.f32 %v2887, %v2945
        %v2963 = vmul.f32 %v2913, %v2938
        %2964 = vrot.lane.b32.xlu0 %v2889, 32
        %v2965 = vpop.permute.xlu0 %2964
        %2966 = vrot.lane.b32.xlu0 %v2890, 32
        %v2967 = vpop.permute.xlu0 %2966
        %2968 = vrot.lane.b32.xlu0 %v2891, 32
        %v2969 = vpop.permute.xlu0 %2968
        %2970 = vrot.lane.b32.xlu0 %v2892, 32
        %v2971 = vpop.permute.xlu0 %2970
        %2972 = vrot.lane.b32.xlu0 %v2893, 32
        %v2973 = vpop.permute.xlu0 %2972
        %2974 = vrot.lane.b32.xlu0 %v2894, 32
        %v2975 = vpop.permute.xlu0 %2974
        %2976 = vrot.lane.b32.xlu0 %v2895, 32
        %v2977 = vpop.permute.xlu0 %2976
        %2978 = vrot.lane.b32.xlu0 %v2896, 32
        %v2979 = vpop.permute.xlu0 %2978
        %v2980 = vsel %vm1806, %v2965, %v2967
        %v2981 = vsel %vm1806, %v2967, %v2969
        %v2982 = vsel %vm1806, %v2969, %v2971
        %v2983 = vsel %vm1806, %v2971, %v2973
        %v2984 = vsel %vm1806, %v2973, %v2975
        %v2985 = vsel %vm1806, %v2975, %v2977
        %v2986 = vsel %vm1806, %v2977, %v2979
        %v2996 = vmul.f32 %v2880, %v2965
        %v2997 = vmul.f32 %v2881, %v2980
        %v2998 = vmul.f32 %v2882, %v2981
        %v2999 = vmul.f32 %v2883, %v2982
        %v3000 = vmul.f32 %v2884, %v2983
        %v3001 = vmul.f32 %v2885, %v2984
        %v3002 = vmul.f32 %v2886, %v2985
        %v3003 = vmul.f32 %v2887, %v2986
        %v3004 = vmul.f32 %v2913, %v2979
        %3005 = vrot.lane.b32.xlu0 %v2915, 34
        %v3006 = vpop.permute.xlu0 %3005
        %3007 = vrot.lane.b32.xlu0 %v2916, 34
        %v3008 = vpop.permute.xlu0 %3007
        %3009 = vrot.lane.b32.xlu0 %v2917, 34
        %v3010 = vpop.permute.xlu0 %3009
        %3011 = vrot.lane.b32.xlu0 %v2918, 34
        %v3012 = vpop.permute.xlu0 %3011
        %3013 = vrot.lane.b32.xlu0 %v2919, 34
        %v3014 = vpop.permute.xlu0 %3013
        %3015 = vrot.lane.b32.xlu0 %v2920, 34
        %v3016 = vpop.permute.xlu0 %3015
        %3017 = vrot.lane.b32.xlu0 %v2921, 34
        %v3018 = vpop.permute.xlu0 %3017
        %3019 = vrot.lane.b32.xlu0 %v2922, 34
        %v3020 = vpop.permute.xlu0 %3019
        %v3021 = vsel %vm1818, %v3006, %v3008
        %v3022 = vsel %vm1818, %v3008, %v3010
        %v3023 = vsel %vm1818, %v3010, %v3012
        %v3024 = vsel %vm1818, %v3012, %v3014
        %v3025 = vsel %vm1818, %v3014, %v3016
        %v3026 = vsel %vm1818, %v3016, %v3018
        %v3027 = vsel %vm1818, %v3018, %v3020
        %v3037 = vmul.f32 %v2880, %v3006
        %v3038 = vmul.f32 %v2881, %v3021
        %v3039 = vmul.f32 %v2882, %v3022
        %v3040 = vmul.f32 %v2883, %v3023
        %v3041 = vmul.f32 %v2884, %v3024
        %v3042 = vmul.f32 %v2885, %v3025
        %v3043 = vmul.f32 %v2886, %v3026
        %v3044 = vmul.f32 %v2887, %v3027
        %v3045 = vmul.f32 %v2913, %v3020
        %3046 = vrot.lane.b32.xlu0 %v2889, 64
        %v3047 = vpop.permute.xlu0 %3046
        %3048 = vrot.lane.b32.xlu0 %v2890, 64
        %v3049 = vpop.permute.xlu0 %3048
        %3050 = vrot.lane.b32.xlu0 %v2891, 64
        %v3051 = vpop.permute.xlu0 %3050
        %3052 = vrot.lane.b32.xlu0 %v2892, 64
        %v3053 = vpop.permute.xlu0 %3052
        %3054 = vrot.lane.b32.xlu0 %v2893, 64
        %v3055 = vpop.permute.xlu0 %3054
        %3056 = vrot.lane.b32.xlu0 %v2894, 64
        %v3057 = vpop.permute.xlu0 %3056
        %3058 = vrot.lane.b32.xlu0 %v2895, 64
        %v3059 = vpop.permute.xlu0 %3058
        %3060 = vrot.lane.b32.xlu0 %v2896, 64
        %v3061 = vpop.permute.xlu0 %3060
        %v3062 = vsel %vm792, %v3047, %v3049
        %v3063 = vsel %vm792, %v3049, %v3051
        %v3064 = vsel %vm792, %v3051, %v3053
        %v3065 = vsel %vm792, %v3053, %v3055
        %v3066 = vsel %vm792, %v3055, %v3057
        %v3067 = vsel %vm792, %v3057, %v3059
        %v3068 = vsel %vm792, %v3059, %v3061
        %v3078 = vmul.f32 %v2880, %v3047
        %v3079 = vmul.f32 %v2881, %v3062
        %v3080 = vmul.f32 %v2882, %v3063
        %v3081 = vmul.f32 %v2883, %v3064
        %v3082 = vmul.f32 %v2884, %v3065
        %v3083 = vmul.f32 %v2885, %v3066
        %v3084 = vmul.f32 %v2886, %v3067
        %v3085 = vmul.f32 %v2887, %v3068
        %v3086 = vmul.f32 %v2913, %v3061
        %3087 = vrot.lane.b32.xlu0 %v2915, 66
        %v3088 = vpop.permute.xlu0 %3087
        %3089 = vrot.lane.b32.xlu0 %v2916, 66
        %v3090 = vpop.permute.xlu0 %3089
        %3091 = vrot.lane.b32.xlu0 %v2917, 66
        %v3092 = vpop.permute.xlu0 %3091
        %3093 = vrot.lane.b32.xlu0 %v2918, 66
        %v3094 = vpop.permute.xlu0 %3093
        %3095 = vrot.lane.b32.xlu0 %v2919, 66
        %v3096 = vpop.permute.xlu0 %3095
        %3097 = vrot.lane.b32.xlu0 %v2920, 66
        %v3098 = vpop.permute.xlu0 %3097
        %3099 = vrot.lane.b32.xlu0 %v2921, 66
        %v3100 = vpop.permute.xlu0 %3099
        %3101 = vrot.lane.b32.xlu0 %v2922, 66
        %v3102 = vpop.permute.xlu0 %3101
        %v3103 = vsel %vm2275, %v3088, %v3090
        %v3104 = vsel %vm2275, %v3090, %v3092
        %v3105 = vsel %vm2275, %v3092, %v3094
        %v3106 = vsel %vm2275, %v3094, %v3096
        %v3107 = vsel %vm2275, %v3096, %v3098
        %v3108 = vsel %vm2275, %v3098, %v3100
        %v3109 = vsel %vm2275, %v3100, %v3102
        %v3119 = vmul.f32 %v2880, %v3088
        %v3120 = vmul.f32 %v2881, %v3103
        %v3121 = vmul.f32 %v2882, %v3104
        %v3122 = vmul.f32 %v2883, %v3105
        %v3123 = vmul.f32 %v2884, %v3106
        %v3124 = vmul.f32 %v2885, %v3107
        %v3125 = vmul.f32 %v2886, %v3108
        %v3126 = vmul.f32 %v2887, %v3109
        %v3127 = vmul.f32 %v2913, %v3102
        %3137 = vrot.lane.b32.xlu0 %v2880, 127
        %v3138 = vpop.permute.xlu0 %3137
        %3139 = vrot.lane.b32.xlu0 %v2881, 127
        %v3140 = vpop.permute.xlu0 %3139
        %3141 = vrot.lane.b32.xlu0 %v2882, 127
        %v3142 = vpop.permute.xlu0 %3141
        %3143 = vrot.lane.b32.xlu0 %v2883, 127
        %v3144 = vpop.permute.xlu0 %3143
        %3145 = vrot.lane.b32.xlu0 %v2884, 127
        %v3146 = vpop.permute.xlu0 %3145
        %3147 = vrot.lane.b32.xlu0 %v2885, 127
        %v3148 = vpop.permute.xlu0 %3147
        %3149 = vrot.lane.b32.xlu0 %v2886, 127
        %v3150 = vpop.permute.xlu0 %3149
        %3151 = vrot.lane.b32.xlu0 %v2887, 127
        %v3152 = vpop.permute.xlu0 %3151
        %3153 = vrot.lane.b32.xlu0 %v2913, 127
        %v3154 = vpop.permute.xlu0 %3153
        %v3155 = vsel %vm1835, %v3138, %v3140
        %v3156 = vsel %vm1835, %v3140, %v3142
        %v3157 = vsel %vm1835, %v3142, %v3144
        %v3158 = vsel %vm1835, %v3144, %v3146
        %v3159 = vsel %vm1835, %v3146, %v3148
        %v3160 = vsel %vm1835, %v3148, %v3150
        %v3161 = vsel %vm1835, %v3150, %v3152
        %v3162 = vsel %vm1835, %v3152, %v3154
        %3180 = vrot.lane.b32.xlu0 %v2955, 126
        %v3181 = vpop.permute.xlu0 %3180
        %3182 = vrot.lane.b32.xlu0 %v2956, 126
        %v3183 = vpop.permute.xlu0 %3182
        %3184 = vrot.lane.b32.xlu0 %v2957, 126
        %v3185 = vpop.permute.xlu0 %3184
        %3186 = vrot.lane.b32.xlu0 %v2958, 126
        %v3187 = vpop.permute.xlu0 %3186
        %3188 = vrot.lane.b32.xlu0 %v2959, 126
        %v3189 = vpop.permute.xlu0 %3188
        %3190 = vrot.lane.b32.xlu0 %v2960, 126
        %v3191 = vpop.permute.xlu0 %3190
        %3192 = vrot.lane.b32.xlu0 %v2961, 126
        %v3193 = vpop.permute.xlu0 %3192
        %3194 = vrot.lane.b32.xlu0 %v2962, 126
        %v3195 = vpop.permute.xlu0 %3194
        %3196 = vrot.lane.b32.xlu0 %v2963, 126
        %v3197 = vpop.permute.xlu0 %3196
        %v3198 = vsel %vm1849, %v3181, %v3183
        %v3199 = vsel %vm1849, %v3183, %v3185
        %v3200 = vsel %vm1849, %v3185, %v3187
        %v3201 = vsel %vm1849, %v3187, %v3189
        %v3202 = vsel %vm1849, %v3189, %v3191
        %v3203 = vsel %vm1849, %v3191, %v3193
        %v3204 = vsel %vm1849, %v3193, %v3195
        %v3205 = vsel %vm1849, %v3195, %v3197
        %3223 = vrot.lane.b32.xlu0 %v2996, 96
        %v3224 = vpop.permute.xlu0 %3223
        %3225 = vrot.lane.b32.xlu0 %v2997, 96
        %v3226 = vpop.permute.xlu0 %3225
        %3227 = vrot.lane.b32.xlu0 %v2998, 96
        %v3228 = vpop.permute.xlu0 %3227
        %3229 = vrot.lane.b32.xlu0 %v2999, 96
        %v3230 = vpop.permute.xlu0 %3229
        %3231 = vrot.lane.b32.xlu0 %v3000, 96
        %v3232 = vpop.permute.xlu0 %3231
        %3233 = vrot.lane.b32.xlu0 %v3001, 96
        %v3234 = vpop.permute.xlu0 %3233
        %3235 = vrot.lane.b32.xlu0 %v3002, 96
        %v3236 = vpop.permute.xlu0 %3235
        %3237 = vrot.lane.b32.xlu0 %v3003, 96
        %v3238 = vpop.permute.xlu0 %3237
        %3239 = vrot.lane.b32.xlu0 %v3004, 96
        %v3240 = vpop.permute.xlu0 %3239
        %v3241 = vsel %vm1902, %v3224, %v3226
        %v3242 = vsel %vm1902, %v3226, %v3228
        %v3243 = vsel %vm1902, %v3228, %v3230
        %v3244 = vsel %vm1902, %v3230, %v3232
        %v3245 = vsel %vm1902, %v3232, %v3234
        %v3246 = vsel %vm1902, %v3234, %v3236
        %v3247 = vsel %vm1902, %v3236, %v3238
        %v3248 = vsel %vm1902, %v3238, %v3240
        %3257 = vrot.lane.b32.xlu0 %v2880, 95
        %v3258 = vpop.permute.xlu0 %3257
        %3259 = vrot.lane.b32.xlu0 %v2881, 95
        %v3260 = vpop.permute.xlu0 %3259
        %3261 = vrot.lane.b32.xlu0 %v2882, 95
        %v3262 = vpop.permute.xlu0 %3261
        %3263 = vrot.lane.b32.xlu0 %v2883, 95
        %v3264 = vpop.permute.xlu0 %3263
        %3265 = vrot.lane.b32.xlu0 %v2884, 95
        %v3266 = vpop.permute.xlu0 %3265
        %3267 = vrot.lane.b32.xlu0 %v2885, 95
        %v3268 = vpop.permute.xlu0 %3267
        %3269 = vrot.lane.b32.xlu0 %v2886, 95
        %v3270 = vpop.permute.xlu0 %3269
        %3271 = vrot.lane.b32.xlu0 %v2887, 95
        %v3272 = vpop.permute.xlu0 %3271
        %3273 = vrot.lane.b32.xlu0 %v2913, 95
        %v3274 = vpop.permute.xlu0 %3273
        %v3275 = vsel %vm1913, %v3258, %v3260
        %v3276 = vsel %vm1913, %v3260, %v3262
        %v3277 = vsel %vm1913, %v3262, %v3264
        %v3278 = vsel %vm1913, %v3264, %v3266
        %v3279 = vsel %vm1913, %v3266, %v3268
        %v3280 = vsel %vm1913, %v3268, %v3270
        %v3281 = vsel %vm1913, %v3270, %v3272
        %v3282 = vsel %vm1913, %v3272, %v3274
        %3300 = vrot.lane.b32.xlu0 %v3037, 94
        %v3301 = vpop.permute.xlu0 %3300
        %3302 = vrot.lane.b32.xlu0 %v3038, 94
        %v3303 = vpop.permute.xlu0 %3302
        %3304 = vrot.lane.b32.xlu0 %v3039, 94
        %v3305 = vpop.permute.xlu0 %3304
        %3306 = vrot.lane.b32.xlu0 %v3040, 94
        %v3307 = vpop.permute.xlu0 %3306
        %3308 = vrot.lane.b32.xlu0 %v3041, 94
        %v3309 = vpop.permute.xlu0 %3308
        %3310 = vrot.lane.b32.xlu0 %v3042, 94
        %v3311 = vpop.permute.xlu0 %3310
        %3312 = vrot.lane.b32.xlu0 %v3043, 94
        %v3313 = vpop.permute.xlu0 %3312
        %3314 = vrot.lane.b32.xlu0 %v3044, 94
        %v3315 = vpop.permute.xlu0 %3314
        %3316 = vrot.lane.b32.xlu0 %v3045, 94
        %v3317 = vpop.permute.xlu0 %3316
        %v3318 = vsel %vm1927, %v3301, %v3303
        %v3319 = vsel %vm1927, %v3303, %v3305
        %v3320 = vsel %vm1927, %v3305, %v3307
        %v3321 = vsel %vm1927, %v3307, %v3309
        %v3322 = vsel %vm1927, %v3309, %v3311
        %v3323 = vsel %vm1927, %v3311, %v3313
        %v3324 = vsel %vm1927, %v3313, %v3315
        %v3325 = vsel %vm1927, %v3315, %v3317
        %3343 = vrot.lane.b32.xlu0 %v3078, 64
        %v3344 = vpop.permute.xlu0 %3343
        %3345 = vrot.lane.b32.xlu0 %v3079, 64
        %v3346 = vpop.permute.xlu0 %3345
        %3347 = vrot.lane.b32.xlu0 %v3080, 64
        %v3348 = vpop.permute.xlu0 %3347
        %3349 = vrot.lane.b32.xlu0 %v3081, 64
        %v3350 = vpop.permute.xlu0 %3349
        %3351 = vrot.lane.b32.xlu0 %v3082, 64
        %v3352 = vpop.permute.xlu0 %3351
        %3353 = vrot.lane.b32.xlu0 %v3083, 64
        %v3354 = vpop.permute.xlu0 %3353
        %3355 = vrot.lane.b32.xlu0 %v3084, 64
        %v3356 = vpop.permute.xlu0 %3355
        %3357 = vrot.lane.b32.xlu0 %v3085, 64
        %v3358 = vpop.permute.xlu0 %3357
        %3359 = vrot.lane.b32.xlu0 %v3086, 64
        %v3360 = vpop.permute.xlu0 %3359
        %v3361 = vsel %vm792, %v3344, %v3346
        %v3362 = vsel %vm792, %v3346, %v3348
        %v3363 = vsel %vm792, %v3348, %v3350
        %v3364 = vsel %vm792, %v3350, %v3352
        %v3365 = vsel %vm792, %v3352, %v3354
        %v3366 = vsel %vm792, %v3354, %v3356
        %v3367 = vsel %vm792, %v3356, %v3358
        %v3368 = vsel %vm792, %v3358, %v3360
        %3377 = vrot.lane.b32.xlu0 %v2880, 63
        %v3378 = vpop.permute.xlu0 %3377
        %3379 = vrot.lane.b32.xlu0 %v2881, 63
        %v3380 = vpop.permute.xlu0 %3379
        %3381 = vrot.lane.b32.xlu0 %v2882, 63
        %v3382 = vpop.permute.xlu0 %3381
        %3383 = vrot.lane.b32.xlu0 %v2883, 63
        %v3384 = vpop.permute.xlu0 %3383
        %3385 = vrot.lane.b32.xlu0 %v2884, 63
        %v3386 = vpop.permute.xlu0 %3385
        %3387 = vrot.lane.b32.xlu0 %v2885, 63
        %v3388 = vpop.permute.xlu0 %3387
        %3389 = vrot.lane.b32.xlu0 %v2886, 63
        %v3390 = vpop.permute.xlu0 %3389
        %3391 = vrot.lane.b32.xlu0 %v2887, 63
        %v3392 = vpop.permute.xlu0 %3391
        %3393 = vrot.lane.b32.xlu0 %v2913, 63
        %v3394 = vpop.permute.xlu0 %3393
        %v3395 = vsel %vm2568, %v3378, %v3380
        %v3396 = vsel %vm2568, %v3380, %v3382
        %v3397 = vsel %vm2568, %v3382, %v3384
        %v3398 = vsel %vm2568, %v3384, %v3386
        %v3399 = vsel %vm2568, %v3386, %v3388
        %v3400 = vsel %vm2568, %v3388, %v3390
        %v3401 = vsel %vm2568, %v3390, %v3392
        %v3402 = vsel %vm2568, %v3392, %v3394
        %3420 = vrot.lane.b32.xlu0 %v3119, 62
        %v3421 = vpop.permute.xlu0 %3420
        %3422 = vrot.lane.b32.xlu0 %v3120, 62
        %v3423 = vpop.permute.xlu0 %3422
        %3424 = vrot.lane.b32.xlu0 %v3121, 62
        %v3425 = vpop.permute.xlu0 %3424
        %3426 = vrot.lane.b32.xlu0 %v3122, 62
        %v3427 = vpop.permute.xlu0 %3426
        %3428 = vrot.lane.b32.xlu0 %v3123, 62
        %v3429 = vpop.permute.xlu0 %3428
        %3430 = vrot.lane.b32.xlu0 %v3124, 62
        %v3431 = vpop.permute.xlu0 %3430
        %3432 = vrot.lane.b32.xlu0 %v3125, 62
        %v3433 = vpop.permute.xlu0 %3432
        %3434 = vrot.lane.b32.xlu0 %v3126, 62
        %v3435 = vpop.permute.xlu0 %3434
        %3436 = vrot.lane.b32.xlu0 %v3127, 62
        %v3437 = vpop.permute.xlu0 %3436
        %v3438 = vsel %vm2612, %v3421, %v3423
        %v3439 = vsel %vm2612, %v3423, %v3425
        %v3440 = vsel %vm2612, %v3425, %v3427
        %v3441 = vsel %vm2612, %v3427, %v3429
        %v3442 = vsel %vm2612, %v3429, %v3431
        %v3443 = vsel %vm2612, %v3431, %v3433
        %v3444 = vsel %vm2612, %v3433, %v3435
        %v3445 = vsel %vm2612, %v3435, %v3437
        %v3454 = vld [vmem:[%s11] sm:$0xff]
        %v3456 = vsel %vm1933, %v3454, 0
        %3458 = vmatpush.msra.mxu0 0.0
        %3459 = vmatpush.msra.mxu0 0.0
        %3460 = vmatpush.msra.mxu0 0.0
        %3461 = vmatpush.msra.mxu0 0.0
        %3462 = vmatpush.msra.mxu0 0.0
        %3463 = vmatpush.msra.mxu0 0.0
        %3464 = vmatpush.msra.mxu0 0.0
        %3465 = vmatpush.msra.mxu0 %v3438
        %3466 = vmatpush.msra.mxu0 %v3395
        %3467 = vmatpush.msra.mxu0 %v3361
        %3468 = vmatpush.msra.mxu0 %v3318
        %3469 = vmatpush.msra.mxu0 %v3275
        %3470 = vmatpush.msra.mxu0 %v3241
        %3471 = vmatpush.msra.mxu0 %v3198
        %3472 = vmatpush.msra.mxu0 %v3155
        %3473 = vmatpush.msra.mxu0 %v2905
        %3474 = vmatmul.f32.gmra.mxu0 %v3456
        %v3475 = vpop.f32.mrf.mxu0
        %v3476 = vadd.f32 0.0, %v3475
        %3477 = vdwg.mxu0
        %3478 = vmatpush.msra.mxu0 0.0
        %3479 = vmatpush.msra.mxu0 0.0
        %3480 = vmatpush.msra.mxu0 0.0
        %3481 = vmatpush.msra.mxu0 0.0
        %3482 = vmatpush.msra.mxu0 0.0
        %3483 = vmatpush.msra.mxu0 0.0
        %3484 = vmatpush.msra.mxu0 0.0
        %3485 = vmatpush.msra.mxu0 %v3439
        %3486 = vmatpush.msra.mxu0 %v3396
        %3487 = vmatpush.msra.mxu0 %v3362
        %3488 = vmatpush.msra.mxu0 %v3319
        %3489 = vmatpush.msra.mxu0 %v3276
        %3490 = vmatpush.msra.mxu0 %v3242
        %3491 = vmatpush.msra.mxu0 %v3199
        %3492 = vmatpush.msra.mxu0 %v3156
        %3493 = vmatpush.msra.mxu0 %v2906
        %3494 = vmatmul.f32.gmra.mxu0 %v3456
        %v3495 = vpop.f32.mrf.mxu0
        %v3496 = vadd.f32 0.0, %v3495
        %3497 = vdwg.mxu0
        %3498 = vmatpush.msra.mxu0 0.0
        %3499 = vmatpush.msra.mxu0 0.0
        %3500 = vmatpush.msra.mxu0 0.0
        %3501 = vmatpush.msra.mxu0 0.0
        %3502 = vmatpush.msra.mxu0 0.0
        %3503 = vmatpush.msra.mxu0 0.0
        %3504 = vmatpush.msra.mxu0 0.0
        %3505 = vmatpush.msra.mxu0 %v3440
        %3506 = vmatpush.msra.mxu0 %v3397
        %3507 = vmatpush.msra.mxu0 %v3363
        %3508 = vmatpush.msra.mxu0 %v3320
        %3509 = vmatpush.msra.mxu0 %v3277
        %3510 = vmatpush.msra.mxu0 %v3243
        %3511 = vmatpush.msra.mxu0 %v3200
        %3512 = vmatpush.msra.mxu0 %v3157
        %3513 = vmatpush.msra.mxu0 %v2907
        %3514 = vmatmul.f32.gmra.mxu0 %v3456
        %v3515 = vpop.f32.mrf.mxu0
        %v3516 = vadd.f32 0.0, %v3515
        %3517 = vdwg.mxu0
        %3518 = vmatpush.msra.mxu0 0.0
        %3519 = vmatpush.msra.mxu0 0.0
        %3520 = vmatpush.msra.mxu0 0.0
        %3521 = vmatpush.msra.mxu0 0.0
        %3522 = vmatpush.msra.mxu0 0.0
        %3523 = vmatpush.msra.mxu0 0.0
        %3524 = vmatpush.msra.mxu0 0.0
        %3525 = vmatpush.msra.mxu0 %v3441
        %3526 = vmatpush.msra.mxu0 %v3398
        %3527 = vmatpush.msra.mxu0 %v3364
        %3528 = vmatpush.msra.mxu0 %v3321
        %3529 = vmatpush.msra.mxu0 %v3278
        %3530 = vmatpush.msra.mxu0 %v3244
        %3531 = vmatpush.msra.mxu0 %v3201
        %3532 = vmatpush.msra.mxu0 %v3158
        %3533 = vmatpush.msra.mxu0 %v2908
        %3534 = vmatmul.f32.gmra.mxu0 %v3456
        %v3535 = vpop.f32.mrf.mxu0
        %v3536 = vadd.f32 0.0, %v3535
        %3537 = vdwg.mxu0
        %3538 = vmatpush.msra.mxu0 0.0
        %3539 = vmatpush.msra.mxu0 0.0
        %3540 = vmatpush.msra.mxu0 0.0
        %3541 = vmatpush.msra.mxu0 0.0
        %3542 = vmatpush.msra.mxu0 0.0
        %3543 = vmatpush.msra.mxu0 0.0
        %3544 = vmatpush.msra.mxu0 0.0
        %3545 = vmatpush.msra.mxu0 %v3442
        %3546 = vmatpush.msra.mxu0 %v3399
        %3547 = vmatpush.msra.mxu0 %v3365
        %3548 = vmatpush.msra.mxu0 %v3322
        %3549 = vmatpush.msra.mxu0 %v3279
        %3550 = vmatpush.msra.mxu0 %v3245
        %3551 = vmatpush.msra.mxu0 %v3202
        %3552 = vmatpush.msra.mxu0 %v3159
        %3553 = vmatpush.msra.mxu0 %v2909
        %3554 = vmatmul.f32.gmra.mxu0 %v3456
        %v3555 = vpop.f32.mrf.mxu0
        %v3556 = vadd.f32 0.0, %v3555
        %3557 = vdwg.mxu0
        %3558 = vmatpush.msra.mxu0 0.0
        %3559 = vmatpush.msra.mxu0 0.0
        %3560 = vmatpush.msra.mxu0 0.0
        %3561 = vmatpush.msra.mxu0 0.0
        %3562 = vmatpush.msra.mxu0 0.0
        %3563 = vmatpush.msra.mxu0 0.0
        %3564 = vmatpush.msra.mxu0 0.0
        %3565 = vmatpush.msra.mxu0 %v3443
        %3566 = vmatpush.msra.mxu0 %v3400
        %3567 = vmatpush.msra.mxu0 %v3366
        %3568 = vmatpush.msra.mxu0 %v3323
        %3569 = vmatpush.msra.mxu0 %v3280
        %3570 = vmatpush.msra.mxu0 %v3246
        %3571 = vmatpush.msra.mxu0 %v3203
        %3572 = vmatpush.msra.mxu0 %v3160
        %3573 = vmatpush.msra.mxu0 %v2910
        %3574 = vmatmul.f32.gmra.mxu0 %v3456
        %v3575 = vpop.f32.mrf.mxu0
        %v3576 = vadd.f32 0.0, %v3575
        %3577 = vdwg.mxu0
        %3578 = vmatpush.msra.mxu0 0.0
        %3579 = vmatpush.msra.mxu0 0.0
        %3580 = vmatpush.msra.mxu0 0.0
        %3581 = vmatpush.msra.mxu0 0.0
        %3582 = vmatpush.msra.mxu0 0.0
        %3583 = vmatpush.msra.mxu0 0.0
        %3584 = vmatpush.msra.mxu0 0.0
        %3585 = vmatpush.msra.mxu0 %v3444
        %3586 = vmatpush.msra.mxu0 %v3401
        %3587 = vmatpush.msra.mxu0 %v3367
        %3588 = vmatpush.msra.mxu0 %v3324
        %3589 = vmatpush.msra.mxu0 %v3281
        %3590 = vmatpush.msra.mxu0 %v3247
        %3591 = vmatpush.msra.mxu0 %v3204
        %3592 = vmatpush.msra.mxu0 %v3161
        %3593 = vmatpush.msra.mxu0 %v2911
        %3594 = vmatmul.f32.gmra.mxu0 %v3456
        %v3595 = vpop.f32.mrf.mxu0
        %v3596 = vadd.f32 0.0, %v3595
        %3597 = vdwg.mxu0
        %3598 = vmatpush.msra.mxu0 0.0
        %3599 = vmatpush.msra.mxu0 0.0
        %3600 = vmatpush.msra.mxu0 0.0
        %3601 = vmatpush.msra.mxu0 0.0
        %3602 = vmatpush.msra.mxu0 0.0
        %3603 = vmatpush.msra.mxu0 0.0
        %3604 = vmatpush.msra.mxu0 0.0
        %3605 = vmatpush.msra.mxu0 %v3445
        %3606 = vmatpush.msra.mxu0 %v3402
        %3607 = vmatpush.msra.mxu0 %v3368
        %3608 = vmatpush.msra.mxu0 %v3325
        %3609 = vmatpush.msra.mxu0 %v3282
        %3610 = vmatpush.msra.mxu0 %v3248
        %3611 = vmatpush.msra.mxu0 %v3205
        %3612 = vmatpush.msra.mxu0 %v3162
        %3613 = vmatpush.msra.mxu0 %v2912
        %3614 = vmatmul.f32.gmra.mxu0 %v3456
        %v3615 = vpop.f32.mrf.mxu0
        %v3616 = vadd.f32 0.0, %v3615
        %3617 = vdwg.mxu0
        %v3618 = vld [vmem:[%s12] sm:$0xff]
        %3620 = vset.pattern.permute.xlu0 0
        %3621 = vperm.xlu0 %3620, %v3618
        %v3622 = vpop.permute.xlu0 %3621
        %v3624 = vmul.f32 %v3476, %v3622
        %v3625 = vmul.f32 %v3496, %v3622
        %v3626 = vmul.f32 %v3516, %v3622
        %v3627 = vmul.f32 %v3536, %v3622
        %v3628 = vmul.f32 %v3556, %v3622
        %v3629 = vmul.f32 %v3576, %v3622
        %v3630 = vmul.f32 %v3596, %v3622
        %v3631 = vmul.f32 %v3616, %v3622
        %3632 = vset.pattern.permute.xlu0 1
        %3633 = vperm.xlu0 %3632, %v3618
        %v3634 = vpop.permute.xlu0 %3633
        %v3636 = vadd.f32 %v3624, %v3634
        %v3637 = vadd.f32 %v3625, %v3634
        %v3638 = vadd.f32 %v3626, %v3634
        %v3639 = vadd.f32 %v3627, %v3634
        %v3640 = vadd.f32 %v3628, %v3634
        %v3641 = vadd.f32 %v3629, %v3634
        %v3642 = vadd.f32 %v3630, %v3634
        %v3643 = vadd.f32 %v3631, %v3634
        %v3644 = vmax.f32 %v3636, 0.0
        %v3645 = vmax.f32 %v3637, 0.0
        %v3646 = vmax.f32 %v3638, 0.0
        %v3647 = vmax.f32 %v3639, 0.0
        %v3648 = vmax.f32 %v3640, 0.0
        %v3649 = vmax.f32 %v3641, 0.0
        %v3650 = vmax.f32 %v3642, 0.0
        %v3651 = vmax.f32 %v3643, 0.0
        %v3652 = vmul.f32 %v2819, %v3644
        %v3653 = vmul.f32 %v2820, %v3645
        %v3654 = vmul.f32 %v2821, %v3646
        %v3655 = vmul.f32 %v2822, %v3647
        %v3656 = vmul.f32 %v2823, %v3648
        %v3657 = vmul.f32 %v2824, %v3649
        %v3658 = vmul.f32 %v2825, %v3650
        %v3659 = vmul.f32 %v2826, %v3651
        %v3660 = vmul.f32 %v3652, %v768
        %v3661 = vmul.f32 %v3653, %v769
        %v3662 = vmul.f32 %v3654, %v770
        %v3663 = vmul.f32 %v3655, %v771
        %v3664 = vmul.f32 %v3656, %v772
        %v3665 = vmul.f32 %v3657, %v773
        %v3666 = vmul.f32 %v3658, %v774
        %v3667 = vmul.f32 %v3659, %v775
        %3668 = vst.msk [vmem:[#allocation2] sm:$0xff] %vm1732, 0.0
        %3669 = vst.msk [vmem:[#allocation2] sm:$0xff] %vm1744, %v1737
        %3670 = vst [vmem:[#allocation2 + $0x8] sm:$0xff] %v1740
        %3671 = vst.msk [vmem:[#allocation2 + $0x10] sm:$0xff] %vm1732, %v1739
        %3672 = vst.msk [vmem:[#allocation2 + $0x10] sm:$0xff] %vm1748, 0.0
        %v3673 = vld [vmem:[%s5] ss:$2 sm:$0x3]
        %v3674 = vld [vmem:[%s1751] ss:$2 sm:$0x3]
        %v3675 = vld [vmem:[#allocation2] sm:$0xff]
        %v3676 = vld [vmem:[#allocation2 + $0x8] sm:$0xff]
        %v3678 = vperm.slane %v3673, 0
        %v3679 = vperm.slane %v3673, 1
        %v3682 = vmul.f32 %v3675, %v3678
        %v3683 = vmul.f32 %v3676, %v3679
        %v3684 = vld [vmem:[#allocation2 + $0x10] sm:$0xff]
        %v3686 = vperm.slane %v3674, 0
        %v3687 = vperm.slane %v3674, 1
        %3688 = vrot.lane.b32.xlu0 %v3686, 2
        %v3689 = vpop.permute.xlu0 %3688
        %3690 = vrot.lane.b32.xlu0 %v3687, 2
        %v3691 = vpop.permute.xlu0 %3690
        %v3692 = vsel %vm1770, %v3689, %v3691
        %v3696 = vmul.f32 %v3675, %v3689
        %v3697 = vmul.f32 %v3676, %v3692
        %v3698 = vmul.f32 %v3684, %v3691
        %3699 = vrot.lane.b32.xlu0 %v3678, 16
        %v3700 = vpop.permute.xlu0 %3699
        %3701 = vrot.lane.b32.xlu0 %v3679, 16
        %v3702 = vpop.permute.xlu0 %3701
        %v3703 = vsel %vm1782, %v3700, %v3702
        %v3707 = vmul.f32 %v3675, %v3700
        %v3708 = vmul.f32 %v3676, %v3703
        %v3709 = vmul.f32 %v3684, %v3702
        %3710 = vrot.lane.b32.xlu0 %v3686, 18
        %v3711 = vpop.permute.xlu0 %3710
        %3712 = vrot.lane.b32.xlu0 %v3687, 18
        %v3713 = vpop.permute.xlu0 %3712
        %v3714 = vsel %vm1794, %v3711, %v3713
        %v3718 = vmul.f32 %v3675, %v3711
        %v3719 = vmul.f32 %v3676, %v3714
        %v3720 = vmul.f32 %v3684, %v3713
        %3721 = vrot.lane.b32.xlu0 %v3678, 32
        %v3722 = vpop.permute.xlu0 %3721
        %3723 = vrot.lane.b32.xlu0 %v3679, 32
        %v3724 = vpop.permute.xlu0 %3723
        %v3725 = vsel %vm1806, %v3722, %v3724
        %v3729 = vmul.f32 %v3675, %v3722
        %v3730 = vmul.f32 %v3676, %v3725
        %v3731 = vmul.f32 %v3684, %v3724
        %3732 = vrot.lane.b32.xlu0 %v3686, 34
        %v3733 = vpop.permute.xlu0 %3732
        %3734 = vrot.lane.b32.xlu0 %v3687, 34
        %v3735 = vpop.permute.xlu0 %3734
        %v3736 = vsel %vm1818, %v3733, %v3735
        %v3740 = vmul.f32 %v3675, %v3733
        %v3741 = vmul.f32 %v3676, %v3736
        %v3742 = vmul.f32 %v3684, %v3735
        %3746 = vrot.lane.b32.xlu0 %v3675, 127
        %v3747 = vpop.permute.xlu0 %3746
        %3748 = vrot.lane.b32.xlu0 %v3676, 127
        %v3749 = vpop.permute.xlu0 %3748
        %3750 = vrot.lane.b32.xlu0 %v3684, 127
        %v3751 = vpop.permute.xlu0 %3750
        %v3752 = vsel %vm1835, %v3747, %v3749
        %v3753 = vsel %vm1835, %v3749, %v3751
        %3759 = vrot.lane.b32.xlu0 %v3696, 126
        %v3760 = vpop.permute.xlu0 %3759
        %3761 = vrot.lane.b32.xlu0 %v3697, 126
        %v3762 = vpop.permute.xlu0 %3761
        %3763 = vrot.lane.b32.xlu0 %v3698, 126
        %v3764 = vpop.permute.xlu0 %3763
        %v3765 = vsel %vm1849, %v3760, %v3762
        %v3766 = vsel %vm1849, %v3762, %v3764
        %3772 = vrot.lane.b32.xlu0 %v3707, 112
        %v3773 = vpop.permute.xlu0 %3772
        %3774 = vrot.lane.b32.xlu0 %v3708, 112
        %v3775 = vpop.permute.xlu0 %3774
        %3776 = vrot.lane.b32.xlu0 %v3709, 112
        %v3777 = vpop.permute.xlu0 %3776
        %v3778 = vsel %vm1863, %v3773, %v3775
        %v3779 = vsel %vm1863, %v3775, %v3777
        %3782 = vrot.lane.b32.xlu0 %v3675, 111
        %v3783 = vpop.permute.xlu0 %3782
        %3784 = vrot.lane.b32.xlu0 %v3676, 111
        %v3785 = vpop.permute.xlu0 %3784
        %3786 = vrot.lane.b32.xlu0 %v3684, 111
        %v3787 = vpop.permute.xlu0 %3786
        %v3788 = vsel %vm1874, %v3783, %v3785
        %v3789 = vsel %vm1874, %v3785, %v3787
        %3795 = vrot.lane.b32.xlu0 %v3718, 110
        %v3796 = vpop.permute.xlu0 %3795
        %3797 = vrot.lane.b32.xlu0 %v3719, 110
        %v3798 = vpop.permute.xlu0 %3797
        %3799 = vrot.lane.b32.xlu0 %v3720, 110
        %v3800 = vpop.permute.xlu0 %3799
        %v3801 = vsel %vm1888, %v3796, %v3798
        %v3802 = vsel %vm1888, %v3798, %v3800
        %3808 = vrot.lane.b32.xlu0 %v3729, 96
        %v3809 = vpop.permute.xlu0 %3808
        %3810 = vrot.lane.b32.xlu0 %v3730, 96
        %v3811 = vpop.permute.xlu0 %3810
        %3812 = vrot.lane.b32.xlu0 %v3731, 96
        %v3813 = vpop.permute.xlu0 %3812
        %v3814 = vsel %vm1902, %v3809, %v3811
        %v3815 = vsel %vm1902, %v3811, %v3813
        %3818 = vrot.lane.b32.xlu0 %v3675, 95
        %v3819 = vpop.permute.xlu0 %3818
        %3820 = vrot.lane.b32.xlu0 %v3676, 95
        %v3821 = vpop.permute.xlu0 %3820
        %3822 = vrot.lane.b32.xlu0 %v3684, 95
        %v3823 = vpop.permute.xlu0 %3822
        %v3824 = vsel %vm1913, %v3819, %v3821
        %v3825 = vsel %vm1913, %v3821, %v3823
        %3831 = vrot.lane.b32.xlu0 %v3740, 94
        %v3832 = vpop.permute.xlu0 %3831
        %3833 = vrot.lane.b32.xlu0 %v3741, 94
        %v3834 = vpop.permute.xlu0 %3833
        %3835 = vrot.lane.b32.xlu0 %v3742, 94
        %v3836 = vpop.permute.xlu0 %3835
        %v3837 = vsel %vm1927, %v3832, %v3834
        %v3838 = vsel %vm1927, %v3834, %v3836
        %v3841 = vld [vmem:[%s13] sm:$0xff]
        %v3843 = vsel %vm1933, %v3841, 0
        %3845 = vmatpush.msra.mxu0 0.0
        %3846 = vmatpush.msra.mxu0 0.0
        %3847 = vmatpush.msra.mxu0 0.0
        %3848 = vmatpush.msra.mxu0 0.0
        %3849 = vmatpush.msra.mxu0 0.0
        %3850 = vmatpush.msra.mxu0 0.0
        %3851 = vmatpush.msra.mxu0 0.0
        %3852 = vmatpush.msra.mxu0 %v3837
        %3853 = vmatpush.msra.mxu0 %v3824
        %3854 = vmatpush.msra.mxu0 %v3814
        %3855 = vmatpush.msra.mxu0 %v3801
        %3856 = vmatpush.msra.mxu0 %v3788
        %3857 = vmatpush.msra.mxu0 %v3778
        %3858 = vmatpush.msra.mxu0 %v3765
        %3859 = vmatpush.msra.mxu0 %v3752
        %3860 = vmatpush.msra.mxu0 %v3682
        %3861 = vmatmul.f32.gmra.mxu0 %v3843
        %v3862 = vpop.f32.mrf.mxu0
        %v3863 = vadd.f32 0.0, %v3862
        %3864 = vdwg.mxu0
        %3865 = vmatpush.msra.mxu0 0.0
        %3866 = vmatpush.msra.mxu0 0.0
        %3867 = vmatpush.msra.mxu0 0.0
        %3868 = vmatpush.msra.mxu0 0.0
        %3869 = vmatpush.msra.mxu0 0.0
        %3870 = vmatpush.msra.mxu0 0.0
        %3871 = vmatpush.msra.mxu0 0.0
        %3872 = vmatpush.msra.mxu0 %v3838
        %3873 = vmatpush.msra.mxu0 %v3825
        %3874 = vmatpush.msra.mxu0 %v3815
        %3875 = vmatpush.msra.mxu0 %v3802
        %3876 = vmatpush.msra.mxu0 %v3789
        %3877 = vmatpush.msra.mxu0 %v3779
        %3878 = vmatpush.msra.mxu0 %v3766
        %3879 = vmatpush.msra.mxu0 %v3753
        %3880 = vmatpush.msra.mxu0 %v3683
        %3881 = vmatmul.f32.gmra.mxu0 %v3843
        %v3882 = vpop.f32.mrf.mxu0
        %v3883 = vadd.f32 0.0, %v3882
        %3884 = vdwg.mxu0
        %v3885 = vld [vmem:[%s14] sm:$0xff]
        %3887 = vset.pattern.permute.xlu0 0
        %3888 = vperm.xlu0 %3887, %v3885
        %v3889 = vpop.permute.xlu0 %3888
        %v3891 = vmul.f32 %v3863, %v3889
        %v3892 = vmul.f32 %v3883, %v3889
        %3893 = vset.pattern.permute.xlu0 1
        %3894 = vperm.xlu0 %3893, %v3885
        %v3895 = vpop.permute.xlu0 %3894
        %v3897 = vadd.f32 %v3891, %v3895
        %v3898 = vadd.f32 %v3892, %v3895
        %v3899 = vmax.f32 %v3897, 0.0
        %v3900 = vmax.f32 %v3898, 0.0
        %3901 = vst.msk [vmem:[#allocation2] sm:$0xff] %vm1732, 0.0
        %3902 = vst.msk [vmem:[#allocation2 + $0x48] sm:$0xff] %vm1732, 0.0
        %3907 = vrot.lane.b32.xlu0 %v1993, 17
        %v3908 = vpop.permute.xlu0 %3907
        %3909 = vrot.lane.b32.xlu0 %v1994, 17
        %v3910 = vpop.permute.xlu0 %3909
        %3911 = vrot.lane.b32.xlu0 %v3899, 17
        %v3912 = vpop.permute.xlu0 %3911
        %3913 = vrot.lane.b32.xlu0 %v3900, 17
        %v3914 = vpop.permute.xlu0 %3913
        %v3915 = vsel %vm1732, %v3908, %v3910
        %v3916 = vsel %vm1732, %v3912, %v3914
        %3923 = vst.msk [vmem:[#allocation2] sm:$0xff] %vm1744, %v3908
        %3924 = vst [vmem:[#allocation2 + $0x8] sm:$0xff] %v3915
        %3925 = vst.msk [vmem:[#allocation2 + $0x10] sm:$0xff] %vm1732, %v3910
        %3926 = vst.msk [vmem:[#allocation2 + $0x48] sm:$0xff] %vm1744, %v3912
        %3927 = vst [vmem:[#allocation2 + $0x50] sm:$0xff] %v3916
        %3928 = vst.msk [vmem:[#allocation2 + $0x58] sm:$0xff] %vm1732, %v3914
        %3929 = vst.msk [vmem:[#allocation2 + $0x10] sm:$0xff] %vm1748, 0.0
        %3930 = vst.msk [vmem:[#allocation2 + $0x58] sm:$0xff] %vm1748, 0.0
        %v3931 = vld [vmem:[%s5] ss:$2 sm:$0x3]
        %v3932 = vld [vmem:[%s1751] ss:$2 sm:$0x3]
        %v3933 = vld [vmem:[#allocation2] sm:$0xff]
        %v3934 = vld [vmem:[#allocation2 + $0x8] sm:$0xff]
        %v3935 = vld [vmem:[#allocation2 + $0x48] sm:$0xff]
        %v3936 = vld [vmem:[#allocation2 + $0x50] sm:$0xff]
        %v3938 = vperm.slane %v3931, 0
        %v3939 = vperm.slane %v3931, 1
        %v3942 = vmul.f32 %v3933, %v3938
        %v3943 = vmul.f32 %v3934, %v3939
        %v3944 = vmul.f32 %v3935, %v3938
        %v3945 = vmul.f32 %v3936, %v3939
        %v3946 = vld [vmem:[#allocation2 + $0x10] sm:$0xff]
        %v3947 = vld [vmem:[#allocation2 + $0x58] sm:$0xff]
        %v3949 = vperm.slane %v3932, 0
        %v3950 = vperm.slane %v3932, 1
        %3951 = vrot.lane.b32.xlu0 %v3949, 2
        %v3952 = vpop.permute.xlu0 %3951
        %3953 = vrot.lane.b32.xlu0 %v3950, 2
        %v3954 = vpop.permute.xlu0 %3953
        %v3955 = vsel %vm1770, %v3952, %v3954
        %v3959 = vmul.f32 %v3933, %v3952
        %v3960 = vmul.f32 %v3934, %v3955
        %v3961 = vmul.f32 %v3946, %v3954
        %v3962 = vmul.f32 %v3935, %v3952
        %v3963 = vmul.f32 %v3936, %v3955
        %v3964 = vmul.f32 %v3947, %v3954
        %3965 = vrot.lane.b32.xlu0 %v3938, 16
        %v3966 = vpop.permute.xlu0 %3965
        %3967 = vrot.lane.b32.xlu0 %v3939, 16
        %v3968 = vpop.permute.xlu0 %3967
        %v3969 = vsel %vm1782, %v3966, %v3968
        %v3973 = vmul.f32 %v3933, %v3966
        %v3974 = vmul.f32 %v3934, %v3969
        %v3975 = vmul.f32 %v3946, %v3968
        %v3976 = vmul.f32 %v3935, %v3966
        %v3977 = vmul.f32 %v3936, %v3969
        %v3978 = vmul.f32 %v3947, %v3968
        %3979 = vrot.lane.b32.xlu0 %v3949, 18
        %v3980 = vpop.permute.xlu0 %3979
        %3981 = vrot.lane.b32.xlu0 %v3950, 18
        %v3982 = vpop.permute.xlu0 %3981
        %v3983 = vsel %vm1794, %v3980, %v3982
        %v3987 = vmul.f32 %v3933, %v3980
        %v3988 = vmul.f32 %v3934, %v3983
        %v3989 = vmul.f32 %v3946, %v3982
        %v3990 = vmul.f32 %v3935, %v3980
        %v3991 = vmul.f32 %v3936, %v3983
        %v3992 = vmul.f32 %v3947, %v3982
        %3993 = vrot.lane.b32.xlu0 %v3938, 32
        %v3994 = vpop.permute.xlu0 %3993
        %3995 = vrot.lane.b32.xlu0 %v3939, 32
        %v3996 = vpop.permute.xlu0 %3995
        %v3997 = vsel %vm1806, %v3994, %v3996
        %v4001 = vmul.f32 %v3933, %v3994
        %v4002 = vmul.f32 %v3934, %v3997
        %v4003 = vmul.f32 %v3946, %v3996
        %v4004 = vmul.f32 %v3935, %v3994
        %v4005 = vmul.f32 %v3936, %v3997
        %v4006 = vmul.f32 %v3947, %v3996
        %4007 = vrot.lane.b32.xlu0 %v3949, 34
        %v4008 = vpop.permute.xlu0 %4007
        %4009 = vrot.lane.b32.xlu0 %v3950, 34
        %v4010 = vpop.permute.xlu0 %4009
        %v4011 = vsel %vm1818, %v4008, %v4010
        %v4015 = vmul.f32 %v3933, %v4008
        %v4016 = vmul.f32 %v3934, %v4011
        %v4017 = vmul.f32 %v3946, %v4010
        %v4018 = vmul.f32 %v3935, %v4008
        %v4019 = vmul.f32 %v3936, %v4011
        %v4020 = vmul.f32 %v3947, %v4010
        %4027 = vrot.lane.b32.xlu0 %v3933, 127
        %v4028 = vpop.permute.xlu0 %4027
        %4029 = vrot.lane.b32.xlu0 %v3934, 127
        %v4030 = vpop.permute.xlu0 %4029
        %4031 = vrot.lane.b32.xlu0 %v3946, 127
        %v4032 = vpop.permute.xlu0 %4031
        %4033 = vrot.lane.b32.xlu0 %v3935, 127
        %v4034 = vpop.permute.xlu0 %4033
        %4035 = vrot.lane.b32.xlu0 %v3936, 127
        %v4036 = vpop.permute.xlu0 %4035
        %4037 = vrot.lane.b32.xlu0 %v3947, 127
        %v4038 = vpop.permute.xlu0 %4037
        %v4039 = vsel %vm1835, %v4028, %v4030
        %v4040 = vsel %vm1835, %v4030, %v4032
        %v4041 = vsel %vm1835, %v4034, %v4036
        %v4042 = vsel %vm1835, %v4036, %v4038
        %4053 = vrot.lane.b32.xlu0 %v3959, 126
        %v4054 = vpop.permute.xlu0 %4053
        %4055 = vrot.lane.b32.xlu0 %v3960, 126
        %v4056 = vpop.permute.xlu0 %4055
        %4057 = vrot.lane.b32.xlu0 %v3961, 126
        %v4058 = vpop.permute.xlu0 %4057
        %4059 = vrot.lane.b32.xlu0 %v3962, 126
        %v4060 = vpop.permute.xlu0 %4059
        %4061 = vrot.lane.b32.xlu0 %v3963, 126
        %v4062 = vpop.permute.xlu0 %4061
        %4063 = vrot.lane.b32.xlu0 %v3964, 126
        %v4064 = vpop.permute.xlu0 %4063
        %v4065 = vsel %vm1849, %v4054, %v4056
        %v4066 = vsel %vm1849, %v4056, %v4058
        %v4067 = vsel %vm1849, %v4060, %v4062
        %v4068 = vsel %vm1849, %v4062, %v4064
        %4079 = vrot.lane.b32.xlu0 %v3973, 112
        %v4080 = vpop.permute.xlu0 %4079
        %4081 = vrot.lane.b32.xlu0 %v3974, 112
        %v4082 = vpop.permute.xlu0 %4081
        %4083 = vrot.lane.b32.xlu0 %v3975, 112
        %v4084 = vpop.permute.xlu0 %4083
        %4085 = vrot.lane.b32.xlu0 %v3976, 112
        %v4086 = vpop.permute.xlu0 %4085
        %4087 = vrot.lane.b32.xlu0 %v3977, 112
        %v4088 = vpop.permute.xlu0 %4087
        %4089 = vrot.lane.b32.xlu0 %v3978, 112
        %v4090 = vpop.permute.xlu0 %4089
        %v4091 = vsel %vm1863, %v4080, %v4082
        %v4092 = vsel %vm1863, %v4082, %v4084
        %v4093 = vsel %vm1863, %v4086, %v4088
        %v4094 = vsel %vm1863, %v4088, %v4090
        %4099 = vrot.lane.b32.xlu0 %v3933, 111
        %v4100 = vpop.permute.xlu0 %4099
        %4101 = vrot.lane.b32.xlu0 %v3934, 111
        %v4102 = vpop.permute.xlu0 %4101
        %4103 = vrot.lane.b32.xlu0 %v3946, 111
        %v4104 = vpop.permute.xlu0 %4103
        %4105 = vrot.lane.b32.xlu0 %v3935, 111
        %v4106 = vpop.permute.xlu0 %4105
        %4107 = vrot.lane.b32.xlu0 %v3936, 111
        %v4108 = vpop.permute.xlu0 %4107
        %4109 = vrot.lane.b32.xlu0 %v3947, 111
        %v4110 = vpop.permute.xlu0 %4109
        %v4111 = vsel %vm1874, %v4100, %v4102
        %v4112 = vsel %vm1874, %v4102, %v4104
        %v4113 = vsel %vm1874, %v4106, %v4108
        %v4114 = vsel %vm1874, %v4108, %v4110
        %4125 = vrot.lane.b32.xlu0 %v3987, 110
        %v4126 = vpop.permute.xlu0 %4125
        %4127 = vrot.lane.b32.xlu0 %v3988, 110
        %v4128 = vpop.permute.xlu0 %4127
        %4129 = vrot.lane.b32.xlu0 %v3989, 110
        %v4130 = vpop.permute.xlu0 %4129
        %4131 = vrot.lane.b32.xlu0 %v3990, 110
        %v4132 = vpop.permute.xlu0 %4131
        %4133 = vrot.lane.b32.xlu0 %v3991, 110
        %v4134 = vpop.permute.xlu0 %4133
        %4135 = vrot.lane.b32.xlu0 %v3992, 110
        %v4136 = vpop.permute.xlu0 %4135
        %v4137 = vsel %vm1888, %v4126, %v4128
        %v4138 = vsel %vm1888, %v4128, %v4130
        %v4139 = vsel %vm1888, %v4132, %v4134
        %v4140 = vsel %vm1888, %v4134, %v4136
        %4151 = vrot.lane.b32.xlu0 %v4001, 96
        %v4152 = vpop.permute.xlu0 %4151
        %4153 = vrot.lane.b32.xlu0 %v4002, 96
        %v4154 = vpop.permute.xlu0 %4153
        %4155 = vrot.lane.b32.xlu0 %v4003, 96
        %v4156 = vpop.permute.xlu0 %4155
        %4157 = vrot.lane.b32.xlu0 %v4004, 96
        %v4158 = vpop.permute.xlu0 %4157
        %4159 = vrot.lane.b32.xlu0 %v4005, 96
        %v4160 = vpop.permute.xlu0 %4159
        %4161 = vrot.lane.b32.xlu0 %v4006, 96
        %v4162 = vpop.permute.xlu0 %4161
        %v4163 = vsel %vm1902, %v4152, %v4154
        %v4164 = vsel %vm1902, %v4154, %v4156
        %v4165 = vsel %vm1902, %v4158, %v4160
        %v4166 = vsel %vm1902, %v4160, %v4162
        %4171 = vrot.lane.b32.xlu0 %v3933, 95
        %v4172 = vpop.permute.xlu0 %4171
        %4173 = vrot.lane.b32.xlu0 %v3934, 95
        %v4174 = vpop.permute.xlu0 %4173
        %4175 = vrot.lane.b32.xlu0 %v3946, 95
        %v4176 = vpop.permute.xlu0 %4175
        %4177 = vrot.lane.b32.xlu0 %v3935, 95
        %v4178 = vpop.permute.xlu0 %4177
        %4179 = vrot.lane.b32.xlu0 %v3936, 95
        %v4180 = vpop.permute.xlu0 %4179
        %4181 = vrot.lane.b32.xlu0 %v3947, 95
        %v4182 = vpop.permute.xlu0 %4181
        %v4183 = vsel %vm1913, %v4172, %v4174
        %v4184 = vsel %vm1913, %v4174, %v4176
        %v4185 = vsel %vm1913, %v4178, %v4180
        %v4186 = vsel %vm1913, %v4180, %v4182
        %4197 = vrot.lane.b32.xlu0 %v4015, 94
        %v4198 = vpop.permute.xlu0 %4197
        %4199 = vrot.lane.b32.xlu0 %v4016, 94
        %v4200 = vpop.permute.xlu0 %4199
        %4201 = vrot.lane.b32.xlu0 %v4017, 94
        %v4202 = vpop.permute.xlu0 %4201
        %4203 = vrot.lane.b32.xlu0 %v4018, 94
        %v4204 = vpop.permute.xlu0 %4203
        %4205 = vrot.lane.b32.xlu0 %v4019, 94
        %v4206 = vpop.permute.xlu0 %4205
        %4207 = vrot.lane.b32.xlu0 %v4020, 94
        %v4208 = vpop.permute.xlu0 %4207
        %v4209 = vsel %vm1927, %v4198, %v4200
        %v4210 = vsel %vm1927, %v4200, %v4202
        %v4211 = vsel %vm1927, %v4204, %v4206
        %v4212 = vsel %vm1927, %v4206, %v4208
        %v4217 = vld [vmem:[%s17] sm:$0xff]
        %v4218 = vld [vmem:[%s17 + $0x8] sm:$0xff]
        %v4219 = vld [vmem:[%s17 + $0x10] sm:$0xff]
        %v4220 = vld [vmem:[%s17 + $0x18] sm:$0xff]
        %v4222 = vsel %vm1782, %v4218, 0
        %v4225 = vsel %vm1782, %v4220, 0
        %4227 = vmatpush.msra.mxu0 %v4185
        %4228 = vmatpush.msra.mxu0 %v4183
        %4229 = vmatpush.msra.mxu0 %v4165
        %4230 = vmatpush.msra.mxu0 %v4163
        %4231 = vmatpush.msra.mxu0 %v4139
        %4232 = vmatpush.msra.mxu0 %v4137
        %4233 = vmatpush.msra.mxu0 %v4113
        %4234 = vmatpush.msra.mxu0 %v4111
        %4235 = vmatpush.msra.mxu0 %v4093
        %4236 = vmatpush.msra.mxu0 %v4091
        %4237 = vmatpush.msra.mxu0 %v4067
        %4238 = vmatpush.msra.mxu0 %v4065
        %4239 = vmatpush.msra.mxu0 %v4041
        %4240 = vmatpush.msra.mxu0 %v4039
        %4241 = vmatpush.msra.mxu0 %v3944
        %4242 = vmatpush.msra.mxu0 %v3942
        %4243 = vmatmul.f32.gmra.mxu0 %v4217
        %v4244 = vpop.f32.mrf.mxu0
        %v4245 = vadd.f32 0.0, %v4244
        %4246 = vmatmul.f32.gmra.mxu0 %v4219
        %v4247 = vpop.f32.mrf.mxu0
        %v4248 = vadd.f32 0.0, %v4247
        %4249 = vdwg.mxu0
        %4250 = vmatpush.msra.mxu0 0.0
        %4251 = vmatpush.msra.mxu0 0.0
        %4252 = vmatpush.msra.mxu0 0.0
        %4253 = vmatpush.msra.mxu0 0.0
        %4254 = vmatpush.msra.mxu0 0.0
        %4255 = vmatpush.msra.mxu0 0.0
        %4256 = vmatpush.msra.mxu0 0.0
        %4257 = vmatpush.msra.mxu0 0.0
        %4258 = vmatpush.msra.mxu0 0.0
        %4259 = vmatpush.msra.mxu0 0.0
        %4260 = vmatpush.msra.mxu0 0.0
        %4261 = vmatpush.msra.mxu0 0.0
        %4262 = vmatpush.msra.mxu0 0.0
        %4263 = vmatpush.msra.mxu0 0.0
        %4264 = vmatpush.msra.mxu0 %v4211
        %4265 = vmatpush.msra.mxu0 %v4209
        %4266 = vmatmul.f32.gmra.mxu0 %v4222
        %v4267 = vpop.f32.mrf.mxu0
        %v4268 = vadd.f32 %v4245, %v4267
        %4269 = vmatmul.f32.gmra.mxu0 %v4225
        %v4270 = vpop.f32.mrf.mxu0
        %v4271 = vadd.f32 %v4248, %v4270
        %4272 = vdwg.mxu0
        %4273 = vmatpush.msra.mxu0 %v4186
        %4274 = vmatpush.msra.mxu0 %v4184
        %4275 = vmatpush.msra.mxu0 %v4166
        %4276 = vmatpush.msra.mxu0 %v4164
        %4277 = vmatpush.msra.mxu0 %v4140
        %4278 = vmatpush.msra.mxu0 %v4138
        %4279 = vmatpush.msra.mxu0 %v4114
        %4280 = vmatpush.msra.mxu0 %v4112
        %4281 = vmatpush.msra.mxu0 %v4094
        %4282 = vmatpush.msra.mxu0 %v4092
        %4283 = vmatpush.msra.mxu0 %v4068
        %4284 = vmatpush.msra.mxu0 %v4066
        %4285 = vmatpush.msra.mxu0 %v4042
        %4286 = vmatpush.msra.mxu0 %v4040
        %4287 = vmatpush.msra.mxu0 %v3945
        %4288 = vmatpush.msra.mxu0 %v3943
        %4289 = vmatmul.f32.gmra.mxu0 %v4217
        %v4290 = vpop.f32.mrf.mxu0
        %v4291 = vadd.f32 0.0, %v4290
        %4292 = vmatmul.f32.gmra.mxu0 %v4219
        %v4293 = vpop.f32.mrf.mxu0
        %v4294 = vadd.f32 0.0, %v4293
        %4295 = vdwg.mxu0
        %4296 = vmatpush.msra.mxu0 0.0
        %4297 = vmatpush.msra.mxu0 0.0
        %4298 = vmatpush.msra.mxu0 0.0
        %4299 = vmatpush.msra.mxu0 0.0
        %4300 = vmatpush.msra.mxu0 0.0
        %4301 = vmatpush.msra.mxu0 0.0
        %4302 = vmatpush.msra.mxu0 0.0
        %4303 = vmatpush.msra.mxu0 0.0
        %4304 = vmatpush.msra.mxu0 0.0
        %4305 = vmatpush.msra.mxu0 0.0
        %4306 = vmatpush.msra.mxu0 0.0
        %4307 = vmatpush.msra.mxu0 0.0
        %4308 = vmatpush.msra.mxu0 0.0
        %4309 = vmatpush.msra.mxu0 0.0
        %4310 = vmatpush.msra.mxu0 %v4212
        %4311 = vmatpush.msra.mxu0 %v4210
        %4312 = vmatmul.f32.gmra.mxu0 %v4222
        %v4313 = vpop.f32.mrf.mxu0
        %v4314 = vadd.f32 %v4291, %v4313
        %4315 = vmatmul.f32.gmra.mxu0 %v4225
        %v4316 = vpop.f32.mrf.mxu0
        %v4317 = vadd.f32 %v4294, %v4316
        %4318 = vdwg.mxu0
        %v4319 = vld [vmem:[%s18] sm:$0xff]
        %v4320 = vld [vmem:[%s18 + $0x8] sm:$0xff]
        %4322 = vset.pattern.permute.xlu0 0
        %4323 = vperm.xlu0 %4322, %v4319
        %v4324 = vpop.permute.xlu0 %4323
        %4327 = vset.pattern.permute.xlu0 0
        %4328 = vperm.xlu0 %4327, %v4320
        %v4329 = vpop.permute.xlu0 %4328
        %v4331 = vmul.f32 %v4268, %v4324
        %v4332 = vmul.f32 %v4314, %v4324
        %v4333 = vmul.f32 %v4271, %v4329
        %v4334 = vmul.f32 %v4317, %v4329
        %4335 = vset.pattern.permute.xlu0 1
        %4336 = vperm.xlu0 %4335, %v4319
        %v4337 = vpop.permute.xlu0 %4336
        %4339 = vset.pattern.permute.xlu0 1
        %4340 = vperm.xlu0 %4339, %v4320
        %v4341 = vpop.permute.xlu0 %4340
        %v4343 = vadd.f32 %v4331, %v4337
        %v4344 = vadd.f32 %v4332, %v4337
        %v4345 = vadd.f32 %v4333, %v4341
        %v4346 = vadd.f32 %v4334, %v4341
        %v4347 = vmax.f32 %v4343, 0.0
        %v4348 = vmax.f32 %v4344, 0.0
        %v4349 = vmax.f32 %v4345, 0.0
        %v4350 = vmax.f32 %v4346, 0.0
        %v4351 = vld [vmem:[#allocation3] sm:$0xff]
        %v4352 = vld [vmem:[#allocation3 + $0x8] sm:$0xff]
        %v4353 = vld [vmem:[#allocation3 + $0x10] sm:$0xff]
        %v4354 = vld [vmem:[#allocation3 + $0x18] sm:$0xff]
        %v4355 = vld [vmem:[#allocation3 + $0x20] sm:$0xff]
        %v4356 = vld [vmem:[#allocation3 + $0x28] sm:$0xff]
        %v4357 = vld [vmem:[#allocation3 + $0x30] sm:$0xff]
        %v4358 = vld [vmem:[#allocation3 + $0x38] sm:$0xff]
        %v4359 = vld [vmem:[#allocation3 + $0x40] sm:$0xff]
        %v4360 = vld [vmem:[#allocation3 + $0x48] sm:$0xff]
        %v4361 = vld [vmem:[#allocation3 + $0x50] sm:$0xff]
        %v4362 = vld [vmem:[#allocation3 + $0x58] sm:$0xff]
        %v4363 = vld [vmem:[#allocation3 + $0x60] sm:$0xff]
        %v4364 = vld [vmem:[#allocation3 + $0x68] sm:$0xff]
        %v4365 = vld [vmem:[#allocation3 + $0x70] sm:$0xff]
        %v4366 = vld [vmem:[#allocation3 + $0x78] sm:$0xff]
        %v4367 = vld [vmem:[#allocation3 + $0x80] sm:$0xff]
        %v4368 = vld [vmem:[#allocation3 + $0x88] sm:$0xff]
        %v4369 = vld [vmem:[#allocation3 + $0x90] sm:$0xff]
        %v4370 = vld [vmem:[#allocation3 + $0x98] sm:$0xff]
        %v4371 = vld [vmem:[#allocation3 + $0xa0] sm:$0xff]
        %v4372 = vld [vmem:[#allocation3 + $0xa8] sm:$0xff]
        %v4373 = vld [vmem:[#allocation3 + $0xb0] sm:$0xff]
        %v4374 = vld [vmem:[#allocation3 + $0xb8] sm:$0xff]
        %v4375 = vld [vmem:[#allocation3 + $0xc0] sm:$0xff]
        %v4376 = vld [vmem:[#allocation3 + $0xc8] sm:$0xff]
        %v4377 = vld [vmem:[#allocation3 + $0xd0] sm:$0xff]
        %v4378 = vld [vmem:[#allocation3 + $0xd8] sm:$0xff]
        %v4379 = vld [vmem:[#allocation3 + $0xe0] sm:$0xff]
        %v4380 = vld [vmem:[#allocation3 + $0xe8] sm:$0xff]
        %v4381 = vld [vmem:[#allocation3 + $0xf0] sm:$0xff]
        %v4382 = vld [vmem:[#allocation3 + $0xf8] sm:$0xff]
        %v4383 = vld [vmem:[#allocation3 + $0x100] sm:$0xff]
        %v4384 = vld [vmem:[#allocation3 + $0x108] sm:$0xff]
        %v4385 = vld [vmem:[#allocation3 + $0x110] sm:$0xff]
        %v4386 = vld [vmem:[#allocation3 + $0x118] sm:$0xff]
        %v4387 = vld [vmem:[#allocation3 + $0x120] sm:$0xff]
        %v4388 = vld [vmem:[#allocation3 + $0x128] sm:$0xff]
        %v4389 = vld [vmem:[#allocation3 + $0x130] sm:$0xff]
        %v4390 = vld [vmem:[#allocation3 + $0x138] sm:$0xff]
        %v4391 = vld [vmem:[#allocation3 + $0x140] sm:$0xff]
        %v4392 = vld [vmem:[#allocation3 + $0x148] sm:$0xff]
        %v4393 = vld [vmem:[#allocation3 + $0x150] sm:$0xff]
        %v4394 = vld [vmem:[#allocation3 + $0x158] sm:$0xff]
        %v4395 = vld [vmem:[#allocation3 + $0x160] sm:$0xff]
        %v4396 = vld [vmem:[#allocation3 + $0x168] sm:$0xff]
        %v4397 = vld [vmem:[#allocation3 + $0x170] sm:$0xff]
        %v4398 = vld [vmem:[#allocation3 + $0x178] sm:$0xff]
        %v4399 = vld [vmem:[#allocation3 + $0x180] sm:$0xff]
        %v4400 = vld [vmem:[#allocation3 + $0x188] sm:$0xff]
        %v4401 = vld [vmem:[#allocation3 + $0x190] sm:$0xff]
        %v4402 = vld [vmem:[#allocation3 + $0x198] sm:$0xff]
        %v4403 = vld [vmem:[#allocation3 + $0x1a0] sm:$0xff]
        %v4404 = vld [vmem:[#allocation3 + $0x1a8] sm:$0xff]
        %v4405 = vld [vmem:[#allocation3 + $0x1b0] sm:$0xff]
        %v4406 = vld [vmem:[#allocation3 + $0x1b8] sm:$0xff]
        %v4407 = vld [vmem:[#allocation3 + $0x1c0] sm:$0xff]
        %v4408 = vld [vmem:[#allocation3 + $0x1c8] sm:$0xff]
        %v4409 = vld [vmem:[#allocation3 + $0x1d0] sm:$0xff]
        %v4410 = vld [vmem:[#allocation3 + $0x1d8] sm:$0xff]
        %v4411 = vld [vmem:[#allocation3 + $0x1e0] sm:$0xff]
        %v4412 = vld [vmem:[#allocation3 + $0x1e8] sm:$0xff]
        %v4413 = vld [vmem:[#allocation3 + $0x1f0] sm:$0xff]
        %v4414 = vld [vmem:[#allocation3 + $0x1f8] sm:$0xff]
        %v4415 = vld [vmem:[#allocation3 + $0x200] sm:$0xff]
        %v4416 = vld [vmem:[#allocation3 + $0x208] sm:$0xff]
        %v4417 = vld [vmem:[#allocation3 + $0x210] sm:$0xff]
        %v4418 = vld [vmem:[#allocation3 + $0x218] sm:$0xff]
        %v4419 = vld [vmem:[#allocation3 + $0x220] sm:$0xff]
        %v4420 = vld [vmem:[#allocation3 + $0x228] sm:$0xff]
        %v4421 = vld [vmem:[#allocation3 + $0x230] sm:$0xff]
        %v4422 = vld [vmem:[#allocation3 + $0x238] sm:$0xff]
        %v4423 = vld [vmem:[#allocation3 + $0x240] sm:$0xff]
        %v4424 = vld [vmem:[#allocation3 + $0x248] sm:$0xff]
        %v4425 = vld [vmem:[#allocation3 + $0x250] sm:$0xff]
        %v4426 = vld [vmem:[#allocation3 + $0x258] sm:$0xff]
        %v4427 = vld [vmem:[#allocation3 + $0x260] sm:$0xff]
        %v4428 = vld [vmem:[#allocation3 + $0x268] sm:$0xff]
        %v4429 = vld [vmem:[#allocation3 + $0x270] sm:$0xff]
        %v4430 = vld [vmem:[#allocation3 + $0x278] sm:$0xff]
        %v4431 = vld [vmem:[#allocation3 + $0x280] sm:$0xff]
        %v4432 = vld [vmem:[#allocation3 + $0x288] sm:$0xff]
        %v4433 = vld [vmem:[#allocation3 + $0x290] sm:$0xff]
        %v4434 = vld [vmem:[#allocation3 + $0x298] sm:$0xff]
        %v4435 = vld [vmem:[#allocation3 + $0x2a0] sm:$0xff]
        %v4436 = vld [vmem:[#allocation3 + $0x2a8] sm:$0xff]
        %v4437 = vld [vmem:[#allocation3 + $0x2b0] sm:$0xff]
        %v4438 = vld [vmem:[#allocation3 + $0x2b8] sm:$0xff]
        %v4439 = vld [vmem:[#allocation3 + $0x2c0] sm:$0xff]
        %v4440 = vld [vmem:[#allocation3 + $0x2c8] sm:$0xff]
        %v4441 = vld [vmem:[#allocation3 + $0x2d0] sm:$0xff]
        %v4442 = vld [vmem:[#allocation3 + $0x2d8] sm:$0xff]
        %v4443 = vld [vmem:[#allocation3 + $0x2e0] sm:$0xff]
        %v4444 = vld [vmem:[#allocation3 + $0x2e8] sm:$0xff]
        %v4445 = vld [vmem:[#allocation3 + $0x2f0] sm:$0xff]
        %v4446 = vld [vmem:[#allocation3 + $0x2f8] sm:$0xff]
        %v4447 = vld [vmem:[#allocation3 + $0x300] sm:$0xff]
        %v4448 = vld [vmem:[#allocation3 + $0x308] sm:$0xff]
        %v4449 = vld [vmem:[#allocation3 + $0x310] sm:$0xff]
        %v4450 = vld [vmem:[#allocation3 + $0x318] sm:$0xff]
        %v4451 = vld [vmem:[#allocation3 + $0x320] sm:$0xff]
        %v4452 = vld [vmem:[#allocation3 + $0x328] sm:$0xff]
        %v4453 = vld [vmem:[#allocation3 + $0x330] sm:$0xff]
        %v4454 = vld [vmem:[#allocation3 + $0x338] sm:$0xff]
        %v4455 = vld [vmem:[#allocation3 + $0x340] sm:$0xff]
        %v4456 = vld [vmem:[#allocation3 + $0x348] sm:$0xff]
        %v4457 = vld [vmem:[#allocation3 + $0x350] sm:$0xff]
        %v4458 = vld [vmem:[#allocation3 + $0x358] sm:$0xff]
        %v4459 = vld [vmem:[#allocation3 + $0x360] sm:$0xff]
        %v4460 = vld [vmem:[#allocation3 + $0x368] sm:$0xff]
        %v4461 = vld [vmem:[#allocation3 + $0x370] sm:$0xff]
        %v4462 = vld [vmem:[#allocation3 + $0x378] sm:$0xff]
        %v4463 = vld [vmem:[#allocation3 + $0x380] sm:$0xff]
        %v4464 = vld [vmem:[#allocation3 + $0x388] sm:$0xff]
        %v4465 = vld [vmem:[#allocation3 + $0x390] sm:$0xff]
        %v4466 = vld [vmem:[#allocation3 + $0x398] sm:$0xff]
        %v4467 = vld [vmem:[#allocation3 + $0x3a0] sm:$0xff]
        %v4468 = vld [vmem:[#allocation3 + $0x3a8] sm:$0xff]
        %v4469 = vld [vmem:[#allocation3 + $0x3b0] sm:$0xff]
        %v4470 = vld [vmem:[#allocation3 + $0x3b8] sm:$0xff]
        %v4471 = vld [vmem:[#allocation3 + $0x3c0] sm:$0xff]
        %v4472 = vld [vmem:[#allocation3 + $0x3c8] sm:$0xff]
        %v4473 = vld [vmem:[#allocation3 + $0x3d0] sm:$0xff]
        %v4474 = vld [vmem:[#allocation3 + $0x3d8] sm:$0xff]
        %v4475 = vld [vmem:[#allocation3 + $0x3e0] sm:$0xff]
        %v4476 = vld [vmem:[#allocation3 + $0x3e8] sm:$0xff]
        %v4477 = vld [vmem:[#allocation3 + $0x3f0] sm:$0xff]
        %v4478 = vld [vmem:[#allocation3 + $0x3f8] sm:$0xff]
        %v4479 = vld [vmem:[#allocation3 + $0x400] sm:$0xff]
        %v4480 = vld [vmem:[#allocation3 + $0x408] sm:$0xff]
        %v4481 = vld [vmem:[#allocation3 + $0x410] sm:$0xff]
        %v4482 = vld [vmem:[#allocation3 + $0x418] sm:$0xff]
        %v4483 = vld [vmem:[#allocation3 + $0x420] sm:$0xff]
        %v4484 = vld [vmem:[#allocation3 + $0x428] sm:$0xff]
        %v4485 = vld [vmem:[#allocation3 + $0x430] sm:$0xff]
        %v4486 = vld [vmem:[#allocation3 + $0x438] sm:$0xff]
        %v4487 = vld [vmem:[#allocation3 + $0x440] sm:$0xff]
        %v4488 = vld [vmem:[#allocation3 + $0x448] sm:$0xff]
        %v4489 = vld [vmem:[#allocation3 + $0x450] sm:$0xff]
        %v4490 = vld [vmem:[#allocation3 + $0x458] sm:$0xff]
        %v4491 = vld [vmem:[#allocation3 + $0x460] sm:$0xff]
        %v4492 = vld [vmem:[#allocation3 + $0x468] sm:$0xff]
        %v4493 = vld [vmem:[#allocation3 + $0x470] sm:$0xff]
        %v4494 = vld [vmem:[#allocation3 + $0x478] sm:$0xff]
        %v4495 = vld [vmem:[#allocation3 + $0x480] sm:$0xff]
        %v4496 = vld [vmem:[#allocation3 + $0x488] sm:$0xff]
        %v4497 = vld [vmem:[#allocation3 + $0x490] sm:$0xff]
        %v4498 = vld [vmem:[#allocation3 + $0x498] sm:$0xff]
        %v4499 = vld [vmem:[#allocation3 + $0x4a0] sm:$0xff]
        %v4500 = vld [vmem:[#allocation3 + $0x4a8] sm:$0xff]
        %v4501 = vld [vmem:[#allocation3 + $0x4b0] sm:$0xff]
        %v4502 = vld [vmem:[#allocation3 + $0x4b8] sm:$0xff]
        %v4503 = vld [vmem:[#allocation3 + $0x4c0] sm:$0xff]
        %v4504 = vld [vmem:[#allocation3 + $0x4c8] sm:$0xff]
        %v4505 = vld [vmem:[#allocation3 + $0x4d0] sm:$0xff]
        %v4506 = vld [vmem:[#allocation3 + $0x4d8] sm:$0xff]
        %v4507 = vld [vmem:[#allocation3 + $0x4e0] sm:$0xff]
        %v4508 = vld [vmem:[#allocation3 + $0x4e8] sm:$0xff]
        %v4509 = vld [vmem:[#allocation3 + $0x4f0] sm:$0xff]
        %v4510 = vld [vmem:[#allocation3 + $0x4f8] sm:$0xff]
        %v4511 = vld [vmem:[#allocation3 + $0x500] sm:$0xff]
        %v4512 = vld [vmem:[#allocation3 + $0x508] sm:$0xff]
        %v4513 = vld [vmem:[#allocation3 + $0x510] sm:$0xff]
        %v4514 = vld [vmem:[#allocation3 + $0x518] sm:$0xff]
        %v4515 = vld [vmem:[#allocation3 + $0x520] sm:$0xff]
        %v4516 = vld [vmem:[#allocation3 + $0x528] sm:$0xff]
        %v4517 = vld [vmem:[#allocation3 + $0x530] sm:$0xff]
        %v4518 = vld [vmem:[#allocation3 + $0x538] sm:$0xff]
        %v4519 = vld [vmem:[#allocation3 + $0x540] sm:$0xff]
        %v4520 = vld [vmem:[#allocation3 + $0x548] sm:$0xff]
        %v4521 = vld [vmem:[#allocation3 + $0x550] sm:$0xff]
        %v4522 = vld [vmem:[#allocation3 + $0x558] sm:$0xff]
        %v4523 = vld [vmem:[#allocation3 + $0x560] sm:$0xff]
        %v4524 = vld [vmem:[#allocation3 + $0x568] sm:$0xff]
        %v4525 = vld [vmem:[#allocation3 + $0x570] sm:$0xff]
        %v4526 = vld [vmem:[#allocation3 + $0x578] sm:$0xff]
        %v4527 = vld [vmem:[#allocation3 + $0x580] sm:$0xff]
        %v4528 = vld [vmem:[#allocation3 + $0x588] sm:$0xff]
        %v4529 = vld [vmem:[#allocation3 + $0x590] sm:$0xff]
        %v4530 = vld [vmem:[#allocation3 + $0x598] sm:$0xff]
        %v4531 = vld [vmem:[#allocation3 + $0x5a0] sm:$0xff]
        %v4532 = vld [vmem:[#allocation3 + $0x5a8] sm:$0xff]
        %v4533 = vld [vmem:[#allocation3 + $0x5b0] sm:$0xff]
        %v4534 = vld [vmem:[#allocation3 + $0x5b8] sm:$0xff]
        %v4535 = vld [vmem:[#allocation3 + $0x5c0] sm:$0xff]
        %v4536 = vld [vmem:[#allocation3 + $0x5c8] sm:$0xff]
        %v4537 = vld [vmem:[#allocation3 + $0x5d0] sm:$0xff]
        %v4538 = vld [vmem:[#allocation3 + $0x5d8] sm:$0xff]
        %v4539 = vld [vmem:[#allocation3 + $0x5e0] sm:$0xff]
        %v4540 = vld [vmem:[#allocation3 + $0x5e8] sm:$0xff]
        %v4541 = vld [vmem:[#allocation3 + $0x5f0] sm:$0xff]
        %v4542 = vld [vmem:[#allocation3 + $0x5f8] sm:$0xff]
        %v4543 = vld [vmem:[#allocation3 + $0x600] sm:$0xff]
        %v4544 = vld [vmem:[#allocation3 + $0x608] sm:$0xff]
        %v4545 = vld [vmem:[#allocation3 + $0x610] sm:$0xff]
        %v4546 = vld [vmem:[#allocation3 + $0x618] sm:$0xff]
        %v4547 = vld [vmem:[#allocation3 + $0x620] sm:$0xff]
        %v4548 = vld [vmem:[#allocation3 + $0x628] sm:$0xff]
        %v4549 = vld [vmem:[#allocation3 + $0x630] sm:$0xff]
        %v4550 = vld [vmem:[#allocation3 + $0x638] sm:$0xff]
        %v4551 = vld [vmem:[#allocation3 + $0x640] sm:$0xff]
        %v4552 = vld [vmem:[#allocation3 + $0x648] sm:$0xff]
        %v4553 = vld [vmem:[#allocation3 + $0x650] sm:$0xff]
        %v4554 = vld [vmem:[#allocation3 + $0x658] sm:$0xff]
        %v4555 = vld [vmem:[#allocation3 + $0x660] sm:$0xff]
        %v4556 = vld [vmem:[#allocation3 + $0x668] sm:$0xff]
        %v4557 = vld [vmem:[#allocation3 + $0x670] sm:$0xff]
        %v4558 = vld [vmem:[#allocation3 + $0x678] sm:$0xff]
        %v4559 = vld [vmem:[#allocation3 + $0x680] sm:$0xff]
        %v4560 = vld [vmem:[#allocation3 + $0x688] sm:$0xff]
        %v4561 = vld [vmem:[#allocation3 + $0x690] sm:$0xff]
        %v4562 = vld [vmem:[#allocation3 + $0x698] sm:$0xff]
        %v4563 = vld [vmem:[#allocation3 + $0x6a0] sm:$0xff]
        %v4564 = vld [vmem:[#allocation3 + $0x6a8] sm:$0xff]
        %v4565 = vld [vmem:[#allocation3 + $0x6b0] sm:$0xff]
        %v4566 = vld [vmem:[#allocation3 + $0x6b8] sm:$0xff]
        %v4567 = vld [vmem:[#allocation3 + $0x6c0] sm:$0xff]
        %v4568 = vld [vmem:[#allocation3 + $0x6c8] sm:$0xff]
        %v4569 = vld [vmem:[#allocation3 + $0x6d0] sm:$0xff]
        %v4570 = vld [vmem:[#allocation3 + $0x6d8] sm:$0xff]
        %v4571 = vld [vmem:[#allocation3 + $0x6e0] sm:$0xff]
        %v4572 = vld [vmem:[#allocation3 + $0x6e8] sm:$0xff]
        %v4573 = vld [vmem:[#allocation3 + $0x6f0] sm:$0xff]
        %v4574 = vld [vmem:[#allocation3 + $0x6f8] sm:$0xff]
        %v4575 = vld [vmem:[#allocation3 + $0x700] sm:$0xff]
        %v4576 = vld [vmem:[#allocation3 + $0x708] sm:$0xff]
        %v4577 = vld [vmem:[#allocation3 + $0x710] sm:$0xff]
        %v4578 = vld [vmem:[#allocation3 + $0x718] sm:$0xff]
        %v4579 = vld [vmem:[#allocation3 + $0x720] sm:$0xff]
        %v4580 = vld [vmem:[#allocation3 + $0x728] sm:$0xff]
        %v4581 = vld [vmem:[#allocation3 + $0x730] sm:$0xff]
        %v4582 = vld [vmem:[#allocation3 + $0x738] sm:$0xff]
        %v4583 = vld [vmem:[#allocation3 + $0x740] sm:$0xff]
        %v4584 = vld [vmem:[#allocation3 + $0x748] sm:$0xff]
        %v4585 = vld [vmem:[#allocation3 + $0x750] sm:$0xff]
        %v4586 = vld [vmem:[#allocation3 + $0x758] sm:$0xff]
        %v4587 = vld [vmem:[#allocation3 + $0x760] sm:$0xff]
        %v4588 = vld [vmem:[#allocation3 + $0x768] sm:$0xff]
        %v4589 = vld [vmem:[#allocation3 + $0x770] sm:$0xff]
        %v4590 = vld [vmem:[#allocation3 + $0x778] sm:$0xff]
        %v4591 = vld [vmem:[#allocation3 + $0x780] sm:$0xff]
        %v4592 = vld [vmem:[#allocation3 + $0x788] sm:$0xff]
        %v4593 = vld [vmem:[#allocation3 + $0x790] sm:$0xff]
        %v4594 = vld [vmem:[#allocation3 + $0x798] sm:$0xff]
        %v4595 = vld [vmem:[#allocation3 + $0x7a0] sm:$0xff]
        %v4596 = vld [vmem:[#allocation3 + $0x7a8] sm:$0xff]
        %v4597 = vld [vmem:[#allocation3 + $0x7b0] sm:$0xff]
        %v4598 = vld [vmem:[#allocation3 + $0x7b8] sm:$0xff]
        %v4599 = vld [vmem:[#allocation3 + $0x7c0] sm:$0xff]
        %v4600 = vld [vmem:[#allocation3 + $0x7c8] sm:$0xff]
        %v4601 = vld [vmem:[#allocation3 + $0x7d0] sm:$0xff]
        %v4602 = vld [vmem:[#allocation3 + $0x7d8] sm:$0xff]
        %v4603 = vld [vmem:[#allocation3 + $0x7e0] sm:$0xff]
        %v4604 = vld [vmem:[#allocation3 + $0x7e8] sm:$0xff]
        %v4605 = vld [vmem:[#allocation3 + $0x7f0] sm:$0xff]
        %v4606 = vld [vmem:[#allocation3 + $0x7f8] sm:$0xff]
        %4607 = vmatpush.msra.mxu0 %v4471
        %4608 = vmatpush.msra.mxu0 %v4463
        %4609 = vmatpush.msra.mxu0 %v4455
        %4610 = vmatpush.msra.mxu0 %v4447
        %4611 = vmatpush.msra.mxu0 %v4439
        %4612 = vmatpush.msra.mxu0 %v4431
        %4613 = vmatpush.msra.mxu0 %v4423
        %4614 = vmatpush.msra.mxu0 %v4415
        %4615 = vmatpush.msra.mxu0 %v4407
        %4616 = vmatpush.msra.mxu0 %v4399
        %4617 = vmatpush.msra.mxu0 %v4391
        %4618 = vmatpush.msra.mxu0 %v4383
        %4619 = vmatpush.msra.mxu0 %v4375
        %4620 = vmatpush.msra.mxu0 %v4367
        %4621 = vmatpush.msra.mxu0 %v4359
        %4622 = vmatpush.msra.mxu0 %v4351
        %4623 = vmatmul.f32.gmra.mxu0 %v4347
        %v4624 = vpop.f32.mrf.mxu0
        %v4625 = vadd.f32 0.0, %v4624
        %4626 = vmatmul.f32.gmra.mxu0 %v4349
        %v4627 = vpop.f32.mrf.mxu0
        %v4628 = vadd.f32 0.0, %v4627
        %4629 = vdwg.mxu0
        %4630 = vmatpush.msra.mxu0 %v4599
        %4631 = vmatpush.msra.mxu0 %v4591
        %4632 = vmatpush.msra.mxu0 %v4583
        %4633 = vmatpush.msra.mxu0 %v4575
        %4634 = vmatpush.msra.mxu0 %v4567
        %4635 = vmatpush.msra.mxu0 %v4559
        %4636 = vmatpush.msra.mxu0 %v4551
        %4637 = vmatpush.msra.mxu0 %v4543
        %4638 = vmatpush.msra.mxu0 %v4535
        %4639 = vmatpush.msra.mxu0 %v4527
        %4640 = vmatpush.msra.mxu0 %v4519
        %4641 = vmatpush.msra.mxu0 %v4511
        %4642 = vmatpush.msra.mxu0 %v4503
        %4643 = vmatpush.msra.mxu0 %v4495
        %4644 = vmatpush.msra.mxu0 %v4487
        %4645 = vmatpush.msra.mxu0 %v4479
        %4646 = vmatmul.f32.gmra.mxu0 %v4348
        %v4647 = vpop.f32.mrf.mxu0
        %v4648 = vadd.f32 %v4625, %v4647
        %4649 = vmatmul.f32.gmra.mxu0 %v4350
        %v4650 = vpop.f32.mrf.mxu0
        %v4651 = vadd.f32 %v4628, %v4650
        %4652 = vdwg.mxu0
        %4653 = vmatpush.msra.mxu0 %v4472
        %4654 = vmatpush.msra.mxu0 %v4464
        %4655 = vmatpush.msra.mxu0 %v4456
        %4656 = vmatpush.msra.mxu0 %v4448
        %4657 = vmatpush.msra.mxu0 %v4440
        %4658 = vmatpush.msra.mxu0 %v4432
        %4659 = vmatpush.msra.mxu0 %v4424
        %4660 = vmatpush.msra.mxu0 %v4416
        %4661 = vmatpush.msra.mxu0 %v4408
        %4662 = vmatpush.msra.mxu0 %v4400
        %4663 = vmatpush.msra.mxu0 %v4392
        %4664 = vmatpush.msra.mxu0 %v4384
        %4665 = vmatpush.msra.mxu0 %v4376
        %4666 = vmatpush.msra.mxu0 %v4368
        %4667 = vmatpush.msra.mxu0 %v4360
        %4668 = vmatpush.msra.mxu0 %v4352
        %4669 = vmatmul.f32.gmra.mxu0 %v4347
        %v4670 = vpop.f32.mrf.mxu0
        %v4671 = vadd.f32 0.0, %v4670
        %4672 = vmatmul.f32.gmra.mxu0 %v4349
        %v4673 = vpop.f32.mrf.mxu0
        %v4674 = vadd.f32 0.0, %v4673
        %4675 = vdwg.mxu0
        %4676 = vmatpush.msra.mxu0 %v4600
        %4677 = vmatpush.msra.mxu0 %v4592
        %4678 = vmatpush.msra.mxu0 %v4584
        %4679 = vmatpush.msra.mxu0 %v4576
        %4680 = vmatpush.msra.mxu0 %v4568
        %4681 = vmatpush.msra.mxu0 %v4560
        %4682 = vmatpush.msra.mxu0 %v4552
        %4683 = vmatpush.msra.mxu0 %v4544
        %4684 = vmatpush.msra.mxu0 %v4536
        %4685 = vmatpush.msra.mxu0 %v4528
        %4686 = vmatpush.msra.mxu0 %v4520
        %4687 = vmatpush.msra.mxu0 %v4512
        %4688 = vmatpush.msra.mxu0 %v4504
        %4689 = vmatpush.msra.mxu0 %v4496
        %4690 = vmatpush.msra.mxu0 %v4488
        %4691 = vmatpush.msra.mxu0 %v4480
        %4692 = vmatmul.f32.gmra.mxu0 %v4348
        %v4693 = vpop.f32.mrf.mxu0
        %v4694 = vadd.f32 %v4671, %v4693
        %4695 = vmatmul.f32.gmra.mxu0 %v4350
        %v4696 = vpop.f32.mrf.mxu0
        %v4697 = vadd.f32 %v4674, %v4696
        %4698 = vdwg.mxu0
        %4699 = vmatpush.msra.mxu0 %v4473
        %4700 = vmatpush.msra.mxu0 %v4465
        %4701 = vmatpush.msra.mxu0 %v4457
        %4702 = vmatpush.msra.mxu0 %v4449
        %4703 = vmatpush.msra.mxu0 %v4441
        %4704 = vmatpush.msra.mxu0 %v4433
        %4705 = vmatpush.msra.mxu0 %v4425
        %4706 = vmatpush.msra.mxu0 %v4417
        %4707 = vmatpush.msra.mxu0 %v4409
        %4708 = vmatpush.msra.mxu0 %v4401
        %4709 = vmatpush.msra.mxu0 %v4393
        %4710 = vmatpush.msra.mxu0 %v4385
        %4711 = vmatpush.msra.mxu0 %v4377
        %4712 = vmatpush.msra.mxu0 %v4369
        %4713 = vmatpush.msra.mxu0 %v4361
        %4714 = vmatpush.msra.mxu0 %v4353
        %4715 = vmatmul.f32.gmra.mxu0 %v4347
        %v4716 = vpop.f32.mrf.mxu0
        %v4717 = vadd.f32 0.0, %v4716
        %4718 = vmatmul.f32.gmra.mxu0 %v4349
        %v4719 = vpop.f32.mrf.mxu0
        %v4720 = vadd.f32 0.0, %v4719
        %4721 = vdwg.mxu0
        %4722 = vmatpush.msra.mxu0 %v4601
        %4723 = vmatpush.msra.mxu0 %v4593
        %4724 = vmatpush.msra.mxu0 %v4585
        %4725 = vmatpush.msra.mxu0 %v4577
        %4726 = vmatpush.msra.mxu0 %v4569
        %4727 = vmatpush.msra.mxu0 %v4561
        %4728 = vmatpush.msra.mxu0 %v4553
        %4729 = vmatpush.msra.mxu0 %v4545
        %4730 = vmatpush.msra.mxu0 %v4537
        %4731 = vmatpush.msra.mxu0 %v4529
        %4732 = vmatpush.msra.mxu0 %v4521
        %4733 = vmatpush.msra.mxu0 %v4513
        %4734 = vmatpush.msra.mxu0 %v4505
        %4735 = vmatpush.msra.mxu0 %v4497
        %4736 = vmatpush.msra.mxu0 %v4489
        %4737 = vmatpush.msra.mxu0 %v4481
        %4738 = vmatmul.f32.gmra.mxu0 %v4348
        %v4739 = vpop.f32.mrf.mxu0
        %v4740 = vadd.f32 %v4717, %v4739
        %4741 = vmatmul.f32.gmra.mxu0 %v4350
        %v4742 = vpop.f32.mrf.mxu0
        %v4743 = vadd.f32 %v4720, %v4742
        %4744 = vdwg.mxu0
        %4745 = vmatpush.msra.mxu0 %v4474
        %4746 = vmatpush.msra.mxu0 %v4466
        %4747 = vmatpush.msra.mxu0 %v4458
        %4748 = vmatpush.msra.mxu0 %v4450
        %4749 = vmatpush.msra.mxu0 %v4442
        %4750 = vmatpush.msra.mxu0 %v4434
        %4751 = vmatpush.msra.mxu0 %v4426
        %4752 = vmatpush.msra.mxu0 %v4418
        %4753 = vmatpush.msra.mxu0 %v4410
        %4754 = vmatpush.msra.mxu0 %v4402
        %4755 = vmatpush.msra.mxu0 %v4394
        %4756 = vmatpush.msra.mxu0 %v4386
        %4757 = vmatpush.msra.mxu0 %v4378
        %4758 = vmatpush.msra.mxu0 %v4370
        %4759 = vmatpush.msra.mxu0 %v4362
        %4760 = vmatpush.msra.mxu0 %v4354
        %4761 = vmatmul.f32.gmra.mxu0 %v4347
        %v4762 = vpop.f32.mrf.mxu0
        %v4763 = vadd.f32 0.0, %v4762
        %4764 = vmatmul.f32.gmra.mxu0 %v4349
        %v4765 = vpop.f32.mrf.mxu0
        %v4766 = vadd.f32 0.0, %v4765
        %4767 = vdwg.mxu0
        %4768 = vmatpush.msra.mxu0 %v4602
        %4769 = vmatpush.msra.mxu0 %v4594
        %4770 = vmatpush.msra.mxu0 %v4586
        %4771 = vmatpush.msra.mxu0 %v4578
        %4772 = vmatpush.msra.mxu0 %v4570
        %4773 = vmatpush.msra.mxu0 %v4562
        %4774 = vmatpush.msra.mxu0 %v4554
        %4775 = vmatpush.msra.mxu0 %v4546
        %4776 = vmatpush.msra.mxu0 %v4538
        %4777 = vmatpush.msra.mxu0 %v4530
        %4778 = vmatpush.msra.mxu0 %v4522
        %4779 = vmatpush.msra.mxu0 %v4514
        %4780 = vmatpush.msra.mxu0 %v4506
        %4781 = vmatpush.msra.mxu0 %v4498
        %4782 = vmatpush.msra.mxu0 %v4490
        %4783 = vmatpush.msra.mxu0 %v4482
        %4784 = vmatmul.f32.gmra.mxu0 %v4348
        %v4785 = vpop.f32.mrf.mxu0
        %v4786 = vadd.f32 %v4763, %v4785
        %4787 = vmatmul.f32.gmra.mxu0 %v4350
        %v4788 = vpop.f32.mrf.mxu0
        %v4789 = vadd.f32 %v4766, %v4788
        %4790 = vdwg.mxu0
        %4791 = vmatpush.msra.mxu0 %v4475
        %4792 = vmatpush.msra.mxu0 %v4467
        %4793 = vmatpush.msra.mxu0 %v4459
        %4794 = vmatpush.msra.mxu0 %v4451
        %4795 = vmatpush.msra.mxu0 %v4443
        %4796 = vmatpush.msra.mxu0 %v4435
        %4797 = vmatpush.msra.mxu0 %v4427
        %4798 = vmatpush.msra.mxu0 %v4419
        %4799 = vmatpush.msra.mxu0 %v4411
        %4800 = vmatpush.msra.mxu0 %v4403
        %4801 = vmatpush.msra.mxu0 %v4395
        %4802 = vmatpush.msra.mxu0 %v4387
        %4803 = vmatpush.msra.mxu0 %v4379
        %4804 = vmatpush.msra.mxu0 %v4371
        %4805 = vmatpush.msra.mxu0 %v4363
        %4806 = vmatpush.msra.mxu0 %v4355
        %4807 = vmatmul.f32.gmra.mxu0 %v4347
        %v4808 = vpop.f32.mrf.mxu0
        %v4809 = vadd.f32 0.0, %v4808
        %4810 = vmatmul.f32.gmra.mxu0 %v4349
        %v4811 = vpop.f32.mrf.mxu0
        %v4812 = vadd.f32 0.0, %v4811
        %4813 = vdwg.mxu0
        %4814 = vmatpush.msra.mxu0 %v4603
        %4815 = vmatpush.msra.mxu0 %v4595
        %4816 = vmatpush.msra.mxu0 %v4587
        %4817 = vmatpush.msra.mxu0 %v4579
        %4818 = vmatpush.msra.mxu0 %v4571
        %4819 = vmatpush.msra.mxu0 %v4563
        %4820 = vmatpush.msra.mxu0 %v4555
        %4821 = vmatpush.msra.mxu0 %v4547
        %4822 = vmatpush.msra.mxu0 %v4539
        %4823 = vmatpush.msra.mxu0 %v4531
        %4824 = vmatpush.msra.mxu0 %v4523
        %4825 = vmatpush.msra.mxu0 %v4515
        %4826 = vmatpush.msra.mxu0 %v4507
        %4827 = vmatpush.msra.mxu0 %v4499
        %4828 = vmatpush.msra.mxu0 %v4491
        %4829 = vmatpush.msra.mxu0 %v4483
        %4830 = vmatmul.f32.gmra.mxu0 %v4348
        %v4831 = vpop.f32.mrf.mxu0
        %v4832 = vadd.f32 %v4809, %v4831
        %4833 = vmatmul.f32.gmra.mxu0 %v4350
        %v4834 = vpop.f32.mrf.mxu0
        %v4835 = vadd.f32 %v4812, %v4834
        %4836 = vdwg.mxu0
        %4837 = vmatpush.msra.mxu0 %v4476
        %4838 = vmatpush.msra.mxu0 %v4468
        %4839 = vmatpush.msra.mxu0 %v4460
        %4840 = vmatpush.msra.mxu0 %v4452
        %4841 = vmatpush.msra.mxu0 %v4444
        %4842 = vmatpush.msra.mxu0 %v4436
        %4843 = vmatpush.msra.mxu0 %v4428
        %4844 = vmatpush.msra.mxu0 %v4420
        %4845 = vmatpush.msra.mxu0 %v4412
        %4846 = vmatpush.msra.mxu0 %v4404
        %4847 = vmatpush.msra.mxu0 %v4396
        %4848 = vmatpush.msra.mxu0 %v4388
        %4849 = vmatpush.msra.mxu0 %v4380
        %4850 = vmatpush.msra.mxu0 %v4372
        %4851 = vmatpush.msra.mxu0 %v4364
        %4852 = vmatpush.msra.mxu0 %v4356
        %4853 = vmatmul.f32.gmra.mxu0 %v4347
        %v4854 = vpop.f32.mrf.mxu0
        %v4855 = vadd.f32 0.0, %v4854
        %4856 = vmatmul.f32.gmra.mxu0 %v4349
        %v4857 = vpop.f32.mrf.mxu0
        %v4858 = vadd.f32 0.0, %v4857
        %4859 = vdwg.mxu0
        %4860 = vmatpush.msra.mxu0 %v4604
        %4861 = vmatpush.msra.mxu0 %v4596
        %4862 = vmatpush.msra.mxu0 %v4588
        %4863 = vmatpush.msra.mxu0 %v4580
        %4864 = vmatpush.msra.mxu0 %v4572
        %4865 = vmatpush.msra.mxu0 %v4564
        %4866 = vmatpush.msra.mxu0 %v4556
        %4867 = vmatpush.msra.mxu0 %v4548
        %4868 = vmatpush.msra.mxu0 %v4540
        %4869 = vmatpush.msra.mxu0 %v4532
        %4870 = vmatpush.msra.mxu0 %v4524
        %4871 = vmatpush.msra.mxu0 %v4516
        %4872 = vmatpush.msra.mxu0 %v4508
        %4873 = vmatpush.msra.mxu0 %v4500
        %4874 = vmatpush.msra.mxu0 %v4492
        %4875 = vmatpush.msra.mxu0 %v4484
        %4876 = vmatmul.f32.gmra.mxu0 %v4348
        %v4877 = vpop.f32.mrf.mxu0
        %v4878 = vadd.f32 %v4855, %v4877
        %4879 = vmatmul.f32.gmra.mxu0 %v4350
        %v4880 = vpop.f32.mrf.mxu0
        %v4881 = vadd.f32 %v4858, %v4880
        %4882 = vdwg.mxu0
        %4883 = vmatpush.msra.mxu0 %v4477
        %4884 = vmatpush.msra.mxu0 %v4469
        %4885 = vmatpush.msra.mxu0 %v4461
        %4886 = vmatpush.msra.mxu0 %v4453
        %4887 = vmatpush.msra.mxu0 %v4445
        %4888 = vmatpush.msra.mxu0 %v4437
        %4889 = vmatpush.msra.mxu0 %v4429
        %4890 = vmatpush.msra.mxu0 %v4421
        %4891 = vmatpush.msra.mxu0 %v4413
        %4892 = vmatpush.msra.mxu0 %v4405
        %4893 = vmatpush.msra.mxu0 %v4397
        %4894 = vmatpush.msra.mxu0 %v4389
        %4895 = vmatpush.msra.mxu0 %v4381
        %4896 = vmatpush.msra.mxu0 %v4373
        %4897 = vmatpush.msra.mxu0 %v4365
        %4898 = vmatpush.msra.mxu0 %v4357
        %4899 = vmatmul.f32.gmra.mxu0 %v4347
        %v4900 = vpop.f32.mrf.mxu0
        %v4901 = vadd.f32 0.0, %v4900
        %4902 = vmatmul.f32.gmra.mxu0 %v4349
        %v4903 = vpop.f32.mrf.mxu0
        %v4904 = vadd.f32 0.0, %v4903
        %4905 = vdwg.mxu0
        %4906 = vmatpush.msra.mxu0 %v4605
        %4907 = vmatpush.msra.mxu0 %v4597
        %4908 = vmatpush.msra.mxu0 %v4589
        %4909 = vmatpush.msra.mxu0 %v4581
        %4910 = vmatpush.msra.mxu0 %v4573
        %4911 = vmatpush.msra.mxu0 %v4565
        %4912 = vmatpush.msra.mxu0 %v4557
        %4913 = vmatpush.msra.mxu0 %v4549
        %4914 = vmatpush.msra.mxu0 %v4541
        %4915 = vmatpush.msra.mxu0 %v4533
        %4916 = vmatpush.msra.mxu0 %v4525
        %4917 = vmatpush.msra.mxu0 %v4517
        %4918 = vmatpush.msra.mxu0 %v4509
        %4919 = vmatpush.msra.mxu0 %v4501
        %4920 = vmatpush.msra.mxu0 %v4493
        %4921 = vmatpush.msra.mxu0 %v4485
        %4922 = vmatmul.f32.gmra.mxu0 %v4348
        %v4923 = vpop.f32.mrf.mxu0
        %v4924 = vadd.f32 %v4901, %v4923
        %4925 = vmatmul.f32.gmra.mxu0 %v4350
        %v4926 = vpop.f32.mrf.mxu0
        %v4927 = vadd.f32 %v4904, %v4926
        %4928 = vdwg.mxu0
        %4929 = vmatpush.msra.mxu0 %v4478
        %4930 = vmatpush.msra.mxu0 %v4470
        %4931 = vmatpush.msra.mxu0 %v4462
        %4932 = vmatpush.msra.mxu0 %v4454
        %4933 = vmatpush.msra.mxu0 %v4446
        %4934 = vmatpush.msra.mxu0 %v4438
        %4935 = vmatpush.msra.mxu0 %v4430
        %4936 = vmatpush.msra.mxu0 %v4422
        %4937 = vmatpush.msra.mxu0 %v4414
        %4938 = vmatpush.msra.mxu0 %v4406
        %4939 = vmatpush.msra.mxu0 %v4398
        %4940 = vmatpush.msra.mxu0 %v4390
        %4941 = vmatpush.msra.mxu0 %v4382
        %4942 = vmatpush.msra.mxu0 %v4374
        %4943 = vmatpush.msra.mxu0 %v4366
        %4944 = vmatpush.msra.mxu0 %v4358
        %4945 = vmatmul.f32.gmra.mxu0 %v4347
        %v4946 = vpop.f32.mrf.mxu0
        %v4947 = vadd.f32 0.0, %v4946
        %4948 = vmatmul.f32.gmra.mxu0 %v4349
        %v4949 = vpop.f32.mrf.mxu0
        %v4950 = vadd.f32 0.0, %v4949
        %4951 = vdwg.mxu0
        %4952 = vmatpush.msra.mxu0 %v4606
        %4953 = vmatpush.msra.mxu0 %v4598
        %4954 = vmatpush.msra.mxu0 %v4590
        %4955 = vmatpush.msra.mxu0 %v4582
        %4956 = vmatpush.msra.mxu0 %v4574
        %4957 = vmatpush.msra.mxu0 %v4566
        %4958 = vmatpush.msra.mxu0 %v4558
        %4959 = vmatpush.msra.mxu0 %v4550
        %4960 = vmatpush.msra.mxu0 %v4542
        %4961 = vmatpush.msra.mxu0 %v4534
        %4962 = vmatpush.msra.mxu0 %v4526
        %4963 = vmatpush.msra.mxu0 %v4518
        %4964 = vmatpush.msra.mxu0 %v4510
        %4965 = vmatpush.msra.mxu0 %v4502
        %4966 = vmatpush.msra.mxu0 %v4494
        %4967 = vmatpush.msra.mxu0 %v4486
        %4968 = vmatmul.f32.gmra.mxu0 %v4348
        %v4969 = vpop.f32.mrf.mxu0
        %v4970 = vadd.f32 %v4947, %v4969
        %4971 = vmatmul.f32.gmra.mxu0 %v4350
        %v4972 = vpop.f32.mrf.mxu0
        %v4973 = vadd.f32 %v4950, %v4972
        %4974 = vdwg.mxu0
        %4975 = vst.msk [vmem:[#allocation2] sm:$0xff] %vm1995, 0.0
        %4976 = vst.msk [vmem:[#allocation2 + $0x48] sm:$0xff] %vm1995, 0.0
        %4993 = vrot.lane.b32.xlu0 %v4648, 33
        %v4994 = vpop.permute.xlu0 %4993
        %4995 = vrot.lane.b32.xlu0 %v4694, 33
        %v4996 = vpop.permute.xlu0 %4995
        %4997 = vrot.lane.b32.xlu0 %v4740, 33
        %v4998 = vpop.permute.xlu0 %4997
        %4999 = vrot.lane.b32.xlu0 %v4786, 33
        %v5000 = vpop.permute.xlu0 %4999
        %5001 = vrot.lane.b32.xlu0 %v4832, 33
        %v5002 = vpop.permute.xlu0 %5001
        %5003 = vrot.lane.b32.xlu0 %v4878, 33
        %v5004 = vpop.permute.xlu0 %5003
        %5005 = vrot.lane.b32.xlu0 %v4924, 33
        %v5006 = vpop.permute.xlu0 %5005
        %5007 = vrot.lane.b32.xlu0 %v4970, 33
        %v5008 = vpop.permute.xlu0 %5007
        %5009 = vrot.lane.b32.xlu0 %v4651, 33
        %v5010 = vpop.permute.xlu0 %5009
        %5011 = vrot.lane.b32.xlu0 %v4697, 33
        %v5012 = vpop.permute.xlu0 %5011
        %5013 = vrot.lane.b32.xlu0 %v4743, 33
        %v5014 = vpop.permute.xlu0 %5013
        %5015 = vrot.lane.b32.xlu0 %v4789, 33
        %v5016 = vpop.permute.xlu0 %5015
        %5017 = vrot.lane.b32.xlu0 %v4835, 33
        %v5018 = vpop.permute.xlu0 %5017
        %5019 = vrot.lane.b32.xlu0 %v4881, 33
        %v5020 = vpop.permute.xlu0 %5019
        %5021 = vrot.lane.b32.xlu0 %v4927, 33
        %v5022 = vpop.permute.xlu0 %5021
        %5023 = vrot.lane.b32.xlu0 %v4973, 33
        %v5024 = vpop.permute.xlu0 %5023
        %v5025 = vsel %vm1995, %v4994, %v4996
        %v5026 = vsel %vm1995, %v4996, %v4998
        %v5027 = vsel %vm1995, %v4998, %v5000
        %v5028 = vsel %vm1995, %v5000, %v5002
        %v5029 = vsel %vm1995, %v5002, %v5004
        %v5030 = vsel %vm1995, %v5004, %v5006
        %v5031 = vsel %vm1995, %v5006, %v5008
        %v5032 = vsel %vm1995, %v5010, %v5012
        %v5033 = vsel %vm1995, %v5012, %v5014
        %v5034 = vsel %vm1995, %v5014, %v5016
        %v5035 = vsel %vm1995, %v5016, %v5018
        %v5036 = vsel %vm1995, %v5018, %v5020
        %v5037 = vsel %vm1995, %v5020, %v5022
        %v5038 = vsel %vm1995, %v5022, %v5024
        %5057 = vst.msk [vmem:[#allocation2] sm:$0xff] %vm2037, %v4994
        %5058 = vst [vmem:[#allocation2 + $0x8] sm:$0xff] %v5025
        %5059 = vst [vmem:[#allocation2 + $0x10] sm:$0xff] %v5026
        %5060 = vst [vmem:[#allocation2 + $0x18] sm:$0xff] %v5027
        %5061 = vst [vmem:[#allocation2 + $0x20] sm:$0xff] %v5028
        %5062 = vst [vmem:[#allocation2 + $0x28] sm:$0xff] %v5029
        %5063 = vst [vmem:[#allocation2 + $0x30] sm:$0xff] %v5030
        %5064 = vst [vmem:[#allocation2 + $0x38] sm:$0xff] %v5031
        %5065 = vst.msk [vmem:[#allocation2 + $0x40] sm:$0xff] %vm1995, %v5008
        %5066 = vst.msk [vmem:[#allocation2 + $0x48] sm:$0xff] %vm2037, %v5010
        %5067 = vst [vmem:[#allocation2 + $0x50] sm:$0xff] %v5032
        %5068 = vst [vmem:[#allocation2 + $0x58] sm:$0xff] %v5033
        %5069 = vst [vmem:[#allocation2 + $0x60] sm:$0xff] %v5034
        %5070 = vst [vmem:[#allocation2 + $0x68] sm:$0xff] %v5035
        %5071 = vst [vmem:[#allocation2 + $0x70] sm:$0xff] %v5036
        %5072 = vst [vmem:[#allocation2 + $0x78] sm:$0xff] %v5037
        %5073 = vst [vmem:[#allocation2 + $0x80] sm:$0xff] %v5038
        %5074 = vst.msk [vmem:[#allocation2 + $0x88] sm:$0xff] %vm1995, %v5024
        %5075 = vst.msk [vmem:[#allocation2 + $0x40] sm:$0xff] %vm2047, 0.0
        %5076 = vst.msk [vmem:[#allocation2 + $0x88] sm:$0xff] %vm2047, 0.0
        %v5077 = vld [vmem:[%s6] ss:$2 sm:$0xff]
        %v5078 = vld [vmem:[%s2050] ss:$2 sm:$0xff]
        %v5079 = vld [vmem:[#allocation2] sm:$0xff]
        %v5080 = vld [vmem:[#allocation2 + $0x8] sm:$0xff]
        %v5081 = vld [vmem:[#allocation2 + $0x10] sm:$0xff]
        %v5082 = vld [vmem:[#allocation2 + $0x18] sm:$0xff]
        %v5083 = vld [vmem:[#allocation2 + $0x20] sm:$0xff]
        %v5084 = vld [vmem:[#allocation2 + $0x28] sm:$0xff]
        %v5085 = vld [vmem:[#allocation2 + $0x30] sm:$0xff]
        %v5086 = vld [vmem:[#allocation2 + $0x38] sm:$0xff]
        %v5087 = vld [vmem:[#allocation2 + $0x48] sm:$0xff]
        %v5088 = vld [vmem:[#allocation2 + $0x50] sm:$0xff]
        %v5089 = vld [vmem:[#allocation2 + $0x58] sm:$0xff]
        %v5090 = vld [vmem:[#allocation2 + $0x60] sm:$0xff]
        %v5091 = vld [vmem:[#allocation2 + $0x68] sm:$0xff]
        %v5092 = vld [vmem:[#allocation2 + $0x70] sm:$0xff]
        %v5093 = vld [vmem:[#allocation2 + $0x78] sm:$0xff]
        %v5094 = vld [vmem:[#allocation2 + $0x80] sm:$0xff]
        %v5096 = vperm.slane %v5077, 0
        %v5097 = vperm.slane %v5077, 1
        %v5098 = vperm.slane %v5077, 2
        %v5099 = vperm.slane %v5077, 3
        %v5100 = vperm.slane %v5077, 4
        %v5101 = vperm.slane %v5077, 5
        %v5102 = vperm.slane %v5077, 6
        %v5103 = vperm.slane %v5077, 7
        %v5112 = vmul.f32 %v5079, %v5096
        %v5113 = vmul.f32 %v5080, %v5097
        %v5114 = vmul.f32 %v5081, %v5098
        %v5115 = vmul.f32 %v5082, %v5099
        %v5116 = vmul.f32 %v5083, %v5100
        %v5117 = vmul.f32 %v5084, %v5101
        %v5118 = vmul.f32 %v5085, %v5102
        %v5119 = vmul.f32 %v5086, %v5103
        %v5120 = vmul.f32 %v5087, %v5096
        %v5121 = vmul.f32 %v5088, %v5097
        %v5122 = vmul.f32 %v5089, %v5098
        %v5123 = vmul.f32 %v5090, %v5099
        %v5124 = vmul.f32 %v5091, %v5100
        %v5125 = vmul.f32 %v5092, %v5101
        %v5126 = vmul.f32 %v5093, %v5102
        %v5127 = vmul.f32 %v5094, %v5103
        %v5128 = vld [vmem:[#allocation2 + $0x40] sm:$0xff]
        %v5129 = vld [vmem:[#allocation2 + $0x88] sm:$0xff]
        %v5131 = vperm.slane %v5078, 0
        %v5132 = vperm.slane %v5078, 1
        %v5133 = vperm.slane %v5078, 2
        %v5134 = vperm.slane %v5078, 3
        %v5135 = vperm.slane %v5078, 4
        %v5136 = vperm.slane %v5078, 5
        %v5137 = vperm.slane %v5078, 6
        %v5138 = vperm.slane %v5078, 7
        %5139 = vrot.lane.b32.xlu0 %v5131, 2
        %v5140 = vpop.permute.xlu0 %5139
        %5141 = vrot.lane.b32.xlu0 %v5132, 2
        %v5142 = vpop.permute.xlu0 %5141
        %5143 = vrot.lane.b32.xlu0 %v5133, 2
        %v5144 = vpop.permute.xlu0 %5143
        %5145 = vrot.lane.b32.xlu0 %v5134, 2
        %v5146 = vpop.permute.xlu0 %5145
        %5147 = vrot.lane.b32.xlu0 %v5135, 2
        %v5148 = vpop.permute.xlu0 %5147
        %5149 = vrot.lane.b32.xlu0 %v5136, 2
        %v5150 = vpop.permute.xlu0 %5149
        %5151 = vrot.lane.b32.xlu0 %v5137, 2
        %v5152 = vpop.permute.xlu0 %5151
        %5153 = vrot.lane.b32.xlu0 %v5138, 2
        %v5154 = vpop.permute.xlu0 %5153
        %v5155 = vsel %vm1770, %v5140, %v5142
        %v5156 = vsel %vm1770, %v5142, %v5144
        %v5157 = vsel %vm1770, %v5144, %v5146
        %v5158 = vsel %vm1770, %v5146, %v5148
        %v5159 = vsel %vm1770, %v5148, %v5150
        %v5160 = vsel %vm1770, %v5150, %v5152
        %v5161 = vsel %vm1770, %v5152, %v5154
        %v5171 = vmul.f32 %v5079, %v5140
        %v5172 = vmul.f32 %v5080, %v5155
        %v5173 = vmul.f32 %v5081, %v5156
        %v5174 = vmul.f32 %v5082, %v5157
        %v5175 = vmul.f32 %v5083, %v5158
        %v5176 = vmul.f32 %v5084, %v5159
        %v5177 = vmul.f32 %v5085, %v5160
        %v5178 = vmul.f32 %v5086, %v5161
        %v5179 = vmul.f32 %v5128, %v5154
        %v5180 = vmul.f32 %v5087, %v5140
        %v5181 = vmul.f32 %v5088, %v5155
        %v5182 = vmul.f32 %v5089, %v5156
        %v5183 = vmul.f32 %v5090, %v5157
        %v5184 = vmul.f32 %v5091, %v5158
        %v5185 = vmul.f32 %v5092, %v5159
        %v5186 = vmul.f32 %v5093, %v5160
        %v5187 = vmul.f32 %v5094, %v5161
        %v5188 = vmul.f32 %v5129, %v5154
        %5189 = vrot.lane.b32.xlu0 %v5096, 32
        %v5190 = vpop.permute.xlu0 %5189
        %5191 = vrot.lane.b32.xlu0 %v5097, 32
        %v5192 = vpop.permute.xlu0 %5191
        %5193 = vrot.lane.b32.xlu0 %v5098, 32
        %v5194 = vpop.permute.xlu0 %5193
        %5195 = vrot.lane.b32.xlu0 %v5099, 32
        %v5196 = vpop.permute.xlu0 %5195
        %5197 = vrot.lane.b32.xlu0 %v5100, 32
        %v5198 = vpop.permute.xlu0 %5197
        %5199 = vrot.lane.b32.xlu0 %v5101, 32
        %v5200 = vpop.permute.xlu0 %5199
        %5201 = vrot.lane.b32.xlu0 %v5102, 32
        %v5202 = vpop.permute.xlu0 %5201
        %5203 = vrot.lane.b32.xlu0 %v5103, 32
        %v5204 = vpop.permute.xlu0 %5203
        %v5205 = vsel %vm1806, %v5190, %v5192
        %v5206 = vsel %vm1806, %v5192, %v5194
        %v5207 = vsel %vm1806, %v5194, %v5196
        %v5208 = vsel %vm1806, %v5196, %v5198
        %v5209 = vsel %vm1806, %v5198, %v5200
        %v5210 = vsel %vm1806, %v5200, %v5202
        %v5211 = vsel %vm1806, %v5202, %v5204
        %v5221 = vmul.f32 %v5079, %v5190
        %v5222 = vmul.f32 %v5080, %v5205
        %v5223 = vmul.f32 %v5081, %v5206
        %v5224 = vmul.f32 %v5082, %v5207
        %v5225 = vmul.f32 %v5083, %v5208
        %v5226 = vmul.f32 %v5084, %v5209
        %v5227 = vmul.f32 %v5085, %v5210
        %v5228 = vmul.f32 %v5086, %v5211
        %v5229 = vmul.f32 %v5128, %v5204
        %v5230 = vmul.f32 %v5087, %v5190
        %v5231 = vmul.f32 %v5088, %v5205
        %v5232 = vmul.f32 %v5089, %v5206
        %v5233 = vmul.f32 %v5090, %v5207
        %v5234 = vmul.f32 %v5091, %v5208
        %v5235 = vmul.f32 %v5092, %v5209
        %v5236 = vmul.f32 %v5093, %v5210
        %v5237 = vmul.f32 %v5094, %v5211
        %v5238 = vmul.f32 %v5129, %v5204
        %5239 = vrot.lane.b32.xlu0 %v5131, 34
        %v5240 = vpop.permute.xlu0 %5239
        %5241 = vrot.lane.b32.xlu0 %v5132, 34
        %v5242 = vpop.permute.xlu0 %5241
        %5243 = vrot.lane.b32.xlu0 %v5133, 34
        %v5244 = vpop.permute.xlu0 %5243
        %5245 = vrot.lane.b32.xlu0 %v5134, 34
        %v5246 = vpop.permute.xlu0 %5245
        %5247 = vrot.lane.b32.xlu0 %v5135, 34
        %v5248 = vpop.permute.xlu0 %5247
        %5249 = vrot.lane.b32.xlu0 %v5136, 34
        %v5250 = vpop.permute.xlu0 %5249
        %5251 = vrot.lane.b32.xlu0 %v5137, 34
        %v5252 = vpop.permute.xlu0 %5251
        %5253 = vrot.lane.b32.xlu0 %v5138, 34
        %v5254 = vpop.permute.xlu0 %5253
        %v5255 = vsel %vm1818, %v5240, %v5242
        %v5256 = vsel %vm1818, %v5242, %v5244
        %v5257 = vsel %vm1818, %v5244, %v5246
        %v5258 = vsel %vm1818, %v5246, %v5248
        %v5259 = vsel %vm1818, %v5248, %v5250
        %v5260 = vsel %vm1818, %v5250, %v5252
        %v5261 = vsel %vm1818, %v5252, %v5254
        %v5271 = vmul.f32 %v5079, %v5240
        %v5272 = vmul.f32 %v5080, %v5255
        %v5273 = vmul.f32 %v5081, %v5256
        %v5274 = vmul.f32 %v5082, %v5257
        %v5275 = vmul.f32 %v5083, %v5258
        %v5276 = vmul.f32 %v5084, %v5259
        %v5277 = vmul.f32 %v5085, %v5260
        %v5278 = vmul.f32 %v5086, %v5261
        %v5279 = vmul.f32 %v5128, %v5254
        %v5280 = vmul.f32 %v5087, %v5240
        %v5281 = vmul.f32 %v5088, %v5255
        %v5282 = vmul.f32 %v5089, %v5256
        %v5283 = vmul.f32 %v5090, %v5257
        %v5284 = vmul.f32 %v5091, %v5258
        %v5285 = vmul.f32 %v5092, %v5259
        %v5286 = vmul.f32 %v5093, %v5260
        %v5287 = vmul.f32 %v5094, %v5261
        %v5288 = vmul.f32 %v5129, %v5254
        %5289 = vrot.lane.b32.xlu0 %v5096, 64
        %v5290 = vpop.permute.xlu0 %5289
        %5291 = vrot.lane.b32.xlu0 %v5097, 64
        %v5292 = vpop.permute.xlu0 %5291
        %5293 = vrot.lane.b32.xlu0 %v5098, 64
        %v5294 = vpop.permute.xlu0 %5293
        %5295 = vrot.lane.b32.xlu0 %v5099, 64
        %v5296 = vpop.permute.xlu0 %5295
        %5297 = vrot.lane.b32.xlu0 %v5100, 64
        %v5298 = vpop.permute.xlu0 %5297
        %5299 = vrot.lane.b32.xlu0 %v5101, 64
        %v5300 = vpop.permute.xlu0 %5299
        %5301 = vrot.lane.b32.xlu0 %v5102, 64
        %v5302 = vpop.permute.xlu0 %5301
        %5303 = vrot.lane.b32.xlu0 %v5103, 64
        %v5304 = vpop.permute.xlu0 %5303
        %v5305 = vsel %vm792, %v5290, %v5292
        %v5306 = vsel %vm792, %v5292, %v5294
        %v5307 = vsel %vm792, %v5294, %v5296
        %v5308 = vsel %vm792, %v5296, %v5298
        %v5309 = vsel %vm792, %v5298, %v5300
        %v5310 = vsel %vm792, %v5300, %v5302
        %v5311 = vsel %vm792, %v5302, %v5304
        %v5321 = vmul.f32 %v5079, %v5290
        %v5322 = vmul.f32 %v5080, %v5305
        %v5323 = vmul.f32 %v5081, %v5306
        %v5324 = vmul.f32 %v5082, %v5307
        %v5325 = vmul.f32 %v5083, %v5308
        %v5326 = vmul.f32 %v5084, %v5309
        %v5327 = vmul.f32 %v5085, %v5310
        %v5328 = vmul.f32 %v5086, %v5311
        %v5329 = vmul.f32 %v5128, %v5304
        %v5330 = vmul.f32 %v5087, %v5290
        %v5331 = vmul.f32 %v5088, %v5305
        %v5332 = vmul.f32 %v5089, %v5306
        %v5333 = vmul.f32 %v5090, %v5307
        %v5334 = vmul.f32 %v5091, %v5308
        %v5335 = vmul.f32 %v5092, %v5309
        %v5336 = vmul.f32 %v5093, %v5310
        %v5337 = vmul.f32 %v5094, %v5311
        %v5338 = vmul.f32 %v5129, %v5304
        %5339 = vrot.lane.b32.xlu0 %v5131, 66
        %v5340 = vpop.permute.xlu0 %5339
        %5341 = vrot.lane.b32.xlu0 %v5132, 66
        %v5342 = vpop.permute.xlu0 %5341
        %5343 = vrot.lane.b32.xlu0 %v5133, 66
        %v5344 = vpop.permute.xlu0 %5343
        %5345 = vrot.lane.b32.xlu0 %v5134, 66
        %v5346 = vpop.permute.xlu0 %5345
        %5347 = vrot.lane.b32.xlu0 %v5135, 66
        %v5348 = vpop.permute.xlu0 %5347
        %5349 = vrot.lane.b32.xlu0 %v5136, 66
        %v5350 = vpop.permute.xlu0 %5349
        %5351 = vrot.lane.b32.xlu0 %v5137, 66
        %v5352 = vpop.permute.xlu0 %5351
        %5353 = vrot.lane.b32.xlu0 %v5138, 66
        %v5354 = vpop.permute.xlu0 %5353
        %v5355 = vsel %vm2275, %v5340, %v5342
        %v5356 = vsel %vm2275, %v5342, %v5344
        %v5357 = vsel %vm2275, %v5344, %v5346
        %v5358 = vsel %vm2275, %v5346, %v5348
        %v5359 = vsel %vm2275, %v5348, %v5350
        %v5360 = vsel %vm2275, %v5350, %v5352
        %v5361 = vsel %vm2275, %v5352, %v5354
        %v5371 = vmul.f32 %v5079, %v5340
        %v5372 = vmul.f32 %v5080, %v5355
        %v5373 = vmul.f32 %v5081, %v5356
        %v5374 = vmul.f32 %v5082, %v5357
        %v5375 = vmul.f32 %v5083, %v5358
        %v5376 = vmul.f32 %v5084, %v5359
        %v5377 = vmul.f32 %v5085, %v5360
        %v5378 = vmul.f32 %v5086, %v5361
        %v5379 = vmul.f32 %v5128, %v5354
        %v5380 = vmul.f32 %v5087, %v5340
        %v5381 = vmul.f32 %v5088, %v5355
        %v5382 = vmul.f32 %v5089, %v5356
        %v5383 = vmul.f32 %v5090, %v5357
        %v5384 = vmul.f32 %v5091, %v5358
        %v5385 = vmul.f32 %v5092, %v5359
        %v5386 = vmul.f32 %v5093, %v5360
        %v5387 = vmul.f32 %v5094, %v5361
        %v5388 = vmul.f32 %v5129, %v5354
        %5407 = vrot.lane.b32.xlu0 %v5079, 127
        %v5408 = vpop.permute.xlu0 %5407
        %5409 = vrot.lane.b32.xlu0 %v5080, 127
        %v5410 = vpop.permute.xlu0 %5409
        %5411 = vrot.lane.b32.xlu0 %v5081, 127
        %v5412 = vpop.permute.xlu0 %5411
        %5413 = vrot.lane.b32.xlu0 %v5082, 127
        %v5414 = vpop.permute.xlu0 %5413
        %5415 = vrot.lane.b32.xlu0 %v5083, 127
        %v5416 = vpop.permute.xlu0 %5415
        %5417 = vrot.lane.b32.xlu0 %v5084, 127
        %v5418 = vpop.permute.xlu0 %5417
        %5419 = vrot.lane.b32.xlu0 %v5085, 127
        %v5420 = vpop.permute.xlu0 %5419
        %5421 = vrot.lane.b32.xlu0 %v5086, 127
        %v5422 = vpop.permute.xlu0 %5421
        %5423 = vrot.lane.b32.xlu0 %v5128, 127
        %v5424 = vpop.permute.xlu0 %5423
        %5425 = vrot.lane.b32.xlu0 %v5087, 127
        %v5426 = vpop.permute.xlu0 %5425
        %5427 = vrot.lane.b32.xlu0 %v5088, 127
        %v5428 = vpop.permute.xlu0 %5427
        %5429 = vrot.lane.b32.xlu0 %v5089, 127
        %v5430 = vpop.permute.xlu0 %5429
        %5431 = vrot.lane.b32.xlu0 %v5090, 127
        %v5432 = vpop.permute.xlu0 %5431
        %5433 = vrot.lane.b32.xlu0 %v5091, 127
        %v5434 = vpop.permute.xlu0 %5433
        %5435 = vrot.lane.b32.xlu0 %v5092, 127
        %v5436 = vpop.permute.xlu0 %5435
        %5437 = vrot.lane.b32.xlu0 %v5093, 127
        %v5438 = vpop.permute.xlu0 %5437
        %5439 = vrot.lane.b32.xlu0 %v5094, 127
        %v5440 = vpop.permute.xlu0 %5439
        %5441 = vrot.lane.b32.xlu0 %v5129, 127
        %v5442 = vpop.permute.xlu0 %5441
        %v5443 = vsel %vm1835, %v5408, %v5410
        %v5444 = vsel %vm1835, %v5410, %v5412
        %v5445 = vsel %vm1835, %v5412, %v5414
        %v5446 = vsel %vm1835, %v5414, %v5416
        %v5447 = vsel %vm1835, %v5416, %v5418
        %v5448 = vsel %vm1835, %v5418, %v5420
        %v5449 = vsel %vm1835, %v5420, %v5422
        %v5450 = vsel %vm1835, %v5422, %v5424
        %v5451 = vsel %vm1835, %v5426, %v5428
        %v5452 = vsel %vm1835, %v5428, %v5430
        %v5453 = vsel %vm1835, %v5430, %v5432
        %v5454 = vsel %vm1835, %v5432, %v5434
        %v5455 = vsel %vm1835, %v5434, %v5436
        %v5456 = vsel %vm1835, %v5436, %v5438
        %v5457 = vsel %vm1835, %v5438, %v5440
        %v5458 = vsel %vm1835, %v5440, %v5442
        %5493 = vrot.lane.b32.xlu0 %v5171, 126
        %v5494 = vpop.permute.xlu0 %5493
        %5495 = vrot.lane.b32.xlu0 %v5172, 126
        %v5496 = vpop.permute.xlu0 %5495
        %5497 = vrot.lane.b32.xlu0 %v5173, 126
        %v5498 = vpop.permute.xlu0 %5497
        %5499 = vrot.lane.b32.xlu0 %v5174, 126
        %v5500 = vpop.permute.xlu0 %5499
        %5501 = vrot.lane.b32.xlu0 %v5175, 126
        %v5502 = vpop.permute.xlu0 %5501
        %5503 = vrot.lane.b32.xlu0 %v5176, 126
        %v5504 = vpop.permute.xlu0 %5503
        %5505 = vrot.lane.b32.xlu0 %v5177, 126
        %v5506 = vpop.permute.xlu0 %5505
        %5507 = vrot.lane.b32.xlu0 %v5178, 126
        %v5508 = vpop.permute.xlu0 %5507
        %5509 = vrot.lane.b32.xlu0 %v5179, 126
        %v5510 = vpop.permute.xlu0 %5509
        %5511 = vrot.lane.b32.xlu0 %v5180, 126
        %v5512 = vpop.permute.xlu0 %5511
        %5513 = vrot.lane.b32.xlu0 %v5181, 126
        %v5514 = vpop.permute.xlu0 %5513
        %5515 = vrot.lane.b32.xlu0 %v5182, 126
        %v5516 = vpop.permute.xlu0 %5515
        %5517 = vrot.lane.b32.xlu0 %v5183, 126
        %v5518 = vpop.permute.xlu0 %5517
        %5519 = vrot.lane.b32.xlu0 %v5184, 126
        %v5520 = vpop.permute.xlu0 %5519
        %5521 = vrot.lane.b32.xlu0 %v5185, 126
        %v5522 = vpop.permute.xlu0 %5521
        %5523 = vrot.lane.b32.xlu0 %v5186, 126
        %v5524 = vpop.permute.xlu0 %5523
        %5525 = vrot.lane.b32.xlu0 %v5187, 126
        %v5526 = vpop.permute.xlu0 %5525
        %5527 = vrot.lane.b32.xlu0 %v5188, 126
        %v5528 = vpop.permute.xlu0 %5527
        %v5529 = vsel %vm1849, %v5494, %v5496
        %v5530 = vsel %vm1849, %v5496, %v5498
        %v5531 = vsel %vm1849, %v5498, %v5500
        %v5532 = vsel %vm1849, %v5500, %v5502
        %v5533 = vsel %vm1849, %v5502, %v5504
        %v5534 = vsel %vm1849, %v5504, %v5506
        %v5535 = vsel %vm1849, %v5506, %v5508
        %v5536 = vsel %vm1849, %v5508, %v5510
        %v5537 = vsel %vm1849, %v5512, %v5514
        %v5538 = vsel %vm1849, %v5514, %v5516
        %v5539 = vsel %vm1849, %v5516, %v5518
        %v5540 = vsel %vm1849, %v5518, %v5520
        %v5541 = vsel %vm1849, %v5520, %v5522
        %v5542 = vsel %vm1849, %v5522, %v5524
        %v5543 = vsel %vm1849, %v5524, %v5526
        %v5544 = vsel %vm1849, %v5526, %v5528
        %5579 = vrot.lane.b32.xlu0 %v5221, 96
        %v5580 = vpop.permute.xlu0 %5579
        %5581 = vrot.lane.b32.xlu0 %v5222, 96
        %v5582 = vpop.permute.xlu0 %5581
        %5583 = vrot.lane.b32.xlu0 %v5223, 96
        %v5584 = vpop.permute.xlu0 %5583
        %5585 = vrot.lane.b32.xlu0 %v5224, 96
        %v5586 = vpop.permute.xlu0 %5585
        %5587 = vrot.lane.b32.xlu0 %v5225, 96
        %v5588 = vpop.permute.xlu0 %5587
        %5589 = vrot.lane.b32.xlu0 %v5226, 96
        %v5590 = vpop.permute.xlu0 %5589
        %5591 = vrot.lane.b32.xlu0 %v5227, 96
        %v5592 = vpop.permute.xlu0 %5591
        %5593 = vrot.lane.b32.xlu0 %v5228, 96
        %v5594 = vpop.permute.xlu0 %5593
        %5595 = vrot.lane.b32.xlu0 %v5229, 96
        %v5596 = vpop.permute.xlu0 %5595
        %5597 = vrot.lane.b32.xlu0 %v5230, 96
        %v5598 = vpop.permute.xlu0 %5597
        %5599 = vrot.lane.b32.xlu0 %v5231, 96
        %v5600 = vpop.permute.xlu0 %5599
        %5601 = vrot.lane.b32.xlu0 %v5232, 96
        %v5602 = vpop.permute.xlu0 %5601
        %5603 = vrot.lane.b32.xlu0 %v5233, 96
        %v5604 = vpop.permute.xlu0 %5603
        %5605 = vrot.lane.b32.xlu0 %v5234, 96
        %v5606 = vpop.permute.xlu0 %5605
        %5607 = vrot.lane.b32.xlu0 %v5235, 96
        %v5608 = vpop.permute.xlu0 %5607
        %5609 = vrot.lane.b32.xlu0 %v5236, 96
        %v5610 = vpop.permute.xlu0 %5609
        %5611 = vrot.lane.b32.xlu0 %v5237, 96
        %v5612 = vpop.permute.xlu0 %5611
        %5613 = vrot.lane.b32.xlu0 %v5238, 96
        %v5614 = vpop.permute.xlu0 %5613
        %v5615 = vsel %vm1902, %v5580, %v5582
        %v5616 = vsel %vm1902, %v5582, %v5584
        %v5617 = vsel %vm1902, %v5584, %v5586
        %v5618 = vsel %vm1902, %v5586, %v5588
        %v5619 = vsel %vm1902, %v5588, %v5590
        %v5620 = vsel %vm1902, %v5590, %v5592
        %v5621 = vsel %vm1902, %v5592, %v5594
        %v5622 = vsel %vm1902, %v5594, %v5596
        %v5623 = vsel %vm1902, %v5598, %v5600
        %v5624 = vsel %vm1902, %v5600, %v5602
        %v5625 = vsel %vm1902, %v5602, %v5604
        %v5626 = vsel %vm1902, %v5604, %v5606
        %v5627 = vsel %vm1902, %v5606, %v5608
        %v5628 = vsel %vm1902, %v5608, %v5610
        %v5629 = vsel %vm1902, %v5610, %v5612
        %v5630 = vsel %vm1902, %v5612, %v5614
        %5647 = vrot.lane.b32.xlu0 %v5079, 95
        %v5648 = vpop.permute.xlu0 %5647
        %5649 = vrot.lane.b32.xlu0 %v5080, 95
        %v5650 = vpop.permute.xlu0 %5649
        %5651 = vrot.lane.b32.xlu0 %v5081, 95
        %v5652 = vpop.permute.xlu0 %5651
        %5653 = vrot.lane.b32.xlu0 %v5082, 95
        %v5654 = vpop.permute.xlu0 %5653
        %5655 = vrot.lane.b32.xlu0 %v5083, 95
        %v5656 = vpop.permute.xlu0 %5655
        %5657 = vrot.lane.b32.xlu0 %v5084, 95
        %v5658 = vpop.permute.xlu0 %5657
        %5659 = vrot.lane.b32.xlu0 %v5085, 95
        %v5660 = vpop.permute.xlu0 %5659
        %5661 = vrot.lane.b32.xlu0 %v5086, 95
        %v5662 = vpop.permute.xlu0 %5661
        %5663 = vrot.lane.b32.xlu0 %v5128, 95
        %v5664 = vpop.permute.xlu0 %5663
        %5665 = vrot.lane.b32.xlu0 %v5087, 95
        %v5666 = vpop.permute.xlu0 %5665
        %5667 = vrot.lane.b32.xlu0 %v5088, 95
        %v5668 = vpop.permute.xlu0 %5667
        %5669 = vrot.lane.b32.xlu0 %v5089, 95
        %v5670 = vpop.permute.xlu0 %5669
        %5671 = vrot.lane.b32.xlu0 %v5090, 95
        %v5672 = vpop.permute.xlu0 %5671
        %5673 = vrot.lane.b32.xlu0 %v5091, 95
        %v5674 = vpop.permute.xlu0 %5673
        %5675 = vrot.lane.b32.xlu0 %v5092, 95
        %v5676 = vpop.permute.xlu0 %5675
        %5677 = vrot.lane.b32.xlu0 %v5093, 95
        %v5678 = vpop.permute.xlu0 %5677
        %5679 = vrot.lane.b32.xlu0 %v5094, 95
        %v5680 = vpop.permute.xlu0 %5679
        %5681 = vrot.lane.b32.xlu0 %v5129, 95
        %v5682 = vpop.permute.xlu0 %5681
        %v5683 = vsel %vm1913, %v5648, %v5650
        %v5684 = vsel %vm1913, %v5650, %v5652
        %v5685 = vsel %vm1913, %v5652, %v5654
        %v5686 = vsel %vm1913, %v5654, %v5656
        %v5687 = vsel %vm1913, %v5656, %v5658
        %v5688 = vsel %vm1913, %v5658, %v5660
        %v5689 = vsel %vm1913, %v5660, %v5662
        %v5690 = vsel %vm1913, %v5662, %v5664
        %v5691 = vsel %vm1913, %v5666, %v5668
        %v5692 = vsel %vm1913, %v5668, %v5670
        %v5693 = vsel %vm1913, %v5670, %v5672
        %v5694 = vsel %vm1913, %v5672, %v5674
        %v5695 = vsel %vm1913, %v5674, %v5676
        %v5696 = vsel %vm1913, %v5676, %v5678
        %v5697 = vsel %vm1913, %v5678, %v5680
        %v5698 = vsel %vm1913, %v5680, %v5682
        %5733 = vrot.lane.b32.xlu0 %v5271, 94
        %v5734 = vpop.permute.xlu0 %5733
        %5735 = vrot.lane.b32.xlu0 %v5272, 94
        %v5736 = vpop.permute.xlu0 %5735
        %5737 = vrot.lane.b32.xlu0 %v5273, 94
        %v5738 = vpop.permute.xlu0 %5737
        %5739 = vrot.lane.b32.xlu0 %v5274, 94
        %v5740 = vpop.permute.xlu0 %5739
        %5741 = vrot.lane.b32.xlu0 %v5275, 94
        %v5742 = vpop.permute.xlu0 %5741
        %5743 = vrot.lane.b32.xlu0 %v5276, 94
        %v5744 = vpop.permute.xlu0 %5743
        %5745 = vrot.lane.b32.xlu0 %v5277, 94
        %v5746 = vpop.permute.xlu0 %5745
        %5747 = vrot.lane.b32.xlu0 %v5278, 94
        %v5748 = vpop.permute.xlu0 %5747
        %5749 = vrot.lane.b32.xlu0 %v5279, 94
        %v5750 = vpop.permute.xlu0 %5749
        %5751 = vrot.lane.b32.xlu0 %v5280, 94
        %v5752 = vpop.permute.xlu0 %5751
        %5753 = vrot.lane.b32.xlu0 %v5281, 94
        %v5754 = vpop.permute.xlu0 %5753
        %5755 = vrot.lane.b32.xlu0 %v5282, 94
        %v5756 = vpop.permute.xlu0 %5755
        %5757 = vrot.lane.b32.xlu0 %v5283, 94
        %v5758 = vpop.permute.xlu0 %5757
        %5759 = vrot.lane.b32.xlu0 %v5284, 94
        %v5760 = vpop.permute.xlu0 %5759
        %5761 = vrot.lane.b32.xlu0 %v5285, 94
        %v5762 = vpop.permute.xlu0 %5761
        %5763 = vrot.lane.b32.xlu0 %v5286, 94
        %v5764 = vpop.permute.xlu0 %5763
        %5765 = vrot.lane.b32.xlu0 %v5287, 94
        %v5766 = vpop.permute.xlu0 %5765
        %5767 = vrot.lane.b32.xlu0 %v5288, 94
        %v5768 = vpop.permute.xlu0 %5767
        %v5769 = vsel %vm1927, %v5734, %v5736
        %v5770 = vsel %vm1927, %v5736, %v5738
        %v5771 = vsel %vm1927, %v5738, %v5740
        %v5772 = vsel %vm1927, %v5740, %v5742
        %v5773 = vsel %vm1927, %v5742, %v5744
        %v5774 = vsel %vm1927, %v5744, %v5746
        %v5775 = vsel %vm1927, %v5746, %v5748
        %v5776 = vsel %vm1927, %v5748, %v5750
        %v5777 = vsel %vm1927, %v5752, %v5754
        %v5778 = vsel %vm1927, %v5754, %v5756
        %v5779 = vsel %vm1927, %v5756, %v5758
        %v5780 = vsel %vm1927, %v5758, %v5760
        %v5781 = vsel %vm1927, %v5760, %v5762
        %v5782 = vsel %vm1927, %v5762, %v5764
        %v5783 = vsel %vm1927, %v5764, %v5766
        %v5784 = vsel %vm1927, %v5766, %v5768
        %5819 = vrot.lane.b32.xlu0 %v5321, 64
        %v5820 = vpop.permute.xlu0 %5819
        %5821 = vrot.lane.b32.xlu0 %v5322, 64
        %v5822 = vpop.permute.xlu0 %5821
        %5823 = vrot.lane.b32.xlu0 %v5323, 64
        %v5824 = vpop.permute.xlu0 %5823
        %5825 = vrot.lane.b32.xlu0 %v5324, 64
        %v5826 = vpop.permute.xlu0 %5825
        %5827 = vrot.lane.b32.xlu0 %v5325, 64
        %v5828 = vpop.permute.xlu0 %5827
        %5829 = vrot.lane.b32.xlu0 %v5326, 64
        %v5830 = vpop.permute.xlu0 %5829
        %5831 = vrot.lane.b32.xlu0 %v5327, 64
        %v5832 = vpop.permute.xlu0 %5831
        %5833 = vrot.lane.b32.xlu0 %v5328, 64
        %v5834 = vpop.permute.xlu0 %5833
        %5835 = vrot.lane.b32.xlu0 %v5329, 64
        %v5836 = vpop.permute.xlu0 %5835
        %5837 = vrot.lane.b32.xlu0 %v5330, 64
        %v5838 = vpop.permute.xlu0 %5837
        %5839 = vrot.lane.b32.xlu0 %v5331, 64
        %v5840 = vpop.permute.xlu0 %5839
        %5841 = vrot.lane.b32.xlu0 %v5332, 64
        %v5842 = vpop.permute.xlu0 %5841
        %5843 = vrot.lane.b32.xlu0 %v5333, 64
        %v5844 = vpop.permute.xlu0 %5843
        %5845 = vrot.lane.b32.xlu0 %v5334, 64
        %v5846 = vpop.permute.xlu0 %5845
        %5847 = vrot.lane.b32.xlu0 %v5335, 64
        %v5848 = vpop.permute.xlu0 %5847
        %5849 = vrot.lane.b32.xlu0 %v5336, 64
        %v5850 = vpop.permute.xlu0 %5849
        %5851 = vrot.lane.b32.xlu0 %v5337, 64
        %v5852 = vpop.permute.xlu0 %5851
        %5853 = vrot.lane.b32.xlu0 %v5338, 64
        %v5854 = vpop.permute.xlu0 %5853
        %v5855 = vsel %vm792, %v5820, %v5822
        %v5856 = vsel %vm792, %v5822, %v5824
        %v5857 = vsel %vm792, %v5824, %v5826
        %v5858 = vsel %vm792, %v5826, %v5828
        %v5859 = vsel %vm792, %v5828, %v5830
        %v5860 = vsel %vm792, %v5830, %v5832
        %v5861 = vsel %vm792, %v5832, %v5834
        %v5862 = vsel %vm792, %v5834, %v5836
        %v5863 = vsel %vm792, %v5838, %v5840
        %v5864 = vsel %vm792, %v5840, %v5842
        %v5865 = vsel %vm792, %v5842, %v5844
        %v5866 = vsel %vm792, %v5844, %v5846
        %v5867 = vsel %vm792, %v5846, %v5848
        %v5868 = vsel %vm792, %v5848, %v5850
        %v5869 = vsel %vm792, %v5850, %v5852
        %v5870 = vsel %vm792, %v5852, %v5854
        %5887 = vrot.lane.b32.xlu0 %v5079, 63
        %v5888 = vpop.permute.xlu0 %5887
        %5889 = vrot.lane.b32.xlu0 %v5080, 63
        %v5890 = vpop.permute.xlu0 %5889
        %5891 = vrot.lane.b32.xlu0 %v5081, 63
        %v5892 = vpop.permute.xlu0 %5891
        %5893 = vrot.lane.b32.xlu0 %v5082, 63
        %v5894 = vpop.permute.xlu0 %5893
        %5895 = vrot.lane.b32.xlu0 %v5083, 63
        %v5896 = vpop.permute.xlu0 %5895
        %5897 = vrot.lane.b32.xlu0 %v5084, 63
        %v5898 = vpop.permute.xlu0 %5897
        %5899 = vrot.lane.b32.xlu0 %v5085, 63
        %v5900 = vpop.permute.xlu0 %5899
        %5901 = vrot.lane.b32.xlu0 %v5086, 63
        %v5902 = vpop.permute.xlu0 %5901
        %5903 = vrot.lane.b32.xlu0 %v5128, 63
        %v5904 = vpop.permute.xlu0 %5903
        %5905 = vrot.lane.b32.xlu0 %v5087, 63
        %v5906 = vpop.permute.xlu0 %5905
        %5907 = vrot.lane.b32.xlu0 %v5088, 63
        %v5908 = vpop.permute.xlu0 %5907
        %5909 = vrot.lane.b32.xlu0 %v5089, 63
        %v5910 = vpop.permute.xlu0 %5909
        %5911 = vrot.lane.b32.xlu0 %v5090, 63
        %v5912 = vpop.permute.xlu0 %5911
        %5913 = vrot.lane.b32.xlu0 %v5091, 63
        %v5914 = vpop.permute.xlu0 %5913
        %5915 = vrot.lane.b32.xlu0 %v5092, 63
        %v5916 = vpop.permute.xlu0 %5915
        %5917 = vrot.lane.b32.xlu0 %v5093, 63
        %v5918 = vpop.permute.xlu0 %5917
        %5919 = vrot.lane.b32.xlu0 %v5094, 63
        %v5920 = vpop.permute.xlu0 %5919
        %5921 = vrot.lane.b32.xlu0 %v5129, 63
        %v5922 = vpop.permute.xlu0 %5921
        %v5923 = vsel %vm2568, %v5888, %v5890
        %v5924 = vsel %vm2568, %v5890, %v5892
        %v5925 = vsel %vm2568, %v5892, %v5894
        %v5926 = vsel %vm2568, %v5894, %v5896
        %v5927 = vsel %vm2568, %v5896, %v5898
        %v5928 = vsel %vm2568, %v5898, %v5900
        %v5929 = vsel %vm2568, %v5900, %v5902
        %v5930 = vsel %vm2568, %v5902, %v5904
        %v5931 = vsel %vm2568, %v5906, %v5908
        %v5932 = vsel %vm2568, %v5908, %v5910
        %v5933 = vsel %vm2568, %v5910, %v5912
        %v5934 = vsel %vm2568, %v5912, %v5914
        %v5935 = vsel %vm2568, %v5914, %v5916
        %v5936 = vsel %vm2568, %v5916, %v5918
        %v5937 = vsel %vm2568, %v5918, %v5920
        %v5938 = vsel %vm2568, %v5920, %v5922
        %5973 = vrot.lane.b32.xlu0 %v5371, 62
        %v5974 = vpop.permute.xlu0 %5973
        %5975 = vrot.lane.b32.xlu0 %v5372, 62
        %v5976 = vpop.permute.xlu0 %5975
        %5977 = vrot.lane.b32.xlu0 %v5373, 62
        %v5978 = vpop.permute.xlu0 %5977
        %5979 = vrot.lane.b32.xlu0 %v5374, 62
        %v5980 = vpop.permute.xlu0 %5979
        %5981 = vrot.lane.b32.xlu0 %v5375, 62
        %v5982 = vpop.permute.xlu0 %5981
        %5983 = vrot.lane.b32.xlu0 %v5376, 62
        %v5984 = vpop.permute.xlu0 %5983
        %5985 = vrot.lane.b32.xlu0 %v5377, 62
        %v5986 = vpop.permute.xlu0 %5985
        %5987 = vrot.lane.b32.xlu0 %v5378, 62
        %v5988 = vpop.permute.xlu0 %5987
        %5989 = vrot.lane.b32.xlu0 %v5379, 62
        %v5990 = vpop.permute.xlu0 %5989
        %5991 = vrot.lane.b32.xlu0 %v5380, 62
        %v5992 = vpop.permute.xlu0 %5991
        %5993 = vrot.lane.b32.xlu0 %v5381, 62
        %v5994 = vpop.permute.xlu0 %5993
        %5995 = vrot.lane.b32.xlu0 %v5382, 62
        %v5996 = vpop.permute.xlu0 %5995
        %5997 = vrot.lane.b32.xlu0 %v5383, 62
        %v5998 = vpop.permute.xlu0 %5997
        %5999 = vrot.lane.b32.xlu0 %v5384, 62
        %v6000 = vpop.permute.xlu0 %5999
        %6001 = vrot.lane.b32.xlu0 %v5385, 62
        %v6002 = vpop.permute.xlu0 %6001
        %6003 = vrot.lane.b32.xlu0 %v5386, 62
        %v6004 = vpop.permute.xlu0 %6003
        %6005 = vrot.lane.b32.xlu0 %v5387, 62
        %v6006 = vpop.permute.xlu0 %6005
        %6007 = vrot.lane.b32.xlu0 %v5388, 62
        %v6008 = vpop.permute.xlu0 %6007
        %v6009 = vsel %vm2612, %v5974, %v5976
        %v6010 = vsel %vm2612, %v5976, %v5978
        %v6011 = vsel %vm2612, %v5978, %v5980
        %v6012 = vsel %vm2612, %v5980, %v5982
        %v6013 = vsel %vm2612, %v5982, %v5984
        %v6014 = vsel %vm2612, %v5984, %v5986
        %v6015 = vsel %vm2612, %v5986, %v5988
        %v6016 = vsel %vm2612, %v5988, %v5990
        %v6017 = vsel %vm2612, %v5992, %v5994
        %v6018 = vsel %vm2612, %v5994, %v5996
        %v6019 = vsel %vm2612, %v5996, %v5998
        %v6020 = vsel %vm2612, %v5998, %v6000
        %v6021 = vsel %vm2612, %v6000, %v6002
        %v6022 = vsel %vm2612, %v6002, %v6004
        %v6023 = vsel %vm2612, %v6004, %v6006
        %v6024 = vsel %vm2612, %v6006, %v6008
        %v6041 = vld [vmem:[%s15] sm:$0xff]
        %v6042 = vld [vmem:[%s15 + $0x8] sm:$0xff]
        %v6043 = vld [vmem:[%s15 + $0x10] sm:$0xff]
        %v6044 = vld [vmem:[%s15 + $0x18] sm:$0xff]
        %v6046 = vsel %vm1782, %v6042, 0
        %v6049 = vsel %vm1782, %v6044, 0
        %6051 = vmatpush.msra.mxu0 %v5931
        %6052 = vmatpush.msra.mxu0 %v5923
        %6053 = vmatpush.msra.mxu0 %v5863
        %6054 = vmatpush.msra.mxu0 %v5855
        %6055 = vmatpush.msra.mxu0 %v5777
        %6056 = vmatpush.msra.mxu0 %v5769
        %6057 = vmatpush.msra.mxu0 %v5691
        %6058 = vmatpush.msra.mxu0 %v5683
        %6059 = vmatpush.msra.mxu0 %v5623
        %6060 = vmatpush.msra.mxu0 %v5615
        %6061 = vmatpush.msra.mxu0 %v5537
        %6062 = vmatpush.msra.mxu0 %v5529
        %6063 = vmatpush.msra.mxu0 %v5451
        %6064 = vmatpush.msra.mxu0 %v5443
        %6065 = vmatpush.msra.mxu0 %v5120
        %6066 = vmatpush.msra.mxu0 %v5112
        %6067 = vmatmul.f32.gmra.mxu0 %v6041
        %v6068 = vpop.f32.mrf.mxu0
        %v6069 = vadd.f32 0.0, %v6068
        %6070 = vmatmul.f32.gmra.mxu0 %v6043
        %v6071 = vpop.f32.mrf.mxu0
        %v6072 = vadd.f32 0.0, %v6071
        %6073 = vdwg.mxu0
        %6074 = vmatpush.msra.mxu0 0.0
        %6075 = vmatpush.msra.mxu0 0.0
        %6076 = vmatpush.msra.mxu0 0.0
        %6077 = vmatpush.msra.mxu0 0.0
        %6078 = vmatpush.msra.mxu0 0.0
        %6079 = vmatpush.msra.mxu0 0.0
        %6080 = vmatpush.msra.mxu0 0.0
        %6081 = vmatpush.msra.mxu0 0.0
        %6082 = vmatpush.msra.mxu0 0.0
        %6083 = vmatpush.msra.mxu0 0.0
        %6084 = vmatpush.msra.mxu0 0.0
        %6085 = vmatpush.msra.mxu0 0.0
        %6086 = vmatpush.msra.mxu0 0.0
        %6087 = vmatpush.msra.mxu0 0.0
        %6088 = vmatpush.msra.mxu0 %v6017
        %6089 = vmatpush.msra.mxu0 %v6009
        %6090 = vmatmul.f32.gmra.mxu0 %v6046
        %v6091 = vpop.f32.mrf.mxu0
        %v6092 = vadd.f32 %v6069, %v6091
        %6093 = vmatmul.f32.gmra.mxu0 %v6049
        %v6094 = vpop.f32.mrf.mxu0
        %v6095 = vadd.f32 %v6072, %v6094
        %6096 = vdwg.mxu0
        %6097 = vmatpush.msra.mxu0 %v5932
        %6098 = vmatpush.msra.mxu0 %v5924
        %6099 = vmatpush.msra.mxu0 %v5864
        %6100 = vmatpush.msra.mxu0 %v5856
        %6101 = vmatpush.msra.mxu0 %v5778
        %6102 = vmatpush.msra.mxu0 %v5770
        %6103 = vmatpush.msra.mxu0 %v5692
        %6104 = vmatpush.msra.mxu0 %v5684
        %6105 = vmatpush.msra.mxu0 %v5624
        %6106 = vmatpush.msra.mxu0 %v5616
        %6107 = vmatpush.msra.mxu0 %v5538
        %6108 = vmatpush.msra.mxu0 %v5530
        %6109 = vmatpush.msra.mxu0 %v5452
        %6110 = vmatpush.msra.mxu0 %v5444
        %6111 = vmatpush.msra.mxu0 %v5121
        %6112 = vmatpush.msra.mxu0 %v5113
        %6113 = vmatmul.f32.gmra.mxu0 %v6041
        %v6114 = vpop.f32.mrf.mxu0
        %v6115 = vadd.f32 0.0, %v6114
        %6116 = vmatmul.f32.gmra.mxu0 %v6043
        %v6117 = vpop.f32.mrf.mxu0
        %v6118 = vadd.f32 0.0, %v6117
        %6119 = vdwg.mxu0
        %6120 = vmatpush.msra.mxu0 0.0
        %6121 = vmatpush.msra.mxu0 0.0
        %6122 = vmatpush.msra.mxu0 0.0
        %6123 = vmatpush.msra.mxu0 0.0
        %6124 = vmatpush.msra.mxu0 0.0
        %6125 = vmatpush.msra.mxu0 0.0
        %6126 = vmatpush.msra.mxu0 0.0
        %6127 = vmatpush.msra.mxu0 0.0
        %6128 = vmatpush.msra.mxu0 0.0
        %6129 = vmatpush.msra.mxu0 0.0
        %6130 = vmatpush.msra.mxu0 0.0
        %6131 = vmatpush.msra.mxu0 0.0
        %6132 = vmatpush.msra.mxu0 0.0
        %6133 = vmatpush.msra.mxu0 0.0
        %6134 = vmatpush.msra.mxu0 %v6018
        %6135 = vmatpush.msra.mxu0 %v6010
        %6136 = vmatmul.f32.gmra.mxu0 %v6046
        %v6137 = vpop.f32.mrf.mxu0
        %v6138 = vadd.f32 %v6115, %v6137
        %6139 = vmatmul.f32.gmra.mxu0 %v6049
        %v6140 = vpop.f32.mrf.mxu0
        %v6141 = vadd.f32 %v6118, %v6140
        %6142 = vdwg.mxu0
        %6143 = vmatpush.msra.mxu0 %v5933
        %6144 = vmatpush.msra.mxu0 %v5925
        %6145 = vmatpush.msra.mxu0 %v5865
        %6146 = vmatpush.msra.mxu0 %v5857
        %6147 = vmatpush.msra.mxu0 %v5779
        %6148 = vmatpush.msra.mxu0 %v5771
        %6149 = vmatpush.msra.mxu0 %v5693
        %6150 = vmatpush.msra.mxu0 %v5685
        %6151 = vmatpush.msra.mxu0 %v5625
        %6152 = vmatpush.msra.mxu0 %v5617
        %6153 = vmatpush.msra.mxu0 %v5539
        %6154 = vmatpush.msra.mxu0 %v5531
        %6155 = vmatpush.msra.mxu0 %v5453
        %6156 = vmatpush.msra.mxu0 %v5445
        %6157 = vmatpush.msra.mxu0 %v5122
        %6158 = vmatpush.msra.mxu0 %v5114
        %6159 = vmatmul.f32.gmra.mxu0 %v6041
        %v6160 = vpop.f32.mrf.mxu0
        %v6161 = vadd.f32 0.0, %v6160
        %6162 = vmatmul.f32.gmra.mxu0 %v6043
        %v6163 = vpop.f32.mrf.mxu0
        %v6164 = vadd.f32 0.0, %v6163
        %6165 = vdwg.mxu0
        %6166 = vmatpush.msra.mxu0 0.0
        %6167 = vmatpush.msra.mxu0 0.0
        %6168 = vmatpush.msra.mxu0 0.0
        %6169 = vmatpush.msra.mxu0 0.0
        %6170 = vmatpush.msra.mxu0 0.0
        %6171 = vmatpush.msra.mxu0 0.0
        %6172 = vmatpush.msra.mxu0 0.0
        %6173 = vmatpush.msra.mxu0 0.0
        %6174 = vmatpush.msra.mxu0 0.0
        %6175 = vmatpush.msra.mxu0 0.0
        %6176 = vmatpush.msra.mxu0 0.0
        %6177 = vmatpush.msra.mxu0 0.0
        %6178 = vmatpush.msra.mxu0 0.0
        %6179 = vmatpush.msra.mxu0 0.0
        %6180 = vmatpush.msra.mxu0 %v6019
        %6181 = vmatpush.msra.mxu0 %v6011
        %6182 = vmatmul.f32.gmra.mxu0 %v6046
        %v6183 = vpop.f32.mrf.mxu0
        %v6184 = vadd.f32 %v6161, %v6183
        %6185 = vmatmul.f32.gmra.mxu0 %v6049
        %v6186 = vpop.f32.mrf.mxu0
        %v6187 = vadd.f32 %v6164, %v6186
        %6188 = vdwg.mxu0
        %6189 = vmatpush.msra.mxu0 %v5934
        %6190 = vmatpush.msra.mxu0 %v5926
        %6191 = vmatpush.msra.mxu0 %v5866
        %6192 = vmatpush.msra.mxu0 %v5858
        %6193 = vmatpush.msra.mxu0 %v5780
        %6194 = vmatpush.msra.mxu0 %v5772
        %6195 = vmatpush.msra.mxu0 %v5694
        %6196 = vmatpush.msra.mxu0 %v5686
        %6197 = vmatpush.msra.mxu0 %v5626
        %6198 = vmatpush.msra.mxu0 %v5618
        %6199 = vmatpush.msra.mxu0 %v5540
        %6200 = vmatpush.msra.mxu0 %v5532
        %6201 = vmatpush.msra.mxu0 %v5454
        %6202 = vmatpush.msra.mxu0 %v5446
        %6203 = vmatpush.msra.mxu0 %v5123
        %6204 = vmatpush.msra.mxu0 %v5115
        %6205 = vmatmul.f32.gmra.mxu0 %v6041
        %v6206 = vpop.f32.mrf.mxu0
        %v6207 = vadd.f32 0.0, %v6206
        %6208 = vmatmul.f32.gmra.mxu0 %v6043
        %v6209 = vpop.f32.mrf.mxu0
        %v6210 = vadd.f32 0.0, %v6209
        %6211 = vdwg.mxu0
        %6212 = vmatpush.msra.mxu0 0.0
        %6213 = vmatpush.msra.mxu0 0.0
        %6214 = vmatpush.msra.mxu0 0.0
        %6215 = vmatpush.msra.mxu0 0.0
        %6216 = vmatpush.msra.mxu0 0.0
        %6217 = vmatpush.msra.mxu0 0.0
        %6218 = vmatpush.msra.mxu0 0.0
        %6219 = vmatpush.msra.mxu0 0.0
        %6220 = vmatpush.msra.mxu0 0.0
        %6221 = vmatpush.msra.mxu0 0.0
        %6222 = vmatpush.msra.mxu0 0.0
        %6223 = vmatpush.msra.mxu0 0.0
        %6224 = vmatpush.msra.mxu0 0.0
        %6225 = vmatpush.msra.mxu0 0.0
        %6226 = vmatpush.msra.mxu0 %v6020
        %6227 = vmatpush.msra.mxu0 %v6012
        %6228 = vmatmul.f32.gmra.mxu0 %v6046
        %v6229 = vpop.f32.mrf.mxu0
        %v6230 = vadd.f32 %v6207, %v6229
        %6231 = vmatmul.f32.gmra.mxu0 %v6049
        %v6232 = vpop.f32.mrf.mxu0
        %v6233 = vadd.f32 %v6210, %v6232
        %6234 = vdwg.mxu0
        %6235 = vmatpush.msra.mxu0 %v5935
        %6236 = vmatpush.msra.mxu0 %v5927
        %6237 = vmatpush.msra.mxu0 %v5867
        %6238 = vmatpush.msra.mxu0 %v5859
        %6239 = vmatpush.msra.mxu0 %v5781
        %6240 = vmatpush.msra.mxu0 %v5773
        %6241 = vmatpush.msra.mxu0 %v5695
        %6242 = vmatpush.msra.mxu0 %v5687
        %6243 = vmatpush.msra.mxu0 %v5627
        %6244 = vmatpush.msra.mxu0 %v5619
        %6245 = vmatpush.msra.mxu0 %v5541
        %6246 = vmatpush.msra.mxu0 %v5533
        %6247 = vmatpush.msra.mxu0 %v5455
        %6248 = vmatpush.msra.mxu0 %v5447
        %6249 = vmatpush.msra.mxu0 %v5124
        %6250 = vmatpush.msra.mxu0 %v5116
        %6251 = vmatmul.f32.gmra.mxu0 %v6041
        %v6252 = vpop.f32.mrf.mxu0
        %v6253 = vadd.f32 0.0, %v6252
        %6254 = vmatmul.f32.gmra.mxu0 %v6043
        %v6255 = vpop.f32.mrf.mxu0
        %v6256 = vadd.f32 0.0, %v6255
        %6257 = vdwg.mxu0
        %6258 = vmatpush.msra.mxu0 0.0
        %6259 = vmatpush.msra.mxu0 0.0
        %6260 = vmatpush.msra.mxu0 0.0
        %6261 = vmatpush.msra.mxu0 0.0
        %6262 = vmatpush.msra.mxu0 0.0
        %6263 = vmatpush.msra.mxu0 0.0
        %6264 = vmatpush.msra.mxu0 0.0
        %6265 = vmatpush.msra.mxu0 0.0
        %6266 = vmatpush.msra.mxu0 0.0
        %6267 = vmatpush.msra.mxu0 0.0
        %6268 = vmatpush.msra.mxu0 0.0
        %6269 = vmatpush.msra.mxu0 0.0
        %6270 = vmatpush.msra.mxu0 0.0
        %6271 = vmatpush.msra.mxu0 0.0
        %6272 = vmatpush.msra.mxu0 %v6021
        %6273 = vmatpush.msra.mxu0 %v6013
        %6274 = vmatmul.f32.gmra.mxu0 %v6046
        %v6275 = vpop.f32.mrf.mxu0
        %v6276 = vadd.f32 %v6253, %v6275
        %6277 = vmatmul.f32.gmra.mxu0 %v6049
        %v6278 = vpop.f32.mrf.mxu0
        %v6279 = vadd.f32 %v6256, %v6278
        %6280 = vdwg.mxu0
        %6281 = vmatpush.msra.mxu0 %v5936
        %6282 = vmatpush.msra.mxu0 %v5928
        %6283 = vmatpush.msra.mxu0 %v5868
        %6284 = vmatpush.msra.mxu0 %v5860
        %6285 = vmatpush.msra.mxu0 %v5782
        %6286 = vmatpush.msra.mxu0 %v5774
        %6287 = vmatpush.msra.mxu0 %v5696
        %6288 = vmatpush.msra.mxu0 %v5688
        %6289 = vmatpush.msra.mxu0 %v5628
        %6290 = vmatpush.msra.mxu0 %v5620
        %6291 = vmatpush.msra.mxu0 %v5542
        %6292 = vmatpush.msra.mxu0 %v5534
        %6293 = vmatpush.msra.mxu0 %v5456
        %6294 = vmatpush.msra.mxu0 %v5448
        %6295 = vmatpush.msra.mxu0 %v5125
        %6296 = vmatpush.msra.mxu0 %v5117
        %6297 = vmatmul.f32.gmra.mxu0 %v6041
        %v6298 = vpop.f32.mrf.mxu0
        %v6299 = vadd.f32 0.0, %v6298
        %6300 = vmatmul.f32.gmra.mxu0 %v6043
        %v6301 = vpop.f32.mrf.mxu0
        %v6302 = vadd.f32 0.0, %v6301
        %6303 = vdwg.mxu0
        %6304 = vmatpush.msra.mxu0 0.0
        %6305 = vmatpush.msra.mxu0 0.0
        %6306 = vmatpush.msra.mxu0 0.0
        %6307 = vmatpush.msra.mxu0 0.0
        %6308 = vmatpush.msra.mxu0 0.0
        %6309 = vmatpush.msra.mxu0 0.0
        %6310 = vmatpush.msra.mxu0 0.0
        %6311 = vmatpush.msra.mxu0 0.0
        %6312 = vmatpush.msra.mxu0 0.0
        %6313 = vmatpush.msra.mxu0 0.0
        %6314 = vmatpush.msra.mxu0 0.0
        %6315 = vmatpush.msra.mxu0 0.0
        %6316 = vmatpush.msra.mxu0 0.0
        %6317 = vmatpush.msra.mxu0 0.0
        %6318 = vmatpush.msra.mxu0 %v6022
        %6319 = vmatpush.msra.mxu0 %v6014
        %6320 = vmatmul.f32.gmra.mxu0 %v6046
        %v6321 = vpop.f32.mrf.mxu0
        %v6322 = vadd.f32 %v6299, %v6321
        %6323 = vmatmul.f32.gmra.mxu0 %v6049
        %v6324 = vpop.f32.mrf.mxu0
        %v6325 = vadd.f32 %v6302, %v6324
        %6326 = vdwg.mxu0
        %6327 = vmatpush.msra.mxu0 %v5937
        %6328 = vmatpush.msra.mxu0 %v5929
        %6329 = vmatpush.msra.mxu0 %v5869
        %6330 = vmatpush.msra.mxu0 %v5861
        %6331 = vmatpush.msra.mxu0 %v5783
        %6332 = vmatpush.msra.mxu0 %v5775
        %6333 = vmatpush.msra.mxu0 %v5697
        %6334 = vmatpush.msra.mxu0 %v5689
        %6335 = vmatpush.msra.mxu0 %v5629
        %6336 = vmatpush.msra.mxu0 %v5621
        %6337 = vmatpush.msra.mxu0 %v5543
        %6338 = vmatpush.msra.mxu0 %v5535
        %6339 = vmatpush.msra.mxu0 %v5457
        %6340 = vmatpush.msra.mxu0 %v5449
        %6341 = vmatpush.msra.mxu0 %v5126
        %6342 = vmatpush.msra.mxu0 %v5118
        %6343 = vmatmul.f32.gmra.mxu0 %v6041
        %v6344 = vpop.f32.mrf.mxu0
        %v6345 = vadd.f32 0.0, %v6344
        %6346 = vmatmul.f32.gmra.mxu0 %v6043
        %v6347 = vpop.f32.mrf.mxu0
        %v6348 = vadd.f32 0.0, %v6347
        %6349 = vdwg.mxu0
        %6350 = vmatpush.msra.mxu0 0.0
        %6351 = vmatpush.msra.mxu0 0.0
        %6352 = vmatpush.msra.mxu0 0.0
        %6353 = vmatpush.msra.mxu0 0.0
        %6354 = vmatpush.msra.mxu0 0.0
        %6355 = vmatpush.msra.mxu0 0.0
        %6356 = vmatpush.msra.mxu0 0.0
        %6357 = vmatpush.msra.mxu0 0.0
        %6358 = vmatpush.msra.mxu0 0.0
        %6359 = vmatpush.msra.mxu0 0.0
        %6360 = vmatpush.msra.mxu0 0.0
        %6361 = vmatpush.msra.mxu0 0.0
        %6362 = vmatpush.msra.mxu0 0.0
        %6363 = vmatpush.msra.mxu0 0.0
        %6364 = vmatpush.msra.mxu0 %v6023
        %6365 = vmatpush.msra.mxu0 %v6015
        %6366 = vmatmul.f32.gmra.mxu0 %v6046
        %v6367 = vpop.f32.mrf.mxu0
        %v6368 = vadd.f32 %v6345, %v6367
        %6369 = vmatmul.f32.gmra.mxu0 %v6049
        %v6370 = vpop.f32.mrf.mxu0
        %v6371 = vadd.f32 %v6348, %v6370
        %6372 = vdwg.mxu0
        %6373 = vmatpush.msra.mxu0 %v5938
        %6374 = vmatpush.msra.mxu0 %v5930
        %6375 = vmatpush.msra.mxu0 %v5870
        %6376 = vmatpush.msra.mxu0 %v5862
        %6377 = vmatpush.msra.mxu0 %v5784
        %6378 = vmatpush.msra.mxu0 %v5776
        %6379 = vmatpush.msra.mxu0 %v5698
        %6380 = vmatpush.msra.mxu0 %v5690
        %6381 = vmatpush.msra.mxu0 %v5630
        %6382 = vmatpush.msra.mxu0 %v5622
        %6383 = vmatpush.msra.mxu0 %v5544
        %6384 = vmatpush.msra.mxu0 %v5536
        %6385 = vmatpush.msra.mxu0 %v5458
        %6386 = vmatpush.msra.mxu0 %v5450
        %6387 = vmatpush.msra.mxu0 %v5127
        %6388 = vmatpush.msra.mxu0 %v5119
        %6389 = vmatmul.f32.gmra.mxu0 %v6041
        %v6390 = vpop.f32.mrf.mxu0
        %v6391 = vadd.f32 0.0, %v6390
        %6392 = vmatmul.f32.gmra.mxu0 %v6043
        %v6393 = vpop.f32.mrf.mxu0
        %v6394 = vadd.f32 0.0, %v6393
        %6395 = vdwg.mxu0
        %6396 = vmatpush.msra.mxu0 0.0
        %6397 = vmatpush.msra.mxu0 0.0
        %6398 = vmatpush.msra.mxu0 0.0
        %6399 = vmatpush.msra.mxu0 0.0
        %6400 = vmatpush.msra.mxu0 0.0
        %6401 = vmatpush.msra.mxu0 0.0
        %6402 = vmatpush.msra.mxu0 0.0
        %6403 = vmatpush.msra.mxu0 0.0
        %6404 = vmatpush.msra.mxu0 0.0
        %6405 = vmatpush.msra.mxu0 0.0
        %6406 = vmatpush.msra.mxu0 0.0
        %6407 = vmatpush.msra.mxu0 0.0
        %6408 = vmatpush.msra.mxu0 0.0
        %6409 = vmatpush.msra.mxu0 0.0
        %6410 = vmatpush.msra.mxu0 %v6024
        %6411 = vmatpush.msra.mxu0 %v6016
        %6412 = vmatmul.f32.gmra.mxu0 %v6046
        %v6413 = vpop.f32.mrf.mxu0
        %v6414 = vadd.f32 %v6391, %v6413
        %6415 = vmatmul.f32.gmra.mxu0 %v6049
        %v6416 = vpop.f32.mrf.mxu0
        %v6417 = vadd.f32 %v6394, %v6416
        %6418 = vdwg.mxu0
        %v6419 = vld [vmem:[%s16] sm:$0xff]
        %v6420 = vld [vmem:[%s16 + $0x8] sm:$0xff]
        %6422 = vset.pattern.permute.xlu0 0
        %6423 = vperm.xlu0 %6422, %v6419
        %v6424 = vpop.permute.xlu0 %6423
        %6427 = vset.pattern.permute.xlu0 0
        %6428 = vperm.xlu0 %6427, %v6420
        %v6429 = vpop.permute.xlu0 %6428
        %v6431 = vmul.f32 %v6092, %v6424
        %v6432 = vmul.f32 %v6138, %v6424
        %v6433 = vmul.f32 %v6184, %v6424
        %v6434 = vmul.f32 %v6230, %v6424
        %v6435 = vmul.f32 %v6276, %v6424
        %v6436 = vmul.f32 %v6322, %v6424
        %v6437 = vmul.f32 %v6368, %v6424
        %v6438 = vmul.f32 %v6414, %v6424
        %v6439 = vmul.f32 %v6095, %v6429
        %v6440 = vmul.f32 %v6141, %v6429
        %v6441 = vmul.f32 %v6187, %v6429
        %v6442 = vmul.f32 %v6233, %v6429
        %v6443 = vmul.f32 %v6279, %v6429
        %v6444 = vmul.f32 %v6325, %v6429
        %v6445 = vmul.f32 %v6371, %v6429
        %v6446 = vmul.f32 %v6417, %v6429
        %6447 = vset.pattern.permute.xlu0 1
        %6448 = vperm.xlu0 %6447, %v6419
        %v6449 = vpop.permute.xlu0 %6448
        %6451 = vset.pattern.permute.xlu0 1
        %6452 = vperm.xlu0 %6451, %v6420
        %v6453 = vpop.permute.xlu0 %6452
        %v6455 = vadd.f32 %v6431, %v6449
        %v6456 = vadd.f32 %v6432, %v6449
        %v6457 = vadd.f32 %v6433, %v6449
        %v6458 = vadd.f32 %v6434, %v6449
        %v6459 = vadd.f32 %v6435, %v6449
        %v6460 = vadd.f32 %v6436, %v6449
        %v6461 = vadd.f32 %v6437, %v6449
        %v6462 = vadd.f32 %v6438, %v6449
        %v6463 = vadd.f32 %v6439, %v6453
        %v6464 = vadd.f32 %v6440, %v6453
        %v6465 = vadd.f32 %v6441, %v6453
        %v6466 = vadd.f32 %v6442, %v6453
        %v6467 = vadd.f32 %v6443, %v6453
        %v6468 = vadd.f32 %v6444, %v6453
        %v6469 = vadd.f32 %v6445, %v6453
        %v6470 = vadd.f32 %v6446, %v6453
        %v6471 = vmax.f32 %v6455, 0.0
        %v6472 = vmax.f32 %v6456, 0.0
        %v6473 = vmax.f32 %v6457, 0.0
        %v6474 = vmax.f32 %v6458, 0.0
        %v6475 = vmax.f32 %v6459, 0.0
        %v6476 = vmax.f32 %v6460, 0.0
        %v6477 = vmax.f32 %v6461, 0.0
        %v6478 = vmax.f32 %v6462, 0.0
        %v6479 = vmax.f32 %v6463, 0.0
        %v6480 = vmax.f32 %v6464, 0.0
        %v6481 = vmax.f32 %v6465, 0.0
        %v6482 = vmax.f32 %v6466, 0.0
        %v6483 = vmax.f32 %v6467, 0.0
        %v6484 = vmax.f32 %v6468, 0.0
        %v6485 = vmax.f32 %v6469, 0.0
        %v6486 = vmax.f32 %v6470, 0.0
        %6487 = vst.msk [vmem:[#allocation2] sm:$0xff] %vm1995, 0.0
        %6488 = vst.msk [vmem:[#allocation2 + $0x48] sm:$0xff] %vm1995, 0.0
        %6489 = vst.msk [vmem:[#allocation2 + $0x90] sm:$0xff] %vm1995, 0.0
        %6514 = vrot.lane.b32.xlu0 %v3660, 33
        %v6515 = vpop.permute.xlu0 %6514
        %6516 = vrot.lane.b32.xlu0 %v3661, 33
        %v6517 = vpop.permute.xlu0 %6516
        %6518 = vrot.lane.b32.xlu0 %v3662, 33
        %v6519 = vpop.permute.xlu0 %6518
        %6520 = vrot.lane.b32.xlu0 %v3663, 33
        %v6521 = vpop.permute.xlu0 %6520
        %6522 = vrot.lane.b32.xlu0 %v3664, 33
        %v6523 = vpop.permute.xlu0 %6522
        %6524 = vrot.lane.b32.xlu0 %v3665, 33
        %v6525 = vpop.permute.xlu0 %6524
        %6526 = vrot.lane.b32.xlu0 %v3666, 33
        %v6527 = vpop.permute.xlu0 %6526
        %6528 = vrot.lane.b32.xlu0 %v3667, 33
        %v6529 = vpop.permute.xlu0 %6528
        %6530 = vrot.lane.b32.xlu0 %v6471, 33
        %v6531 = vpop.permute.xlu0 %6530
        %6532 = vrot.lane.b32.xlu0 %v6472, 33
        %v6533 = vpop.permute.xlu0 %6532
        %6534 = vrot.lane.b32.xlu0 %v6473, 33
        %v6535 = vpop.permute.xlu0 %6534
        %6536 = vrot.lane.b32.xlu0 %v6474, 33
        %v6537 = vpop.permute.xlu0 %6536
        %6538 = vrot.lane.b32.xlu0 %v6475, 33
        %v6539 = vpop.permute.xlu0 %6538
        %6540 = vrot.lane.b32.xlu0 %v6476, 33
        %v6541 = vpop.permute.xlu0 %6540
        %6542 = vrot.lane.b32.xlu0 %v6477, 33
        %v6543 = vpop.permute.xlu0 %6542
        %6544 = vrot.lane.b32.xlu0 %v6478, 33
        %v6545 = vpop.permute.xlu0 %6544
        %6546 = vrot.lane.b32.xlu0 %v6479, 33
        %v6547 = vpop.permute.xlu0 %6546
        %6548 = vrot.lane.b32.xlu0 %v6480, 33
        %v6549 = vpop.permute.xlu0 %6548
        %6550 = vrot.lane.b32.xlu0 %v6481, 33
        %v6551 = vpop.permute.xlu0 %6550
        %6552 = vrot.lane.b32.xlu0 %v6482, 33
        %v6553 = vpop.permute.xlu0 %6552
        %6554 = vrot.lane.b32.xlu0 %v6483, 33
        %v6555 = vpop.permute.xlu0 %6554
        %6556 = vrot.lane.b32.xlu0 %v6484, 33
        %v6557 = vpop.permute.xlu0 %6556
        %6558 = vrot.lane.b32.xlu0 %v6485, 33
        %v6559 = vpop.permute.xlu0 %6558
        %6560 = vrot.lane.b32.xlu0 %v6486, 33
        %v6561 = vpop.permute.xlu0 %6560
        %v6562 = vsel %vm1995, %v6515, %v6517
        %v6563 = vsel %vm1995, %v6517, %v6519
        %v6564 = vsel %vm1995, %v6519, %v6521
        %v6565 = vsel %vm1995, %v6521, %v6523
        %v6566 = vsel %vm1995, %v6523, %v6525
        %v6567 = vsel %vm1995, %v6525, %v6527
        %v6568 = vsel %vm1995, %v6527, %v6529
        %v6569 = vsel %vm1995, %v6531, %v6533
        %v6570 = vsel %vm1995, %v6533, %v6535
        %v6571 = vsel %vm1995, %v6535, %v6537
        %v6572 = vsel %vm1995, %v6537, %v6539
        %v6573 = vsel %vm1995, %v6539, %v6541
        %v6574 = vsel %vm1995, %v6541, %v6543
        %v6575 = vsel %vm1995, %v6543, %v6545
        %v6576 = vsel %vm1995, %v6547, %v6549
        %v6577 = vsel %vm1995, %v6549, %v6551
        %v6578 = vsel %vm1995, %v6551, %v6553
        %v6579 = vsel %vm1995, %v6553, %v6555
        %v6580 = vsel %vm1995, %v6555, %v6557
        %v6581 = vsel %vm1995, %v6557, %v6559
        %v6582 = vsel %vm1995, %v6559, %v6561
        %6610 = vst.msk [vmem:[#allocation2] sm:$0xff] %vm2037, %v6515
        %6611 = vst [vmem:[#allocation2 + $0x8] sm:$0xff] %v6562
        %6612 = vst [vmem:[#allocation2 + $0x10] sm:$0xff] %v6563
        %6613 = vst [vmem:[#allocation2 + $0x18] sm:$0xff] %v6564
        %6614 = vst [vmem:[#allocation2 + $0x20] sm:$0xff] %v6565
        %6615 = vst [vmem:[#allocation2 + $0x28] sm:$0xff] %v6566
        %6616 = vst [vmem:[#allocation2 + $0x30] sm:$0xff] %v6567
        %6617 = vst [vmem:[#allocation2 + $0x38] sm:$0xff] %v6568
        %6618 = vst.msk [vmem:[#allocation2 + $0x40] sm:$0xff] %vm1995, %v6529
        %6619 = vst.msk [vmem:[#allocation2 + $0x48] sm:$0xff] %vm2037, %v6531
        %6620 = vst [vmem:[#allocation2 + $0x50] sm:$0xff] %v6569
        %6621 = vst [vmem:[#allocation2 + $0x58] sm:$0xff] %v6570
        %6622 = vst [vmem:[#allocation2 + $0x60] sm:$0xff] %v6571
        %6623 = vst [vmem:[#allocation2 + $0x68] sm:$0xff] %v6572
        %6624 = vst [vmem:[#allocation2 + $0x70] sm:$0xff] %v6573
        %6625 = vst [vmem:[#allocation2 + $0x78] sm:$0xff] %v6574
        %6626 = vst [vmem:[#allocation2 + $0x80] sm:$0xff] %v6575
        %6627 = vst.msk [vmem:[#allocation2 + $0x88] sm:$0xff] %vm1995, %v6545
        %6628 = vst.msk [vmem:[#allocation2 + $0x90] sm:$0xff] %vm2037, %v6547
        %6629 = vst [vmem:[#allocation2 + $0x98] sm:$0xff] %v6576
        %6630 = vst [vmem:[#allocation2 + $0xa0] sm:$0xff] %v6577
        %6631 = vst [vmem:[#allocation2 + $0xa8] sm:$0xff] %v6578
        %6632 = vst [vmem:[#allocation2 + $0xb0] sm:$0xff] %v6579
        %6633 = vst [vmem:[#allocation2 + $0xb8] sm:$0xff] %v6580
        %6634 = vst [vmem:[#allocation2 + $0xc0] sm:$0xff] %v6581
        %6635 = vst [vmem:[#allocation2 + $0xc8] sm:$0xff] %v6582
        %6636 = vst.msk [vmem:[#allocation2 + $0xd0] sm:$0xff] %vm1995, %v6561
        %6637 = vst.msk [vmem:[#allocation2 + $0x40] sm:$0xff] %vm2047, 0.0
        %6638 = vst.msk [vmem:[#allocation2 + $0x88] sm:$0xff] %vm2047, 0.0
        %6639 = vst.msk [vmem:[#allocation2 + $0xd0] sm:$0xff] %vm2047, 0.0
        %v6640 = vld [vmem:[%s6] ss:$2 sm:$0xff]
        %v6641 = vld [vmem:[%s2050] ss:$2 sm:$0xff]
        %v6642 = vld [vmem:[#allocation2] sm:$0xff]
        %v6643 = vld [vmem:[#allocation2 + $0x8] sm:$0xff]
        %v6644 = vld [vmem:[#allocation2 + $0x10] sm:$0xff]
        %v6645 = vld [vmem:[#allocation2 + $0x18] sm:$0xff]
        %v6646 = vld [vmem:[#allocation2 + $0x20] sm:$0xff]
        %v6647 = vld [vmem:[#allocation2 + $0x28] sm:$0xff]
        %v6648 = vld [vmem:[#allocation2 + $0x30] sm:$0xff]
        %v6649 = vld [vmem:[#allocation2 + $0x38] sm:$0xff]
        %v6650 = vld [vmem:[#allocation2 + $0x48] sm:$0xff]
        %v6651 = vld [vmem:[#allocation2 + $0x50] sm:$0xff]
        %v6652 = vld [vmem:[#allocation2 + $0x58] sm:$0xff]
        %v6653 = vld [vmem:[#allocation2 + $0x60] sm:$0xff]
        %v6654 = vld [vmem:[#allocation2 + $0x68] sm:$0xff]
        %v6655 = vld [vmem:[#allocation2 + $0x70] sm:$0xff]
        %v6656 = vld [vmem:[#allocation2 + $0x78] sm:$0xff]
        %v6657 = vld [vmem:[#allocation2 + $0x80] sm:$0xff]
        %v6658 = vld [vmem:[#allocation2 + $0x90] sm:$0xff]
        %v6659 = vld [vmem:[#allocation2 + $0x98] sm:$0xff]
        %v6660 = vld [vmem:[#allocation2 + $0xa0] sm:$0xff]
        %v6661 = vld [vmem:[#allocation2 + $0xa8] sm:$0xff]
        %v6662 = vld [vmem:[#allocation2 + $0xb0] sm:$0xff]
        %v6663 = vld [vmem:[#allocation2 + $0xb8] sm:$0xff]
        %v6664 = vld [vmem:[#allocation2 + $0xc0] sm:$0xff]
        %v6665 = vld [vmem:[#allocation2 + $0xc8] sm:$0xff]
        %v6667 = vperm.slane %v6640, 0
        %v6668 = vperm.slane %v6640, 1
        %v6669 = vperm.slane %v6640, 2
        %v6670 = vperm.slane %v6640, 3
        %v6671 = vperm.slane %v6640, 4
        %v6672 = vperm.slane %v6640, 5
        %v6673 = vperm.slane %v6640, 6
        %v6674 = vperm.slane %v6640, 7
        %v6683 = vmul.f32 %v6642, %v6667
        %v6684 = vmul.f32 %v6643, %v6668
        %v6685 = vmul.f32 %v6644, %v6669
        %v6686 = vmul.f32 %v6645, %v6670
        %v6687 = vmul.f32 %v6646, %v6671
        %v6688 = vmul.f32 %v6647, %v6672
        %v6689 = vmul.f32 %v6648, %v6673
        %v6690 = vmul.f32 %v6649, %v6674
        %v6691 = vmul.f32 %v6650, %v6667
        %v6692 = vmul.f32 %v6651, %v6668
        %v6693 = vmul.f32 %v6652, %v6669
        %v6694 = vmul.f32 %v6653, %v6670
        %v6695 = vmul.f32 %v6654, %v6671
        %v6696 = vmul.f32 %v6655, %v6672
        %v6697 = vmul.f32 %v6656, %v6673
        %v6698 = vmul.f32 %v6657, %v6674
        %v6699 = vmul.f32 %v6658, %v6667
        %v6700 = vmul.f32 %v6659, %v6668
        %v6701 = vmul.f32 %v6660, %v6669
        %v6702 = vmul.f32 %v6661, %v6670
        %v6703 = vmul.f32 %v6662, %v6671
        %v6704 = vmul.f32 %v6663, %v6672
        %v6705 = vmul.f32 %v6664, %v6673
        %v6706 = vmul.f32 %v6665, %v6674
        %v6707 = vld [vmem:[#allocation2 + $0x40] sm:$0xff]
        %v6708 = vld [vmem:[#allocation2 + $0x88] sm:$0xff]
        %v6709 = vld [vmem:[#allocation2 + $0xd0] sm:$0xff]
        %v6711 = vperm.slane %v6641, 0
        %v6712 = vperm.slane %v6641, 1
        %v6713 = vperm.slane %v6641, 2
        %v6714 = vperm.slane %v6641, 3
        %v6715 = vperm.slane %v6641, 4
        %v6716 = vperm.slane %v6641, 5
        %v6717 = vperm.slane %v6641, 6
        %v6718 = vperm.slane %v6641, 7
        %6719 = vrot.lane.b32.xlu0 %v6711, 2
        %v6720 = vpop.permute.xlu0 %6719
        %6721 = vrot.lane.b32.xlu0 %v6712, 2
        %v6722 = vpop.permute.xlu0 %6721
        %6723 = vrot.lane.b32.xlu0 %v6713, 2
        %v6724 = vpop.permute.xlu0 %6723
        %6725 = vrot.lane.b32.xlu0 %v6714, 2
        %v6726 = vpop.permute.xlu0 %6725
        %6727 = vrot.lane.b32.xlu0 %v6715, 2
        %v6728 = vpop.permute.xlu0 %6727
        %6729 = vrot.lane.b32.xlu0 %v6716, 2
        %v6730 = vpop.permute.xlu0 %6729
        %6731 = vrot.lane.b32.xlu0 %v6717, 2
        %v6732 = vpop.permute.xlu0 %6731
        %6733 = vrot.lane.b32.xlu0 %v6718, 2
        %v6734 = vpop.permute.xlu0 %6733
        %v6735 = vsel %vm1770, %v6720, %v6722
        %v6736 = vsel %vm1770, %v6722, %v6724
        %v6737 = vsel %vm1770, %v6724, %v6726
        %v6738 = vsel %vm1770, %v6726, %v6728
        %v6739 = vsel %vm1770, %v6728, %v6730
        %v6740 = vsel %vm1770, %v6730, %v6732
        %v6741 = vsel %vm1770, %v6732, %v6734
        %v6751 = vmul.f32 %v6642, %v6720
        %v6752 = vmul.f32 %v6643, %v6735
        %v6753 = vmul.f32 %v6644, %v6736
        %v6754 = vmul.f32 %v6645, %v6737
        %v6755 = vmul.f32 %v6646, %v6738
        %v6756 = vmul.f32 %v6647, %v6739
        %v6757 = vmul.f32 %v6648, %v6740
        %v6758 = vmul.f32 %v6649, %v6741
        %v6759 = vmul.f32 %v6707, %v6734
        %v6760 = vmul.f32 %v6650, %v6720
        %v6761 = vmul.f32 %v6651, %v6735
        %v6762 = vmul.f32 %v6652, %v6736
        %v6763 = vmul.f32 %v6653, %v6737
        %v6764 = vmul.f32 %v6654, %v6738
        %v6765 = vmul.f32 %v6655, %v6739
        %v6766 = vmul.f32 %v6656, %v6740
        %v6767 = vmul.f32 %v6657, %v6741
        %v6768 = vmul.f32 %v6708, %v6734
        %v6769 = vmul.f32 %v6658, %v6720
        %v6770 = vmul.f32 %v6659, %v6735
        %v6771 = vmul.f32 %v6660, %v6736
        %v6772 = vmul.f32 %v6661, %v6737
        %v6773 = vmul.f32 %v6662, %v6738
        %v6774 = vmul.f32 %v6663, %v6739
        %v6775 = vmul.f32 %v6664, %v6740
        %v6776 = vmul.f32 %v6665, %v6741
        %v6777 = vmul.f32 %v6709, %v6734
        %6778 = vrot.lane.b32.xlu0 %v6667, 32
        %v6779 = vpop.permute.xlu0 %6778
        %6780 = vrot.lane.b32.xlu0 %v6668, 32
        %v6781 = vpop.permute.xlu0 %6780
        %6782 = vrot.lane.b32.xlu0 %v6669, 32
        %v6783 = vpop.permute.xlu0 %6782
        %6784 = vrot.lane.b32.xlu0 %v6670, 32
        %v6785 = vpop.permute.xlu0 %6784
        %6786 = vrot.lane.b32.xlu0 %v6671, 32
        %v6787 = vpop.permute.xlu0 %6786
        %6788 = vrot.lane.b32.xlu0 %v6672, 32
        %v6789 = vpop.permute.xlu0 %6788
        %6790 = vrot.lane.b32.xlu0 %v6673, 32
        %v6791 = vpop.permute.xlu0 %6790
        %6792 = vrot.lane.b32.xlu0 %v6674, 32
        %v6793 = vpop.permute.xlu0 %6792
        %v6794 = vsel %vm1806, %v6779, %v6781
        %v6795 = vsel %vm1806, %v6781, %v6783
        %v6796 = vsel %vm1806, %v6783, %v6785
        %v6797 = vsel %vm1806, %v6785, %v6787
        %v6798 = vsel %vm1806, %v6787, %v6789
        %v6799 = vsel %vm1806, %v6789, %v6791
        %v6800 = vsel %vm1806, %v6791, %v6793
        %v6810 = vmul.f32 %v6642, %v6779
        %v6811 = vmul.f32 %v6643, %v6794
        %v6812 = vmul.f32 %v6644, %v6795
        %v6813 = vmul.f32 %v6645, %v6796
        %v6814 = vmul.f32 %v6646, %v6797
        %v6815 = vmul.f32 %v6647, %v6798
        %v6816 = vmul.f32 %v6648, %v6799
        %v6817 = vmul.f32 %v6649, %v6800
        %v6818 = vmul.f32 %v6707, %v6793
        %v6819 = vmul.f32 %v6650, %v6779
        %v6820 = vmul.f32 %v6651, %v6794
        %v6821 = vmul.f32 %v6652, %v6795
        %v6822 = vmul.f32 %v6653, %v6796
        %v6823 = vmul.f32 %v6654, %v6797
        %v6824 = vmul.f32 %v6655, %v6798
        %v6825 = vmul.f32 %v6656, %v6799
        %v6826 = vmul.f32 %v6657, %v6800
        %v6827 = vmul.f32 %v6708, %v6793
        %v6828 = vmul.f32 %v6658, %v6779
        %v6829 = vmul.f32 %v6659, %v6794
        %v6830 = vmul.f32 %v6660, %v6795
        %v6831 = vmul.f32 %v6661, %v6796
        %v6832 = vmul.f32 %v6662, %v6797
        %v6833 = vmul.f32 %v6663, %v6798
        %v6834 = vmul.f32 %v6664, %v6799
        %v6835 = vmul.f32 %v6665, %v6800
        %v6836 = vmul.f32 %v6709, %v6793
        %6837 = vrot.lane.b32.xlu0 %v6711, 34
        %v6838 = vpop.permute.xlu0 %6837
        %6839 = vrot.lane.b32.xlu0 %v6712, 34
        %v6840 = vpop.permute.xlu0 %6839
        %6841 = vrot.lane.b32.xlu0 %v6713, 34
        %v6842 = vpop.permute.xlu0 %6841
        %6843 = vrot.lane.b32.xlu0 %v6714, 34
        %v6844 = vpop.permute.xlu0 %6843
        %6845 = vrot.lane.b32.xlu0 %v6715, 34
        %v6846 = vpop.permute.xlu0 %6845
        %6847 = vrot.lane.b32.xlu0 %v6716, 34
        %v6848 = vpop.permute.xlu0 %6847
        %6849 = vrot.lane.b32.xlu0 %v6717, 34
        %v6850 = vpop.permute.xlu0 %6849
        %6851 = vrot.lane.b32.xlu0 %v6718, 34
        %v6852 = vpop.permute.xlu0 %6851
        %v6853 = vsel %vm1818, %v6838, %v6840
        %v6854 = vsel %vm1818, %v6840, %v6842
        %v6855 = vsel %vm1818, %v6842, %v6844
        %v6856 = vsel %vm1818, %v6844, %v6846
        %v6857 = vsel %vm1818, %v6846, %v6848
        %v6858 = vsel %vm1818, %v6848, %v6850
        %v6859 = vsel %vm1818, %v6850, %v6852
        %v6869 = vmul.f32 %v6642, %v6838
        %v6870 = vmul.f32 %v6643, %v6853
        %v6871 = vmul.f32 %v6644, %v6854
        %v6872 = vmul.f32 %v6645, %v6855
        %v6873 = vmul.f32 %v6646, %v6856
        %v6874 = vmul.f32 %v6647, %v6857
        %v6875 = vmul.f32 %v6648, %v6858
        %v6876 = vmul.f32 %v6649, %v6859
        %v6877 = vmul.f32 %v6707, %v6852
        %v6878 = vmul.f32 %v6650, %v6838
        %v6879 = vmul.f32 %v6651, %v6853
        %v6880 = vmul.f32 %v6652, %v6854
        %v6881 = vmul.f32 %v6653, %v6855
        %v6882 = vmul.f32 %v6654, %v6856
        %v6883 = vmul.f32 %v6655, %v6857
        %v6884 = vmul.f32 %v6656, %v6858
        %v6885 = vmul.f32 %v6657, %v6859
        %v6886 = vmul.f32 %v6708, %v6852
        %v6887 = vmul.f32 %v6658, %v6838
        %v6888 = vmul.f32 %v6659, %v6853
        %v6889 = vmul.f32 %v6660, %v6854
        %v6890 = vmul.f32 %v6661, %v6855
        %v6891 = vmul.f32 %v6662, %v6856
        %v6892 = vmul.f32 %v6663, %v6857
        %v6893 = vmul.f32 %v6664, %v6858
        %v6894 = vmul.f32 %v6665, %v6859
        %v6895 = vmul.f32 %v6709, %v6852
        %6896 = vrot.lane.b32.xlu0 %v6667, 64
        %v6897 = vpop.permute.xlu0 %6896
        %6898 = vrot.lane.b32.xlu0 %v6668, 64
        %v6899 = vpop.permute.xlu0 %6898
        %6900 = vrot.lane.b32.xlu0 %v6669, 64
        %v6901 = vpop.permute.xlu0 %6900
        %6902 = vrot.lane.b32.xlu0 %v6670, 64
        %v6903 = vpop.permute.xlu0 %6902
        %6904 = vrot.lane.b32.xlu0 %v6671, 64
        %v6905 = vpop.permute.xlu0 %6904
        %6906 = vrot.lane.b32.xlu0 %v6672, 64
        %v6907 = vpop.permute.xlu0 %6906
        %6908 = vrot.lane.b32.xlu0 %v6673, 64
        %v6909 = vpop.permute.xlu0 %6908
        %6910 = vrot.lane.b32.xlu0 %v6674, 64
        %v6911 = vpop.permute.xlu0 %6910
        %v6912 = vsel %vm792, %v6897, %v6899
        %v6913 = vsel %vm792, %v6899, %v6901
        %v6914 = vsel %vm792, %v6901, %v6903
        %v6915 = vsel %vm792, %v6903, %v6905
        %v6916 = vsel %vm792, %v6905, %v6907
        %v6917 = vsel %vm792, %v6907, %v6909
        %v6918 = vsel %vm792, %v6909, %v6911
        %v6928 = vmul.f32 %v6642, %v6897
        %v6929 = vmul.f32 %v6643, %v6912
        %v6930 = vmul.f32 %v6644, %v6913
        %v6931 = vmul.f32 %v6645, %v6914
        %v6932 = vmul.f32 %v6646, %v6915
        %v6933 = vmul.f32 %v6647, %v6916
        %v6934 = vmul.f32 %v6648, %v6917
        %v6935 = vmul.f32 %v6649, %v6918
        %v6936 = vmul.f32 %v6707, %v6911
        %v6937 = vmul.f32 %v6650, %v6897
        %v6938 = vmul.f32 %v6651, %v6912
        %v6939 = vmul.f32 %v6652, %v6913
        %v6940 = vmul.f32 %v6653, %v6914
        %v6941 = vmul.f32 %v6654, %v6915
        %v6942 = vmul.f32 %v6655, %v6916
        %v6943 = vmul.f32 %v6656, %v6917
        %v6944 = vmul.f32 %v6657, %v6918
        %v6945 = vmul.f32 %v6708, %v6911
        %v6946 = vmul.f32 %v6658, %v6897
        %v6947 = vmul.f32 %v6659, %v6912
        %v6948 = vmul.f32 %v6660, %v6913
        %v6949 = vmul.f32 %v6661, %v6914
        %v6950 = vmul.f32 %v6662, %v6915
        %v6951 = vmul.f32 %v6663, %v6916
        %v6952 = vmul.f32 %v6664, %v6917
        %v6953 = vmul.f32 %v6665, %v6918
        %v6954 = vmul.f32 %v6709, %v6911
        %6955 = vrot.lane.b32.xlu0 %v6711, 66
        %v6956 = vpop.permute.xlu0 %6955
        %6957 = vrot.lane.b32.xlu0 %v6712, 66
        %v6958 = vpop.permute.xlu0 %6957
        %6959 = vrot.lane.b32.xlu0 %v6713, 66
        %v6960 = vpop.permute.xlu0 %6959
        %6961 = vrot.lane.b32.xlu0 %v6714, 66
        %v6962 = vpop.permute.xlu0 %6961
        %6963 = vrot.lane.b32.xlu0 %v6715, 66
        %v6964 = vpop.permute.xlu0 %6963
        %6965 = vrot.lane.b32.xlu0 %v6716, 66
        %v6966 = vpop.permute.xlu0 %6965
        %6967 = vrot.lane.b32.xlu0 %v6717, 66
        %v6968 = vpop.permute.xlu0 %6967
        %6969 = vrot.lane.b32.xlu0 %v6718, 66
        %v6970 = vpop.permute.xlu0 %6969
        %v6971 = vsel %vm2275, %v6956, %v6958
        %v6972 = vsel %vm2275, %v6958, %v6960
        %v6973 = vsel %vm2275, %v6960, %v6962
        %v6974 = vsel %vm2275, %v6962, %v6964
        %v6975 = vsel %vm2275, %v6964, %v6966
        %v6976 = vsel %vm2275, %v6966, %v6968
        %v6977 = vsel %vm2275, %v6968, %v6970
        %v6987 = vmul.f32 %v6642, %v6956
        %v6988 = vmul.f32 %v6643, %v6971
        %v6989 = vmul.f32 %v6644, %v6972
        %v6990 = vmul.f32 %v6645, %v6973
        %v6991 = vmul.f32 %v6646, %v6974
        %v6992 = vmul.f32 %v6647, %v6975
        %v6993 = vmul.f32 %v6648, %v6976
        %v6994 = vmul.f32 %v6649, %v6977
        %v6995 = vmul.f32 %v6707, %v6970
        %v6996 = vmul.f32 %v6650, %v6956
        %v6997 = vmul.f32 %v6651, %v6971
        %v6998 = vmul.f32 %v6652, %v6972
        %v6999 = vmul.f32 %v6653, %v6973
        %v7000 = vmul.f32 %v6654, %v6974
        %v7001 = vmul.f32 %v6655, %v6975
        %v7002 = vmul.f32 %v6656, %v6976
        %v7003 = vmul.f32 %v6657, %v6977
        %v7004 = vmul.f32 %v6708, %v6970
        %v7005 = vmul.f32 %v6658, %v6956
        %v7006 = vmul.f32 %v6659, %v6971
        %v7007 = vmul.f32 %v6660, %v6972
        %v7008 = vmul.f32 %v6661, %v6973
        %v7009 = vmul.f32 %v6662, %v6974
        %v7010 = vmul.f32 %v6663, %v6975
        %v7011 = vmul.f32 %v6664, %v6976
        %v7012 = vmul.f32 %v6665, %v6977
        %v7013 = vmul.f32 %v6709, %v6970
        %7041 = vrot.lane.b32.xlu0 %v6642, 127
        %v7042 = vpop.permute.xlu0 %7041
        %7043 = vrot.lane.b32.xlu0 %v6643, 127
        %v7044 = vpop.permute.xlu0 %7043
        %7045 = vrot.lane.b32.xlu0 %v6644, 127
        %v7046 = vpop.permute.xlu0 %7045
        %7047 = vrot.lane.b32.xlu0 %v6645, 127
        %v7048 = vpop.permute.xlu0 %7047
        %7049 = vrot.lane.b32.xlu0 %v6646, 127
        %v7050 = vpop.permute.xlu0 %7049
        %7051 = vrot.lane.b32.xlu0 %v6647, 127
        %v7052 = vpop.permute.xlu0 %7051
        %7053 = vrot.lane.b32.xlu0 %v6648, 127
        %v7054 = vpop.permute.xlu0 %7053
        %7055 = vrot.lane.b32.xlu0 %v6649, 127
        %v7056 = vpop.permute.xlu0 %7055
        %7057 = vrot.lane.b32.xlu0 %v6707, 127
        %v7058 = vpop.permute.xlu0 %7057
        %7059 = vrot.lane.b32.xlu0 %v6650, 127
        %v7060 = vpop.permute.xlu0 %7059
        %7061 = vrot.lane.b32.xlu0 %v6651, 127
        %v7062 = vpop.permute.xlu0 %7061
        %7063 = vrot.lane.b32.xlu0 %v6652, 127
        %v7064 = vpop.permute.xlu0 %7063
        %7065 = vrot.lane.b32.xlu0 %v6653, 127
        %v7066 = vpop.permute.xlu0 %7065
        %7067 = vrot.lane.b32.xlu0 %v6654, 127
        %v7068 = vpop.permute.xlu0 %7067
        %7069 = vrot.lane.b32.xlu0 %v6655, 127
        %v7070 = vpop.permute.xlu0 %7069
        %7071 = vrot.lane.b32.xlu0 %v6656, 127
        %v7072 = vpop.permute.xlu0 %7071
        %7073 = vrot.lane.b32.xlu0 %v6657, 127
        %v7074 = vpop.permute.xlu0 %7073
        %7075 = vrot.lane.b32.xlu0 %v6708, 127
        %v7076 = vpop.permute.xlu0 %7075
        %7077 = vrot.lane.b32.xlu0 %v6658, 127
        %v7078 = vpop.permute.xlu0 %7077
        %7079 = vrot.lane.b32.xlu0 %v6659, 127
        %v7080 = vpop.permute.xlu0 %7079
        %7081 = vrot.lane.b32.xlu0 %v6660, 127
        %v7082 = vpop.permute.xlu0 %7081
        %7083 = vrot.lane.b32.xlu0 %v6661, 127
        %v7084 = vpop.permute.xlu0 %7083
        %7085 = vrot.lane.b32.xlu0 %v6662, 127
        %v7086 = vpop.permute.xlu0 %7085
        %7087 = vrot.lane.b32.xlu0 %v6663, 127
        %v7088 = vpop.permute.xlu0 %7087
        %7089 = vrot.lane.b32.xlu0 %v6664, 127
        %v7090 = vpop.permute.xlu0 %7089
        %7091 = vrot.lane.b32.xlu0 %v6665, 127
        %v7092 = vpop.permute.xlu0 %7091
        %7093 = vrot.lane.b32.xlu0 %v6709, 127
        %v7094 = vpop.permute.xlu0 %7093
        %v7095 = vsel %vm1835, %v7042, %v7044
        %v7096 = vsel %vm1835, %v7044, %v7046
        %v7097 = vsel %vm1835, %v7046, %v7048
        %v7098 = vsel %vm1835, %v7048, %v7050
        %v7099 = vsel %vm1835, %v7050, %v7052
        %v7100 = vsel %vm1835, %v7052, %v7054
        %v7101 = vsel %vm1835, %v7054, %v7056
        %v7102 = vsel %vm1835, %v7056, %v7058
        %v7103 = vsel %vm1835, %v7060, %v7062
        %v7104 = vsel %vm1835, %v7062, %v7064
        %v7105 = vsel %vm1835, %v7064, %v7066
        %v7106 = vsel %vm1835, %v7066, %v7068
        %v7107 = vsel %vm1835, %v7068, %v7070
        %v7108 = vsel %vm1835, %v7070, %v7072
        %v7109 = vsel %vm1835, %v7072, %v7074
        %v7110 = vsel %vm1835, %v7074, %v7076
        %v7111 = vsel %vm1835, %v7078, %v7080
        %v7112 = vsel %vm1835, %v7080, %v7082
        %v7113 = vsel %vm1835, %v7082, %v7084
        %v7114 = vsel %vm1835, %v7084, %v7086
        %v7115 = vsel %vm1835, %v7086, %v7088
        %v7116 = vsel %vm1835, %v7088, %v7090
        %v7117 = vsel %vm1835, %v7090, %v7092
        %v7118 = vsel %vm1835, %v7092, %v7094
        %7170 = vrot.lane.b32.xlu0 %v6751, 126
        %v7171 = vpop.permute.xlu0 %7170
        %7172 = vrot.lane.b32.xlu0 %v6752, 126
        %v7173 = vpop.permute.xlu0 %7172
        %7174 = vrot.lane.b32.xlu0 %v6753, 126
        %v7175 = vpop.permute.xlu0 %7174
        %7176 = vrot.lane.b32.xlu0 %v6754, 126
        %v7177 = vpop.permute.xlu0 %7176
        %7178 = vrot.lane.b32.xlu0 %v6755, 126
        %v7179 = vpop.permute.xlu0 %7178
        %7180 = vrot.lane.b32.xlu0 %v6756, 126
        %v7181 = vpop.permute.xlu0 %7180
        %7182 = vrot.lane.b32.xlu0 %v6757, 126
        %v7183 = vpop.permute.xlu0 %7182
        %7184 = vrot.lane.b32.xlu0 %v6758, 126
        %v7185 = vpop.permute.xlu0 %7184
        %7186 = vrot.lane.b32.xlu0 %v6759, 126
        %v7187 = vpop.permute.xlu0 %7186
        %7188 = vrot.lane.b32.xlu0 %v6760, 126
        %v7189 = vpop.permute.xlu0 %7188
        %7190 = vrot.lane.b32.xlu0 %v6761, 126
        %v7191 = vpop.permute.xlu0 %7190
        %7192 = vrot.lane.b32.xlu0 %v6762, 126
        %v7193 = vpop.permute.xlu0 %7192
        %7194 = vrot.lane.b32.xlu0 %v6763, 126
        %v7195 = vpop.permute.xlu0 %7194
        %7196 = vrot.lane.b32.xlu0 %v6764, 126
        %v7197 = vpop.permute.xlu0 %7196
        %7198 = vrot.lane.b32.xlu0 %v6765, 126
        %v7199 = vpop.permute.xlu0 %7198
        %7200 = vrot.lane.b32.xlu0 %v6766, 126
        %v7201 = vpop.permute.xlu0 %7200
        %7202 = vrot.lane.b32.xlu0 %v6767, 126
        %v7203 = vpop.permute.xlu0 %7202
        %7204 = vrot.lane.b32.xlu0 %v6768, 126
        %v7205 = vpop.permute.xlu0 %7204
        %7206 = vrot.lane.b32.xlu0 %v6769, 126
        %v7207 = vpop.permute.xlu0 %7206
        %7208 = vrot.lane.b32.xlu0 %v6770, 126
        %v7209 = vpop.permute.xlu0 %7208
        %7210 = vrot.lane.b32.xlu0 %v6771, 126
        %v7211 = vpop.permute.xlu0 %7210
        %7212 = vrot.lane.b32.xlu0 %v6772, 126
        %v7213 = vpop.permute.xlu0 %7212
        %7214 = vrot.lane.b32.xlu0 %v6773, 126
        %v7215 = vpop.permute.xlu0 %7214
        %7216 = vrot.lane.b32.xlu0 %v6774, 126
        %v7217 = vpop.permute.xlu0 %7216
        %7218 = vrot.lane.b32.xlu0 %v6775, 126
        %v7219 = vpop.permute.xlu0 %7218
        %7220 = vrot.lane.b32.xlu0 %v6776, 126
        %v7221 = vpop.permute.xlu0 %7220
        %7222 = vrot.lane.b32.xlu0 %v6777, 126
        %v7223 = vpop.permute.xlu0 %7222
        %v7224 = vsel %vm1849, %v7171, %v7173
        %v7225 = vsel %vm1849, %v7173, %v7175
        %v7226 = vsel %vm1849, %v7175, %v7177
        %v7227 = vsel %vm1849, %v7177, %v7179
        %v7228 = vsel %vm1849, %v7179, %v7181
        %v7229 = vsel %vm1849, %v7181, %v7183
        %v7230 = vsel %vm1849, %v7183, %v7185
        %v7231 = vsel %vm1849, %v7185, %v7187
        %v7232 = vsel %vm1849, %v7189, %v7191
        %v7233 = vsel %vm1849, %v7191, %v7193
        %v7234 = vsel %vm1849, %v7193, %v7195
        %v7235 = vsel %vm1849, %v7195, %v7197
        %v7236 = vsel %vm1849, %v7197, %v7199
        %v7237 = vsel %vm1849, %v7199, %v7201
        %v7238 = vsel %vm1849, %v7201, %v7203
        %v7239 = vsel %vm1849, %v7203, %v7205
        %v7240 = vsel %vm1849, %v7207, %v7209
        %v7241 = vsel %vm1849, %v7209, %v7211
        %v7242 = vsel %vm1849, %v7211, %v7213
        %v7243 = vsel %vm1849, %v7213, %v7215
        %v7244 = vsel %vm1849, %v7215, %v7217
        %v7245 = vsel %vm1849, %v7217, %v7219
        %v7246 = vsel %vm1849, %v7219, %v7221
        %v7247 = vsel %vm1849, %v7221, %v7223
        %7299 = vrot.lane.b32.xlu0 %v6810, 96
        %v7300 = vpop.permute.xlu0 %7299
        %7301 = vrot.lane.b32.xlu0 %v6811, 96
        %v7302 = vpop.permute.xlu0 %7301
        %7303 = vrot.lane.b32.xlu0 %v6812, 96
        %v7304 = vpop.permute.xlu0 %7303
        %7305 = vrot.lane.b32.xlu0 %v6813, 96
        %v7306 = vpop.permute.xlu0 %7305
        %7307 = vrot.lane.b32.xlu0 %v6814, 96
        %v7308 = vpop.permute.xlu0 %7307
        %7309 = vrot.lane.b32.xlu0 %v6815, 96
        %v7310 = vpop.permute.xlu0 %7309
        %7311 = vrot.lane.b32.xlu0 %v6816, 96
        %v7312 = vpop.permute.xlu0 %7311
        %7313 = vrot.lane.b32.xlu0 %v6817, 96
        %v7314 = vpop.permute.xlu0 %7313
        %7315 = vrot.lane.b32.xlu0 %v6818, 96
        %v7316 = vpop.permute.xlu0 %7315
        %7317 = vrot.lane.b32.xlu0 %v6819, 96
        %v7318 = vpop.permute.xlu0 %7317
        %7319 = vrot.lane.b32.xlu0 %v6820, 96
        %v7320 = vpop.permute.xlu0 %7319
        %7321 = vrot.lane.b32.xlu0 %v6821, 96
        %v7322 = vpop.permute.xlu0 %7321
        %7323 = vrot.lane.b32.xlu0 %v6822, 96
        %v7324 = vpop.permute.xlu0 %7323
        %7325 = vrot.lane.b32.xlu0 %v6823, 96
        %v7326 = vpop.permute.xlu0 %7325
        %7327 = vrot.lane.b32.xlu0 %v6824, 96
        %v7328 = vpop.permute.xlu0 %7327
        %7329 = vrot.lane.b32.xlu0 %v6825, 96
        %v7330 = vpop.permute.xlu0 %7329
        %7331 = vrot.lane.b32.xlu0 %v6826, 96
        %v7332 = vpop.permute.xlu0 %7331
        %7333 = vrot.lane.b32.xlu0 %v6827, 96
        %v7334 = vpop.permute.xlu0 %7333
        %7335 = vrot.lane.b32.xlu0 %v6828, 96
        %v7336 = vpop.permute.xlu0 %7335
        %7337 = vrot.lane.b32.xlu0 %v6829, 96
        %v7338 = vpop.permute.xlu0 %7337
        %7339 = vrot.lane.b32.xlu0 %v6830, 96
        %v7340 = vpop.permute.xlu0 %7339
        %7341 = vrot.lane.b32.xlu0 %v6831, 96
        %v7342 = vpop.permute.xlu0 %7341
        %7343 = vrot.lane.b32.xlu0 %v6832, 96
        %v7344 = vpop.permute.xlu0 %7343
        %7345 = vrot.lane.b32.xlu0 %v6833, 96
        %v7346 = vpop.permute.xlu0 %7345
        %7347 = vrot.lane.b32.xlu0 %v6834, 96
        %v7348 = vpop.permute.xlu0 %7347
        %7349 = vrot.lane.b32.xlu0 %v6835, 96
        %v7350 = vpop.permute.xlu0 %7349
        %7351 = vrot.lane.b32.xlu0 %v6836, 96
        %v7352 = vpop.permute.xlu0 %7351
        %v7353 = vsel %vm1902, %v7300, %v7302
        %v7354 = vsel %vm1902, %v7302, %v7304
        %v7355 = vsel %vm1902, %v7304, %v7306
        %v7356 = vsel %vm1902, %v7306, %v7308
        %v7357 = vsel %vm1902, %v7308, %v7310
        %v7358 = vsel %vm1902, %v7310, %v7312
        %v7359 = vsel %vm1902, %v7312, %v7314
        %v7360 = vsel %vm1902, %v7314, %v7316
        %v7361 = vsel %vm1902, %v7318, %v7320
        %v7362 = vsel %vm1902, %v7320, %v7322
        %v7363 = vsel %vm1902, %v7322, %v7324
        %v7364 = vsel %vm1902, %v7324, %v7326
        %v7365 = vsel %vm1902, %v7326, %v7328
        %v7366 = vsel %vm1902, %v7328, %v7330
        %v7367 = vsel %vm1902, %v7330, %v7332
        %v7368 = vsel %vm1902, %v7332, %v7334
        %v7369 = vsel %vm1902, %v7336, %v7338
        %v7370 = vsel %vm1902, %v7338, %v7340
        %v7371 = vsel %vm1902, %v7340, %v7342
        %v7372 = vsel %vm1902, %v7342, %v7344
        %v7373 = vsel %vm1902, %v7344, %v7346
        %v7374 = vsel %vm1902, %v7346, %v7348
        %v7375 = vsel %vm1902, %v7348, %v7350
        %v7376 = vsel %vm1902, %v7350, %v7352
        %7401 = vrot.lane.b32.xlu0 %v6642, 95
        %v7402 = vpop.permute.xlu0 %7401
        %7403 = vrot.lane.b32.xlu0 %v6643, 95
        %v7404 = vpop.permute.xlu0 %7403
        %7405 = vrot.lane.b32.xlu0 %v6644, 95
        %v7406 = vpop.permute.xlu0 %7405
        %7407 = vrot.lane.b32.xlu0 %v6645, 95
        %v7408 = vpop.permute.xlu0 %7407
        %7409 = vrot.lane.b32.xlu0 %v6646, 95
        %v7410 = vpop.permute.xlu0 %7409
        %7411 = vrot.lane.b32.xlu0 %v6647, 95
        %v7412 = vpop.permute.xlu0 %7411
        %7413 = vrot.lane.b32.xlu0 %v6648, 95
        %v7414 = vpop.permute.xlu0 %7413
        %7415 = vrot.lane.b32.xlu0 %v6649, 95
        %v7416 = vpop.permute.xlu0 %7415
        %7417 = vrot.lane.b32.xlu0 %v6707, 95
        %v7418 = vpop.permute.xlu0 %7417
        %7419 = vrot.lane.b32.xlu0 %v6650, 95
        %v7420 = vpop.permute.xlu0 %7419
        %7421 = vrot.lane.b32.xlu0 %v6651, 95
        %v7422 = vpop.permute.xlu0 %7421
        %7423 = vrot.lane.b32.xlu0 %v6652, 95
        %v7424 = vpop.permute.xlu0 %7423
        %7425 = vrot.lane.b32.xlu0 %v6653, 95
        %v7426 = vpop.permute.xlu0 %7425
        %7427 = vrot.lane.b32.xlu0 %v6654, 95
        %v7428 = vpop.permute.xlu0 %7427
        %7429 = vrot.lane.b32.xlu0 %v6655, 95
        %v7430 = vpop.permute.xlu0 %7429
        %7431 = vrot.lane.b32.xlu0 %v6656, 95
        %v7432 = vpop.permute.xlu0 %7431
        %7433 = vrot.lane.b32.xlu0 %v6657, 95
        %v7434 = vpop.permute.xlu0 %7433
        %7435 = vrot.lane.b32.xlu0 %v6708, 95
        %v7436 = vpop.permute.xlu0 %7435
        %7437 = vrot.lane.b32.xlu0 %v6658, 95
        %v7438 = vpop.permute.xlu0 %7437
        %7439 = vrot.lane.b32.xlu0 %v6659, 95
        %v7440 = vpop.permute.xlu0 %7439
        %7441 = vrot.lane.b32.xlu0 %v6660, 95
        %v7442 = vpop.permute.xlu0 %7441
        %7443 = vrot.lane.b32.xlu0 %v6661, 95
        %v7444 = vpop.permute.xlu0 %7443
        %7445 = vrot.lane.b32.xlu0 %v6662, 95
        %v7446 = vpop.permute.xlu0 %7445
        %7447 = vrot.lane.b32.xlu0 %v6663, 95
        %v7448 = vpop.permute.xlu0 %7447
        %7449 = vrot.lane.b32.xlu0 %v6664, 95
        %v7450 = vpop.permute.xlu0 %7449
        %7451 = vrot.lane.b32.xlu0 %v6665, 95
        %v7452 = vpop.permute.xlu0 %7451
        %7453 = vrot.lane.b32.xlu0 %v6709, 95
        %v7454 = vpop.permute.xlu0 %7453
        %v7455 = vsel %vm1913, %v7402, %v7404
        %v7456 = vsel %vm1913, %v7404, %v7406
        %v7457 = vsel %vm1913, %v7406, %v7408
        %v7458 = vsel %vm1913, %v7408, %v7410
        %v7459 = vsel %vm1913, %v7410, %v7412
        %v7460 = vsel %vm1913, %v7412, %v7414
        %v7461 = vsel %vm1913, %v7414, %v7416
        %v7462 = vsel %vm1913, %v7416, %v7418
        %v7463 = vsel %vm1913, %v7420, %v7422
        %v7464 = vsel %vm1913, %v7422, %v7424
        %v7465 = vsel %vm1913, %v7424, %v7426
        %v7466 = vsel %vm1913, %v7426, %v7428
        %v7467 = vsel %vm1913, %v7428, %v7430
        %v7468 = vsel %vm1913, %v7430, %v7432
        %v7469 = vsel %vm1913, %v7432, %v7434
        %v7470 = vsel %vm1913, %v7434, %v7436
        %v7471 = vsel %vm1913, %v7438, %v7440
        %v7472 = vsel %vm1913, %v7440, %v7442
        %v7473 = vsel %vm1913, %v7442, %v7444
        %v7474 = vsel %vm1913, %v7444, %v7446
        %v7475 = vsel %vm1913, %v7446, %v7448
        %v7476 = vsel %vm1913, %v7448, %v7450
        %v7477 = vsel %vm1913, %v7450, %v7452
        %v7478 = vsel %vm1913, %v7452, %v7454
        %7530 = vrot.lane.b32.xlu0 %v6869, 94
        %v7531 = vpop.permute.xlu0 %7530
        %7532 = vrot.lane.b32.xlu0 %v6870, 94
        %v7533 = vpop.permute.xlu0 %7532
        %7534 = vrot.lane.b32.xlu0 %v6871, 94
        %v7535 = vpop.permute.xlu0 %7534
        %7536 = vrot.lane.b32.xlu0 %v6872, 94
        %v7537 = vpop.permute.xlu0 %7536
        %7538 = vrot.lane.b32.xlu0 %v6873, 94
        %v7539 = vpop.permute.xlu0 %7538
        %7540 = vrot.lane.b32.xlu0 %v6874, 94
        %v7541 = vpop.permute.xlu0 %7540
        %7542 = vrot.lane.b32.xlu0 %v6875, 94
        %v7543 = vpop.permute.xlu0 %7542
        %7544 = vrot.lane.b32.xlu0 %v6876, 94
        %v7545 = vpop.permute.xlu0 %7544
        %7546 = vrot.lane.b32.xlu0 %v6877, 94
        %v7547 = vpop.permute.xlu0 %7546
        %7548 = vrot.lane.b32.xlu0 %v6878, 94
        %v7549 = vpop.permute.xlu0 %7548
        %7550 = vrot.lane.b32.xlu0 %v6879, 94
        %v7551 = vpop.permute.xlu0 %7550
        %7552 = vrot.lane.b32.xlu0 %v6880, 94
        %v7553 = vpop.permute.xlu0 %7552
        %7554 = vrot.lane.b32.xlu0 %v6881, 94
        %v7555 = vpop.permute.xlu0 %7554
        %7556 = vrot.lane.b32.xlu0 %v6882, 94
        %v7557 = vpop.permute.xlu0 %7556
        %7558 = vrot.lane.b32.xlu0 %v6883, 94
        %v7559 = vpop.permute.xlu0 %7558
        %7560 = vrot.lane.b32.xlu0 %v6884, 94
        %v7561 = vpop.permute.xlu0 %7560
        %7562 = vrot.lane.b32.xlu0 %v6885, 94
        %v7563 = vpop.permute.xlu0 %7562
        %7564 = vrot.lane.b32.xlu0 %v6886, 94
        %v7565 = vpop.permute.xlu0 %7564
        %7566 = vrot.lane.b32.xlu0 %v6887, 94
        %v7567 = vpop.permute.xlu0 %7566
        %7568 = vrot.lane.b32.xlu0 %v6888, 94
        %v7569 = vpop.permute.xlu0 %7568
        %7570 = vrot.lane.b32.xlu0 %v6889, 94
        %v7571 = vpop.permute.xlu0 %7570
        %7572 = vrot.lane.b32.xlu0 %v6890, 94
        %v7573 = vpop.permute.xlu0 %7572
        %7574 = vrot.lane.b32.xlu0 %v6891, 94
        %v7575 = vpop.permute.xlu0 %7574
        %7576 = vrot.lane.b32.xlu0 %v6892, 94
        %v7577 = vpop.permute.xlu0 %7576
        %7578 = vrot.lane.b32.xlu0 %v6893, 94
        %v7579 = vpop.permute.xlu0 %7578
        %7580 = vrot.lane.b32.xlu0 %v6894, 94
        %v7581 = vpop.permute.xlu0 %7580
        %7582 = vrot.lane.b32.xlu0 %v6895, 94
        %v7583 = vpop.permute.xlu0 %7582
        %v7584 = vsel %vm1927, %v7531, %v7533
        %v7585 = vsel %vm1927, %v7533, %v7535
        %v7586 = vsel %vm1927, %v7535, %v7537
        %v7587 = vsel %vm1927, %v7537, %v7539
        %v7588 = vsel %vm1927, %v7539, %v7541
        %v7589 = vsel %vm1927, %v7541, %v7543
        %v7590 = vsel %vm1927, %v7543, %v7545
        %v7591 = vsel %vm1927, %v7545, %v7547
        %v7592 = vsel %vm1927, %v7549, %v7551
        %v7593 = vsel %vm1927, %v7551, %v7553
        %v7594 = vsel %vm1927, %v7553, %v7555
        %v7595 = vsel %vm1927, %v7555, %v7557
        %v7596 = vsel %vm1927, %v7557, %v7559
        %v7597 = vsel %vm1927, %v7559, %v7561
        %v7598 = vsel %vm1927, %v7561, %v7563
        %v7599 = vsel %vm1927, %v7563, %v7565
        %v7600 = vsel %vm1927, %v7567, %v7569
        %v7601 = vsel %vm1927, %v7569, %v7571
        %v7602 = vsel %vm1927, %v7571, %v7573
        %v7603 = vsel %vm1927, %v7573, %v7575
        %v7604 = vsel %vm1927, %v7575, %v7577
        %v7605 = vsel %vm1927, %v7577, %v7579
        %v7606 = vsel %vm1927, %v7579, %v7581
        %v7607 = vsel %vm1927, %v7581, %v7583
        %7659 = vrot.lane.b32.xlu0 %v6928, 64
        %v7660 = vpop.permute.xlu0 %7659
        %7661 = vrot.lane.b32.xlu0 %v6929, 64
        %v7662 = vpop.permute.xlu0 %7661
        %7663 = vrot.lane.b32.xlu0 %v6930, 64
        %v7664 = vpop.permute.xlu0 %7663
        %7665 = vrot.lane.b32.xlu0 %v6931, 64
        %v7666 = vpop.permute.xlu0 %7665
        %7667 = vrot.lane.b32.xlu0 %v6932, 64
        %v7668 = vpop.permute.xlu0 %7667
        %7669 = vrot.lane.b32.xlu0 %v6933, 64
        %v7670 = vpop.permute.xlu0 %7669
        %7671 = vrot.lane.b32.xlu0 %v6934, 64
        %v7672 = vpop.permute.xlu0 %7671
        %7673 = vrot.lane.b32.xlu0 %v6935, 64
        %v7674 = vpop.permute.xlu0 %7673
        %7675 = vrot.lane.b32.xlu0 %v6936, 64
        %v7676 = vpop.permute.xlu0 %7675
        %7677 = vrot.lane.b32.xlu0 %v6937, 64
        %v7678 = vpop.permute.xlu0 %7677
        %7679 = vrot.lane.b32.xlu0 %v6938, 64
        %v7680 = vpop.permute.xlu0 %7679
        %7681 = vrot.lane.b32.xlu0 %v6939, 64
        %v7682 = vpop.permute.xlu0 %7681
        %7683 = vrot.lane.b32.xlu0 %v6940, 64
        %v7684 = vpop.permute.xlu0 %7683
        %7685 = vrot.lane.b32.xlu0 %v6941, 64
        %v7686 = vpop.permute.xlu0 %7685
        %7687 = vrot.lane.b32.xlu0 %v6942, 64
        %v7688 = vpop.permute.xlu0 %7687
        %7689 = vrot.lane.b32.xlu0 %v6943, 64
        %v7690 = vpop.permute.xlu0 %7689
        %7691 = vrot.lane.b32.xlu0 %v6944, 64
        %v7692 = vpop.permute.xlu0 %7691
        %7693 = vrot.lane.b32.xlu0 %v6945, 64
        %v7694 = vpop.permute.xlu0 %7693
        %7695 = vrot.lane.b32.xlu0 %v6946, 64
        %v7696 = vpop.permute.xlu0 %7695
        %7697 = vrot.lane.b32.xlu0 %v6947, 64
        %v7698 = vpop.permute.xlu0 %7697
        %7699 = vrot.lane.b32.xlu0 %v6948, 64
        %v7700 = vpop.permute.xlu0 %7699
        %7701 = vrot.lane.b32.xlu0 %v6949, 64
        %v7702 = vpop.permute.xlu0 %7701
        %7703 = vrot.lane.b32.xlu0 %v6950, 64
        %v7704 = vpop.permute.xlu0 %7703
        %7705 = vrot.lane.b32.xlu0 %v6951, 64
        %v7706 = vpop.permute.xlu0 %7705
        %7707 = vrot.lane.b32.xlu0 %v6952, 64
        %v7708 = vpop.permute.xlu0 %7707
        %7709 = vrot.lane.b32.xlu0 %v6953, 64
        %v7710 = vpop.permute.xlu0 %7709
        %7711 = vrot.lane.b32.xlu0 %v6954, 64
        %v7712 = vpop.permute.xlu0 %7711
        %v7713 = vsel %vm792, %v7660, %v7662
        %v7714 = vsel %vm792, %v7662, %v7664
        %v7715 = vsel %vm792, %v7664, %v7666
        %v7716 = vsel %vm792, %v7666, %v7668
        %v7717 = vsel %vm792, %v7668, %v7670
        %v7718 = vsel %vm792, %v7670, %v7672
        %v7719 = vsel %vm792, %v7672, %v7674
        %v7720 = vsel %vm792, %v7674, %v7676
        %v7721 = vsel %vm792, %v7678, %v7680
        %v7722 = vsel %vm792, %v7680, %v7682
        %v7723 = vsel %vm792, %v7682, %v7684
        %v7724 = vsel %vm792, %v7684, %v7686
        %v7725 = vsel %vm792, %v7686, %v7688
        %v7726 = vsel %vm792, %v7688, %v7690
        %v7727 = vsel %vm792, %v7690, %v7692
        %v7728 = vsel %vm792, %v7692, %v7694
        %v7729 = vsel %vm792, %v7696, %v7698
        %v7730 = vsel %vm792, %v7698, %v7700
        %v7731 = vsel %vm792, %v7700, %v7702
        %v7732 = vsel %vm792, %v7702, %v7704
        %v7733 = vsel %vm792, %v7704, %v7706
        %v7734 = vsel %vm792, %v7706, %v7708
        %v7735 = vsel %vm792, %v7708, %v7710
        %v7736 = vsel %vm792, %v7710, %v7712
        %7761 = vrot.lane.b32.xlu0 %v6642, 63
        %v7762 = vpop.permute.xlu0 %7761
        %7763 = vrot.lane.b32.xlu0 %v6643, 63
        %v7764 = vpop.permute.xlu0 %7763
        %7765 = vrot.lane.b32.xlu0 %v6644, 63
        %v7766 = vpop.permute.xlu0 %7765
        %7767 = vrot.lane.b32.xlu0 %v6645, 63
        %v7768 = vpop.permute.xlu0 %7767
        %7769 = vrot.lane.b32.xlu0 %v6646, 63
        %v7770 = vpop.permute.xlu0 %7769
        %7771 = vrot.lane.b32.xlu0 %v6647, 63
        %v7772 = vpop.permute.xlu0 %7771
        %7773 = vrot.lane.b32.xlu0 %v6648, 63
        %v7774 = vpop.permute.xlu0 %7773
        %7775 = vrot.lane.b32.xlu0 %v6649, 63
        %v7776 = vpop.permute.xlu0 %7775
        %7777 = vrot.lane.b32.xlu0 %v6707, 63
        %v7778 = vpop.permute.xlu0 %7777
        %7779 = vrot.lane.b32.xlu0 %v6650, 63
        %v7780 = vpop.permute.xlu0 %7779
        %7781 = vrot.lane.b32.xlu0 %v6651, 63
        %v7782 = vpop.permute.xlu0 %7781
        %7783 = vrot.lane.b32.xlu0 %v6652, 63
        %v7784 = vpop.permute.xlu0 %7783
        %7785 = vrot.lane.b32.xlu0 %v6653, 63
        %v7786 = vpop.permute.xlu0 %7785
        %7787 = vrot.lane.b32.xlu0 %v6654, 63
        %v7788 = vpop.permute.xlu0 %7787
        %7789 = vrot.lane.b32.xlu0 %v6655, 63
        %v7790 = vpop.permute.xlu0 %7789
        %7791 = vrot.lane.b32.xlu0 %v6656, 63
        %v7792 = vpop.permute.xlu0 %7791
        %7793 = vrot.lane.b32.xlu0 %v6657, 63
        %v7794 = vpop.permute.xlu0 %7793
        %7795 = vrot.lane.b32.xlu0 %v6708, 63
        %v7796 = vpop.permute.xlu0 %7795
        %7797 = vrot.lane.b32.xlu0 %v6658, 63
        %v7798 = vpop.permute.xlu0 %7797
        %7799 = vrot.lane.b32.xlu0 %v6659, 63
        %v7800 = vpop.permute.xlu0 %7799
        %7801 = vrot.lane.b32.xlu0 %v6660, 63
        %v7802 = vpop.permute.xlu0 %7801
        %7803 = vrot.lane.b32.xlu0 %v6661, 63
        %v7804 = vpop.permute.xlu0 %7803
        %7805 = vrot.lane.b32.xlu0 %v6662, 63
        %v7806 = vpop.permute.xlu0 %7805
        %7807 = vrot.lane.b32.xlu0 %v6663, 63
        %v7808 = vpop.permute.xlu0 %7807
        %7809 = vrot.lane.b32.xlu0 %v6664, 63
        %v7810 = vpop.permute.xlu0 %7809
        %7811 = vrot.lane.b32.xlu0 %v6665, 63
        %v7812 = vpop.permute.xlu0 %7811
        %7813 = vrot.lane.b32.xlu0 %v6709, 63
        %v7814 = vpop.permute.xlu0 %7813
        %v7815 = vsel %vm2568, %v7762, %v7764
        %v7816 = vsel %vm2568, %v7764, %v7766
        %v7817 = vsel %vm2568, %v7766, %v7768
        %v7818 = vsel %vm2568, %v7768, %v7770
        %v7819 = vsel %vm2568, %v7770, %v7772
        %v7820 = vsel %vm2568, %v7772, %v7774
        %v7821 = vsel %vm2568, %v7774, %v7776
        %v7822 = vsel %vm2568, %v7776, %v7778
        %v7823 = vsel %vm2568, %v7780, %v7782
        %v7824 = vsel %vm2568, %v7782, %v7784
        %v7825 = vsel %vm2568, %v7784, %v7786
        %v7826 = vsel %vm2568, %v7786, %v7788
        %v7827 = vsel %vm2568, %v7788, %v7790
        %v7828 = vsel %vm2568, %v7790, %v7792
        %v7829 = vsel %vm2568, %v7792, %v7794
        %v7830 = vsel %vm2568, %v7794, %v7796
        %v7831 = vsel %vm2568, %v7798, %v7800
        %v7832 = vsel %vm2568, %v7800, %v7802
        %v7833 = vsel %vm2568, %v7802, %v7804
        %v7834 = vsel %vm2568, %v7804, %v7806
        %v7835 = vsel %vm2568, %v7806, %v7808
        %v7836 = vsel %vm2568, %v7808, %v7810
        %v7837 = vsel %vm2568, %v7810, %v7812
        %v7838 = vsel %vm2568, %v7812, %v7814
        %7890 = vrot.lane.b32.xlu0 %v6987, 62
        %v7891 = vpop.permute.xlu0 %7890
        %7892 = vrot.lane.b32.xlu0 %v6988, 62
        %v7893 = vpop.permute.xlu0 %7892
        %7894 = vrot.lane.b32.xlu0 %v6989, 62
        %v7895 = vpop.permute.xlu0 %7894
        %7896 = vrot.lane.b32.xlu0 %v6990, 62
        %v7897 = vpop.permute.xlu0 %7896
        %7898 = vrot.lane.b32.xlu0 %v6991, 62
        %v7899 = vpop.permute.xlu0 %7898
        %7900 = vrot.lane.b32.xlu0 %v6992, 62
        %v7901 = vpop.permute.xlu0 %7900
        %7902 = vrot.lane.b32.xlu0 %v6993, 62
        %v7903 = vpop.permute.xlu0 %7902
        %7904 = vrot.lane.b32.xlu0 %v6994, 62
        %v7905 = vpop.permute.xlu0 %7904
        %7906 = vrot.lane.b32.xlu0 %v6995, 62
        %v7907 = vpop.permute.xlu0 %7906
        %7908 = vrot.lane.b32.xlu0 %v6996, 62
        %v7909 = vpop.permute.xlu0 %7908
        %7910 = vrot.lane.b32.xlu0 %v6997, 62
        %v7911 = vpop.permute.xlu0 %7910
        %7912 = vrot.lane.b32.xlu0 %v6998, 62
        %v7913 = vpop.permute.xlu0 %7912
        %7914 = vrot.lane.b32.xlu0 %v6999, 62
        %v7915 = vpop.permute.xlu0 %7914
        %7916 = vrot.lane.b32.xlu0 %v7000, 62
        %v7917 = vpop.permute.xlu0 %7916
        %7918 = vrot.lane.b32.xlu0 %v7001, 62
        %v7919 = vpop.permute.xlu0 %7918
        %7920 = vrot.lane.b32.xlu0 %v7002, 62
        %v7921 = vpop.permute.xlu0 %7920
        %7922 = vrot.lane.b32.xlu0 %v7003, 62
        %v7923 = vpop.permute.xlu0 %7922
        %7924 = vrot.lane.b32.xlu0 %v7004, 62
        %v7925 = vpop.permute.xlu0 %7924
        %7926 = vrot.lane.b32.xlu0 %v7005, 62
        %v7927 = vpop.permute.xlu0 %7926
        %7928 = vrot.lane.b32.xlu0 %v7006, 62
        %v7929 = vpop.permute.xlu0 %7928
        %7930 = vrot.lane.b32.xlu0 %v7007, 62
        %v7931 = vpop.permute.xlu0 %7930
        %7932 = vrot.lane.b32.xlu0 %v7008, 62
        %v7933 = vpop.permute.xlu0 %7932
        %7934 = vrot.lane.b32.xlu0 %v7009, 62
        %v7935 = vpop.permute.xlu0 %7934
        %7936 = vrot.lane.b32.xlu0 %v7010, 62
        %v7937 = vpop.permute.xlu0 %7936
        %7938 = vrot.lane.b32.xlu0 %v7011, 62
        %v7939 = vpop.permute.xlu0 %7938
        %7940 = vrot.lane.b32.xlu0 %v7012, 62
        %v7941 = vpop.permute.xlu0 %7940
        %7942 = vrot.lane.b32.xlu0 %v7013, 62
        %v7943 = vpop.permute.xlu0 %7942
        %v7944 = vsel %vm2612, %v7891, %v7893
        %v7945 = vsel %vm2612, %v7893, %v7895
        %v7946 = vsel %vm2612, %v7895, %v7897
        %v7947 = vsel %vm2612, %v7897, %v7899
        %v7948 = vsel %vm2612, %v7899, %v7901
        %v7949 = vsel %vm2612, %v7901, %v7903
        %v7950 = vsel %vm2612, %v7903, %v7905
        %v7951 = vsel %vm2612, %v7905, %v7907
        %v7952 = vsel %vm2612, %v7909, %v7911
        %v7953 = vsel %vm2612, %v7911, %v7913
        %v7954 = vsel %vm2612, %v7913, %v7915
        %v7955 = vsel %vm2612, %v7915, %v7917
        %v7956 = vsel %vm2612, %v7917, %v7919
        %v7957 = vsel %vm2612, %v7919, %v7921
        %v7958 = vsel %vm2612, %v7921, %v7923
        %v7959 = vsel %vm2612, %v7923, %v7925
        %v7960 = vsel %vm2612, %v7927, %v7929
        %v7961 = vsel %vm2612, %v7929, %v7931
        %v7962 = vsel %vm2612, %v7931, %v7933
        %v7963 = vsel %vm2612, %v7933, %v7935
        %v7964 = vsel %vm2612, %v7935, %v7937
        %v7965 = vsel %vm2612, %v7937, %v7939
        %v7966 = vsel %vm2612, %v7939, %v7941
        %v7967 = vsel %vm2612, %v7941, %v7943
        %v7992 = vld [vmem:[%s19] sm:$0xff]
        %v7993 = vld [vmem:[%s19 + $0x8] sm:$0xff]
        %v7994 = vld [vmem:[%s19 + $0x10] sm:$0xff]
        %v7995 = vld [vmem:[%s19 + $0x18] sm:$0xff]
        %v7996 = vld [vmem:[%s19 + $0x20] sm:$0xff]
        %v7997 = vld [vmem:[%s19 + $0x28] sm:$0xff]
        %vm7998 = vcmask 719872
        %v8000 = vsel %vm7998, %v7993, 0
        %v8003 = vsel %vm7998, %v7995, 0
        %v8006 = vsel %vm7998, %v7997, 0
        %8008 = vmatpush.msra.mxu0 %v7584
        %8009 = vmatpush.msra.mxu0 %v7471
        %8010 = vmatpush.msra.mxu0 %v7463
        %8011 = vmatpush.msra.mxu0 %v7455
        %8012 = vmatpush.msra.mxu0 %v7369
        %8013 = vmatpush.msra.mxu0 %v7361
        %8014 = vmatpush.msra.mxu0 %v7353
        %8015 = vmatpush.msra.mxu0 %v7240
        %8016 = vmatpush.msra.mxu0 %v7232
        %8017 = vmatpush.msra.mxu0 %v7224
        %8018 = vmatpush.msra.mxu0 %v7111
        %8019 = vmatpush.msra.mxu0 %v7103
        %8020 = vmatpush.msra.mxu0 %v7095
        %8021 = vmatpush.msra.mxu0 %v6699
        %8022 = vmatpush.msra.mxu0 %v6691
        %8023 = vmatpush.msra.mxu0 %v6683
        %8024 = vmatmul.f32.gmra.mxu0 %v7992
        %v8025 = vpop.f32.mrf.mxu0
        %v8026 = vadd.f32 0.0, %v8025
        %8027 = vmatmul.f32.gmra.mxu0 %v7994
        %v8028 = vpop.f32.mrf.mxu0
        %v8029 = vadd.f32 0.0, %v8028
        %8030 = vmatmul.f32.gmra.mxu0 %v7996
        %v8031 = vpop.f32.mrf.mxu0
        %v8032 = vadd.f32 0.0, %v8031
        %8033 = vdwg.mxu0
        %8034 = vmatpush.msra.mxu0 0.0
        %8035 = vmatpush.msra.mxu0 0.0
        %8036 = vmatpush.msra.mxu0 0.0
        %8037 = vmatpush.msra.mxu0 0.0
        %8038 = vmatpush.msra.mxu0 0.0
        %8039 = vmatpush.msra.mxu0 %v7960
        %8040 = vmatpush.msra.mxu0 %v7952
        %8041 = vmatpush.msra.mxu0 %v7944
        %8042 = vmatpush.msra.mxu0 %v7831
        %8043 = vmatpush.msra.mxu0 %v7823
        %8044 = vmatpush.msra.mxu0 %v7815
        %8045 = vmatpush.msra.mxu0 %v7729
        %8046 = vmatpush.msra.mxu0 %v7721
        %8047 = vmatpush.msra.mxu0 %v7713
        %8048 = vmatpush.msra.mxu0 %v7600
        %8049 = vmatpush.msra.mxu0 %v7592
        %8050 = vmatmul.f32.gmra.mxu0 %v8000
        %v8051 = vpop.f32.mrf.mxu0
        %v8052 = vadd.f32 %v8026, %v8051
        %8053 = vmatmul.f32.gmra.mxu0 %v8003
        %v8054 = vpop.f32.mrf.mxu0
        %v8055 = vadd.f32 %v8029, %v8054
        %8056 = vmatmul.f32.gmra.mxu0 %v8006
        %v8057 = vpop.f32.mrf.mxu0
        %v8058 = vadd.f32 %v8032, %v8057
        %8059 = vdwg.mxu0
        %8060 = vmatpush.msra.mxu0 %v7585
        %8061 = vmatpush.msra.mxu0 %v7472
        %8062 = vmatpush.msra.mxu0 %v7464
        %8063 = vmatpush.msra.mxu0 %v7456
        %8064 = vmatpush.msra.mxu0 %v7370
        %8065 = vmatpush.msra.mxu0 %v7362
        %8066 = vmatpush.msra.mxu0 %v7354
        %8067 = vmatpush.msra.mxu0 %v7241
        %8068 = vmatpush.msra.mxu0 %v7233
        %8069 = vmatpush.msra.mxu0 %v7225
        %8070 = vmatpush.msra.mxu0 %v7112
        %8071 = vmatpush.msra.mxu0 %v7104
        %8072 = vmatpush.msra.mxu0 %v7096
        %8073 = vmatpush.msra.mxu0 %v6700
        %8074 = vmatpush.msra.mxu0 %v6692
        %8075 = vmatpush.msra.mxu0 %v6684
        %8076 = vmatmul.f32.gmra.mxu0 %v7992
        %v8077 = vpop.f32.mrf.mxu0
        %v8078 = vadd.f32 0.0, %v8077
        %8079 = vmatmul.f32.gmra.mxu0 %v7994
        %v8080 = vpop.f32.mrf.mxu0
        %v8081 = vadd.f32 0.0, %v8080
        %8082 = vmatmul.f32.gmra.mxu0 %v7996
        %v8083 = vpop.f32.mrf.mxu0
        %v8084 = vadd.f32 0.0, %v8083
        %8085 = vdwg.mxu0
        %8086 = vmatpush.msra.mxu0 0.0
        %8087 = vmatpush.msra.mxu0 0.0
        %8088 = vmatpush.msra.mxu0 0.0
        %8089 = vmatpush.msra.mxu0 0.0
        %8090 = vmatpush.msra.mxu0 0.0
        %8091 = vmatpush.msra.mxu0 %v7961
        %8092 = vmatpush.msra.mxu0 %v7953
        %8093 = vmatpush.msra.mxu0 %v7945
        %8094 = vmatpush.msra.mxu0 %v7832
        %8095 = vmatpush.msra.mxu0 %v7824
        %8096 = vmatpush.msra.mxu0 %v7816
        %8097 = vmatpush.msra.mxu0 %v7730
        %8098 = vmatpush.msra.mxu0 %v7722
        %8099 = vmatpush.msra.mxu0 %v7714
        %8100 = vmatpush.msra.mxu0 %v7601
        %8101 = vmatpush.msra.mxu0 %v7593
        %8102 = vmatmul.f32.gmra.mxu0 %v8000
        %v8103 = vpop.f32.mrf.mxu0
        %v8104 = vadd.f32 %v8078, %v8103
        %8105 = vmatmul.f32.gmra.mxu0 %v8003
        %v8106 = vpop.f32.mrf.mxu0
        %v8107 = vadd.f32 %v8081, %v8106
        %8108 = vmatmul.f32.gmra.mxu0 %v8006
        %v8109 = vpop.f32.mrf.mxu0
        %v8110 = vadd.f32 %v8084, %v8109
        %8111 = vdwg.mxu0
        %8112 = vmatpush.msra.mxu0 %v7586
        %8113 = vmatpush.msra.mxu0 %v7473
        %8114 = vmatpush.msra.mxu0 %v7465
        %8115 = vmatpush.msra.mxu0 %v7457
        %8116 = vmatpush.msra.mxu0 %v7371
        %8117 = vmatpush.msra.mxu0 %v7363
        %8118 = vmatpush.msra.mxu0 %v7355
        %8119 = vmatpush.msra.mxu0 %v7242
        %8120 = vmatpush.msra.mxu0 %v7234
        %8121 = vmatpush.msra.mxu0 %v7226
        %8122 = vmatpush.msra.mxu0 %v7113
        %8123 = vmatpush.msra.mxu0 %v7105
        %8124 = vmatpush.msra.mxu0 %v7097
        %8125 = vmatpush.msra.mxu0 %v6701
        %8126 = vmatpush.msra.mxu0 %v6693
        %8127 = vmatpush.msra.mxu0 %v6685
        %8128 = vmatmul.f32.gmra.mxu0 %v7992
        %v8129 = vpop.f32.mrf.mxu0
        %v8130 = vadd.f32 0.0, %v8129
        %8131 = vmatmul.f32.gmra.mxu0 %v7994
        %v8132 = vpop.f32.mrf.mxu0
        %v8133 = vadd.f32 0.0, %v8132
        %8134 = vmatmul.f32.gmra.mxu0 %v7996
        %v8135 = vpop.f32.mrf.mxu0
        %v8136 = vadd.f32 0.0, %v8135
        %8137 = vdwg.mxu0
        %8138 = vmatpush.msra.mxu0 0.0
        %8139 = vmatpush.msra.mxu0 0.0
        %8140 = vmatpush.msra.mxu0 0.0
        %8141 = vmatpush.msra.mxu0 0.0
        %8142 = vmatpush.msra.mxu0 0.0
        %8143 = vmatpush.msra.mxu0 %v7962
        %8144 = vmatpush.msra.mxu0 %v7954
        %8145 = vmatpush.msra.mxu0 %v7946
        %8146 = vmatpush.msra.mxu0 %v7833
        %8147 = vmatpush.msra.mxu0 %v7825
        %8148 = vmatpush.msra.mxu0 %v7817
        %8149 = vmatpush.msra.mxu0 %v7731
        %8150 = vmatpush.msra.mxu0 %v7723
        %8151 = vmatpush.msra.mxu0 %v7715
        %8152 = vmatpush.msra.mxu0 %v7602
        %8153 = vmatpush.msra.mxu0 %v7594
        %8154 = vmatmul.f32.gmra.mxu0 %v8000
        %v8155 = vpop.f32.mrf.mxu0
        %v8156 = vadd.f32 %v8130, %v8155
        %8157 = vmatmul.f32.gmra.mxu0 %v8003
        %v8158 = vpop.f32.mrf.mxu0
        %v8159 = vadd.f32 %v8133, %v8158
        %8160 = vmatmul.f32.gmra.mxu0 %v8006
        %v8161 = vpop.f32.mrf.mxu0
        %v8162 = vadd.f32 %v8136, %v8161
        %8163 = vdwg.mxu0
        %8164 = vmatpush.msra.mxu0 %v7587
        %8165 = vmatpush.msra.mxu0 %v7474
        %8166 = vmatpush.msra.mxu0 %v7466
        %8167 = vmatpush.msra.mxu0 %v7458
        %8168 = vmatpush.msra.mxu0 %v7372
        %8169 = vmatpush.msra.mxu0 %v7364
        %8170 = vmatpush.msra.mxu0 %v7356
        %8171 = vmatpush.msra.mxu0 %v7243
        %8172 = vmatpush.msra.mxu0 %v7235
        %8173 = vmatpush.msra.mxu0 %v7227
        %8174 = vmatpush.msra.mxu0 %v7114
        %8175 = vmatpush.msra.mxu0 %v7106
        %8176 = vmatpush.msra.mxu0 %v7098
        %8177 = vmatpush.msra.mxu0 %v6702
        %8178 = vmatpush.msra.mxu0 %v6694
        %8179 = vmatpush.msra.mxu0 %v6686
        %8180 = vmatmul.f32.gmra.mxu0 %v7992
        %v8181 = vpop.f32.mrf.mxu0
        %v8182 = vadd.f32 0.0, %v8181
        %8183 = vmatmul.f32.gmra.mxu0 %v7994
        %v8184 = vpop.f32.mrf.mxu0
        %v8185 = vadd.f32 0.0, %v8184
        %8186 = vmatmul.f32.gmra.mxu0 %v7996
        %v8187 = vpop.f32.mrf.mxu0
        %v8188 = vadd.f32 0.0, %v8187
        %8189 = vdwg.mxu0
        %8190 = vmatpush.msra.mxu0 0.0
        %8191 = vmatpush.msra.mxu0 0.0
        %8192 = vmatpush.msra.mxu0 0.0
        %8193 = vmatpush.msra.mxu0 0.0
        %8194 = vmatpush.msra.mxu0 0.0
        %8195 = vmatpush.msra.mxu0 %v7963
        %8196 = vmatpush.msra.mxu0 %v7955
        %8197 = vmatpush.msra.mxu0 %v7947
        %8198 = vmatpush.msra.mxu0 %v7834
        %8199 = vmatpush.msra.mxu0 %v7826
        %8200 = vmatpush.msra.mxu0 %v7818
        %8201 = vmatpush.msra.mxu0 %v7732
        %8202 = vmatpush.msra.mxu0 %v7724
        %8203 = vmatpush.msra.mxu0 %v7716
        %8204 = vmatpush.msra.mxu0 %v7603
        %8205 = vmatpush.msra.mxu0 %v7595
        %8206 = vmatmul.f32.gmra.mxu0 %v8000
        %v8207 = vpop.f32.mrf.mxu0
        %v8208 = vadd.f32 %v8182, %v8207
        %8209 = vmatmul.f32.gmra.mxu0 %v8003
        %v8210 = vpop.f32.mrf.mxu0
        %v8211 = vadd.f32 %v8185, %v8210
        %8212 = vmatmul.f32.gmra.mxu0 %v8006
        %v8213 = vpop.f32.mrf.mxu0
        %v8214 = vadd.f32 %v8188, %v8213
        %8215 = vdwg.mxu0
        %8216 = vmatpush.msra.mxu0 %v7588
        %8217 = vmatpush.msra.mxu0 %v7475
        %8218 = vmatpush.msra.mxu0 %v7467
        %8219 = vmatpush.msra.mxu0 %v7459
        %8220 = vmatpush.msra.mxu0 %v7373
        %8221 = vmatpush.msra.mxu0 %v7365
        %8222 = vmatpush.msra.mxu0 %v7357
        %8223 = vmatpush.msra.mxu0 %v7244
        %8224 = vmatpush.msra.mxu0 %v7236
        %8225 = vmatpush.msra.mxu0 %v7228
        %8226 = vmatpush.msra.mxu0 %v7115
        %8227 = vmatpush.msra.mxu0 %v7107
        %8228 = vmatpush.msra.mxu0 %v7099
        %8229 = vmatpush.msra.mxu0 %v6703
        %8230 = vmatpush.msra.mxu0 %v6695
        %8231 = vmatpush.msra.mxu0 %v6687
        %8232 = vmatmul.f32.gmra.mxu0 %v7992
        %v8233 = vpop.f32.mrf.mxu0
        %v8234 = vadd.f32 0.0, %v8233
        %8235 = vmatmul.f32.gmra.mxu0 %v7994
        %v8236 = vpop.f32.mrf.mxu0
        %v8237 = vadd.f32 0.0, %v8236
        %8238 = vmatmul.f32.gmra.mxu0 %v7996
        %v8239 = vpop.f32.mrf.mxu0
        %v8240 = vadd.f32 0.0, %v8239
        %8241 = vdwg.mxu0
        %8242 = vmatpush.msra.mxu0 0.0
        %8243 = vmatpush.msra.mxu0 0.0
        %8244 = vmatpush.msra.mxu0 0.0
        %8245 = vmatpush.msra.mxu0 0.0
        %8246 = vmatpush.msra.mxu0 0.0
        %8247 = vmatpush.msra.mxu0 %v7964
        %8248 = vmatpush.msra.mxu0 %v7956
        %8249 = vmatpush.msra.mxu0 %v7948
        %8250 = vmatpush.msra.mxu0 %v7835
        %8251 = vmatpush.msra.mxu0 %v7827
        %8252 = vmatpush.msra.mxu0 %v7819
        %8253 = vmatpush.msra.mxu0 %v7733
        %8254 = vmatpush.msra.mxu0 %v7725
        %8255 = vmatpush.msra.mxu0 %v7717
        %8256 = vmatpush.msra.mxu0 %v7604
        %8257 = vmatpush.msra.mxu0 %v7596
        %8258 = vmatmul.f32.gmra.mxu0 %v8000
        %v8259 = vpop.f32.mrf.mxu0
        %v8260 = vadd.f32 %v8234, %v8259
        %8261 = vmatmul.f32.gmra.mxu0 %v8003
        %v8262 = vpop.f32.mrf.mxu0
        %v8263 = vadd.f32 %v8237, %v8262
        %8264 = vmatmul.f32.gmra.mxu0 %v8006
        %v8265 = vpop.f32.mrf.mxu0
        %v8266 = vadd.f32 %v8240, %v8265
        %8267 = vdwg.mxu0
        %8268 = vmatpush.msra.mxu0 %v7589
        %8269 = vmatpush.msra.mxu0 %v7476
        %8270 = vmatpush.msra.mxu0 %v7468
        %8271 = vmatpush.msra.mxu0 %v7460
        %8272 = vmatpush.msra.mxu0 %v7374
        %8273 = vmatpush.msra.mxu0 %v7366
        %8274 = vmatpush.msra.mxu0 %v7358
        %8275 = vmatpush.msra.mxu0 %v7245
        %8276 = vmatpush.msra.mxu0 %v7237
        %8277 = vmatpush.msra.mxu0 %v7229
        %8278 = vmatpush.msra.mxu0 %v7116
        %8279 = vmatpush.msra.mxu0 %v7108
        %8280 = vmatpush.msra.mxu0 %v7100
        %8281 = vmatpush.msra.mxu0 %v6704
        %8282 = vmatpush.msra.mxu0 %v6696
        %8283 = vmatpush.msra.mxu0 %v6688
        %8284 = vmatmul.f32.gmra.mxu0 %v7992
        %v8285 = vpop.f32.mrf.mxu0
        %v8286 = vadd.f32 0.0, %v8285
        %8287 = vmatmul.f32.gmra.mxu0 %v7994
        %v8288 = vpop.f32.mrf.mxu0
        %v8289 = vadd.f32 0.0, %v8288
        %8290 = vmatmul.f32.gmra.mxu0 %v7996
        %v8291 = vpop.f32.mrf.mxu0
        %v8292 = vadd.f32 0.0, %v8291
        %8293 = vdwg.mxu0
        %8294 = vmatpush.msra.mxu0 0.0
        %8295 = vmatpush.msra.mxu0 0.0
        %8296 = vmatpush.msra.mxu0 0.0
        %8297 = vmatpush.msra.mxu0 0.0
        %8298 = vmatpush.msra.mxu0 0.0
        %8299 = vmatpush.msra.mxu0 %v7965
        %8300 = vmatpush.msra.mxu0 %v7957
        %8301 = vmatpush.msra.mxu0 %v7949
        %8302 = vmatpush.msra.mxu0 %v7836
        %8303 = vmatpush.msra.mxu0 %v7828
        %8304 = vmatpush.msra.mxu0 %v7820
        %8305 = vmatpush.msra.mxu0 %v7734
        %8306 = vmatpush.msra.mxu0 %v7726
        %8307 = vmatpush.msra.mxu0 %v7718
        %8308 = vmatpush.msra.mxu0 %v7605
        %8309 = vmatpush.msra.mxu0 %v7597
        %8310 = vmatmul.f32.gmra.mxu0 %v8000
        %v8311 = vpop.f32.mrf.mxu0
        %v8312 = vadd.f32 %v8286, %v8311
        %8313 = vmatmul.f32.gmra.mxu0 %v8003
        %v8314 = vpop.f32.mrf.mxu0
        %v8315 = vadd.f32 %v8289, %v8314
        %8316 = vmatmul.f32.gmra.mxu0 %v8006
        %v8317 = vpop.f32.mrf.mxu0
        %v8318 = vadd.f32 %v8292, %v8317
        %8319 = vdwg.mxu0
        %8320 = vmatpush.msra.mxu0 %v7590
        %8321 = vmatpush.msra.mxu0 %v7477
        %8322 = vmatpush.msra.mxu0 %v7469
        %8323 = vmatpush.msra.mxu0 %v7461
        %8324 = vmatpush.msra.mxu0 %v7375
        %8325 = vmatpush.msra.mxu0 %v7367
        %8326 = vmatpush.msra.mxu0 %v7359
        %8327 = vmatpush.msra.mxu0 %v7246
        %8328 = vmatpush.msra.mxu0 %v7238
        %8329 = vmatpush.msra.mxu0 %v7230
        %8330 = vmatpush.msra.mxu0 %v7117
        %8331 = vmatpush.msra.mxu0 %v7109
        %8332 = vmatpush.msra.mxu0 %v7101
        %8333 = vmatpush.msra.mxu0 %v6705
        %8334 = vmatpush.msra.mxu0 %v6697
        %8335 = vmatpush.msra.mxu0 %v6689
        %8336 = vmatmul.f32.gmra.mxu0 %v7992
        %v8337 = vpop.f32.mrf.mxu0
        %v8338 = vadd.f32 0.0, %v8337
        %8339 = vmatmul.f32.gmra.mxu0 %v7994
        %v8340 = vpop.f32.mrf.mxu0
        %v8341 = vadd.f32 0.0, %v8340
        %8342 = vmatmul.f32.gmra.mxu0 %v7996
        %v8343 = vpop.f32.mrf.mxu0
        %v8344 = vadd.f32 0.0, %v8343
        %8345 = vdwg.mxu0
        %8346 = vmatpush.msra.mxu0 0.0
        %8347 = vmatpush.msra.mxu0 0.0
        %8348 = vmatpush.msra.mxu0 0.0
        %8349 = vmatpush.msra.mxu0 0.0
        %8350 = vmatpush.msra.mxu0 0.0
        %8351 = vmatpush.msra.mxu0 %v7966
        %8352 = vmatpush.msra.mxu0 %v7958
        %8353 = vmatpush.msra.mxu0 %v7950
        %8354 = vmatpush.msra.mxu0 %v7837
        %8355 = vmatpush.msra.mxu0 %v7829
        %8356 = vmatpush.msra.mxu0 %v7821
        %8357 = vmatpush.msra.mxu0 %v7735
        %8358 = vmatpush.msra.mxu0 %v7727
        %8359 = vmatpush.msra.mxu0 %v7719
        %8360 = vmatpush.msra.mxu0 %v7606
        %8361 = vmatpush.msra.mxu0 %v7598
        %8362 = vmatmul.f32.gmra.mxu0 %v8000
        %v8363 = vpop.f32.mrf.mxu0
        %v8364 = vadd.f32 %v8338, %v8363
        %8365 = vmatmul.f32.gmra.mxu0 %v8003
        %v8366 = vpop.f32.mrf.mxu0
        %v8367 = vadd.f32 %v8341, %v8366
        %8368 = vmatmul.f32.gmra.mxu0 %v8006
        %v8369 = vpop.f32.mrf.mxu0
        %v8370 = vadd.f32 %v8344, %v8369
        %8371 = vdwg.mxu0
        %8372 = vmatpush.msra.mxu0 %v7591
        %8373 = vmatpush.msra.mxu0 %v7478
        %8374 = vmatpush.msra.mxu0 %v7470
        %8375 = vmatpush.msra.mxu0 %v7462
        %8376 = vmatpush.msra.mxu0 %v7376
        %8377 = vmatpush.msra.mxu0 %v7368
        %8378 = vmatpush.msra.mxu0 %v7360
        %8379 = vmatpush.msra.mxu0 %v7247
        %8380 = vmatpush.msra.mxu0 %v7239
        %8381 = vmatpush.msra.mxu0 %v7231
        %8382 = vmatpush.msra.mxu0 %v7118
        %8383 = vmatpush.msra.mxu0 %v7110
        %8384 = vmatpush.msra.mxu0 %v7102
        %8385 = vmatpush.msra.mxu0 %v6706
        %8386 = vmatpush.msra.mxu0 %v6698
        %8387 = vmatpush.msra.mxu0 %v6690
        %8388 = vmatmul.f32.gmra.mxu0 %v7992
        %v8389 = vpop.f32.mrf.mxu0
        %v8390 = vadd.f32 0.0, %v8389
        %8391 = vmatmul.f32.gmra.mxu0 %v7994
        %v8392 = vpop.f32.mrf.mxu0
        %v8393 = vadd.f32 0.0, %v8392
        %8394 = vmatmul.f32.gmra.mxu0 %v7996
        %v8395 = vpop.f32.mrf.mxu0
        %v8396 = vadd.f32 0.0, %v8395
        %8397 = vdwg.mxu0
        %8398 = vmatpush.msra.mxu0 0.0
        %8399 = vmatpush.msra.mxu0 0.0
        %8400 = vmatpush.msra.mxu0 0.0
        %8401 = vmatpush.msra.mxu0 0.0
        %8402 = vmatpush.msra.mxu0 0.0
        %8403 = vmatpush.msra.mxu0 %v7967
        %8404 = vmatpush.msra.mxu0 %v7959
        %8405 = vmatpush.msra.mxu0 %v7951
        %8406 = vmatpush.msra.mxu0 %v7838
        %8407 = vmatpush.msra.mxu0 %v7830
        %8408 = vmatpush.msra.mxu0 %v7822
        %8409 = vmatpush.msra.mxu0 %v7736
        %8410 = vmatpush.msra.mxu0 %v7728
        %8411 = vmatpush.msra.mxu0 %v7720
        %8412 = vmatpush.msra.mxu0 %v7607
        %8413 = vmatpush.msra.mxu0 %v7599
        %8414 = vmatmul.f32.gmra.mxu0 %v8000
        %v8415 = vpop.f32.mrf.mxu0
        %v8416 = vadd.f32 %v8390, %v8415
        %8417 = vmatmul.f32.gmra.mxu0 %v8003
        %v8418 = vpop.f32.mrf.mxu0
        %v8419 = vadd.f32 %v8393, %v8418
        %8420 = vmatmul.f32.gmra.mxu0 %v8006
        %v8421 = vpop.f32.mrf.mxu0
        %v8422 = vadd.f32 %v8396, %v8421
        %8423 = vdwg.mxu0
        %v8424 = vld [vmem:[%s20] sm:$0xff]
        %v8425 = vld [vmem:[%s20 + $0x8] sm:$0xff]
        %v8426 = vld [vmem:[%s20 + $0x10] sm:$0xff]
        %8428 = vset.pattern.permute.xlu0 0
        %8429 = vperm.xlu0 %8428, %v8424
        %v8430 = vpop.permute.xlu0 %8429
        %8433 = vset.pattern.permute.xlu0 0
        %8434 = vperm.xlu0 %8433, %v8425
        %v8435 = vpop.permute.xlu0 %8434
        %8438 = vset.pattern.permute.xlu0 0
        %8439 = vperm.xlu0 %8438, %v8426
        %v8440 = vpop.permute.xlu0 %8439
        %v8442 = vmul.f32 %v8052, %v8430
        %v8443 = vmul.f32 %v8104, %v8430
        %v8444 = vmul.f32 %v8156, %v8430
        %v8445 = vmul.f32 %v8208, %v8430
        %v8446 = vmul.f32 %v8260, %v8430
        %v8447 = vmul.f32 %v8312, %v8430
        %v8448 = vmul.f32 %v8364, %v8430
        %v8449 = vmul.f32 %v8416, %v8430
        %v8450 = vmul.f32 %v8055, %v8435
        %v8451 = vmul.f32 %v8107, %v8435
        %v8452 = vmul.f32 %v8159, %v8435
        %v8453 = vmul.f32 %v8211, %v8435
        %v8454 = vmul.f32 %v8263, %v8435
        %v8455 = vmul.f32 %v8315, %v8435
        %v8456 = vmul.f32 %v8367, %v8435
        %v8457 = vmul.f32 %v8419, %v8435
        %v8458 = vmul.f32 %v8058, %v8440
        %v8459 = vmul.f32 %v8110, %v8440
        %v8460 = vmul.f32 %v8162, %v8440
        %v8461 = vmul.f32 %v8214, %v8440
        %v8462 = vmul.f32 %v8266, %v8440
        %v8463 = vmul.f32 %v8318, %v8440
        %v8464 = vmul.f32 %v8370, %v8440
        %v8465 = vmul.f32 %v8422, %v8440
        %8466 = vset.pattern.permute.xlu0 1
        %8467 = vperm.xlu0 %8466, %v8424
        %v8468 = vpop.permute.xlu0 %8467
        %8470 = vset.pattern.permute.xlu0 1
        %8471 = vperm.xlu0 %8470, %v8425
        %v8472 = vpop.permute.xlu0 %8471
        %8474 = vset.pattern.permute.xlu0 1
        %8475 = vperm.xlu0 %8474, %v8426
        %v8476 = vpop.permute.xlu0 %8475
        %v8478 = vadd.f32 %v8442, %v8468
        %v8479 = vadd.f32 %v8443, %v8468
        %v8480 = vadd.f32 %v8444, %v8468
        %v8481 = vadd.f32 %v8445, %v8468
        %v8482 = vadd.f32 %v8446, %v8468
        %v8483 = vadd.f32 %v8447, %v8468
        %v8484 = vadd.f32 %v8448, %v8468
        %v8485 = vadd.f32 %v8449, %v8468
        %v8486 = vadd.f32 %v8450, %v8472
        %v8487 = vadd.f32 %v8451, %v8472
        %v8488 = vadd.f32 %v8452, %v8472
        %v8489 = vadd.f32 %v8453, %v8472
        %v8490 = vadd.f32 %v8454, %v8472
        %v8491 = vadd.f32 %v8455, %v8472
        %v8492 = vadd.f32 %v8456, %v8472
        %v8493 = vadd.f32 %v8457, %v8472
        %v8494 = vadd.f32 %v8458, %v8476
        %v8495 = vadd.f32 %v8459, %v8476
        %v8496 = vadd.f32 %v8460, %v8476
        %v8497 = vadd.f32 %v8461, %v8476
        %v8498 = vadd.f32 %v8462, %v8476
        %v8499 = vadd.f32 %v8463, %v8476
        %v8500 = vadd.f32 %v8464, %v8476
        %v8501 = vadd.f32 %v8465, %v8476
        %v8502 = vmax.f32 %v8478, 0.0
        %v8503 = vmax.f32 %v8479, 0.0
        %v8504 = vmax.f32 %v8480, 0.0
        %v8505 = vmax.f32 %v8481, 0.0
        %v8506 = vmax.f32 %v8482, 0.0
        %v8507 = vmax.f32 %v8483, 0.0
        %v8508 = vmax.f32 %v8484, 0.0
        %v8509 = vmax.f32 %v8485, 0.0
        %v8510 = vmax.f32 %v8486, 0.0
        %v8511 = vmax.f32 %v8487, 0.0
        %v8512 = vmax.f32 %v8488, 0.0
        %v8513 = vmax.f32 %v8489, 0.0
        %v8514 = vmax.f32 %v8490, 0.0
        %v8515 = vmax.f32 %v8491, 0.0
        %v8516 = vmax.f32 %v8492, 0.0
        %v8517 = vmax.f32 %v8493, 0.0
        %v8518 = vmax.f32 %v8494, 0.0
        %v8519 = vmax.f32 %v8495, 0.0
        %v8520 = vmax.f32 %v8496, 0.0
        %v8521 = vmax.f32 %v8497, 0.0
        %v8522 = vmax.f32 %v8498, 0.0
        %v8523 = vmax.f32 %v8499, 0.0
        %v8524 = vmax.f32 %v8500, 0.0
        %v8525 = vmax.f32 %v8501, 0.0
        %8526 = vst.msk [vmem:[#allocation2] sm:$0xff] %vm1995, 0.0
        %8527 = vst.msk [vmem:[#allocation2 + $0x48] sm:$0xff] %vm1995, 0.0
        %8528 = vst.msk [vmem:[#allocation2 + $0x90] sm:$0xff] %vm1995, 0.0
        %8553 = vrot.lane.b32.xlu0 %v8502, 33
        %v8554 = vpop.permute.xlu0 %8553
        %8555 = vrot.lane.b32.xlu0 %v8503, 33
        %v8556 = vpop.permute.xlu0 %8555
        %8557 = vrot.lane.b32.xlu0 %v8504, 33
        %v8558 = vpop.permute.xlu0 %8557
        %8559 = vrot.lane.b32.xlu0 %v8505, 33
        %v8560 = vpop.permute.xlu0 %8559
        %8561 = vrot.lane.b32.xlu0 %v8506, 33
        %v8562 = vpop.permute.xlu0 %8561
        %8563 = vrot.lane.b32.xlu0 %v8507, 33
        %v8564 = vpop.permute.xlu0 %8563
        %8565 = vrot.lane.b32.xlu0 %v8508, 33
        %v8566 = vpop.permute.xlu0 %8565
        %8567 = vrot.lane.b32.xlu0 %v8509, 33
        %v8568 = vpop.permute.xlu0 %8567
        %8569 = vrot.lane.b32.xlu0 %v8510, 33
        %v8570 = vpop.permute.xlu0 %8569
        %8571 = vrot.lane.b32.xlu0 %v8511, 33
        %v8572 = vpop.permute.xlu0 %8571
        %8573 = vrot.lane.b32.xlu0 %v8512, 33
        %v8574 = vpop.permute.xlu0 %8573
        %8575 = vrot.lane.b32.xlu0 %v8513, 33
        %v8576 = vpop.permute.xlu0 %8575
        %8577 = vrot.lane.b32.xlu0 %v8514, 33
        %v8578 = vpop.permute.xlu0 %8577
        %8579 = vrot.lane.b32.xlu0 %v8515, 33
        %v8580 = vpop.permute.xlu0 %8579
        %8581 = vrot.lane.b32.xlu0 %v8516, 33
        %v8582 = vpop.permute.xlu0 %8581
        %8583 = vrot.lane.b32.xlu0 %v8517, 33
        %v8584 = vpop.permute.xlu0 %8583
        %8585 = vrot.lane.b32.xlu0 %v8518, 33
        %v8586 = vpop.permute.xlu0 %8585
        %8587 = vrot.lane.b32.xlu0 %v8519, 33
        %v8588 = vpop.permute.xlu0 %8587
        %8589 = vrot.lane.b32.xlu0 %v8520, 33
        %v8590 = vpop.permute.xlu0 %8589
        %8591 = vrot.lane.b32.xlu0 %v8521, 33
        %v8592 = vpop.permute.xlu0 %8591
        %8593 = vrot.lane.b32.xlu0 %v8522, 33
        %v8594 = vpop.permute.xlu0 %8593
        %8595 = vrot.lane.b32.xlu0 %v8523, 33
        %v8596 = vpop.permute.xlu0 %8595
        %8597 = vrot.lane.b32.xlu0 %v8524, 33
        %v8598 = vpop.permute.xlu0 %8597
        %8599 = vrot.lane.b32.xlu0 %v8525, 33
        %v8600 = vpop.permute.xlu0 %8599
        %v8601 = vsel %vm1995, %v8554, %v8556
        %v8602 = vsel %vm1995, %v8556, %v8558
        %v8603 = vsel %vm1995, %v8558, %v8560
        %v8604 = vsel %vm1995, %v8560, %v8562
        %v8605 = vsel %vm1995, %v8562, %v8564
        %v8606 = vsel %vm1995, %v8564, %v8566
        %v8607 = vsel %vm1995, %v8566, %v8568
        %v8608 = vsel %vm1995, %v8570, %v8572
        %v8609 = vsel %vm1995, %v8572, %v8574
        %v8610 = vsel %vm1995, %v8574, %v8576
        %v8611 = vsel %vm1995, %v8576, %v8578
        %v8612 = vsel %vm1995, %v8578, %v8580
        %v8613 = vsel %vm1995, %v8580, %v8582
        %v8614 = vsel %vm1995, %v8582, %v8584
        %v8615 = vsel %vm1995, %v8586, %v8588
        %v8616 = vsel %vm1995, %v8588, %v8590
        %v8617 = vsel %vm1995, %v8590, %v8592
        %v8618 = vsel %vm1995, %v8592, %v8594
        %v8619 = vsel %vm1995, %v8594, %v8596
        %v8620 = vsel %vm1995, %v8596, %v8598
        %v8621 = vsel %vm1995, %v8598, %v8600
        %8649 = vst.msk [vmem:[#allocation2] sm:$0xff] %vm2037, %v8554
        %8650 = vst [vmem:[#allocation2 + $0x8] sm:$0xff] %v8601
        %8651 = vst [vmem:[#allocation2 + $0x10] sm:$0xff] %v8602
        %8652 = vst [vmem:[#allocation2 + $0x18] sm:$0xff] %v8603
        %8653 = vst [vmem:[#allocation2 + $0x20] sm:$0xff] %v8604
        %8654 = vst [vmem:[#allocation2 + $0x28] sm:$0xff] %v8605
        %8655 = vst [vmem:[#allocation2 + $0x30] sm:$0xff] %v8606
        %8656 = vst [vmem:[#allocation2 + $0x38] sm:$0xff] %v8607
        %8657 = vst.msk [vmem:[#allocation2 + $0x40] sm:$0xff] %vm1995, %v8568
        %8658 = vst.msk [vmem:[#allocation2 + $0x48] sm:$0xff] %vm2037, %v8570
        %8659 = vst [vmem:[#allocation2 + $0x50] sm:$0xff] %v8608
        %8660 = vst [vmem:[#allocation2 + $0x58] sm:$0xff] %v8609
        %8661 = vst [vmem:[#allocation2 + $0x60] sm:$0xff] %v8610
        %8662 = vst [vmem:[#allocation2 + $0x68] sm:$0xff] %v8611
        %8663 = vst [vmem:[#allocation2 + $0x70] sm:$0xff] %v8612
        %8664 = vst [vmem:[#allocation2 + $0x78] sm:$0xff] %v8613
        %8665 = vst [vmem:[#allocation2 + $0x80] sm:$0xff] %v8614
        %8666 = vst.msk [vmem:[#allocation2 + $0x88] sm:$0xff] %vm1995, %v8584
        %8667 = vst.msk [vmem:[#allocation2 + $0x90] sm:$0xff] %vm2037, %v8586
        %8668 = vst [vmem:[#allocation2 + $0x98] sm:$0xff] %v8615
        %8669 = vst [vmem:[#allocation2 + $0xa0] sm:$0xff] %v8616
        %8670 = vst [vmem:[#allocation2 + $0xa8] sm:$0xff] %v8617
        %8671 = vst [vmem:[#allocation2 + $0xb0] sm:$0xff] %v8618
        %8672 = vst [vmem:[#allocation2 + $0xb8] sm:$0xff] %v8619
        %8673 = vst [vmem:[#allocation2 + $0xc0] sm:$0xff] %v8620
        %8674 = vst [vmem:[#allocation2 + $0xc8] sm:$0xff] %v8621
        %8675 = vst.msk [vmem:[#allocation2 + $0xd0] sm:$0xff] %vm1995, %v8600
        %8676 = vst.msk [vmem:[#allocation2 + $0x40] sm:$0xff] %vm2047, 0.0
        %8677 = vst.msk [vmem:[#allocation2 + $0x88] sm:$0xff] %vm2047, 0.0
        %8678 = vst.msk [vmem:[#allocation2 + $0xd0] sm:$0xff] %vm2047, 0.0
        %v8679 = vld [vmem:[%s6] ss:$2 sm:$0xff]
        %v8680 = vld [vmem:[%s2050] ss:$2 sm:$0xff]
        %v8681 = vld [vmem:[#allocation2] sm:$0xff]
        %v8682 = vld [vmem:[#allocation2 + $0x8] sm:$0xff]
        %v8683 = vld [vmem:[#allocation2 + $0x10] sm:$0xff]
        %v8684 = vld [vmem:[#allocation2 + $0x18] sm:$0xff]
        %v8685 = vld [vmem:[#allocation2 + $0x20] sm:$0xff]
        %v8686 = vld [vmem:[#allocation2 + $0x28] sm:$0xff]
        %v8687 = vld [vmem:[#allocation2 + $0x30] sm:$0xff]
        %v8688 = vld [vmem:[#allocation2 + $0x38] sm:$0xff]
        %v8689 = vld [vmem:[#allocation2 + $0x48] sm:$0xff]
        %v8690 = vld [vmem:[#allocation2 + $0x50] sm:$0xff]
        %v8691 = vld [vmem:[#allocation2 + $0x58] sm:$0xff]
        %v8692 = vld [vmem:[#allocation2 + $0x60] sm:$0xff]
        %v8693 = vld [vmem:[#allocation2 + $0x68] sm:$0xff]
        %v8694 = vld [vmem:[#allocation2 + $0x70] sm:$0xff]
        %v8695 = vld [vmem:[#allocation2 + $0x78] sm:$0xff]
        %v8696 = vld [vmem:[#allocation2 + $0x80] sm:$0xff]
        %v8697 = vld [vmem:[#allocation2 + $0x90] sm:$0xff]
        %v8698 = vld [vmem:[#allocation2 + $0x98] sm:$0xff]
        %v8699 = vld [vmem:[#allocation2 + $0xa0] sm:$0xff]
        %v8700 = vld [vmem:[#allocation2 + $0xa8] sm:$0xff]
        %v8701 = vld [vmem:[#allocation2 + $0xb0] sm:$0xff]
        %v8702 = vld [vmem:[#allocation2 + $0xb8] sm:$0xff]
        %v8703 = vld [vmem:[#allocation2 + $0xc0] sm:$0xff]
        %v8704 = vld [vmem:[#allocation2 + $0xc8] sm:$0xff]
        %v8706 = vperm.slane %v8679, 0
        %v8707 = vperm.slane %v8679, 1
        %v8708 = vperm.slane %v8679, 2
        %v8709 = vperm.slane %v8679, 3
        %v8710 = vperm.slane %v8679, 4
        %v8711 = vperm.slane %v8679, 5
        %v8712 = vperm.slane %v8679, 6
        %v8713 = vperm.slane %v8679, 7
        %v8722 = vmul.f32 %v8681, %v8706
        %v8723 = vmul.f32 %v8682, %v8707
        %v8724 = vmul.f32 %v8683, %v8708
        %v8725 = vmul.f32 %v8684, %v8709
        %v8726 = vmul.f32 %v8685, %v8710
        %v8727 = vmul.f32 %v8686, %v8711
        %v8728 = vmul.f32 %v8687, %v8712
        %v8729 = vmul.f32 %v8688, %v8713
        %v8730 = vmul.f32 %v8689, %v8706
        %v8731 = vmul.f32 %v8690, %v8707
        %v8732 = vmul.f32 %v8691, %v8708
        %v8733 = vmul.f32 %v8692, %v8709
        %v8734 = vmul.f32 %v8693, %v8710
        %v8735 = vmul.f32 %v8694, %v8711
        %v8736 = vmul.f32 %v8695, %v8712
        %v8737 = vmul.f32 %v8696, %v8713
        %v8738 = vmul.f32 %v8697, %v8706
        %v8739 = vmul.f32 %v8698, %v8707
        %v8740 = vmul.f32 %v8699, %v8708
        %v8741 = vmul.f32 %v8700, %v8709
        %v8742 = vmul.f32 %v8701, %v8710
        %v8743 = vmul.f32 %v8702, %v8711
        %v8744 = vmul.f32 %v8703, %v8712
        %v8745 = vmul.f32 %v8704, %v8713
        %v8746 = vld [vmem:[#allocation2 + $0x40] sm:$0xff]
        %v8747 = vld [vmem:[#allocation2 + $0x88] sm:$0xff]
        %v8748 = vld [vmem:[#allocation2 + $0xd0] sm:$0xff]
        %v8750 = vperm.slane %v8680, 0
        %v8751 = vperm.slane %v8680, 1
        %v8752 = vperm.slane %v8680, 2
        %v8753 = vperm.slane %v8680, 3
        %v8754 = vperm.slane %v8680, 4
        %v8755 = vperm.slane %v8680, 5
        %v8756 = vperm.slane %v8680, 6
        %v8757 = vperm.slane %v8680, 7
        %8758 = vrot.lane.b32.xlu0 %v8750, 2
        %v8759 = vpop.permute.xlu0 %8758
        %8760 = vrot.lane.b32.xlu0 %v8751, 2
        %v8761 = vpop.permute.xlu0 %8760
        %8762 = vrot.lane.b32.xlu0 %v8752, 2
        %v8763 = vpop.permute.xlu0 %8762
        %8764 = vrot.lane.b32.xlu0 %v8753, 2
        %v8765 = vpop.permute.xlu0 %8764
        %8766 = vrot.lane.b32.xlu0 %v8754, 2
        %v8767 = vpop.permute.xlu0 %8766
        %8768 = vrot.lane.b32.xlu0 %v8755, 2
        %v8769 = vpop.permute.xlu0 %8768
        %8770 = vrot.lane.b32.xlu0 %v8756, 2
        %v8771 = vpop.permute.xlu0 %8770
        %8772 = vrot.lane.b32.xlu0 %v8757, 2
        %v8773 = vpop.permute.xlu0 %8772
        %v8774 = vsel %vm1770, %v8759, %v8761
        %v8775 = vsel %vm1770, %v8761, %v8763
        %v8776 = vsel %vm1770, %v8763, %v8765
        %v8777 = vsel %vm1770, %v8765, %v8767
        %v8778 = vsel %vm1770, %v8767, %v8769
        %v8779 = vsel %vm1770, %v8769, %v8771
        %v8780 = vsel %vm1770, %v8771, %v8773
        %v8790 = vmul.f32 %v8681, %v8759
        %v8791 = vmul.f32 %v8682, %v8774
        %v8792 = vmul.f32 %v8683, %v8775
        %v8793 = vmul.f32 %v8684, %v8776
        %v8794 = vmul.f32 %v8685, %v8777
        %v8795 = vmul.f32 %v8686, %v8778
        %v8796 = vmul.f32 %v8687, %v8779
        %v8797 = vmul.f32 %v8688, %v8780
        %v8798 = vmul.f32 %v8746, %v8773
        %v8799 = vmul.f32 %v8689, %v8759
        %v8800 = vmul.f32 %v8690, %v8774
        %v8801 = vmul.f32 %v8691, %v8775
        %v8802 = vmul.f32 %v8692, %v8776
        %v8803 = vmul.f32 %v8693, %v8777
        %v8804 = vmul.f32 %v8694, %v8778
        %v8805 = vmul.f32 %v8695, %v8779
        %v8806 = vmul.f32 %v8696, %v8780
        %v8807 = vmul.f32 %v8747, %v8773
        %v8808 = vmul.f32 %v8697, %v8759
        %v8809 = vmul.f32 %v8698, %v8774
        %v8810 = vmul.f32 %v8699, %v8775
        %v8811 = vmul.f32 %v8700, %v8776
        %v8812 = vmul.f32 %v8701, %v8777
        %v8813 = vmul.f32 %v8702, %v8778
        %v8814 = vmul.f32 %v8703, %v8779
        %v8815 = vmul.f32 %v8704, %v8780
        %v8816 = vmul.f32 %v8748, %v8773
        %8817 = vrot.lane.b32.xlu0 %v8706, 32
        %v8818 = vpop.permute.xlu0 %8817
        %8819 = vrot.lane.b32.xlu0 %v8707, 32
        %v8820 = vpop.permute.xlu0 %8819
        %8821 = vrot.lane.b32.xlu0 %v8708, 32
        %v8822 = vpop.permute.xlu0 %8821
        %8823 = vrot.lane.b32.xlu0 %v8709, 32
        %v8824 = vpop.permute.xlu0 %8823
        %8825 = vrot.lane.b32.xlu0 %v8710, 32
        %v8826 = vpop.permute.xlu0 %8825
        %8827 = vrot.lane.b32.xlu0 %v8711, 32
        %v8828 = vpop.permute.xlu0 %8827
        %8829 = vrot.lane.b32.xlu0 %v8712, 32
        %v8830 = vpop.permute.xlu0 %8829
        %8831 = vrot.lane.b32.xlu0 %v8713, 32
        %v8832 = vpop.permute.xlu0 %8831
        %v8833 = vsel %vm1806, %v8818, %v8820
        %v8834 = vsel %vm1806, %v8820, %v8822
        %v8835 = vsel %vm1806, %v8822, %v8824
        %v8836 = vsel %vm1806, %v8824, %v8826
        %v8837 = vsel %vm1806, %v8826, %v8828
        %v8838 = vsel %vm1806, %v8828, %v8830
        %v8839 = vsel %vm1806, %v8830, %v8832
        %v8849 = vmul.f32 %v8681, %v8818
        %v8850 = vmul.f32 %v8682, %v8833
        %v8851 = vmul.f32 %v8683, %v8834
        %v8852 = vmul.f32 %v8684, %v8835
        %v8853 = vmul.f32 %v8685, %v8836
        %v8854 = vmul.f32 %v8686, %v8837
        %v8855 = vmul.f32 %v8687, %v8838
        %v8856 = vmul.f32 %v8688, %v8839
        %v8857 = vmul.f32 %v8746, %v8832
        %v8858 = vmul.f32 %v8689, %v8818
        %v8859 = vmul.f32 %v8690, %v8833
        %v8860 = vmul.f32 %v8691, %v8834
        %v8861 = vmul.f32 %v8692, %v8835
        %v8862 = vmul.f32 %v8693, %v8836
        %v8863 = vmul.f32 %v8694, %v8837
        %v8864 = vmul.f32 %v8695, %v8838
        %v8865 = vmul.f32 %v8696, %v8839
        %v8866 = vmul.f32 %v8747, %v8832
        %v8867 = vmul.f32 %v8697, %v8818
        %v8868 = vmul.f32 %v8698, %v8833
        %v8869 = vmul.f32 %v8699, %v8834
        %v8870 = vmul.f32 %v8700, %v8835
        %v8871 = vmul.f32 %v8701, %v8836
        %v8872 = vmul.f32 %v8702, %v8837
        %v8873 = vmul.f32 %v8703, %v8838
        %v8874 = vmul.f32 %v8704, %v8839
        %v8875 = vmul.f32 %v8748, %v8832
        %8876 = vrot.lane.b32.xlu0 %v8750, 34
        %v8877 = vpop.permute.xlu0 %8876
        %8878 = vrot.lane.b32.xlu0 %v8751, 34
        %v8879 = vpop.permute.xlu0 %8878
        %8880 = vrot.lane.b32.xlu0 %v8752, 34
        %v8881 = vpop.permute.xlu0 %8880
        %8882 = vrot.lane.b32.xlu0 %v8753, 34
        %v8883 = vpop.permute.xlu0 %8882
        %8884 = vrot.lane.b32.xlu0 %v8754, 34
        %v8885 = vpop.permute.xlu0 %8884
        %8886 = vrot.lane.b32.xlu0 %v8755, 34
        %v8887 = vpop.permute.xlu0 %8886
        %8888 = vrot.lane.b32.xlu0 %v8756, 34
        %v8889 = vpop.permute.xlu0 %8888
        %8890 = vrot.lane.b32.xlu0 %v8757, 34
        %v8891 = vpop.permute.xlu0 %8890
        %v8892 = vsel %vm1818, %v8877, %v8879
        %v8893 = vsel %vm1818, %v8879, %v8881
        %v8894 = vsel %vm1818, %v8881, %v8883
        %v8895 = vsel %vm1818, %v8883, %v8885
        %v8896 = vsel %vm1818, %v8885, %v8887
        %v8897 = vsel %vm1818, %v8887, %v8889
        %v8898 = vsel %vm1818, %v8889, %v8891
        %v8908 = vmul.f32 %v8681, %v8877
        %v8909 = vmul.f32 %v8682, %v8892
        %v8910 = vmul.f32 %v8683, %v8893
        %v8911 = vmul.f32 %v8684, %v8894
        %v8912 = vmul.f32 %v8685, %v8895
        %v8913 = vmul.f32 %v8686, %v8896
        %v8914 = vmul.f32 %v8687, %v8897
        %v8915 = vmul.f32 %v8688, %v8898
        %v8916 = vmul.f32 %v8746, %v8891
        %v8917 = vmul.f32 %v8689, %v8877
        %v8918 = vmul.f32 %v8690, %v8892
        %v8919 = vmul.f32 %v8691, %v8893
        %v8920 = vmul.f32 %v8692, %v8894
        %v8921 = vmul.f32 %v8693, %v8895
        %v8922 = vmul.f32 %v8694, %v8896
        %v8923 = vmul.f32 %v8695, %v8897
        %v8924 = vmul.f32 %v8696, %v8898
        %v8925 = vmul.f32 %v8747, %v8891
        %v8926 = vmul.f32 %v8697, %v8877
        %v8927 = vmul.f32 %v8698, %v8892
        %v8928 = vmul.f32 %v8699, %v8893
        %v8929 = vmul.f32 %v8700, %v8894
        %v8930 = vmul.f32 %v8701, %v8895
        %v8931 = vmul.f32 %v8702, %v8896
        %v8932 = vmul.f32 %v8703, %v8897
        %v8933 = vmul.f32 %v8704, %v8898
        %v8934 = vmul.f32 %v8748, %v8891
        %8935 = vrot.lane.b32.xlu0 %v8706, 64
        %v8936 = vpop.permute.xlu0 %8935
        %8937 = vrot.lane.b32.xlu0 %v8707, 64
        %v8938 = vpop.permute.xlu0 %8937
        %8939 = vrot.lane.b32.xlu0 %v8708, 64
        %v8940 = vpop.permute.xlu0 %8939
        %8941 = vrot.lane.b32.xlu0 %v8709, 64
        %v8942 = vpop.permute.xlu0 %8941
        %8943 = vrot.lane.b32.xlu0 %v8710, 64
        %v8944 = vpop.permute.xlu0 %8943
        %8945 = vrot.lane.b32.xlu0 %v8711, 64
        %v8946 = vpop.permute.xlu0 %8945
        %8947 = vrot.lane.b32.xlu0 %v8712, 64
        %v8948 = vpop.permute.xlu0 %8947
        %8949 = vrot.lane.b32.xlu0 %v8713, 64
        %v8950 = vpop.permute.xlu0 %8949
        %v8951 = vsel %vm792, %v8936, %v8938
        %v8952 = vsel %vm792, %v8938, %v8940
        %v8953 = vsel %vm792, %v8940, %v8942
        %v8954 = vsel %vm792, %v8942, %v8944
        %v8955 = vsel %vm792, %v8944, %v8946
        %v8956 = vsel %vm792, %v8946, %v8948
        %v8957 = vsel %vm792, %v8948, %v8950
        %v8967 = vmul.f32 %v8681, %v8936
        %v8968 = vmul.f32 %v8682, %v8951
        %v8969 = vmul.f32 %v8683, %v8952
        %v8970 = vmul.f32 %v8684, %v8953
        %v8971 = vmul.f32 %v8685, %v8954
        %v8972 = vmul.f32 %v8686, %v8955
        %v8973 = vmul.f32 %v8687, %v8956
        %v8974 = vmul.f32 %v8688, %v8957
        %v8975 = vmul.f32 %v8746, %v8950
        %v8976 = vmul.f32 %v8689, %v8936
        %v8977 = vmul.f32 %v8690, %v8951
        %v8978 = vmul.f32 %v8691, %v8952
        %v8979 = vmul.f32 %v8692, %v8953
        %v8980 = vmul.f32 %v8693, %v8954
        %v8981 = vmul.f32 %v8694, %v8955
        %v8982 = vmul.f32 %v8695, %v8956
        %v8983 = vmul.f32 %v8696, %v8957
        %v8984 = vmul.f32 %v8747, %v8950
        %v8985 = vmul.f32 %v8697, %v8936
        %v8986 = vmul.f32 %v8698, %v8951
        %v8987 = vmul.f32 %v8699, %v8952
        %v8988 = vmul.f32 %v8700, %v8953
        %v8989 = vmul.f32 %v8701, %v8954
        %v8990 = vmul.f32 %v8702, %v8955
        %v8991 = vmul.f32 %v8703, %v8956
        %v8992 = vmul.f32 %v8704, %v8957
        %v8993 = vmul.f32 %v8748, %v8950
        %8994 = vrot.lane.b32.xlu0 %v8750, 66
        %v8995 = vpop.permute.xlu0 %8994
        %8996 = vrot.lane.b32.xlu0 %v8751, 66
        %v8997 = vpop.permute.xlu0 %8996
        %8998 = vrot.lane.b32.xlu0 %v8752, 66
        %v8999 = vpop.permute.xlu0 %8998
        %9000 = vrot.lane.b32.xlu0 %v8753, 66
        %v9001 = vpop.permute.xlu0 %9000
        %9002 = vrot.lane.b32.xlu0 %v8754, 66
        %v9003 = vpop.permute.xlu0 %9002
        %9004 = vrot.lane.b32.xlu0 %v8755, 66
        %v9005 = vpop.permute.xlu0 %9004
        %9006 = vrot.lane.b32.xlu0 %v8756, 66
        %v9007 = vpop.permute.xlu0 %9006
        %9008 = vrot.lane.b32.xlu0 %v8757, 66
        %v9009 = vpop.permute.xlu0 %9008
        %v9010 = vsel %vm2275, %v8995, %v8997
        %v9011 = vsel %vm2275, %v8997, %v8999
        %v9012 = vsel %vm2275, %v8999, %v9001
        %v9013 = vsel %vm2275, %v9001, %v9003
        %v9014 = vsel %vm2275, %v9003, %v9005
        %v9015 = vsel %vm2275, %v9005, %v9007
        %v9016 = vsel %vm2275, %v9007, %v9009
        %v9026 = vmul.f32 %v8681, %v8995
        %v9027 = vmul.f32 %v8682, %v9010
        %v9028 = vmul.f32 %v8683, %v9011
        %v9029 = vmul.f32 %v8684, %v9012
        %v9030 = vmul.f32 %v8685, %v9013
        %v9031 = vmul.f32 %v8686, %v9014
        %v9032 = vmul.f32 %v8687, %v9015
        %v9033 = vmul.f32 %v8688, %v9016
        %v9034 = vmul.f32 %v8746, %v9009
        %v9035 = vmul.f32 %v8689, %v8995
        %v9036 = vmul.f32 %v8690, %v9010
        %v9037 = vmul.f32 %v8691, %v9011
        %v9038 = vmul.f32 %v8692, %v9012
        %v9039 = vmul.f32 %v8693, %v9013
        %v9040 = vmul.f32 %v8694, %v9014
        %v9041 = vmul.f32 %v8695, %v9015
        %v9042 = vmul.f32 %v8696, %v9016
        %v9043 = vmul.f32 %v8747, %v9009
        %v9044 = vmul.f32 %v8697, %v8995
        %v9045 = vmul.f32 %v8698, %v9010
        %v9046 = vmul.f32 %v8699, %v9011
        %v9047 = vmul.f32 %v8700, %v9012
        %v9048 = vmul.f32 %v8701, %v9013
        %v9049 = vmul.f32 %v8702, %v9014
        %v9050 = vmul.f32 %v8703, %v9015
        %v9051 = vmul.f32 %v8704, %v9016
        %v9052 = vmul.f32 %v8748, %v9009
        %9080 = vrot.lane.b32.xlu0 %v8681, 127
        %v9081 = vpop.permute.xlu0 %9080
        %9082 = vrot.lane.b32.xlu0 %v8682, 127
        %v9083 = vpop.permute.xlu0 %9082
        %9084 = vrot.lane.b32.xlu0 %v8683, 127
        %v9085 = vpop.permute.xlu0 %9084
        %9086 = vrot.lane.b32.xlu0 %v8684, 127
        %v9087 = vpop.permute.xlu0 %9086
        %9088 = vrot.lane.b32.xlu0 %v8685, 127
        %v9089 = vpop.permute.xlu0 %9088
        %9090 = vrot.lane.b32.xlu0 %v8686, 127
        %v9091 = vpop.permute.xlu0 %9090
        %9092 = vrot.lane.b32.xlu0 %v8687, 127
        %v9093 = vpop.permute.xlu0 %9092
        %9094 = vrot.lane.b32.xlu0 %v8688, 127
        %v9095 = vpop.permute.xlu0 %9094
        %9096 = vrot.lane.b32.xlu0 %v8746, 127
        %v9097 = vpop.permute.xlu0 %9096
        %9098 = vrot.lane.b32.xlu0 %v8689, 127
        %v9099 = vpop.permute.xlu0 %9098
        %9100 = vrot.lane.b32.xlu0 %v8690, 127
        %v9101 = vpop.permute.xlu0 %9100
        %9102 = vrot.lane.b32.xlu0 %v8691, 127
        %v9103 = vpop.permute.xlu0 %9102
        %9104 = vrot.lane.b32.xlu0 %v8692, 127
        %v9105 = vpop.permute.xlu0 %9104
        %9106 = vrot.lane.b32.xlu0 %v8693, 127
        %v9107 = vpop.permute.xlu0 %9106
        %9108 = vrot.lane.b32.xlu0 %v8694, 127
        %v9109 = vpop.permute.xlu0 %9108
        %9110 = vrot.lane.b32.xlu0 %v8695, 127
        %v9111 = vpop.permute.xlu0 %9110
        %9112 = vrot.lane.b32.xlu0 %v8696, 127
        %v9113 = vpop.permute.xlu0 %9112
        %9114 = vrot.lane.b32.xlu0 %v8747, 127
        %v9115 = vpop.permute.xlu0 %9114
        %9116 = vrot.lane.b32.xlu0 %v8697, 127
        %v9117 = vpop.permute.xlu0 %9116
        %9118 = vrot.lane.b32.xlu0 %v8698, 127
        %v9119 = vpop.permute.xlu0 %9118
        %9120 = vrot.lane.b32.xlu0 %v8699, 127
        %v9121 = vpop.permute.xlu0 %9120
        %9122 = vrot.lane.b32.xlu0 %v8700, 127
        %v9123 = vpop.permute.xlu0 %9122
        %9124 = vrot.lane.b32.xlu0 %v8701, 127
        %v9125 = vpop.permute.xlu0 %9124
        %9126 = vrot.lane.b32.xlu0 %v8702, 127
        %v9127 = vpop.permute.xlu0 %9126
        %9128 = vrot.lane.b32.xlu0 %v8703, 127
        %v9129 = vpop.permute.xlu0 %9128
        %9130 = vrot.lane.b32.xlu0 %v8704, 127
        %v9131 = vpop.permute.xlu0 %9130
        %9132 = vrot.lane.b32.xlu0 %v8748, 127
        %v9133 = vpop.permute.xlu0 %9132
        %v9134 = vsel %vm1835, %v9081, %v9083
        %v9135 = vsel %vm1835, %v9083, %v9085
        %v9136 = vsel %vm1835, %v9085, %v9087
        %v9137 = vsel %vm1835, %v9087, %v9089
        %v9138 = vsel %vm1835, %v9089, %v9091
        %v9139 = vsel %vm1835, %v9091, %v9093
        %v9140 = vsel %vm1835, %v9093, %v9095
        %v9141 = vsel %vm1835, %v9095, %v9097
        %v9142 = vsel %vm1835, %v9099, %v9101
        %v9143 = vsel %vm1835, %v9101, %v9103
        %v9144 = vsel %vm1835, %v9103, %v9105
        %v9145 = vsel %vm1835, %v9105, %v9107
        %v9146 = vsel %vm1835, %v9107, %v9109
        %v9147 = vsel %vm1835, %v9109, %v9111
        %v9148 = vsel %vm1835, %v9111, %v9113
        %v9149 = vsel %vm1835, %v9113, %v9115
        %v9150 = vsel %vm1835, %v9117, %v9119
        %v9151 = vsel %vm1835, %v9119, %v9121
        %v9152 = vsel %vm1835, %v9121, %v9123
        %v9153 = vsel %vm1835, %v9123, %v9125
        %v9154 = vsel %vm1835, %v9125, %v9127
        %v9155 = vsel %vm1835, %v9127, %v9129
        %v9156 = vsel %vm1835, %v9129, %v9131
        %v9157 = vsel %vm1835, %v9131, %v9133
        %9209 = vrot.lane.b32.xlu0 %v8790, 126
        %v9210 = vpop.permute.xlu0 %9209
        %9211 = vrot.lane.b32.xlu0 %v8791, 126
        %v9212 = vpop.permute.xlu0 %9211
        %9213 = vrot.lane.b32.xlu0 %v8792, 126
        %v9214 = vpop.permute.xlu0 %9213
        %9215 = vrot.lane.b32.xlu0 %v8793, 126
        %v9216 = vpop.permute.xlu0 %9215
        %9217 = vrot.lane.b32.xlu0 %v8794, 126
        %v9218 = vpop.permute.xlu0 %9217
        %9219 = vrot.lane.b32.xlu0 %v8795, 126
        %v9220 = vpop.permute.xlu0 %9219
        %9221 = vrot.lane.b32.xlu0 %v8796, 126
        %v9222 = vpop.permute.xlu0 %9221
        %9223 = vrot.lane.b32.xlu0 %v8797, 126
        %v9224 = vpop.permute.xlu0 %9223
        %9225 = vrot.lane.b32.xlu0 %v8798, 126
        %v9226 = vpop.permute.xlu0 %9225
        %9227 = vrot.lane.b32.xlu0 %v8799, 126
        %v9228 = vpop.permute.xlu0 %9227
        %9229 = vrot.lane.b32.xlu0 %v8800, 126
        %v9230 = vpop.permute.xlu0 %9229
        %9231 = vrot.lane.b32.xlu0 %v8801, 126
        %v9232 = vpop.permute.xlu0 %9231
        %9233 = vrot.lane.b32.xlu0 %v8802, 126
        %v9234 = vpop.permute.xlu0 %9233
        %9235 = vrot.lane.b32.xlu0 %v8803, 126
        %v9236 = vpop.permute.xlu0 %9235
        %9237 = vrot.lane.b32.xlu0 %v8804, 126
        %v9238 = vpop.permute.xlu0 %9237
        %9239 = vrot.lane.b32.xlu0 %v8805, 126
        %v9240 = vpop.permute.xlu0 %9239
        %9241 = vrot.lane.b32.xlu0 %v8806, 126
        %v9242 = vpop.permute.xlu0 %9241
        %9243 = vrot.lane.b32.xlu0 %v8807, 126
        %v9244 = vpop.permute.xlu0 %9243
        %9245 = vrot.lane.b32.xlu0 %v8808, 126
        %v9246 = vpop.permute.xlu0 %9245
        %9247 = vrot.lane.b32.xlu0 %v8809, 126
        %v9248 = vpop.permute.xlu0 %9247
        %9249 = vrot.lane.b32.xlu0 %v8810, 126
        %v9250 = vpop.permute.xlu0 %9249
        %9251 = vrot.lane.b32.xlu0 %v8811, 126
        %v9252 = vpop.permute.xlu0 %9251
        %9253 = vrot.lane.b32.xlu0 %v8812, 126
        %v9254 = vpop.permute.xlu0 %9253
        %9255 = vrot.lane.b32.xlu0 %v8813, 126
        %v9256 = vpop.permute.xlu0 %9255
        %9257 = vrot.lane.b32.xlu0 %v8814, 126
        %v9258 = vpop.permute.xlu0 %9257
        %9259 = vrot.lane.b32.xlu0 %v8815, 126
        %v9260 = vpop.permute.xlu0 %9259
        %9261 = vrot.lane.b32.xlu0 %v8816, 126
        %v9262 = vpop.permute.xlu0 %9261
        %v9263 = vsel %vm1849, %v9210, %v9212
        %v9264 = vsel %vm1849, %v9212, %v9214
        %v9265 = vsel %vm1849, %v9214, %v9216
        %v9266 = vsel %vm1849, %v9216, %v9218
        %v9267 = vsel %vm1849, %v9218, %v9220
        %v9268 = vsel %vm1849, %v9220, %v9222
        %v9269 = vsel %vm1849, %v9222, %v9224
        %v9270 = vsel %vm1849, %v9224, %v9226
        %v9271 = vsel %vm1849, %v9228, %v9230
        %v9272 = vsel %vm1849, %v9230, %v9232
        %v9273 = vsel %vm1849, %v9232, %v9234
        %v9274 = vsel %vm1849, %v9234, %v9236
        %v9275 = vsel %vm1849, %v9236, %v9238
        %v9276 = vsel %vm1849, %v9238, %v9240
        %v9277 = vsel %vm1849, %v9240, %v9242
        %v9278 = vsel %vm1849, %v9242, %v9244
        %v9279 = vsel %vm1849, %v9246, %v9248
        %v9280 = vsel %vm1849, %v9248, %v9250
        %v9281 = vsel %vm1849, %v9250, %v9252
        %v9282 = vsel %vm1849, %v9252, %v9254
        %v9283 = vsel %vm1849, %v9254, %v9256
        %v9284 = vsel %vm1849, %v9256, %v9258
        %v9285 = vsel %vm1849, %v9258, %v9260
        %v9286 = vsel %vm1849, %v9260, %v9262
        %9338 = vrot.lane.b32.xlu0 %v8849, 96
        %v9339 = vpop.permute.xlu0 %9338
        %9340 = vrot.lane.b32.xlu0 %v8850, 96
        %v9341 = vpop.permute.xlu0 %9340
        %9342 = vrot.lane.b32.xlu0 %v8851, 96
        %v9343 = vpop.permute.xlu0 %9342
        %9344 = vrot.lane.b32.xlu0 %v8852, 96
        %v9345 = vpop.permute.xlu0 %9344
        %9346 = vrot.lane.b32.xlu0 %v8853, 96
        %v9347 = vpop.permute.xlu0 %9346
        %9348 = vrot.lane.b32.xlu0 %v8854, 96
        %v9349 = vpop.permute.xlu0 %9348
        %9350 = vrot.lane.b32.xlu0 %v8855, 96
        %v9351 = vpop.permute.xlu0 %9350
        %9352 = vrot.lane.b32.xlu0 %v8856, 96
        %v9353 = vpop.permute.xlu0 %9352
        %9354 = vrot.lane.b32.xlu0 %v8857, 96
        %v9355 = vpop.permute.xlu0 %9354
        %9356 = vrot.lane.b32.xlu0 %v8858, 96
        %v9357 = vpop.permute.xlu0 %9356
        %9358 = vrot.lane.b32.xlu0 %v8859, 96
        %v9359 = vpop.permute.xlu0 %9358
        %9360 = vrot.lane.b32.xlu0 %v8860, 96
        %v9361 = vpop.permute.xlu0 %9360
        %9362 = vrot.lane.b32.xlu0 %v8861, 96
        %v9363 = vpop.permute.xlu0 %9362
        %9364 = vrot.lane.b32.xlu0 %v8862, 96
        %v9365 = vpop.permute.xlu0 %9364
        %9366 = vrot.lane.b32.xlu0 %v8863, 96
        %v9367 = vpop.permute.xlu0 %9366
        %9368 = vrot.lane.b32.xlu0 %v8864, 96
        %v9369 = vpop.permute.xlu0 %9368
        %9370 = vrot.lane.b32.xlu0 %v8865, 96
        %v9371 = vpop.permute.xlu0 %9370
        %9372 = vrot.lane.b32.xlu0 %v8866, 96
        %v9373 = vpop.permute.xlu0 %9372
        %9374 = vrot.lane.b32.xlu0 %v8867, 96
        %v9375 = vpop.permute.xlu0 %9374
        %9376 = vrot.lane.b32.xlu0 %v8868, 96
        %v9377 = vpop.permute.xlu0 %9376
        %9378 = vrot.lane.b32.xlu0 %v8869, 96
        %v9379 = vpop.permute.xlu0 %9378
        %9380 = vrot.lane.b32.xlu0 %v8870, 96
        %v9381 = vpop.permute.xlu0 %9380
        %9382 = vrot.lane.b32.xlu0 %v8871, 96
        %v9383 = vpop.permute.xlu0 %9382
        %9384 = vrot.lane.b32.xlu0 %v8872, 96
        %v9385 = vpop.permute.xlu0 %9384
        %9386 = vrot.lane.b32.xlu0 %v8873, 96
        %v9387 = vpop.permute.xlu0 %9386
        %9388 = vrot.lane.b32.xlu0 %v8874, 96
        %v9389 = vpop.permute.xlu0 %9388
        %9390 = vrot.lane.b32.xlu0 %v8875, 96
        %v9391 = vpop.permute.xlu0 %9390
        %v9392 = vsel %vm1902, %v9339, %v9341
        %v9393 = vsel %vm1902, %v9341, %v9343
        %v9394 = vsel %vm1902, %v9343, %v9345
        %v9395 = vsel %vm1902, %v9345, %v9347
        %v9396 = vsel %vm1902, %v9347, %v9349
        %v9397 = vsel %vm1902, %v9349, %v9351
        %v9398 = vsel %vm1902, %v9351, %v9353
        %v9399 = vsel %vm1902, %v9353, %v9355
        %v9400 = vsel %vm1902, %v9357, %v9359
        %v9401 = vsel %vm1902, %v9359, %v9361
        %v9402 = vsel %vm1902, %v9361, %v9363
        %v9403 = vsel %vm1902, %v9363, %v9365
        %v9404 = vsel %vm1902, %v9365, %v9367
        %v9405 = vsel %vm1902, %v9367, %v9369
        %v9406 = vsel %vm1902, %v9369, %v9371
        %v9407 = vsel %vm1902, %v9371, %v9373
        %v9408 = vsel %vm1902, %v9375, %v9377
        %v9409 = vsel %vm1902, %v9377, %v9379
        %v9410 = vsel %vm1902, %v9379, %v9381
        %v9411 = vsel %vm1902, %v9381, %v9383
        %v9412 = vsel %vm1902, %v9383, %v9385
        %v9413 = vsel %vm1902, %v9385, %v9387
        %v9414 = vsel %vm1902, %v9387, %v9389
        %v9415 = vsel %vm1902, %v9389, %v9391
        %9440 = vrot.lane.b32.xlu0 %v8681, 95
        %v9441 = vpop.permute.xlu0 %9440
        %9442 = vrot.lane.b32.xlu0 %v8682, 95
        %v9443 = vpop.permute.xlu0 %9442
        %9444 = vrot.lane.b32.xlu0 %v8683, 95
        %v9445 = vpop.permute.xlu0 %9444
        %9446 = vrot.lane.b32.xlu0 %v8684, 95
        %v9447 = vpop.permute.xlu0 %9446
        %9448 = vrot.lane.b32.xlu0 %v8685, 95
        %v9449 = vpop.permute.xlu0 %9448
        %9450 = vrot.lane.b32.xlu0 %v8686, 95
        %v9451 = vpop.permute.xlu0 %9450
        %9452 = vrot.lane.b32.xlu0 %v8687, 95
        %v9453 = vpop.permute.xlu0 %9452
        %9454 = vrot.lane.b32.xlu0 %v8688, 95
        %v9455 = vpop.permute.xlu0 %9454
        %9456 = vrot.lane.b32.xlu0 %v8746, 95
        %v9457 = vpop.permute.xlu0 %9456
        %9458 = vrot.lane.b32.xlu0 %v8689, 95
        %v9459 = vpop.permute.xlu0 %9458
        %9460 = vrot.lane.b32.xlu0 %v8690, 95
        %v9461 = vpop.permute.xlu0 %9460
        %9462 = vrot.lane.b32.xlu0 %v8691, 95
        %v9463 = vpop.permute.xlu0 %9462
        %9464 = vrot.lane.b32.xlu0 %v8692, 95
        %v9465 = vpop.permute.xlu0 %9464
        %9466 = vrot.lane.b32.xlu0 %v8693, 95
        %v9467 = vpop.permute.xlu0 %9466
        %9468 = vrot.lane.b32.xlu0 %v8694, 95
        %v9469 = vpop.permute.xlu0 %9468
        %9470 = vrot.lane.b32.xlu0 %v8695, 95
        %v9471 = vpop.permute.xlu0 %9470
        %9472 = vrot.lane.b32.xlu0 %v8696, 95
        %v9473 = vpop.permute.xlu0 %9472
        %9474 = vrot.lane.b32.xlu0 %v8747, 95
        %v9475 = vpop.permute.xlu0 %9474
        %9476 = vrot.lane.b32.xlu0 %v8697, 95
        %v9477 = vpop.permute.xlu0 %9476
        %9478 = vrot.lane.b32.xlu0 %v8698, 95
        %v9479 = vpop.permute.xlu0 %9478
        %9480 = vrot.lane.b32.xlu0 %v8699, 95
        %v9481 = vpop.permute.xlu0 %9480
        %9482 = vrot.lane.b32.xlu0 %v8700, 95
        %v9483 = vpop.permute.xlu0 %9482
        %9484 = vrot.lane.b32.xlu0 %v8701, 95
        %v9485 = vpop.permute.xlu0 %9484
        %9486 = vrot.lane.b32.xlu0 %v8702, 95
        %v9487 = vpop.permute.xlu0 %9486
        %9488 = vrot.lane.b32.xlu0 %v8703, 95
        %v9489 = vpop.permute.xlu0 %9488
        %9490 = vrot.lane.b32.xlu0 %v8704, 95
        %v9491 = vpop.permute.xlu0 %9490
        %9492 = vrot.lane.b32.xlu0 %v8748, 95
        %v9493 = vpop.permute.xlu0 %9492
        %v9494 = vsel %vm1913, %v9441, %v9443
        %v9495 = vsel %vm1913, %v9443, %v9445
        %v9496 = vsel %vm1913, %v9445, %v9447
        %v9497 = vsel %vm1913, %v9447, %v9449
        %v9498 = vsel %vm1913, %v9449, %v9451
        %v9499 = vsel %vm1913, %v9451, %v9453
        %v9500 = vsel %vm1913, %v9453, %v9455
        %v9501 = vsel %vm1913, %v9455, %v9457
        %v9502 = vsel %vm1913, %v9459, %v9461
        %v9503 = vsel %vm1913, %v9461, %v9463
        %v9504 = vsel %vm1913, %v9463, %v9465
        %v9505 = vsel %vm1913, %v9465, %v9467
        %v9506 = vsel %vm1913, %v9467, %v9469
        %v9507 = vsel %vm1913, %v9469, %v9471
        %v9508 = vsel %vm1913, %v9471, %v9473
        %v9509 = vsel %vm1913, %v9473, %v9475
        %v9510 = vsel %vm1913, %v9477, %v9479
        %v9511 = vsel %vm1913, %v9479, %v9481
        %v9512 = vsel %vm1913, %v9481, %v9483
        %v9513 = vsel %vm1913, %v9483, %v9485
        %v9514 = vsel %vm1913, %v9485, %v9487
        %v9515 = vsel %vm1913, %v9487, %v9489
        %v9516 = vsel %vm1913, %v9489, %v9491
        %v9517 = vsel %vm1913, %v9491, %v9493
        %9569 = vrot.lane.b32.xlu0 %v8908, 94
        %v9570 = vpop.permute.xlu0 %9569
        %9571 = vrot.lane.b32.xlu0 %v8909, 94
        %v9572 = vpop.permute.xlu0 %9571
        %9573 = vrot.lane.b32.xlu0 %v8910, 94
        %v9574 = vpop.permute.xlu0 %9573
        %9575 = vrot.lane.b32.xlu0 %v8911, 94
        %v9576 = vpop.permute.xlu0 %9575
        %9577 = vrot.lane.b32.xlu0 %v8912, 94
        %v9578 = vpop.permute.xlu0 %9577
        %9579 = vrot.lane.b32.xlu0 %v8913, 94
        %v9580 = vpop.permute.xlu0 %9579
        %9581 = vrot.lane.b32.xlu0 %v8914, 94
        %v9582 = vpop.permute.xlu0 %9581
        %9583 = vrot.lane.b32.xlu0 %v8915, 94
        %v9584 = vpop.permute.xlu0 %9583
        %9585 = vrot.lane.b32.xlu0 %v8916, 94
        %v9586 = vpop.permute.xlu0 %9585
        %9587 = vrot.lane.b32.xlu0 %v8917, 94
        %v9588 = vpop.permute.xlu0 %9587
        %9589 = vrot.lane.b32.xlu0 %v8918, 94
        %v9590 = vpop.permute.xlu0 %9589
        %9591 = vrot.lane.b32.xlu0 %v8919, 94
        %v9592 = vpop.permute.xlu0 %9591
        %9593 = vrot.lane.b32.xlu0 %v8920, 94
        %v9594 = vpop.permute.xlu0 %9593
        %9595 = vrot.lane.b32.xlu0 %v8921, 94
        %v9596 = vpop.permute.xlu0 %9595
        %9597 = vrot.lane.b32.xlu0 %v8922, 94
        %v9598 = vpop.permute.xlu0 %9597
        %9599 = vrot.lane.b32.xlu0 %v8923, 94
        %v9600 = vpop.permute.xlu0 %9599
        %9601 = vrot.lane.b32.xlu0 %v8924, 94
        %v9602 = vpop.permute.xlu0 %9601
        %9603 = vrot.lane.b32.xlu0 %v8925, 94
        %v9604 = vpop.permute.xlu0 %9603
        %9605 = vrot.lane.b32.xlu0 %v8926, 94
        %v9606 = vpop.permute.xlu0 %9605
        %9607 = vrot.lane.b32.xlu0 %v8927, 94
        %v9608 = vpop.permute.xlu0 %9607
        %9609 = vrot.lane.b32.xlu0 %v8928, 94
        %v9610 = vpop.permute.xlu0 %9609
        %9611 = vrot.lane.b32.xlu0 %v8929, 94
        %v9612 = vpop.permute.xlu0 %9611
        %9613 = vrot.lane.b32.xlu0 %v8930, 94
        %v9614 = vpop.permute.xlu0 %9613
        %9615 = vrot.lane.b32.xlu0 %v8931, 94
        %v9616 = vpop.permute.xlu0 %9615
        %9617 = vrot.lane.b32.xlu0 %v8932, 94
        %v9618 = vpop.permute.xlu0 %9617
        %9619 = vrot.lane.b32.xlu0 %v8933, 94
        %v9620 = vpop.permute.xlu0 %9619
        %9621 = vrot.lane.b32.xlu0 %v8934, 94
        %v9622 = vpop.permute.xlu0 %9621
        %v9623 = vsel %vm1927, %v9570, %v9572
        %v9624 = vsel %vm1927, %v9572, %v9574
        %v9625 = vsel %vm1927, %v9574, %v9576
        %v9626 = vsel %vm1927, %v9576, %v9578
        %v9627 = vsel %vm1927, %v9578, %v9580
        %v9628 = vsel %vm1927, %v9580, %v9582
        %v9629 = vsel %vm1927, %v9582, %v9584
        %v9630 = vsel %vm1927, %v9584, %v9586
        %v9631 = vsel %vm1927, %v9588, %v9590
        %v9632 = vsel %vm1927, %v9590, %v9592
        %v9633 = vsel %vm1927, %v9592, %v9594
        %v9634 = vsel %vm1927, %v9594, %v9596
        %v9635 = vsel %vm1927, %v9596, %v9598
        %v9636 = vsel %vm1927, %v9598, %v9600
        %v9637 = vsel %vm1927, %v9600, %v9602
        %v9638 = vsel %vm1927, %v9602, %v9604
        %v9639 = vsel %vm1927, %v9606, %v9608
        %v9640 = vsel %vm1927, %v9608, %v9610
        %v9641 = vsel %vm1927, %v9610, %v9612
        %v9642 = vsel %vm1927, %v9612, %v9614
        %v9643 = vsel %vm1927, %v9614, %v9616
        %v9644 = vsel %vm1927, %v9616, %v9618
        %v9645 = vsel %vm1927, %v9618, %v9620
        %v9646 = vsel %vm1927, %v9620, %v9622
        %9698 = vrot.lane.b32.xlu0 %v8967, 64
        %v9699 = vpop.permute.xlu0 %9698
        %9700 = vrot.lane.b32.xlu0 %v8968, 64
        %v9701 = vpop.permute.xlu0 %9700
        %9702 = vrot.lane.b32.xlu0 %v8969, 64
        %v9703 = vpop.permute.xlu0 %9702
        %9704 = vrot.lane.b32.xlu0 %v8970, 64
        %v9705 = vpop.permute.xlu0 %9704
        %9706 = vrot.lane.b32.xlu0 %v8971, 64
        %v9707 = vpop.permute.xlu0 %9706
        %9708 = vrot.lane.b32.xlu0 %v8972, 64
        %v9709 = vpop.permute.xlu0 %9708
        %9710 = vrot.lane.b32.xlu0 %v8973, 64
        %v9711 = vpop.permute.xlu0 %9710
        %9712 = vrot.lane.b32.xlu0 %v8974, 64
        %v9713 = vpop.permute.xlu0 %9712
        %9714 = vrot.lane.b32.xlu0 %v8975, 64
        %v9715 = vpop.permute.xlu0 %9714
        %9716 = vrot.lane.b32.xlu0 %v8976, 64
        %v9717 = vpop.permute.xlu0 %9716
        %9718 = vrot.lane.b32.xlu0 %v8977, 64
        %v9719 = vpop.permute.xlu0 %9718
        %9720 = vrot.lane.b32.xlu0 %v8978, 64
        %v9721 = vpop.permute.xlu0 %9720
        %9722 = vrot.lane.b32.xlu0 %v8979, 64
        %v9723 = vpop.permute.xlu0 %9722
        %9724 = vrot.lane.b32.xlu0 %v8980, 64
        %v9725 = vpop.permute.xlu0 %9724
        %9726 = vrot.lane.b32.xlu0 %v8981, 64
        %v9727 = vpop.permute.xlu0 %9726
        %9728 = vrot.lane.b32.xlu0 %v8982, 64
        %v9729 = vpop.permute.xlu0 %9728
        %9730 = vrot.lane.b32.xlu0 %v8983, 64
        %v9731 = vpop.permute.xlu0 %9730
        %9732 = vrot.lane.b32.xlu0 %v8984, 64
        %v9733 = vpop.permute.xlu0 %9732
        %9734 = vrot.lane.b32.xlu0 %v8985, 64
        %v9735 = vpop.permute.xlu0 %9734
        %9736 = vrot.lane.b32.xlu0 %v8986, 64
        %v9737 = vpop.permute.xlu0 %9736
        %9738 = vrot.lane.b32.xlu0 %v8987, 64
        %v9739 = vpop.permute.xlu0 %9738
        %9740 = vrot.lane.b32.xlu0 %v8988, 64
        %v9741 = vpop.permute.xlu0 %9740
        %9742 = vrot.lane.b32.xlu0 %v8989, 64
        %v9743 = vpop.permute.xlu0 %9742
        %9744 = vrot.lane.b32.xlu0 %v8990, 64
        %v9745 = vpop.permute.xlu0 %9744
        %9746 = vrot.lane.b32.xlu0 %v8991, 64
        %v9747 = vpop.permute.xlu0 %9746
        %9748 = vrot.lane.b32.xlu0 %v8992, 64
        %v9749 = vpop.permute.xlu0 %9748
        %9750 = vrot.lane.b32.xlu0 %v8993, 64
        %v9751 = vpop.permute.xlu0 %9750
        %v9752 = vsel %vm792, %v9699, %v9701
        %v9753 = vsel %vm792, %v9701, %v9703
        %v9754 = vsel %vm792, %v9703, %v9705
        %v9755 = vsel %vm792, %v9705, %v9707
        %v9756 = vsel %vm792, %v9707, %v9709
        %v9757 = vsel %vm792, %v9709, %v9711
        %v9758 = vsel %vm792, %v9711, %v9713
        %v9759 = vsel %vm792, %v9713, %v9715
        %v9760 = vsel %vm792, %v9717, %v9719
        %v9761 = vsel %vm792, %v9719, %v9721
        %v9762 = vsel %vm792, %v9721, %v9723
        %v9763 = vsel %vm792, %v9723, %v9725
        %v9764 = vsel %vm792, %v9725, %v9727
        %v9765 = vsel %vm792, %v9727, %v9729
        %v9766 = vsel %vm792, %v9729, %v9731
        %v9767 = vsel %vm792, %v9731, %v9733
        %v9768 = vsel %vm792, %v9735, %v9737
        %v9769 = vsel %vm792, %v9737, %v9739
        %v9770 = vsel %vm792, %v9739, %v9741
        %v9771 = vsel %vm792, %v9741, %v9743
        %v9772 = vsel %vm792, %v9743, %v9745
        %v9773 = vsel %vm792, %v9745, %v9747
        %v9774 = vsel %vm792, %v9747, %v9749
        %v9775 = vsel %vm792, %v9749, %v9751
        %9800 = vrot.lane.b32.xlu0 %v8681, 63
        %v9801 = vpop.permute.xlu0 %9800
        %9802 = vrot.lane.b32.xlu0 %v8682, 63
        %v9803 = vpop.permute.xlu0 %9802
        %9804 = vrot.lane.b32.xlu0 %v8683, 63
        %v9805 = vpop.permute.xlu0 %9804
        %9806 = vrot.lane.b32.xlu0 %v8684, 63
        %v9807 = vpop.permute.xlu0 %9806
        %9808 = vrot.lane.b32.xlu0 %v8685, 63
        %v9809 = vpop.permute.xlu0 %9808
        %9810 = vrot.lane.b32.xlu0 %v8686, 63
        %v9811 = vpop.permute.xlu0 %9810
        %9812 = vrot.lane.b32.xlu0 %v8687, 63
        %v9813 = vpop.permute.xlu0 %9812
        %9814 = vrot.lane.b32.xlu0 %v8688, 63
        %v9815 = vpop.permute.xlu0 %9814
        %9816 = vrot.lane.b32.xlu0 %v8746, 63
        %v9817 = vpop.permute.xlu0 %9816
        %9818 = vrot.lane.b32.xlu0 %v8689, 63
        %v9819 = vpop.permute.xlu0 %9818
        %9820 = vrot.lane.b32.xlu0 %v8690, 63
        %v9821 = vpop.permute.xlu0 %9820
        %9822 = vrot.lane.b32.xlu0 %v8691, 63
        %v9823 = vpop.permute.xlu0 %9822
        %9824 = vrot.lane.b32.xlu0 %v8692, 63
        %v9825 = vpop.permute.xlu0 %9824
        %9826 = vrot.lane.b32.xlu0 %v8693, 63
        %v9827 = vpop.permute.xlu0 %9826
        %9828 = vrot.lane.b32.xlu0 %v8694, 63
        %v9829 = vpop.permute.xlu0 %9828
        %9830 = vrot.lane.b32.xlu0 %v8695, 63
        %v9831 = vpop.permute.xlu0 %9830
        %9832 = vrot.lane.b32.xlu0 %v8696, 63
        %v9833 = vpop.permute.xlu0 %9832
        %9834 = vrot.lane.b32.xlu0 %v8747, 63
        %v9835 = vpop.permute.xlu0 %9834
        %9836 = vrot.lane.b32.xlu0 %v8697, 63
        %v9837 = vpop.permute.xlu0 %9836
        %9838 = vrot.lane.b32.xlu0 %v8698, 63
        %v9839 = vpop.permute.xlu0 %9838
        %9840 = vrot.lane.b32.xlu0 %v8699, 63
        %v9841 = vpop.permute.xlu0 %9840
        %9842 = vrot.lane.b32.xlu0 %v8700, 63
        %v9843 = vpop.permute.xlu0 %9842
        %9844 = vrot.lane.b32.xlu0 %v8701, 63
        %v9845 = vpop.permute.xlu0 %9844
        %9846 = vrot.lane.b32.xlu0 %v8702, 63
        %v9847 = vpop.permute.xlu0 %9846
        %9848 = vrot.lane.b32.xlu0 %v8703, 63
        %v9849 = vpop.permute.xlu0 %9848
        %9850 = vrot.lane.b32.xlu0 %v8704, 63
        %v9851 = vpop.permute.xlu0 %9850
        %9852 = vrot.lane.b32.xlu0 %v8748, 63
        %v9853 = vpop.permute.xlu0 %9852
        %v9854 = vsel %vm2568, %v9801, %v9803
        %v9855 = vsel %vm2568, %v9803, %v9805
        %v9856 = vsel %vm2568, %v9805, %v9807
        %v9857 = vsel %vm2568, %v9807, %v9809
        %v9858 = vsel %vm2568, %v9809, %v9811
        %v9859 = vsel %vm2568, %v9811, %v9813
        %v9860 = vsel %vm2568, %v9813, %v9815
        %v9861 = vsel %vm2568, %v9815, %v9817
        %v9862 = vsel %vm2568, %v9819, %v9821
        %v9863 = vsel %vm2568, %v9821, %v9823
        %v9864 = vsel %vm2568, %v9823, %v9825
        %v9865 = vsel %vm2568, %v9825, %v9827
        %v9866 = vsel %vm2568, %v9827, %v9829
        %v9867 = vsel %vm2568, %v9829, %v9831
        %v9868 = vsel %vm2568, %v9831, %v9833
        %v9869 = vsel %vm2568, %v9833, %v9835
        %v9870 = vsel %vm2568, %v9837, %v9839
        %v9871 = vsel %vm2568, %v9839, %v9841
        %v9872 = vsel %vm2568, %v9841, %v9843
        %v9873 = vsel %vm2568, %v9843, %v9845
        %v9874 = vsel %vm2568, %v9845, %v9847
        %v9875 = vsel %vm2568, %v9847, %v9849
        %v9876 = vsel %vm2568, %v9849, %v9851
        %v9877 = vsel %vm2568, %v9851, %v9853
        %9929 = vrot.lane.b32.xlu0 %v9026, 62
        %v9930 = vpop.permute.xlu0 %9929
        %9931 = vrot.lane.b32.xlu0 %v9027, 62
        %v9932 = vpop.permute.xlu0 %9931
        %9933 = vrot.lane.b32.xlu0 %v9028, 62
        %v9934 = vpop.permute.xlu0 %9933
        %9935 = vrot.lane.b32.xlu0 %v9029, 62
        %v9936 = vpop.permute.xlu0 %9935
        %9937 = vrot.lane.b32.xlu0 %v9030, 62
        %v9938 = vpop.permute.xlu0 %9937
        %9939 = vrot.lane.b32.xlu0 %v9031, 62
        %v9940 = vpop.permute.xlu0 %9939
        %9941 = vrot.lane.b32.xlu0 %v9032, 62
        %v9942 = vpop.permute.xlu0 %9941
        %9943 = vrot.lane.b32.xlu0 %v9033, 62
        %v9944 = vpop.permute.xlu0 %9943
        %9945 = vrot.lane.b32.xlu0 %v9034, 62
        %v9946 = vpop.permute.xlu0 %9945
        %9947 = vrot.lane.b32.xlu0 %v9035, 62
        %v9948 = vpop.permute.xlu0 %9947
        %9949 = vrot.lane.b32.xlu0 %v9036, 62
        %v9950 = vpop.permute.xlu0 %9949
        %9951 = vrot.lane.b32.xlu0 %v9037, 62
        %v9952 = vpop.permute.xlu0 %9951
        %9953 = vrot.lane.b32.xlu0 %v9038, 62
        %v9954 = vpop.permute.xlu0 %9953
        %9955 = vrot.lane.b32.xlu0 %v9039, 62
        %v9956 = vpop.permute.xlu0 %9955
        %9957 = vrot.lane.b32.xlu0 %v9040, 62
        %v9958 = vpop.permute.xlu0 %9957
        %9959 = vrot.lane.b32.xlu0 %v9041, 62
        %v9960 = vpop.permute.xlu0 %9959
        %9961 = vrot.lane.b32.xlu0 %v9042, 62
        %v9962 = vpop.permute.xlu0 %9961
        %9963 = vrot.lane.b32.xlu0 %v9043, 62
        %v9964 = vpop.permute.xlu0 %9963
        %9965 = vrot.lane.b32.xlu0 %v9044, 62
        %v9966 = vpop.permute.xlu0 %9965
        %9967 = vrot.lane.b32.xlu0 %v9045, 62
        %v9968 = vpop.permute.xlu0 %9967
        %9969 = vrot.lane.b32.xlu0 %v9046, 62
        %v9970 = vpop.permute.xlu0 %9969
        %9971 = vrot.lane.b32.xlu0 %v9047, 62
        %v9972 = vpop.permute.xlu0 %9971
        %9973 = vrot.lane.b32.xlu0 %v9048, 62
        %v9974 = vpop.permute.xlu0 %9973
        %9975 = vrot.lane.b32.xlu0 %v9049, 62
        %v9976 = vpop.permute.xlu0 %9975
        %9977 = vrot.lane.b32.xlu0 %v9050, 62
        %v9978 = vpop.permute.xlu0 %9977
        %9979 = vrot.lane.b32.xlu0 %v9051, 62
        %v9980 = vpop.permute.xlu0 %9979
        %9981 = vrot.lane.b32.xlu0 %v9052, 62
        %v9982 = vpop.permute.xlu0 %9981
        %v9983 = vsel %vm2612, %v9930, %v9932
        %v9984 = vsel %vm2612, %v9932, %v9934
        %v9985 = vsel %vm2612, %v9934, %v9936
        %v9986 = vsel %vm2612, %v9936, %v9938
        %v9987 = vsel %vm2612, %v9938, %v9940
        %v9988 = vsel %vm2612, %v9940, %v9942
        %v9989 = vsel %vm2612, %v9942, %v9944
        %v9990 = vsel %vm2612, %v9944, %v9946
        %v9991 = vsel %vm2612, %v9948, %v9950
        %v9992 = vsel %vm2612, %v9950, %v9952
        %v9993 = vsel %vm2612, %v9952, %v9954
        %v9994 = vsel %vm2612, %v9954, %v9956
        %v9995 = vsel %vm2612, %v9956, %v9958
        %v9996 = vsel %vm2612, %v9958, %v9960
        %v9997 = vsel %vm2612, %v9960, %v9962
        %v9998 = vsel %vm2612, %v9962, %v9964
        %v9999 = vsel %vm2612, %v9966, %v9968
        %v10000 = vsel %vm2612, %v9968, %v9970
        %v10001 = vsel %vm2612, %v9970, %v9972
        %v10002 = vsel %vm2612, %v9972, %v9974
        %v10003 = vsel %vm2612, %v9974, %v9976
        %v10004 = vsel %vm2612, %v9976, %v9978
        %v10005 = vsel %vm2612, %v9978, %v9980
        %v10006 = vsel %vm2612, %v9980, %v9982
        %v10031 = vld [vmem:[%s21] sm:$0xff]
        %v10032 = vld [vmem:[%s21 + $0x8] sm:$0xff]
        %v10034 = vsel %vm7998, %v10032, 0
        %10036 = vmatpush.msra.mxu0 %v9623
        %10037 = vmatpush.msra.mxu0 %v9510
        %10038 = vmatpush.msra.mxu0 %v9502
        %10039 = vmatpush.msra.mxu0 %v9494
        %10040 = vmatpush.msra.mxu0 %v9408
        %10041 = vmatpush.msra.mxu0 %v9400
        %10042 = vmatpush.msra.mxu0 %v9392
        %10043 = vmatpush.msra.mxu0 %v9279
        %10044 = vmatpush.msra.mxu0 %v9271
        %10045 = vmatpush.msra.mxu0 %v9263
        %10046 = vmatpush.msra.mxu0 %v9150
        %10047 = vmatpush.msra.mxu0 %v9142
        %10048 = vmatpush.msra.mxu0 %v9134
        %10049 = vmatpush.msra.mxu0 %v8738
        %10050 = vmatpush.msra.mxu0 %v8730
        %10051 = vmatpush.msra.mxu0 %v8722
        %10052 = vmatmul.f32.gmra.mxu0 %v10031
        %v10053 = vpop.f32.mrf.mxu0
        %v10054 = vadd.f32 0.0, %v10053
        %10055 = vdwg.mxu0
        %10056 = vmatpush.msra.mxu0 0.0
        %10057 = vmatpush.msra.mxu0 0.0
        %10058 = vmatpush.msra.mxu0 0.0
        %10059 = vmatpush.msra.mxu0 0.0
        %10060 = vmatpush.msra.mxu0 0.0
        %10061 = vmatpush.msra.mxu0 %v9999
        %10062 = vmatpush.msra.mxu0 %v9991
        %10063 = vmatpush.msra.mxu0 %v9983
        %10064 = vmatpush.msra.mxu0 %v9870
        %10065 = vmatpush.msra.mxu0 %v9862
        %10066 = vmatpush.msra.mxu0 %v9854
        %10067 = vmatpush.msra.mxu0 %v9768
        %10068 = vmatpush.msra.mxu0 %v9760
        %10069 = vmatpush.msra.mxu0 %v9752
        %10070 = vmatpush.msra.mxu0 %v9639
        %10071 = vmatpush.msra.mxu0 %v9631
        %10072 = vmatmul.f32.gmra.mxu0 %v10034
        %v10073 = vpop.f32.mrf.mxu0
        %v10074 = vadd.f32 %v10054, %v10073
        %10075 = vdwg.mxu0
        %10076 = vmatpush.msra.mxu0 %v9624
        %10077 = vmatpush.msra.mxu0 %v9511
        %10078 = vmatpush.msra.mxu0 %v9503
        %10079 = vmatpush.msra.mxu0 %v9495
        %10080 = vmatpush.msra.mxu0 %v9409
        %10081 = vmatpush.msra.mxu0 %v9401
        %10082 = vmatpush.msra.mxu0 %v9393
        %10083 = vmatpush.msra.mxu0 %v9280
        %10084 = vmatpush.msra.mxu0 %v9272
        %10085 = vmatpush.msra.mxu0 %v9264
        %10086 = vmatpush.msra.mxu0 %v9151
        %10087 = vmatpush.msra.mxu0 %v9143
        %10088 = vmatpush.msra.mxu0 %v9135
        %10089 = vmatpush.msra.mxu0 %v8739
        %10090 = vmatpush.msra.mxu0 %v8731
        %10091 = vmatpush.msra.mxu0 %v8723
        %10092 = vmatmul.f32.gmra.mxu0 %v10031
        %v10093 = vpop.f32.mrf.mxu0
        %v10094 = vadd.f32 0.0, %v10093
        %10095 = vdwg.mxu0
        %10096 = vmatpush.msra.mxu0 0.0
        %10097 = vmatpush.msra.mxu0 0.0
        %10098 = vmatpush.msra.mxu0 0.0
        %10099 = vmatpush.msra.mxu0 0.0
        %10100 = vmatpush.msra.mxu0 0.0
        %10101 = vmatpush.msra.mxu0 %v10000
        %10102 = vmatpush.msra.mxu0 %v9992
        %10103 = vmatpush.msra.mxu0 %v9984
        %10104 = vmatpush.msra.mxu0 %v9871
        %10105 = vmatpush.msra.mxu0 %v9863
        %10106 = vmatpush.msra.mxu0 %v9855
        %10107 = vmatpush.msra.mxu0 %v9769
        %10108 = vmatpush.msra.mxu0 %v9761
        %10109 = vmatpush.msra.mxu0 %v9753
        %10110 = vmatpush.msra.mxu0 %v9640
        %10111 = vmatpush.msra.mxu0 %v9632
        %10112 = vmatmul.f32.gmra.mxu0 %v10034
        %v10113 = vpop.f32.mrf.mxu0
        %v10114 = vadd.f32 %v10094, %v10113
        %10115 = vdwg.mxu0
        %10116 = vmatpush.msra.mxu0 %v9625
        %10117 = vmatpush.msra.mxu0 %v9512
        %10118 = vmatpush.msra.mxu0 %v9504
        %10119 = vmatpush.msra.mxu0 %v9496
        %10120 = vmatpush.msra.mxu0 %v9410
        %10121 = vmatpush.msra.mxu0 %v9402
        %10122 = vmatpush.msra.mxu0 %v9394
        %10123 = vmatpush.msra.mxu0 %v9281
        %10124 = vmatpush.msra.mxu0 %v9273
        %10125 = vmatpush.msra.mxu0 %v9265
        %10126 = vmatpush.msra.mxu0 %v9152
        %10127 = vmatpush.msra.mxu0 %v9144
        %10128 = vmatpush.msra.mxu0 %v9136
        %10129 = vmatpush.msra.mxu0 %v8740
        %10130 = vmatpush.msra.mxu0 %v8732
        %10131 = vmatpush.msra.mxu0 %v8724
        %10132 = vmatmul.f32.gmra.mxu0 %v10031
        %v10133 = vpop.f32.mrf.mxu0
        %v10134 = vadd.f32 0.0, %v10133
        %10135 = vdwg.mxu0
        %10136 = vmatpush.msra.mxu0 0.0
        %10137 = vmatpush.msra.mxu0 0.0
        %10138 = vmatpush.msra.mxu0 0.0
        %10139 = vmatpush.msra.mxu0 0.0
        %10140 = vmatpush.msra.mxu0 0.0
        %10141 = vmatpush.msra.mxu0 %v10001
        %10142 = vmatpush.msra.mxu0 %v9993
        %10143 = vmatpush.msra.mxu0 %v9985
        %10144 = vmatpush.msra.mxu0 %v9872
        %10145 = vmatpush.msra.mxu0 %v9864
        %10146 = vmatpush.msra.mxu0 %v9856
        %10147 = vmatpush.msra.mxu0 %v9770
        %10148 = vmatpush.msra.mxu0 %v9762
        %10149 = vmatpush.msra.mxu0 %v9754
        %10150 = vmatpush.msra.mxu0 %v9641
        %10151 = vmatpush.msra.mxu0 %v9633
        %10152 = vmatmul.f32.gmra.mxu0 %v10034
        %v10153 = vpop.f32.mrf.mxu0
        %v10154 = vadd.f32 %v10134, %v10153
        %10155 = vdwg.mxu0
        %10156 = vmatpush.msra.mxu0 %v9626
        %10157 = vmatpush.msra.mxu0 %v9513
        %10158 = vmatpush.msra.mxu0 %v9505
        %10159 = vmatpush.msra.mxu0 %v9497
        %10160 = vmatpush.msra.mxu0 %v9411
        %10161 = vmatpush.msra.mxu0 %v9403
        %10162 = vmatpush.msra.mxu0 %v9395
        %10163 = vmatpush.msra.mxu0 %v9282
        %10164 = vmatpush.msra.mxu0 %v9274
        %10165 = vmatpush.msra.mxu0 %v9266
        %10166 = vmatpush.msra.mxu0 %v9153
        %10167 = vmatpush.msra.mxu0 %v9145
        %10168 = vmatpush.msra.mxu0 %v9137
        %10169 = vmatpush.msra.mxu0 %v8741
        %10170 = vmatpush.msra.mxu0 %v8733
        %10171 = vmatpush.msra.mxu0 %v8725
        %10172 = vmatmul.f32.gmra.mxu0 %v10031
        %v10173 = vpop.f32.mrf.mxu0
        %v10174 = vadd.f32 0.0, %v10173
        %10175 = vdwg.mxu0
        %10176 = vmatpush.msra.mxu0 0.0
        %10177 = vmatpush.msra.mxu0 0.0
        %10178 = vmatpush.msra.mxu0 0.0
        %10179 = vmatpush.msra.mxu0 0.0
        %10180 = vmatpush.msra.mxu0 0.0
        %10181 = vmatpush.msra.mxu0 %v10002
        %10182 = vmatpush.msra.mxu0 %v9994
        %10183 = vmatpush.msra.mxu0 %v9986
        %10184 = vmatpush.msra.mxu0 %v9873
        %10185 = vmatpush.msra.mxu0 %v9865
        %10186 = vmatpush.msra.mxu0 %v9857
        %10187 = vmatpush.msra.mxu0 %v9771
        %10188 = vmatpush.msra.mxu0 %v9763
        %10189 = vmatpush.msra.mxu0 %v9755
        %10190 = vmatpush.msra.mxu0 %v9642
        %10191 = vmatpush.msra.mxu0 %v9634
        %10192 = vmatmul.f32.gmra.mxu0 %v10034
        %v10193 = vpop.f32.mrf.mxu0
        %v10194 = vadd.f32 %v10174, %v10193
        %10195 = vdwg.mxu0
        %10196 = vmatpush.msra.mxu0 %v9627
        %10197 = vmatpush.msra.mxu0 %v9514
        %10198 = vmatpush.msra.mxu0 %v9506
        %10199 = vmatpush.msra.mxu0 %v9498
        %10200 = vmatpush.msra.mxu0 %v9412
        %10201 = vmatpush.msra.mxu0 %v9404
        %10202 = vmatpush.msra.mxu0 %v9396
        %10203 = vmatpush.msra.mxu0 %v9283
        %10204 = vmatpush.msra.mxu0 %v9275
        %10205 = vmatpush.msra.mxu0 %v9267
        %10206 = vmatpush.msra.mxu0 %v9154
        %10207 = vmatpush.msra.mxu0 %v9146
        %10208 = vmatpush.msra.mxu0 %v9138
        %10209 = vmatpush.msra.mxu0 %v8742
        %10210 = vmatpush.msra.mxu0 %v8734
        %10211 = vmatpush.msra.mxu0 %v8726
        %10212 = vmatmul.f32.gmra.mxu0 %v10031
        %v10213 = vpop.f32.mrf.mxu0
        %v10214 = vadd.f32 0.0, %v10213
        %10215 = vdwg.mxu0
        %10216 = vmatpush.msra.mxu0 0.0
        %10217 = vmatpush.msra.mxu0 0.0
        %10218 = vmatpush.msra.mxu0 0.0
        %10219 = vmatpush.msra.mxu0 0.0
        %10220 = vmatpush.msra.mxu0 0.0
        %10221 = vmatpush.msra.mxu0 %v10003
        %10222 = vmatpush.msra.mxu0 %v9995
        %10223 = vmatpush.msra.mxu0 %v9987
        %10224 = vmatpush.msra.mxu0 %v9874
        %10225 = vmatpush.msra.mxu0 %v9866
        %10226 = vmatpush.msra.mxu0 %v9858
        %10227 = vmatpush.msra.mxu0 %v9772
        %10228 = vmatpush.msra.mxu0 %v9764
        %10229 = vmatpush.msra.mxu0 %v9756
        %10230 = vmatpush.msra.mxu0 %v9643
        %10231 = vmatpush.msra.mxu0 %v9635
        %10232 = vmatmul.f32.gmra.mxu0 %v10034
        %v10233 = vpop.f32.mrf.mxu0
        %v10234 = vadd.f32 %v10214, %v10233
        %10235 = vdwg.mxu0
        %10236 = vmatpush.msra.mxu0 %v9628
        %10237 = vmatpush.msra.mxu0 %v9515
        %10238 = vmatpush.msra.mxu0 %v9507
        %10239 = vmatpush.msra.mxu0 %v9499
        %10240 = vmatpush.msra.mxu0 %v9413
        %10241 = vmatpush.msra.mxu0 %v9405
        %10242 = vmatpush.msra.mxu0 %v9397
        %10243 = vmatpush.msra.mxu0 %v9284
        %10244 = vmatpush.msra.mxu0 %v9276
        %10245 = vmatpush.msra.mxu0 %v9268
        %10246 = vmatpush.msra.mxu0 %v9155
        %10247 = vmatpush.msra.mxu0 %v9147
        %10248 = vmatpush.msra.mxu0 %v9139
        %10249 = vmatpush.msra.mxu0 %v8743
        %10250 = vmatpush.msra.mxu0 %v8735
        %10251 = vmatpush.msra.mxu0 %v8727
        %10252 = vmatmul.f32.gmra.mxu0 %v10031
        %v10253 = vpop.f32.mrf.mxu0
        %v10254 = vadd.f32 0.0, %v10253
        %10255 = vdwg.mxu0
        %10256 = vmatpush.msra.mxu0 0.0
        %10257 = vmatpush.msra.mxu0 0.0
        %10258 = vmatpush.msra.mxu0 0.0
        %10259 = vmatpush.msra.mxu0 0.0
        %10260 = vmatpush.msra.mxu0 0.0
        %10261 = vmatpush.msra.mxu0 %v10004
        %10262 = vmatpush.msra.mxu0 %v9996
        %10263 = vmatpush.msra.mxu0 %v9988
        %10264 = vmatpush.msra.mxu0 %v9875
        %10265 = vmatpush.msra.mxu0 %v9867
        %10266 = vmatpush.msra.mxu0 %v9859
        %10267 = vmatpush.msra.mxu0 %v9773
        %10268 = vmatpush.msra.mxu0 %v9765
        %10269 = vmatpush.msra.mxu0 %v9757
        %10270 = vmatpush.msra.mxu0 %v9644
        %10271 = vmatpush.msra.mxu0 %v9636
        %10272 = vmatmul.f32.gmra.mxu0 %v10034
        %v10273 = vpop.f32.mrf.mxu0
        %v10274 = vadd.f32 %v10254, %v10273
        %10275 = vdwg.mxu0
        %10276 = vmatpush.msra.mxu0 %v9629
        %10277 = vmatpush.msra.mxu0 %v9516
        %10278 = vmatpush.msra.mxu0 %v9508
        %10279 = vmatpush.msra.mxu0 %v9500
        %10280 = vmatpush.msra.mxu0 %v9414
        %10281 = vmatpush.msra.mxu0 %v9406
        %10282 = vmatpush.msra.mxu0 %v9398
        %10283 = vmatpush.msra.mxu0 %v9285
        %10284 = vmatpush.msra.mxu0 %v9277
        %10285 = vmatpush.msra.mxu0 %v9269
        %10286 = vmatpush.msra.mxu0 %v9156
        %10287 = vmatpush.msra.mxu0 %v9148
        %10288 = vmatpush.msra.mxu0 %v9140
        %10289 = vmatpush.msra.mxu0 %v8744
        %10290 = vmatpush.msra.mxu0 %v8736
        %10291 = vmatpush.msra.mxu0 %v8728
        %10292 = vmatmul.f32.gmra.mxu0 %v10031
        %v10293 = vpop.f32.mrf.mxu0
        %v10294 = vadd.f32 0.0, %v10293
        %10295 = vdwg.mxu0
        %10296 = vmatpush.msra.mxu0 0.0
        %10297 = vmatpush.msra.mxu0 0.0
        %10298 = vmatpush.msra.mxu0 0.0
        %10299 = vmatpush.msra.mxu0 0.0
        %10300 = vmatpush.msra.mxu0 0.0
        %10301 = vmatpush.msra.mxu0 %v10005
        %10302 = vmatpush.msra.mxu0 %v9997
        %10303 = vmatpush.msra.mxu0 %v9989
        %10304 = vmatpush.msra.mxu0 %v9876
        %10305 = vmatpush.msra.mxu0 %v9868
        %10306 = vmatpush.msra.mxu0 %v9860
        %10307 = vmatpush.msra.mxu0 %v9774
        %10308 = vmatpush.msra.mxu0 %v9766
        %10309 = vmatpush.msra.mxu0 %v9758
        %10310 = vmatpush.msra.mxu0 %v9645
        %10311 = vmatpush.msra.mxu0 %v9637
        %10312 = vmatmul.f32.gmra.mxu0 %v10034
        %v10313 = vpop.f32.mrf.mxu0
        %v10314 = vadd.f32 %v10294, %v10313
        %10315 = vdwg.mxu0
        %10316 = vmatpush.msra.mxu0 %v9630
        %10317 = vmatpush.msra.mxu0 %v9517
        %10318 = vmatpush.msra.mxu0 %v9509
        %10319 = vmatpush.msra.mxu0 %v9501
        %10320 = vmatpush.msra.mxu0 %v9415
        %10321 = vmatpush.msra.mxu0 %v9407
        %10322 = vmatpush.msra.mxu0 %v9399
        %10323 = vmatpush.msra.mxu0 %v9286
        %10324 = vmatpush.msra.mxu0 %v9278
        %10325 = vmatpush.msra.mxu0 %v9270
        %10326 = vmatpush.msra.mxu0 %v9157
        %10327 = vmatpush.msra.mxu0 %v9149
        %10328 = vmatpush.msra.mxu0 %v9141
        %10329 = vmatpush.msra.mxu0 %v8745
        %10330 = vmatpush.msra.mxu0 %v8737
        %10331 = vmatpush.msra.mxu0 %v8729
        %10332 = vmatmul.f32.gmra.mxu0 %v10031
        %v10333 = vpop.f32.mrf.mxu0
        %v10334 = vadd.f32 0.0, %v10333
        %10335 = vdwg.mxu0
        %10336 = vmatpush.msra.mxu0 0.0
        %10337 = vmatpush.msra.mxu0 0.0
        %10338 = vmatpush.msra.mxu0 0.0
        %10339 = vmatpush.msra.mxu0 0.0
        %10340 = vmatpush.msra.mxu0 0.0
        %10341 = vmatpush.msra.mxu0 %v10006
        %10342 = vmatpush.msra.mxu0 %v9998
        %10343 = vmatpush.msra.mxu0 %v9990
        %10344 = vmatpush.msra.mxu0 %v9877
        %10345 = vmatpush.msra.mxu0 %v9869
        %10346 = vmatpush.msra.mxu0 %v9861
        %10347 = vmatpush.msra.mxu0 %v9775
        %10348 = vmatpush.msra.mxu0 %v9767
        %10349 = vmatpush.msra.mxu0 %v9759
        %10350 = vmatpush.msra.mxu0 %v9646
        %10351 = vmatpush.msra.mxu0 %v9638
        %10352 = vmatmul.f32.gmra.mxu0 %v10034
        %v10353 = vpop.f32.mrf.mxu0
        %v10354 = vadd.f32 %v10334, %v10353
        %10355 = vdwg.mxu0
        %v10356 = vld [vmem:[%s22] sm:$0xff]
        %10358 = vset.pattern.permute.xlu0 0
        %10359 = vperm.xlu0 %10358, %v10356
        %v10360 = vpop.permute.xlu0 %10359
        %v10362 = vmul.f32 %v10074, %v10360
        %v10363 = vmul.f32 %v10114, %v10360
        %v10364 = vmul.f32 %v10154, %v10360
        %v10365 = vmul.f32 %v10194, %v10360
        %v10366 = vmul.f32 %v10234, %v10360
        %v10367 = vmul.f32 %v10274, %v10360
        %v10368 = vmul.f32 %v10314, %v10360
        %v10369 = vmul.f32 %v10354, %v10360
        %10370 = vset.pattern.permute.xlu0 1
        %10371 = vperm.xlu0 %10370, %v10356
        %v10372 = vpop.permute.xlu0 %10371
        %v10374 = vadd.f32 %v10362, %v10372
        %v10375 = vadd.f32 %v10363, %v10372
        %v10376 = vadd.f32 %v10364, %v10372
        %v10377 = vadd.f32 %v10365, %v10372
        %v10378 = vadd.f32 %v10366, %v10372
        %v10379 = vadd.f32 %v10367, %v10372
        %v10380 = vadd.f32 %v10368, %v10372
        %v10381 = vadd.f32 %v10369, %v10372
        %v10382 = vmax.f32 %v10374, 0.0
        %v10383 = vmax.f32 %v10375, 0.0
        %v10384 = vmax.f32 %v10376, 0.0
        %v10385 = vmax.f32 %v10377, 0.0
        %v10386 = vmax.f32 %v10378, 0.0
        %v10387 = vmax.f32 %v10379, 0.0
        %v10388 = vmax.f32 %v10380, 0.0
        %v10389 = vmax.f32 %v10381, 0.0
        %10390 = vst [vmem:[%s764] sm:$0xff] %v10382
        %10391 = vst [vmem:[%s764 + $0x8] sm:$0xff] %v10383
        %10392 = vst [vmem:[%s764 + $0x10] sm:$0xff] %v10384
        %10393 = vst [vmem:[%s764 + $0x18] sm:$0xff] %v10385
        %10394 = vst [vmem:[%s764 + $0x20] sm:$0xff] %v10386
        %10395 = vst [vmem:[%s764 + $0x28] sm:$0xff] %v10387
        %10396 = vst [vmem:[%s764 + $0x30] sm:$0xff] %v10388
        %10397 = vst [vmem:[%s764 + $0x38] sm:$0xff] %v10389
        %p10398 = scmp.lt.s32.totalorder %s35, 1
        %s10399 = scalar_select %p10398, %s35, 1
        %s10400 = smul.addr %s10399, 8
        %s10401 = smul.addr %s10400, 8
        %s10402 = scalar_lea.vmem %s23, %s10401
        // Predicated region
        $region117: #{decoder_forward.1} parent=111 // pred_check
          %p10403 = pneg %p551
        $region118: #{decoder_forward.1} parent=111 // pred_check_branch
          %10405 = sbr.rel (%p10403) target = $region120
        $region119: #{decoder_forward.1} parent=111 // pred_region
          _
        $region120: #{decoder_forward.1} parent=111 // pred_fallthru
          _
      $region112: #{decoder_forward.1} parent=5 // pred_fallthru
        _
      %p10406 = scmp.le.s32.totalorder 2, %s30
      // Predicated region
      $region121: #{decoder_forward.1} parent=5 // pred_check
        %p10407 = pneg %p10406
      $region122: #{decoder_forward.1} parent=5 // pred_check_branch
        %10409 = sbr.rel (%p10407) target = $region124
      $region123: #{decoder_forward.1} parent=5 // pred_region
        %s10410 = ssub.s32 %s30, 2
        // Predicated region
        $region125: #{decoder_forward.1} parent=123 // pred_check
          %p10411 = pneg %p557
        $region126: #{decoder_forward.1} parent=123 // pred_check_branch
          %10413 = sbr.rel (%p10411) target = $region128
        $region127: #{decoder_forward.1} parent=123 // pred_region
          %p10414 = scmp.lt.s32.totalorder %s36, 1
          %s10415 = scalar_select %p10414, %s36, 1
          %s10416 = smul.addr %s10415, 8
          %s10417 = smul.addr %s10416, 8
          %s10418 = scalar_lea.vmem %s23, %s10417
        $region128: #{decoder_forward.1} parent=123 // pred_fallthru
          _
      $region124: #{decoder_forward.1} parent=5 // pred_fallthru
        _
    $region6: #{decoder_forward.1} parent=1 // loop_footer
      %s34 = sadd.s32 1, %s30
    $region7: #{decoder_forward.1} parent=1 // loop_footer_branch
      %29 = sbr.rel target = $region3
    $region8: #{decoder_forward.1} parent=1 // loop_exit
      _
    %10419 = vsyncpa [#allocation4], 1
    %s10420 = scalar_lea.sflag [#allocation4], 1
    %10421 = vsyncpa %s10420, 1

</llo_original>
